<compile_context>
chip_gen: v5e
topology: v5e:2x2
jax: 0.10.0
libtpu: 0.0.40
codegen_flags: <defaults>
</compile_context>

<pallas_src>
import functools

import jax
import jax.numpy as jnp
from jax.experimental import pallas as pl
from jax.experimental.pallas import tpu as pltpu

_CIN1_PAD = 8  # conv1 input channels padded 3 -> 8 so im2col slabs are sublane-aligned


def _round_up(x, m):
    return ((x + m - 1) // m) * m


def _conv_per_kh(cref, w_ref, b_ref, *, KH, KW, Wp, Lc, off0, relu):
    """One conv layer as KH accumulated MXU matmuls over per-kh im2col slabs.

    cref  : (Cin, SEG) flat padded canvas, valid pixel (y,x) at lane BASE + y*Wp + x,
            zero in (at least) the P-ring around the valid region.
    w_ref : (KH, Cout, KW*Cin) weights, last axis ordered (kw, cin).
    b_ref : (Cout, 1)
    off0  : BASE - P*(Wp+1); tap (kh, kw) reads lane p + off0 + kh*Wp + kw.
    Output value is in "image-origin" lane coords: pixel (y,x) at lane y*Wp + x.
    """
    acc = None
    for kh in range(KH):
        base = off0 + kh * Wp
        pieces = [cref[:, base + kw: base + kw + Lc] for kw in range(KW)]
        slab = pieces[0] if KW == 1 else jnp.concatenate(pieces, axis=0)
        part = jnp.dot(w_ref[kh], slab, preferred_element_type=jnp.float32)
        acc = part if acc is None else acc + part
    acc = acc + b_ref[...]
    return jnp.maximum(acc, 0.0) if relu else acc


def _model_b_kernel(x_ref, gt_ref, g_ref, w1_ref, b1_ref, w2_ref, b2_ref,
                    w3_ref, b3_ref, w4_ref, b4_ref, o_ref, c1_ref, c34_ref,
                    *, W, Wp, Lc, BASE, SEG):
    f32 = jnp.float32
    lane = jax.lax.broadcasted_iota(jnp.int32, (1, Lc), 1)
    col_ok = (lane % Wp) < W        # valid-column mask in image-origin lane coords

    # ---- input scatter (stride W -> Wp, exact zero padding) via selection matmul
    x8 = x_ref[0].astype(f32)                                       # (8, HW)
    v0 = jnp.dot(x8, gt_ref[...], preferred_element_type=f32)       # (8, Lc)
    c1_ref[:, 0:BASE] = jnp.zeros((c1_ref.shape[0], BASE), f32)
    c1_ref[:, BASE + Lc:SEG] = jnp.zeros((c1_ref.shape[0], SEG - BASE - Lc), f32)
    c1_ref[:, BASE:BASE + Lc] = v0

    # ---- conv1 9x9 pad 4 + ReLU
    a1 = _conv_per_kh(c1_ref, w1_ref, b1_ref, KH=9, KW=9, Wp=Wp, Lc=Lc,
                      off0=BASE - 4 * (Wp + 1), relu=True)          # (64, Lc)

    # ---- conv2 1x1 + ReLU (pointwise on the value, stays in the same domain)
    a2 = jnp.dot(w2_ref[...], a1, preferred_element_type=f32) + b2_ref[...]
    a2 = jnp.maximum(a2, 0.0)                                       # (32, Lc)

    # ---- re-center a2 as conv3's zero-ringed padded input (one masked wide store)
    c34_ref[:, 0:BASE] = jnp.zeros((c34_ref.shape[0], BASE), f32)
    c34_ref[:, BASE + Lc:SEG] = jnp.zeros((c34_ref.shape[0], SEG - BASE - Lc), f32)
    c34_ref[:, BASE:BASE + Lc] = jnp.where(col_ok, a2, 0.0)

    # ---- conv3 3x3 pad 1 + ReLU
    a3 = _conv_per_kh(c34_ref, w3_ref, b3_ref, KH=3, KW=3, Wp=Wp, Lc=Lc,
                      off0=BASE - 1 * (Wp + 1), relu=True)          # (32, Lc)

    # ---- conv4 5x5 pad 2 (no ReLU); canvas edge zero blocks are still valid
    c34_ref[:, BASE:BASE + Lc] = jnp.where(col_ok, a3, 0.0)
    a4 = _conv_per_kh(c34_ref, w4_ref, b4_ref, KH=5, KW=5, Wp=Wp, Lc=Lc,
                      off0=BASE - 2 * (Wp + 1), relu=False)         # (3, Lc)

    # ---- output gather (stride Wp -> W) via selection matmul: one dense store
    o_ref[0] = jnp.dot(a4, g_ref[...],
                       preferred_element_type=f32).astype(o_ref.dtype)


def _per_kh_weight(w_hwio, cin_pad=None):
    """(KH, KW, Cin, Cout) HWIO -> (KH, Cout, KW*Cin), last axis (kw, cin) order."""
    KH, KW, Cin, Cout = w_hwio.shape
    if cin_pad is not None and cin_pad > Cin:
        w_hwio = jnp.pad(w_hwio, ((0, 0), (0, 0), (0, cin_pad - Cin), (0, 0)))
        Cin = cin_pad
    return jnp.transpose(w_hwio, (0, 3, 1, 2)).reshape(KH, Cout, KW * Cin)


def model_b_forward(x_nchw, params):
    """Forward pass of Model_B. Input/output are NCHW, like the PyTorch module."""
    N, C, H, W = x_nchw.shape
    assert C == 3
    HW = H * W

    # Unified canvas geometry (shared by every layer).
    Wp = W + 8                                   # row stride of the padded domain
    Lc = _round_up((H - 1) * Wp + W, 128)        # computed lanes per image
    BASE = _round_up(4 * (Wp + 1), 128)          # lane-aligned store offset (>= 4-ring)
    SEG = BASE + Lc + _round_up(4 * Wp + 4, 128)  # canvas width incl. read slack

    # 0/1 selection matrices: G gathers valid lanes (Wp-strided -> dense),
    # GT scatters dense rows into the Wp-strided domain with exact zero padding.
    q = jnp.arange(HW)
    rows = (q // W) * Wp + (q % W)
    G = jnp.zeros((Lc, HW), jnp.float32).at[rows, q].set(1.0)
    GT = G.T

    w1, b1 = params["conv1"]
    w2, b2 = params["conv2"]
    w3, b3 = params["conv3"]
    w4, b4 = params["conv4"]

    w1f = _per_kh_weight(w1, _CIN1_PAD)          # (9, 64, 72)
    w2f = _per_kh_weight(w2)[0]                  # (32, 64)
    w3f = _per_kh_weight(w3)                     # (3, 32, 96)
    w4f = _per_kh_weight(w4)                     # (5, 32, 160)
    b1c, b2c, b3c, b4c = (b.reshape(-1, 1) for b in (b1, b2, b3, b4))

    # NCHW input, flattened and channel-padded 3 -> 8 (tiny XLA pad, 16 KB).
    x8 = jnp.pad(x_nchw.reshape(N, C, HW), ((0, 0), (0, _CIN1_PAD - C), (0, 0)))

    def cmap(a):
        return pl.BlockSpec(a.shape, lambda n, _nd=a.ndim: (0,) * _nd)

    out = pl.pallas_call(
        functools.partial(_model_b_kernel, W=W, Wp=Wp, Lc=Lc, BASE=BASE, SEG=SEG),
        out_shape=jax.ShapeDtypeStruct((N, 3, HW), x_nchw.dtype),
        grid_spec=pltpu.PrefetchScalarGridSpec(
            num_scalar_prefetch=0,
            grid=(N,),
            in_specs=[
                pl.BlockSpec((1, _CIN1_PAD, HW), lambda n: (n, 0, 0)),
                cmap(GT), cmap(G),
                cmap(w1f), cmap(b1c),
                cmap(w2f), cmap(b2c),
                cmap(w3f), cmap(b3c),
                cmap(w4f), cmap(b4c),
            ],
            out_specs=pl.BlockSpec((1, 3, HW), lambda n: (n, 0, 0)),
            scratch_shapes=[
                pltpu.VMEM((_CIN1_PAD, SEG), jnp.float32),   # conv1 input canvas
                pltpu.VMEM((32, SEG), jnp.float32),          # conv3/conv4 input canvas
            ],
        ),
        compiler_params=pltpu.CompilerParams(
            dimension_semantics=("parallel",)),
    )(x8, GT, G, w1f, b1c, w2f, b2c, w3f, b3c, w4f, b4c)

    return out.reshape(N, 3, H, W)


def init_params(key):
    """Deterministic synthetic weights with the Model_B shapes (KH,KW,Cin,Cout)."""
    specs = [
        ("conv1", 9, 3, 64),
        ("conv2", 1, 64, 32),
        ("conv3", 3, 32, 32),
        ("conv4", 5, 32, 3),
    ]
    params = {}
    for name, k, cin, cout in specs:
        key, kw_key, kb_key = jax.random.split(key, 3)
        fan_in = cin * k * k
        scale = 1.0 / jnp.sqrt(jnp.float32(fan_in))
        w = jax.random.uniform(kw_key, (k, k, cin, cout), jnp.float32,
                               minval=-scale, maxval=scale)
        b = jax.random.uniform(kb_key, (cout,), jnp.float32,
                               minval=-scale, maxval=scale)
        params[name] = (w, b)
    return params


if __name__ == "__main__":
    key = jax.random.PRNGKey(0)
    pkey, xkey = jax.random.split(key)
    params = init_params(pkey)

    # Small deterministic input consistent with Conv2d(3, ...): N=2, C=3, H=W=16.
    x = jax.random.normal(xkey, (2, 3, 16, 16), dtype=jnp.float32)

    fwd = jax.jit(model_b_forward)
    out = jax.block_until_ready(fwd(x, params))
    assert out.shape == (2, 3, 16, 16), out.shape

    # Sanity check against XLA's native conv on the same params.
    def ref_conv(x_nhwc, w, b, pad, relu):
        y = jax.lax.conv_general_dilated(
            x_nhwc, w, window_strides=(1, 1),
            padding=((pad, pad), (pad, pad)),
            dimension_numbers=("NHWC", "HWIO", "NHWC"))
        y = y + b[None, None, None, :]
        return jnp.maximum(y, 0.0) if relu else y

    xr = jnp.transpose(x, (0, 2, 3, 1))
    xr = ref_conv(xr, *params["conv1"], 4, True)
    xr = ref_conv(xr, *params["conv2"], 0, True)
    xr = ref_conv(xr, *params["conv3"], 1, True)
    xr = ref_conv(xr, *params["conv4"], 2, False)
    ref = jnp.transpose(xr, (0, 3, 1, 2))
    err = float(jnp.max(jnp.abs(out - ref)))
    assert err < 2e-3, err

    print("KERNEL_OK")
</pallas_src>

<mosaic_0001>
module attributes {stable_mosaic.version = 11 : i64} {
  func.func @_model_b_kernel(%arg0: i32, %arg1: memref<1x8x256xf32, #tpu.memory_space<vmem>>, %arg2: memref<256x384xf32, #tpu.memory_space<vmem>>, %arg3: memref<384x256xf32, #tpu.memory_space<vmem>>, %arg4: memref<9x64x72xf32, #tpu.memory_space<vmem>>, %arg5: memref<64x1xf32, #tpu.memory_space<vmem>>, %arg6: memref<32x64xf32, #tpu.memory_space<vmem>>, %arg7: memref<32x1xf32, #tpu.memory_space<vmem>>, %arg8: memref<3x32x96xf32, #tpu.memory_space<vmem>>, %arg9: memref<32x1xf32, #tpu.memory_space<vmem>>, %arg10: memref<5x3x160xf32, #tpu.memory_space<vmem>>, %arg11: memref<3x1xf32, #tpu.memory_space<vmem>>, %arg12: memref<1x3x256xf32, #tpu.memory_space<vmem>>, %arg13: memref<8x640xf32, #tpu.memory_space<vmem>>, %arg14: memref<32x640xf32, #tpu.memory_space<vmem>>) attributes {dimension_semantics = [#tpu.dimension_semantics<parallel>], iteration_bounds = array<i64: 2>, scalar_prefetch = 0 : i64, scratch_operands = 2 : i64, tpu.core_type = #tpu.core_type<tc>, window_params = [{transform_indices = @transform_0, window_bounds = array<i64: 1, 8, 256>}, {pipeline_mode = #tpu.pipeline_mode<synchronous>, transform_indices = @transform_1, window_bounds = array<i64: 256, 384>}, {pipeline_mode = #tpu.pipeline_mode<synchronous>, transform_indices = @transform_2, window_bounds = array<i64: 384, 256>}, {pipeline_mode = #tpu.pipeline_mode<synchronous>, transform_indices = @transform_3, window_bounds = array<i64: 9, 64, 72>}, {pipeline_mode = #tpu.pipeline_mode<synchronous>, transform_indices = @transform_4, window_bounds = array<i64: 64, 1>}, {pipeline_mode = #tpu.pipeline_mode<synchronous>, transform_indices = @transform_5, window_bounds = array<i64: 32, 64>}, {pipeline_mode = #tpu.pipeline_mode<synchronous>, transform_indices = @transform_6, window_bounds = array<i64: 32, 1>}, {pipeline_mode = #tpu.pipeline_mode<synchronous>, transform_indices = @transform_7, window_bounds = array<i64: 3, 32, 96>}, {pipeline_mode = #tpu.pipeline_mode<synchronous>, transform_indices = @transform_8, window_bounds = array<i64: 32, 1>}, {pipeline_mode = #tpu.pipeline_mode<synchronous>, transform_indices = @transform_9, window_bounds = array<i64: 5, 3, 160>}, {pipeline_mode = #tpu.pipeline_mode<synchronous>, transform_indices = @transform_10, window_bounds = array<i64: 3, 1>}, {transform_indices = @transform_11, window_bounds = array<i64: 1, 3, 256>}]} {
    %0 = tpu.iota {dimensions = array<i32: 1>} : vector<1x384xi32>
    %c24_i32 = arith.constant 24 : i32
    %c0_i32 = arith.constant 0 : i32
    %1 = arith.cmpi eq, %c24_i32, %c0_i32 : i32
    %c1_i32 = arith.constant 1 : i32
    %2 = arith.select %1, %c1_i32, %c24_i32 : i32
    %3 = vector.broadcast %2 : i32 to vector<1x384xi32>
    %4 = arith.remsi %0, %3 : vector<1x384xi32>
    %c0_i32_0 = arith.constant 0 : i32
    %5 = vector.broadcast %c0_i32_0 : i32 to vector<1x384xi32>
    %6 = arith.cmpi ne, %4, %5 : vector<1x384xi32>
    %c0_i32_1 = arith.constant 0 : i32
    %7 = vector.broadcast %c0_i32_1 : i32 to vector<1x384xi32>
    %8 = arith.cmpi slt, %4, %7 : vector<1x384xi32>
    %c0_i32_2 = arith.constant 0 : i32
    %9 = arith.cmpi slt, %2, %c0_i32_2 : i32
    %10 = vector.broadcast %9 : i1 to vector<1x384xi1>
    %11 = vector.broadcast %10 : vector<1x384xi1> to vector<1x384xi1>
    %12 = arith.xori %8, %11 : vector<1x384xi1>
    %13 = arith.andi %12, %6 : vector<1x384xi1>
    %14 = vector.broadcast %2 : i32 to vector<1x384xi32>
    %15 = arith.addi %4, %14 : vector<1x384xi32>
    %16 = arith.select %13, %15, %4 : vector<1x384xi1>, vector<1x384xi32>
    %c16_i32 = arith.constant 16 : i32
    %17 = vector.broadcast %c16_i32 : i32 to vector<1x384xi32>
    %18 = arith.cmpi slt, %16, %17 : vector<1x384xi32>
    %c0 = arith.constant 0 : index
    %c0_3 = arith.constant 0 : index
    %c0_4 = arith.constant 0 : index
    %19 = vector.load %arg1[%c0, %c0_3, %c0_4] : memref<1x8x256xf32, #tpu.memory_space<vmem>>, vector<1x8x256xf32>
    %20 = vector.shape_cast %19 : vector<1x8x256xf32> to vector<8x256xf32>
    %c0_5 = arith.constant 0 : index
    %c0_6 = arith.constant 0 : index
    %21 = vector.load %arg2[%c0_5, %c0_6] : memref<256x384xf32, #tpu.memory_space<vmem>>, vector<256x384xf32>
    %cst = arith.constant dense<0.000000e+00> : vector<8x384xf32>
    %22 = tpu.matmul %20, %21, %cst {dimension_numbers = #tpu.dot_dimension_numbers<[1], [0], [0], [1], [0, 0, 1, 1], [], []>} : vector<8x256xf32>, vector<256x384xf32>, vector<8x384xf32> -> vector<8x384xf32>
    %cst_7 = arith.constant 0.000000e+00 : f32
    %23 = vector.broadcast %cst_7 : f32 to vector<8x128xf32>
    %c0_8 = arith.constant 0 : index
    %c0_9 = arith.constant 0 : index
    %24 = vector.load %arg13[%c0_8, %c0_9] : memref<8x640xf32, #tpu.memory_space<vmem>>, vector<8x128xf32>
    tpu.vector_store %arg13[%c0_8, %c0_9], %23 {strides = array<i32>} : memref<8x640xf32, #tpu.memory_space<vmem>>, vector<8x128xf32>,
    %cst_10 = arith.constant 0.000000e+00 : f32
    %25 = vector.broadcast %cst_10 : f32 to vector<8x128xf32>
    %c0_11 = arith.constant 0 : index
    %c512 = arith.constant 512 : index
    %26 = vector.load %arg13[%c0_11, %c512] : memref<8x640xf32, #tpu.memory_space<vmem>>, vector<8x128xf32>
    tpu.vector_store %arg13[%c0_11, %c512], %25 {strides = array<i32>} : memref<8x640xf32, #tpu.memory_space<vmem>>, vector<8x128xf32>,
    %c0_12 = arith.constant 0 : index
    %c128 = arith.constant 128 : index
    %27 = vector.load %arg13[%c0_12, %c128] : memref<8x640xf32, #tpu.memory_space<vmem>>, vector<8x384xf32>
    tpu.vector_store %arg13[%c0_12, %c128], %22 {strides = array<i32>} : memref<8x640xf32, #tpu.memory_space<vmem>>, vector<8x384xf32>,
    %c0_13 = arith.constant 0 : index
    %c28 = arith.constant 28 : index
    %28 = vector.load %arg13[%c0_13, %c28] : memref<8x640xf32, #tpu.memory_space<vmem>>, vector<8x384xf32>
    %c0_14 = arith.constant 0 : index
    %c29 = arith.constant 29 : index
    %29 = vector.load %arg13[%c0_14, %c29] : memref<8x640xf32, #tpu.memory_space<vmem>>, vector<8x384xf32>
    %c0_15 = arith.constant 0 : index
    %c30 = arith.constant 30 : index
    %30 = vector.load %arg13[%c0_15, %c30] : memref<8x640xf32, #tpu.memory_space<vmem>>, vector<8x384xf32>
    %c0_16 = arith.constant 0 : index
    %c31 = arith.constant 31 : index
    %31 = vector.load %arg13[%c0_16, %c31] : memref<8x640xf32, #tpu.memory_space<vmem>>, vector<8x384xf32>
    %c0_17 = arith.constant 0 : index
    %c32 = arith.constant 32 : index
    %32 = vector.load %arg13[%c0_17, %c32] : memref<8x640xf32, #tpu.memory_space<vmem>>, vector<8x384xf32>
    %c0_18 = arith.constant 0 : index
    %c33 = arith.constant 33 : index
    %33 = vector.load %arg13[%c0_18, %c33] : memref<8x640xf32, #tpu.memory_space<vmem>>, vector<8x384xf32>
    %c0_19 = arith.constant 0 : index
    %c34 = arith.constant 34 : index
    %34 = vector.load %arg13[%c0_19, %c34] : memref<8x640xf32, #tpu.memory_space<vmem>>, vector<8x384xf32>
    %c0_20 = arith.constant 0 : index
    %c35 = arith.constant 35 : index
    %35 = vector.load %arg13[%c0_20, %c35] : memref<8x640xf32, #tpu.memory_space<vmem>>, vector<8x384xf32>
    %c0_21 = arith.constant 0 : index
    %c36 = arith.constant 36 : index
    %36 = vector.load %arg13[%c0_21, %c36] : memref<8x640xf32, #tpu.memory_space<vmem>>, vector<8x384xf32>
    %37 = tpu.concatenate %28, %29, %30, %31, %32, %33, %34, %35, %36 in 0 : vector<8x384xf32>, vector<8x384xf32>, vector<8x384xf32>, vector<8x384xf32>, vector<8x384xf32>, vector<8x384xf32>, vector<8x384xf32>, vector<8x384xf32>, vector<8x384xf32> -> vector<72x384xf32>
    %c0_22 = arith.constant 0 : index
    %c0_23 = arith.constant 0 : index
    %c0_24 = arith.constant 0 : index
    %38 = vector.load %arg4[%c0_22, %c0_23, %c0_24] : memref<9x64x72xf32, #tpu.memory_space<vmem>>, vector<1x64x72xf32>
    %39 = vector.shape_cast %38 : vector<1x64x72xf32> to vector<64x72xf32>
    %cst_25 = arith.constant dense<0.000000e+00> : vector<64x384xf32>
    %40 = tpu.matmul %39, %37, %cst_25 {dimension_numbers = #tpu.dot_dimension_numbers<[1], [0], [0], [1], [0, 0, 1, 1], [], []>} : vector<64x72xf32>, vector<72x384xf32>, vector<64x384xf32> -> vector<64x384xf32>
    %c0_26 = arith.constant 0 : index
    %c52 = arith.constant 52 : index
    %41 = vector.load %arg13[%c0_26, %c52] : memref<8x640xf32, #tpu.memory_space<vmem>>, vector<8x384xf32>
    %c0_27 = arith.constant 0 : index
    %c53 = arith.constant 53 : index
    %42 = vector.load %arg13[%c0_27, %c53] : memref<8x640xf32, #tpu.memory_space<vmem>>, vector<8x384xf32>
    %c0_28 = arith.constant 0 : index
    %c54 = arith.constant 54 : index
    %43 = vector.load %arg13[%c0_28, %c54] : memref<8x640xf32, #tpu.memory_space<vmem>>, vector<8x384xf32>
    %c0_29 = arith.constant 0 : index
    %c55 = arith.constant 55 : index
    %44 = vector.load %arg13[%c0_29, %c55] : memref<8x640xf32, #tpu.memory_space<vmem>>, vector<8x384xf32>
    %c0_30 = arith.constant 0 : index
    %c56 = arith.constant 56 : index
    %45 = vector.load %arg13[%c0_30, %c56] : memref<8x640xf32, #tpu.memory_space<vmem>>, vector<8x384xf32>
    %c0_31 = arith.constant 0 : index
    %c57 = arith.constant 57 : index
    %46 = vector.load %arg13[%c0_31, %c57] : memref<8x640xf32, #tpu.memory_space<vmem>>, vector<8x384xf32>
    %c0_32 = arith.constant 0 : index
    %c58 = arith.constant 58 : index
    %47 = vector.load %arg13[%c0_32, %c58] : memref<8x640xf32, #tpu.memory_space<vmem>>, vector<8x384xf32>
    %c0_33 = arith.constant 0 : index
    %c59 = arith.constant 59 : index
    %48 = vector.load %arg13[%c0_33, %c59] : memref<8x640xf32, #tpu.memory_space<vmem>>, vector<8x384xf32>
    %c0_34 = arith.constant 0 : index
    %c60 = arith.constant 60 : index
    %49 = vector.load %arg13[%c0_34, %c60] : memref<8x640xf32, #tpu.memory_space<vmem>>, vector<8x384xf32>
    %50 = tpu.concatenate %41, %42, %43, %44, %45, %46, %47, %48, %49 in 0 : vector<8x384xf32>, vector<8x384xf32>, vector<8x384xf32>, vector<8x384xf32>, vector<8x384xf32>, vector<8x384xf32>, vector<8x384xf32>, vector<8x384xf32>, vector<8x384xf32> -> vector<72x384xf32>
    %c1 = arith.constant 1 : index
    %c0_35 = arith.constant 0 : index
    %c0_36 = arith.constant 0 : index
    %51 = vector.load %arg4[%c1, %c0_35, %c0_36] : memref<9x64x72xf32, #tpu.memory_space<vmem>>, vector<1x64x72xf32>
    %52 = vector.shape_cast %51 : vector<1x64x72xf32> to vector<64x72xf32>
    %cst_37 = arith.constant dense<0.000000e+00> : vector<64x384xf32>
    %53 = tpu.matmul %52, %50, %cst_37 {dimension_numbers = #tpu.dot_dimension_numbers<[1], [0], [0], [1], [0, 0, 1, 1], [], []>} : vector<64x72xf32>, vector<72x384xf32>, vector<64x384xf32> -> vector<64x384xf32>
    %54 = arith.addf %40, %53 : vector<64x384xf32>
    %c0_38 = arith.constant 0 : index
    %c76 = arith.constant 76 : index
    %55 = vector.load %arg13[%c0_38, %c76] : memref<8x640xf32, #tpu.memory_space<vmem>>, vector<8x384xf32>
    %c0_39 = arith.constant 0 : index
    %c77 = arith.constant 77 : index
    %56 = vector.load %arg13[%c0_39, %c77] : memref<8x640xf32, #tpu.memory_space<vmem>>, vector<8x384xf32>
    %c0_40 = arith.constant 0 : index
    %c78 = arith.constant 78 : index
    %57 = vector.load %arg13[%c0_40, %c78] : memref<8x640xf32, #tpu.memory_space<vmem>>, vector<8x384xf32>
    %c0_41 = arith.constant 0 : index
    %c79 = arith.constant 79 : index
    %58 = vector.load %arg13[%c0_41, %c79] : memref<8x640xf32, #tpu.memory_space<vmem>>, vector<8x384xf32>
    %c0_42 = arith.constant 0 : index
    %c80 = arith.constant 80 : index
    %59 = vector.load %arg13[%c0_42, %c80] : memref<8x640xf32, #tpu.memory_space<vmem>>, vector<8x384xf32>
    %c0_43 = arith.constant 0 : index
    %c81 = arith.constant 81 : index
    %60 = vector.load %arg13[%c0_43, %c81] : memref<8x640xf32, #tpu.memory_space<vmem>>, vector<8x384xf32>
    %c0_44 = arith.constant 0 : index
    %c82 = arith.constant 82 : index
    %61 = vector.load %arg13[%c0_44, %c82] : memref<8x640xf32, #tpu.memory_space<vmem>>, vector<8x384xf32>
    %c0_45 = arith.constant 0 : index
    %c83 = arith.constant 83 : index
    %62 = vector.load %arg13[%c0_45, %c83] : memref<8x640xf32, #tpu.memory_space<vmem>>, vector<8x384xf32>
    %c0_46 = arith.constant 0 : index
    %c84 = arith.constant 84 : index
    %63 = vector.load %arg13[%c0_46, %c84] : memref<8x640xf32, #tpu.memory_space<vmem>>, vector<8x384xf32>
    %64 = tpu.concatenate %55, %56, %57, %58, %59, %60, %61, %62, %63 in 0 : vector<8x384xf32>, vector<8x384xf32>, vector<8x384xf32>, vector<8x384xf32>, vector<8x384xf32>, vector<8x384xf32>, vector<8x384xf32>, vector<8x384xf32>, vector<8x384xf32> -> vector<72x384xf32>
    %c2 = arith.constant 2 : index
    %c0_47 = arith.constant 0 : index
    %c0_48 = arith.constant 0 : index
    %65 = vector.load %arg4[%c2, %c0_47, %c0_48] : memref<9x64x72xf32, #tpu.memory_space<vmem>>, vector<1x64x72xf32>
    %66 = vector.shape_cast %65 : vector<1x64x72xf32> to vector<64x72xf32>
    %cst_49 = arith.constant dense<0.000000e+00> : vector<64x384xf32>
    %67 = tpu.matmul %66, %64, %cst_49 {dimension_numbers = #tpu.dot_dimension_numbers<[1], [0], [0], [1], [0, 0, 1, 1], [], []>} : vector<64x72xf32>, vector<72x384xf32>, vector<64x384xf32> -> vector<64x384xf32>
    %68 = arith.addf %54, %67 : vector<64x384xf32>
    %c0_50 = arith.constant 0 : index
    %c100 = arith.constant 100 : index
    %69 = vector.load %arg13[%c0_50, %c100] : memref<8x640xf32, #tpu.memory_space<vmem>>, vector<8x384xf32>
    %c0_51 = arith.constant 0 : index
    %c101 = arith.constant 101 : index
    %70 = vector.load %arg13[%c0_51, %c101] : memref<8x640xf32, #tpu.memory_space<vmem>>, vector<8x384xf32>
    %c0_52 = arith.constant 0 : index
    %c102 = arith.constant 102 : index
    %71 = vector.load %arg13[%c0_52, %c102] : memref<8x640xf32, #tpu.memory_space<vmem>>, vector<8x384xf32>
    %c0_53 = arith.constant 0 : index
    %c103 = arith.constant 103 : index
    %72 = vector.load %arg13[%c0_53, %c103] : memref<8x640xf32, #tpu.memory_space<vmem>>, vector<8x384xf32>
    %c0_54 = arith.constant 0 : index
    %c104 = arith.constant 104 : index
    %73 = vector.load %arg13[%c0_54, %c104] : memref<8x640xf32, #tpu.memory_space<vmem>>, vector<8x384xf32>
    %c0_55 = arith.constant 0 : index
    %c105 = arith.constant 105 : index
    %74 = vector.load %arg13[%c0_55, %c105] : memref<8x640xf32, #tpu.memory_space<vmem>>, vector<8x384xf32>
    %c0_56 = arith.constant 0 : index
    %c106 = arith.constant 106 : index
    %75 = vector.load %arg13[%c0_56, %c106] : memref<8x640xf32, #tpu.memory_space<vmem>>, vector<8x384xf32>
    %c0_57 = arith.constant 0 : index
    %c107 = arith.constant 107 : index
    %76 = vector.load %arg13[%c0_57, %c107] : memref<8x640xf32, #tpu.memory_space<vmem>>, vector<8x384xf32>
    %c0_58 = arith.constant 0 : index
    %c108 = arith.constant 108 : index
    %77 = vector.load %arg13[%c0_58, %c108] : memref<8x640xf32, #tpu.memory_space<vmem>>, vector<8x384xf32>
    %78 = tpu.concatenate %69, %70, %71, %72, %73, %74, %75, %76, %77 in 0 : vector<8x384xf32>, vector<8x384xf32>, vector<8x384xf32>, vector<8x384xf32>, vector<8x384xf32>, vector<8x384xf32>, vector<8x384xf32>, vector<8x384xf32>, vector<8x384xf32> -> vector<72x384xf32>
    %c3 = arith.constant 3 : index
    %c0_59 = arith.constant 0 : index
    %c0_60 = arith.constant 0 : index
    %79 = vector.load %arg4[%c3, %c0_59, %c0_60] : memref<9x64x72xf32, #tpu.memory_space<vmem>>, vector<1x64x72xf32>
    %80 = vector.shape_cast %79 : vector<1x64x72xf32> to vector<64x72xf32>
    %cst_61 = arith.constant dense<0.000000e+00> : vector<64x384xf32>
    %81 = tpu.matmul %80, %78, %cst_61 {dimension_numbers = #tpu.dot_dimension_numbers<[1], [0], [0], [1], [0, 0, 1, 1], [], []>} : vector<64x72xf32>, vector<72x384xf32>, vector<64x384xf32> -> vector<64x384xf32>
    %82 = arith.addf %68, %81 : vector<64x384xf32>
    %c0_62 = arith.constant 0 : index
    %c124 = arith.constant 124 : index
    %83 = vector.load %arg13[%c0_62, %c124] : memref<8x640xf32, #tpu.memory_space<vmem>>, vector<8x384xf32>
    %c0_63 = arith.constant 0 : index
    %c125 = arith.constant 125 : index
    %84 = vector.load %arg13[%c0_63, %c125] : memref<8x640xf32, #tpu.memory_space<vmem>>, vector<8x384xf32>
    %c0_64 = arith.constant 0 : index
    %c126 = arith.constant 126 : index
    %85 = vector.load %arg13[%c0_64, %c126] : memref<8x640xf32, #tpu.memory_space<vmem>>, vector<8x384xf32>
    %c0_65 = arith.constant 0 : index
    %c127 = arith.constant 127 : index
    %86 = vector.load %arg13[%c0_65, %c127] : memref<8x640xf32, #tpu.memory_space<vmem>>, vector<8x384xf32>
    %c0_66 = arith.constant 0 : index
    %c128_67 = arith.constant 128 : index
    %87 = vector.load %arg13[%c0_66, %c128_67] : memref<8x640xf32, #tpu.memory_space<vmem>>, vector<8x384xf32>
    %c0_68 = arith.constant 0 : index
    %c129 = arith.constant 129 : index
    %88 = vector.load %arg13[%c0_68, %c129] : memref<8x640xf32, #tpu.memory_space<vmem>>, vector<8x384xf32>
    %c0_69 = arith.constant 0 : index
    %c130 = arith.constant 130 : index
    %89 = vector.load %arg13[%c0_69, %c130] : memref<8x640xf32, #tpu.memory_space<vmem>>, vector<8x384xf32>
    %c0_70 = arith.constant 0 : index
    %c131 = arith.constant 131 : index
    %90 = vector.load %arg13[%c0_70, %c131] : memref<8x640xf32, #tpu.memory_space<vmem>>, vector<8x384xf32>
    %c0_71 = arith.constant 0 : index
    %c132 = arith.constant 132 : index
    %91 = vector.load %arg13[%c0_71, %c132] : memref<8x640xf32, #tpu.memory_space<vmem>>, vector<8x384xf32>
    %92 = tpu.concatenate %83, %84, %85, %86, %87, %88, %89, %90, %91 in 0 : vector<8x384xf32>, vector<8x384xf32>, vector<8x384xf32>, vector<8x384xf32>, vector<8x384xf32>, vector<8x384xf32>, vector<8x384xf32>, vector<8x384xf32>, vector<8x384xf32> -> vector<72x384xf32>
    %c4 = arith.constant 4 : index
    %c0_72 = arith.constant 0 : index
    %c0_73 = arith.constant 0 : index
    %93 = vector.load %arg4[%c4, %c0_72, %c0_73] : memref<9x64x72xf32, #tpu.memory_space<vmem>>, vector<1x64x72xf32>
    %94 = vector.shape_cast %93 : vector<1x64x72xf32> to vector<64x72xf32>
    %cst_74 = arith.constant dense<0.000000e+00> : vector<64x384xf32>
    %95 = tpu.matmul %94, %92, %cst_74 {dimension_numbers = #tpu.dot_dimension_numbers<[1], [0], [0], [1], [0, 0, 1, 1], [], []>} : vector<64x72xf32>, vector<72x384xf32>, vector<64x384xf32> -> vector<64x384xf32>
    %96 = arith.addf %82, %95 : vector<64x384xf32>
    %c0_75 = arith.constant 0 : index
    %c148 = arith.constant 148 : index
    %97 = vector.load %arg13[%c0_75, %c148] : memref<8x640xf32, #tpu.memory_space<vmem>>, vector<8x384xf32>
    %c0_76 = arith.constant 0 : index
    %c149 = arith.constant 149 : index
    %98 = vector.load %arg13[%c0_76, %c149] : memref<8x640xf32, #tpu.memory_space<vmem>>, vector<8x384xf32>
    %c0_77 = arith.constant 0 : index
    %c150 = arith.constant 150 : index
    %99 = vector.load %arg13[%c0_77, %c150] : memref<8x640xf32, #tpu.memory_space<vmem>>, vector<8x384xf32>
    %c0_78 = arith.constant 0 : index
    %c151 = arith.constant 151 : index
    %100 = vector.load %arg13[%c0_78, %c151] : memref<8x640xf32, #tpu.memory_space<vmem>>, vector<8x384xf32>
    %c0_79 = arith.constant 0 : index
    %c152 = arith.constant 152 : index
    %101 = vector.load %arg13[%c0_79, %c152] : memref<8x640xf32, #tpu.memory_space<vmem>>, vector<8x384xf32>
    %c0_80 = arith.constant 0 : index
    %c153 = arith.constant 153 : index
    %102 = vector.load %arg13[%c0_80, %c153] : memref<8x640xf32, #tpu.memory_space<vmem>>, vector<8x384xf32>
    %c0_81 = arith.constant 0 : index
    %c154 = arith.constant 154 : index
    %103 = vector.load %arg13[%c0_81, %c154] : memref<8x640xf32, #tpu.memory_space<vmem>>, vector<8x384xf32>
    %c0_82 = arith.constant 0 : index
    %c155 = arith.constant 155 : index
    %104 = vector.load %arg13[%c0_82, %c155] : memref<8x640xf32, #tpu.memory_space<vmem>>, vector<8x384xf32>
    %c0_83 = arith.constant 0 : index
    %c156 = arith.constant 156 : index
    %105 = vector.load %arg13[%c0_83, %c156] : memref<8x640xf32, #tpu.memory_space<vmem>>, vector<8x384xf32>
    %106 = tpu.concatenate %97, %98, %99, %100, %101, %102, %103, %104, %105 in 0 : vector<8x384xf32>, vector<8x384xf32>, vector<8x384xf32>, vector<8x384xf32>, vector<8x384xf32>, vector<8x384xf32>, vector<8x384xf32>, vector<8x384xf32>, vector<8x384xf32> -> vector<72x384xf32>
    %c5 = arith.constant 5 : index
    %c0_84 = arith.constant 0 : index
    %c0_85 = arith.constant 0 : index
    %107 = vector.load %arg4[%c5, %c0_84, %c0_85] : memref<9x64x72xf32, #tpu.memory_space<vmem>>, vector<1x64x72xf32>
    %108 = vector.shape_cast %107 : vector<1x64x72xf32> to vector<64x72xf32>
    %cst_86 = arith.constant dense<0.000000e+00> : vector<64x384xf32>
    %109 = tpu.matmul %108, %106, %cst_86 {dimension_numbers = #tpu.dot_dimension_numbers<[1], [0], [0], [1], [0, 0, 1, 1], [], []>} : vector<64x72xf32>, vector<72x384xf32>, vector<64x384xf32> -> vector<64x384xf32>
    %110 = arith.addf %96, %109 : vector<64x384xf32>
    %c0_87 = arith.constant 0 : index
    %c172 = arith.constant 172 : index
    %111 = vector.load %arg13[%c0_87, %c172] : memref<8x640xf32, #tpu.memory_space<vmem>>, vector<8x384xf32>
    %c0_88 = arith.constant 0 : index
    %c173 = arith.constant 173 : index
    %112 = vector.load %arg13[%c0_88, %c173] : memref<8x640xf32, #tpu.memory_space<vmem>>, vector<8x384xf32>
    %c0_89 = arith.constant 0 : index
    %c174 = arith.constant 174 : index
    %113 = vector.load %arg13[%c0_89, %c174] : memref<8x640xf32, #tpu.memory_space<vmem>>, vector<8x384xf32>
    %c0_90 = arith.constant 0 : index
    %c175 = arith.constant 175 : index
    %114 = vector.load %arg13[%c0_90, %c175] : memref<8x640xf32, #tpu.memory_space<vmem>>, vector<8x384xf32>
    %c0_91 = arith.constant 0 : index
    %c176 = arith.constant 176 : index
    %115 = vector.load %arg13[%c0_91, %c176] : memref<8x640xf32, #tpu.memory_space<vmem>>, vector<8x384xf32>
    %c0_92 = arith.constant 0 : index
    %c177 = arith.constant 177 : index
    %116 = vector.load %arg13[%c0_92, %c177] : memref<8x640xf32, #tpu.memory_space<vmem>>, vector<8x384xf32>
    %c0_93 = arith.constant 0 : index
    %c178 = arith.constant 178 : index
    %117 = vector.load %arg13[%c0_93, %c178] : memref<8x640xf32, #tpu.memory_space<vmem>>, vector<8x384xf32>
    %c0_94 = arith.constant 0 : index
    %c179 = arith.constant 179 : index
    %118 = vector.load %arg13[%c0_94, %c179] : memref<8x640xf32, #tpu.memory_space<vmem>>, vector<8x384xf32>
    %c0_95 = arith.constant 0 : index
    %c180 = arith.constant 180 : index
    %119 = vector.load %arg13[%c0_95, %c180] : memref<8x640xf32, #tpu.memory_space<vmem>>, vector<8x384xf32>
    %120 = tpu.concatenate %111, %112, %113, %114, %115, %116, %117, %118, %119 in 0 : vector<8x384xf32>, vector<8x384xf32>, vector<8x384xf32>, vector<8x384xf32>, vector<8x384xf32>, vector<8x384xf32>, vector<8x384xf32>, vector<8x384xf32>, vector<8x384xf32> -> vector<72x384xf32>
    %c6 = arith.constant 6 : index
    %c0_96 = arith.constant 0 : index
    %c0_97 = arith.constant 0 : index
    %121 = vector.load %arg4[%c6, %c0_96, %c0_97] : memref<9x64x72xf32, #tpu.memory_space<vmem>>, vector<1x64x72xf32>
    %122 = vector.shape_cast %121 : vector<1x64x72xf32> to vector<64x72xf32>
    %cst_98 = arith.constant dense<0.000000e+00> : vector<64x384xf32>
    %123 = tpu.matmul %122, %120, %cst_98 {dimension_numbers = #tpu.dot_dimension_numbers<[1], [0], [0], [1], [0, 0, 1, 1], [], []>} : vector<64x72xf32>, vector<72x384xf32>, vector<64x384xf32> -> vector<64x384xf32>
    %124 = arith.addf %110, %123 : vector<64x384xf32>
    %c0_99 = arith.constant 0 : index
    %c196 = arith.constant 196 : index
    %125 = vector.load %arg13[%c0_99, %c196] : memref<8x640xf32, #tpu.memory_space<vmem>>, vector<8x384xf32>
    %c0_100 = arith.constant 0 : index
    %c197 = arith.constant 197 : index
    %126 = vector.load %arg13[%c0_100, %c197] : memref<8x640xf32, #tpu.memory_space<vmem>>, vector<8x384xf32>
    %c0_101 = arith.constant 0 : index
    %c198 = arith.constant 198 : index
    %127 = vector.load %arg13[%c0_101, %c198] : memref<8x640xf32, #tpu.memory_space<vmem>>, vector<8x384xf32>
    %c0_102 = arith.constant 0 : index
    %c199 = arith.constant 199 : index
    %128 = vector.load %arg13[%c0_102, %c199] : memref<8x640xf32, #tpu.memory_space<vmem>>, vector<8x384xf32>
    %c0_103 = arith.constant 0 : index
    %c200 = arith.constant 200 : index
    %129 = vector.load %arg13[%c0_103, %c200] : memref<8x640xf32, #tpu.memory_space<vmem>>, vector<8x384xf32>
    %c0_104 = arith.constant 0 : index
    %c201 = arith.constant 201 : index
    %130 = vector.load %arg13[%c0_104, %c201] : memref<8x640xf32, #tpu.memory_space<vmem>>, vector<8x384xf32>
    %c0_105 = arith.constant 0 : index
    %c202 = arith.constant 202 : index
    %131 = vector.load %arg13[%c0_105, %c202] : memref<8x640xf32, #tpu.memory_space<vmem>>, vector<8x384xf32>
    %c0_106 = arith.constant 0 : index
    %c203 = arith.constant 203 : index
    %132 = vector.load %arg13[%c0_106, %c203] : memref<8x640xf32, #tpu.memory_space<vmem>>, vector<8x384xf32>
    %c0_107 = arith.constant 0 : index
    %c204 = arith.constant 204 : index
    %133 = vector.load %arg13[%c0_107, %c204] : memref<8x640xf32, #tpu.memory_space<vmem>>, vector<8x384xf32>
    %134 = tpu.concatenate %125, %126, %127, %128, %129, %130, %131, %132, %133 in 0 : vector<8x384xf32>, vector<8x384xf32>, vector<8x384xf32>, vector<8x384xf32>, vector<8x384xf32>, vector<8x384xf32>, vector<8x384xf32>, vector<8x384xf32>, vector<8x384xf32> -> vector<72x384xf32>
    %c7 = arith.constant 7 : index
    %c0_108 = arith.constant 0 : index
    %c0_109 = arith.constant 0 : index
    %135 = vector.load %arg4[%c7, %c0_108, %c0_109] : memref<9x64x72xf32, #tpu.memory_space<vmem>>, vector<1x64x72xf32>
    %136 = vector.shape_cast %135 : vector<1x64x72xf32> to vector<64x72xf32>
    %cst_110 = arith.constant dense<0.000000e+00> : vector<64x384xf32>
    %137 = tpu.matmul %136, %134, %cst_110 {dimension_numbers = #tpu.dot_dimension_numbers<[1], [0], [0], [1], [0, 0, 1, 1], [], []>} : vector<64x72xf32>, vector<72x384xf32>, vector<64x384xf32> -> vector<64x384xf32>
    %138 = arith.addf %124, %137 : vector<64x384xf32>
    %c0_111 = arith.constant 0 : index
    %c220 = arith.constant 220 : index
    %139 = vector.load %arg13[%c0_111, %c220] : memref<8x640xf32, #tpu.memory_space<vmem>>, vector<8x384xf32>
    %c0_112 = arith.constant 0 : index
    %c221 = arith.constant 221 : index
    %140 = vector.load %arg13[%c0_112, %c221] : memref<8x640xf32, #tpu.memory_space<vmem>>, vector<8x384xf32>
    %c0_113 = arith.constant 0 : index
    %c222 = arith.constant 222 : index
    %141 = vector.load %arg13[%c0_113, %c222] : memref<8x640xf32, #tpu.memory_space<vmem>>, vector<8x384xf32>
    %c0_114 = arith.constant 0 : index
    %c223 = arith.constant 223 : index
    %142 = vector.load %arg13[%c0_114, %c223] : memref<8x640xf32, #tpu.memory_space<vmem>>, vector<8x384xf32>
    %c0_115 = arith.constant 0 : index
    %c224 = arith.constant 224 : index
    %143 = vector.load %arg13[%c0_115, %c224] : memref<8x640xf32, #tpu.memory_space<vmem>>, vector<8x384xf32>
    %c0_116 = arith.constant 0 : index
    %c225 = arith.constant 225 : index
    %144 = vector.load %arg13[%c0_116, %c225] : memref<8x640xf32, #tpu.memory_space<vmem>>, vector<8x384xf32>
    %c0_117 = arith.constant 0 : index
    %c226 = arith.constant 226 : index
    %145 = vector.load %arg13[%c0_117, %c226] : memref<8x640xf32, #tpu.memory_space<vmem>>, vector<8x384xf32>
    %c0_118 = arith.constant 0 : index
    %c227 = arith.constant 227 : index
    %146 = vector.load %arg13[%c0_118, %c227] : memref<8x640xf32, #tpu.memory_space<vmem>>, vector<8x384xf32>
    %c0_119 = arith.constant 0 : index
    %c228 = arith.constant 228 : index
    %147 = vector.load %arg13[%c0_119, %c228] : memref<8x640xf32, #tpu.memory_space<vmem>>, vector<8x384xf32>
    %148 = tpu.concatenate %139, %140, %141, %142, %143, %144, %145, %146, %147 in 0 : vector<8x384xf32>, vector<8x384xf32>, vector<8x384xf32>, vector<8x384xf32>, vector<8x384xf32>, vector<8x384xf32>, vector<8x384xf32>, vector<8x384xf32>, vector<8x384xf32> -> vector<72x384xf32>
    %c8 = arith.constant 8 : index
    %c0_120 = arith.constant 0 : index
    %c0_121 = arith.constant 0 : index
    %149 = vector.load %arg4[%c8, %c0_120, %c0_121] : memref<9x64x72xf32, #tpu.memory_space<vmem>>, vector<1x64x72xf32>
    %150 = vector.shape_cast %149 : vector<1x64x72xf32> to vector<64x72xf32>
    %cst_122 = arith.constant dense<0.000000e+00> : vector<64x384xf32>
    %151 = tpu.matmul %150, %148, %cst_122 {dimension_numbers = #tpu.dot_dimension_numbers<[1], [0], [0], [1], [0, 0, 1, 1], [], []>} : vector<64x72xf32>, vector<72x384xf32>, vector<64x384xf32> -> vector<64x384xf32>
    %152 = arith.addf %138, %151 : vector<64x384xf32>
    %c0_123 = arith.constant 0 : index
    %c0_124 = arith.constant 0 : index
    %153 = vector.load %arg5[%c0_123, %c0_124] : memref<64x1xf32, #tpu.memory_space<vmem>>, vector<64x1xf32>
    %154 = vector.broadcast %153 : vector<64x1xf32> to vector<64x384xf32>
    %155 = arith.addf %152, %154 : vector<64x384xf32>
    %cst_125 = arith.constant 0.000000e+00 : f32
    %156 = vector.broadcast %cst_125 : f32 to vector<64x384xf32>
    %157 = arith.maximumf %155, %156 : vector<64x384xf32>
    %c0_126 = arith.constant 0 : index
    %c0_127 = arith.constant 0 : index
    %158 = vector.load %arg6[%c0_126, %c0_127] : memref<32x64xf32, #tpu.memory_space<vmem>>, vector<32x64xf32>
    %cst_128 = arith.constant dense<0.000000e+00> : vector<32x384xf32>
    %159 = tpu.matmul %158, %157, %cst_128 {dimension_numbers = #tpu.dot_dimension_numbers<[1], [0], [0], [1], [0, 0, 1, 1], [], []>} : vector<32x64xf32>, vector<64x384xf32>, vector<32x384xf32> -> vector<32x384xf32>
    %c0_129 = arith.constant 0 : index
    %c0_130 = arith.constant 0 : index
    %160 = vector.load %arg7[%c0_129, %c0_130] : memref<32x1xf32, #tpu.memory_space<vmem>>, vector<32x1xf32>
    %161 = vector.broadcast %160 : vector<32x1xf32> to vector<32x384xf32>
    %162 = arith.addf %159, %161 : vector<32x384xf32>
    %cst_131 = arith.constant 0.000000e+00 : f32
    %163 = vector.broadcast %cst_131 : f32 to vector<32x384xf32>
    %164 = arith.maximumf %162, %163 : vector<32x384xf32>
    %cst_132 = arith.constant 0.000000e+00 : f32
    %165 = vector.broadcast %cst_132 : f32 to vector<32x128xf32>
    %c0_133 = arith.constant 0 : index
    %c0_134 = arith.constant 0 : index
    %166 = vector.load %arg14[%c0_133, %c0_134] : memref<32x640xf32, #tpu.memory_space<vmem>>, vector<32x128xf32>
    tpu.vector_store %arg14[%c0_133, %c0_134], %165 {strides = array<i32>} : memref<32x640xf32, #tpu.memory_space<vmem>>, vector<32x128xf32>,
    %cst_135 = arith.constant 0.000000e+00 : f32
    %167 = vector.broadcast %cst_135 : f32 to vector<32x128xf32>
    %c0_136 = arith.constant 0 : index
    %c512_137 = arith.constant 512 : index
    %168 = vector.load %arg14[%c0_136, %c512_137] : memref<32x640xf32, #tpu.memory_space<vmem>>, vector<32x128xf32>
    tpu.vector_store %arg14[%c0_136, %c512_137], %167 {strides = array<i32>} : memref<32x640xf32, #tpu.memory_space<vmem>>, vector<32x128xf32>,
    %cst_138 = arith.constant 0.000000e+00 : f32
    %169 = vector.shape_cast %18 : vector<1x384xi1> to vector<1x384xi1>
    %170 = vector.broadcast %169 : vector<1x384xi1> to vector<32x384xi1>
    %171 = vector.broadcast %cst_138 : f32 to vector<32x384xf32>
    %172 = arith.select %170, %164, %171 : vector<32x384xi1>, vector<32x384xf32>
    %c0_139 = arith.constant 0 : index
    %c128_140 = arith.constant 128 : index
    %173 = vector.load %arg14[%c0_139, %c128_140] : memref<32x640xf32, #tpu.memory_space<vmem>>, vector<32x384xf32>
    tpu.vector_store %arg14[%c0_139, %c128_140], %172 {strides = array<i32>} : memref<32x640xf32, #tpu.memory_space<vmem>>, vector<32x384xf32>,
    %c0_141 = arith.constant 0 : index
    %c103_142 = arith.constant 103 : index
    %174 = vector.load %arg14[%c0_141, %c103_142] : memref<32x640xf32, #tpu.memory_space<vmem>>, vector<32x384xf32>
    %c0_143 = arith.constant 0 : index
    %c104_144 = arith.constant 104 : index
    %175 = vector.load %arg14[%c0_143, %c104_144] : memref<32x640xf32, #tpu.memory_space<vmem>>, vector<32x384xf32>
    %c0_145 = arith.constant 0 : index
    %c105_146 = arith.constant 105 : index
    %176 = vector.load %arg14[%c0_145, %c105_146] : memref<32x640xf32, #tpu.memory_space<vmem>>, vector<32x384xf32>
    %177 = tpu.concatenate %174, %175, %176 in 0 : vector<32x384xf32>, vector<32x384xf32>, vector<32x384xf32> -> vector<96x384xf32>
    %c0_147 = arith.constant 0 : index
    %c0_148 = arith.constant 0 : index
    %c0_149 = arith.constant 0 : index
    %178 = vector.load %arg8[%c0_147, %c0_148, %c0_149] : memref<3x32x96xf32, #tpu.memory_space<vmem>>, vector<1x32x96xf32>
    %179 = vector.shape_cast %178 : vector<1x32x96xf32> to vector<32x96xf32>
    %cst_150 = arith.constant dense<0.000000e+00> : vector<32x384xf32>
    %180 = tpu.matmul %179, %177, %cst_150 {dimension_numbers = #tpu.dot_dimension_numbers<[1], [0], [0], [1], [0, 0, 1, 1], [], []>} : vector<32x96xf32>, vector<96x384xf32>, vector<32x384xf32> -> vector<32x384xf32>
    %c0_151 = arith.constant 0 : index
    %c127_152 = arith.constant 127 : index
    %181 = vector.load %arg14[%c0_151, %c127_152] : memref<32x640xf32, #tpu.memory_space<vmem>>, vector<32x384xf32>
    %c0_153 = arith.constant 0 : index
    %c128_154 = arith.constant 128 : index
    %182 = vector.load %arg14[%c0_153, %c128_154] : memref<32x640xf32, #tpu.memory_space<vmem>>, vector<32x384xf32>
    %c0_155 = arith.constant 0 : index
    %c129_156 = arith.constant 129 : index
    %183 = vector.load %arg14[%c0_155, %c129_156] : memref<32x640xf32, #tpu.memory_space<vmem>>, vector<32x384xf32>
    %184 = tpu.concatenate %181, %182, %183 in 0 : vector<32x384xf32>, vector<32x384xf32>, vector<32x384xf32> -> vector<96x384xf32>
    %c1_157 = arith.constant 1 : index
    %c0_158 = arith.constant 0 : index
    %c0_159 = arith.constant 0 : index
    %185 = vector.load %arg8[%c1_157, %c0_158, %c0_159] : memref<3x32x96xf32, #tpu.memory_space<vmem>>, vector<1x32x96xf32>
    %186 = vector.shape_cast %185 : vector<1x32x96xf32> to vector<32x96xf32>
    %cst_160 = arith.constant dense<0.000000e+00> : vector<32x384xf32>
    %187 = tpu.matmul %186, %184, %cst_160 {dimension_numbers = #tpu.dot_dimension_numbers<[1], [0], [0], [1], [0, 0, 1, 1], [], []>} : vector<32x96xf32>, vector<96x384xf32>, vector<32x384xf32> -> vector<32x384xf32>
    %188 = arith.addf %180, %187 : vector<32x384xf32>
    %c0_161 = arith.constant 0 : index
    %c151_162 = arith.constant 151 : index
    %189 = vector.load %arg14[%c0_161, %c151_162] : memref<32x640xf32, #tpu.memory_space<vmem>>, vector<32x384xf32>
    %c0_163 = arith.constant 0 : index
    %c152_164 = arith.constant 152 : index
    %190 = vector.load %arg14[%c0_163, %c152_164] : memref<32x640xf32, #tpu.memory_space<vmem>>, vector<32x384xf32>
    %c0_165 = arith.constant 0 : index
    %c153_166 = arith.constant 153 : index
    %191 = vector.load %arg14[%c0_165, %c153_166] : memref<32x640xf32, #tpu.memory_space<vmem>>, vector<32x384xf32>
    %192 = tpu.concatenate %189, %190, %191 in 0 : vector<32x384xf32>, vector<32x384xf32>, vector<32x384xf32> -> vector<96x384xf32>
    %c2_167 = arith.constant 2 : index
    %c0_168 = arith.constant 0 : index
    %c0_169 = arith.constant 0 : index
    %193 = vector.load %arg8[%c2_167, %c0_168, %c0_169] : memref<3x32x96xf32, #tpu.memory_space<vmem>>, vector<1x32x96xf32>
    %194 = vector.shape_cast %193 : vector<1x32x96xf32> to vector<32x96xf32>
    %cst_170 = arith.constant dense<0.000000e+00> : vector<32x384xf32>
    %195 = tpu.matmul %194, %192, %cst_170 {dimension_numbers = #tpu.dot_dimension_numbers<[1], [0], [0], [1], [0, 0, 1, 1], [], []>} : vector<32x96xf32>, vector<96x384xf32>, vector<32x384xf32> -> vector<32x384xf32>
    %196 = arith.addf %188, %195 : vector<32x384xf32>
    %c0_171 = arith.constant 0 : index
    %c0_172 = arith.constant 0 : index
    %197 = vector.load %arg9[%c0_171, %c0_172] : memref<32x1xf32, #tpu.memory_space<vmem>>, vector<32x1xf32>
    %198 = vector.broadcast %197 : vector<32x1xf32> to vector<32x384xf32>
    %199 = arith.addf %196, %198 : vector<32x384xf32>
    %cst_173 = arith.constant 0.000000e+00 : f32
    %200 = vector.broadcast %cst_173 : f32 to vector<32x384xf32>
    %201 = arith.maximumf %199, %200 : vector<32x384xf32>
    %cst_174 = arith.constant 0.000000e+00 : f32
    %202 = vector.shape_cast %18 : vector<1x384xi1> to vector<1x384xi1>
    %203 = vector.broadcast %202 : vector<1x384xi1> to vector<32x384xi1>
    %204 = vector.broadcast %cst_174 : f32 to vector<32x384xf32>
    %205 = arith.select %203, %201, %204 : vector<32x384xi1>, vector<32x384xf32>
    %c0_175 = arith.constant 0 : index
    %c128_176 = arith.constant 128 : index
    %206 = vector.load %arg14[%c0_175, %c128_176] : memref<32x640xf32, #tpu.memory_space<vmem>>, vector<32x384xf32>
    tpu.vector_store %arg14[%c0_175, %c128_176], %205 {strides = array<i32>} : memref<32x640xf32, #tpu.memory_space<vmem>>, vector<32x384xf32>,
    %c0_177 = arith.constant 0 : index
    %c78_178 = arith.constant 78 : index
    %207 = vector.load %arg14[%c0_177, %c78_178] : memref<32x640xf32, #tpu.memory_space<vmem>>, vector<32x384xf32>
    %c0_179 = arith.constant 0 : index
    %c79_180 = arith.constant 79 : index
    %208 = vector.load %arg14[%c0_179, %c79_180] : memref<32x640xf32, #tpu.memory_space<vmem>>, vector<32x384xf32>
    %c0_181 = arith.constant 0 : index
    %c80_182 = arith.constant 80 : index
    %209 = vector.load %arg14[%c0_181, %c80_182] : memref<32x640xf32, #tpu.memory_space<vmem>>, vector<32x384xf32>
    %c0_183 = arith.constant 0 : index
    %c81_184 = arith.constant 81 : index
    %210 = vector.load %arg14[%c0_183, %c81_184] : memref<32x640xf32, #tpu.memory_space<vmem>>, vector<32x384xf32>
    %c0_185 = arith.constant 0 : index
    %c82_186 = arith.constant 82 : index
    %211 = vector.load %arg14[%c0_185, %c82_186] : memref<32x640xf32, #tpu.memory_space<vmem>>, vector<32x384xf32>
    %212 = tpu.concatenate %207, %208, %209, %210, %211 in 0 : vector<32x384xf32>, vector<32x384xf32>, vector<32x384xf32>, vector<32x384xf32>, vector<32x384xf32> -> vector<160x384xf32>
    %c0_187 = arith.constant 0 : index
    %c0_188 = arith.constant 0 : index
    %c0_189 = arith.constant 0 : index
    %213 = vector.load %arg10[%c0_187, %c0_188, %c0_189] : memref<5x3x160xf32, #tpu.memory_space<vmem>>, vector<1x3x160xf32>
    %214 = vector.shape_cast %213 : vector<1x3x160xf32> to vector<3x160xf32>
    %cst_190 = arith.constant dense<0.000000e+00> : vector<3x384xf32>
    %215 = tpu.matmul %214, %212, %cst_190 {dimension_numbers = #tpu.dot_dimension_numbers<[1], [0], [0], [1], [0, 0, 1, 1], [], []>} : vector<3x160xf32>, vector<160x384xf32>, vector<3x384xf32> -> vector<3x384xf32>
    %c0_191 = arith.constant 0 : index
    %c102_192 = arith.constant 102 : index
    %216 = vector.load %arg14[%c0_191, %c102_192] : memref<32x640xf32, #tpu.memory_space<vmem>>, vector<32x384xf32>
    %c0_193 = arith.constant 0 : index
    %c103_194 = arith.constant 103 : index
    %217 = vector.load %arg14[%c0_193, %c103_194] : memref<32x640xf32, #tpu.memory_space<vmem>>, vector<32x384xf32>
    %c0_195 = arith.constant 0 : index
    %c104_196 = arith.constant 104 : index
    %218 = vector.load %arg14[%c0_195, %c104_196] : memref<32x640xf32, #tpu.memory_space<vmem>>, vector<32x384xf32>
    %c0_197 = arith.constant 0 : index
    %c105_198 = arith.constant 105 : index
    %219 = vector.load %arg14[%c0_197, %c105_198] : memref<32x640xf32, #tpu.memory_space<vmem>>, vector<32x384xf32>
    %c0_199 = arith.constant 0 : index
    %c106_200 = arith.constant 106 : index
    %220 = vector.load %arg14[%c0_199, %c106_200] : memref<32x640xf32, #tpu.memory_space<vmem>>, vector<32x384xf32>
    %221 = tpu.concatenate %216, %217, %218, %219, %220 in 0 : vector<32x384xf32>, vector<32x384xf32>, vector<32x384xf32>, vector<32x384xf32>, vector<32x384xf32> -> vector<160x384xf32>
    %c1_201 = arith.constant 1 : index
    %c0_202 = arith.constant 0 : index
    %c0_203 = arith.constant 0 : index
    %222 = vector.load %arg10[%c1_201, %c0_202, %c0_203] : memref<5x3x160xf32, #tpu.memory_space<vmem>>, vector<1x3x160xf32>
    %223 = vector.shape_cast %222 : vector<1x3x160xf32> to vector<3x160xf32>
    %cst_204 = arith.constant dense<0.000000e+00> : vector<3x384xf32>
    %224 = tpu.matmul %223, %221, %cst_204 {dimension_numbers = #tpu.dot_dimension_numbers<[1], [0], [0], [1], [0, 0, 1, 1], [], []>} : vector<3x160xf32>, vector<160x384xf32>, vector<3x384xf32> -> vector<3x384xf32>
    %225 = arith.addf %215, %224 : vector<3x384xf32>
    %c0_205 = arith.constant 0 : index
    %c126_206 = arith.constant 126 : index
    %226 = vector.load %arg14[%c0_205, %c126_206] : memref<32x640xf32, #tpu.memory_space<vmem>>, vector<32x384xf32>
    %c0_207 = arith.constant 0 : index
    %c127_208 = arith.constant 127 : index
    %227 = vector.load %arg14[%c0_207, %c127_208] : memref<32x640xf32, #tpu.memory_space<vmem>>, vector<32x384xf32>
    %c0_209 = arith.constant 0 : index
    %c128_210 = arith.constant 128 : index
    %228 = vector.load %arg14[%c0_209, %c128_210] : memref<32x640xf32, #tpu.memory_space<vmem>>, vector<32x384xf32>
    %c0_211 = arith.constant 0 : index
    %c129_212 = arith.constant 129 : index
    %229 = vector.load %arg14[%c0_211, %c129_212] : memref<32x640xf32, #tpu.memory_space<vmem>>, vector<32x384xf32>
    %c0_213 = arith.constant 0 : index
    %c130_214 = arith.constant 130 : index
    %230 = vector.load %arg14[%c0_213, %c130_214] : memref<32x640xf32, #tpu.memory_space<vmem>>, vector<32x384xf32>
    %231 = tpu.concatenate %226, %227, %228, %229, %230 in 0 : vector<32x384xf32>, vector<32x384xf32>, vector<32x384xf32>, vector<32x384xf32>, vector<32x384xf32> -> vector<160x384xf32>
    %c2_215 = arith.constant 2 : index
    %c0_216 = arith.constant 0 : index
    %c0_217 = arith.constant 0 : index
    %232 = vector.load %arg10[%c2_215, %c0_216, %c0_217] : memref<5x3x160xf32, #tpu.memory_space<vmem>>, vector<1x3x160xf32>
    %233 = vector.shape_cast %232 : vector<1x3x160xf32> to vector<3x160xf32>
    %cst_218 = arith.constant dense<0.000000e+00> : vector<3x384xf32>
    %234 = tpu.matmul %233, %231, %cst_218 {dimension_numbers = #tpu.dot_dimension_numbers<[1], [0], [0], [1], [0, 0, 1, 1], [], []>} : vector<3x160xf32>, vector<160x384xf32>, vector<3x384xf32> -> vector<3x384xf32>
    %235 = arith.addf %225, %234 : vector<3x384xf32>
    %c0_219 = arith.constant 0 : index
    %c150_220 = arith.constant 150 : index
    %236 = vector.load %arg14[%c0_219, %c150_220] : memref<32x640xf32, #tpu.memory_space<vmem>>, vector<32x384xf32>
    %c0_221 = arith.constant 0 : index
    %c151_222 = arith.constant 151 : index
    %237 = vector.load %arg14[%c0_221, %c151_222] : memref<32x640xf32, #tpu.memory_space<vmem>>, vector<32x384xf32>
    %c0_223 = arith.constant 0 : index
    %c152_224 = arith.constant 152 : index
    %238 = vector.load %arg14[%c0_223, %c152_224] : memref<32x640xf32, #tpu.memory_space<vmem>>, vector<32x384xf32>
    %c0_225 = arith.constant 0 : index
    %c153_226 = arith.constant 153 : index
    %239 = vector.load %arg14[%c0_225, %c153_226] : memref<32x640xf32, #tpu.memory_space<vmem>>, vector<32x384xf32>
    %c0_227 = arith.constant 0 : index
    %c154_228 = arith.constant 154 : index
    %240 = vector.load %arg14[%c0_227, %c154_228] : memref<32x640xf32, #tpu.memory_space<vmem>>, vector<32x384xf32>
    %241 = tpu.concatenate %236, %237, %238, %239, %240 in 0 : vector<32x384xf32>, vector<32x384xf32>, vector<32x384xf32>, vector<32x384xf32>, vector<32x384xf32> -> vector<160x384xf32>
    %c3_229 = arith.constant 3 : index
    %c0_230 = arith.constant 0 : index
    %c0_231 = arith.constant 0 : index
    %242 = vector.load %arg10[%c3_229, %c0_230, %c0_231] : memref<5x3x160xf32, #tpu.memory_space<vmem>>, vector<1x3x160xf32>
    %243 = vector.shape_cast %242 : vector<1x3x160xf32> to vector<3x160xf32>
    %cst_232 = arith.constant dense<0.000000e+00> : vector<3x384xf32>
    %244 = tpu.matmul %243, %241, %cst_232 {dimension_numbers = #tpu.dot_dimension_numbers<[1], [0], [0], [1], [0, 0, 1, 1], [], []>} : vector<3x160xf32>, vector<160x384xf32>, vector<3x384xf32> -> vector<3x384xf32>
    %245 = arith.addf %235, %244 : vector<3x384xf32>
    %c0_233 = arith.constant 0 : index
    %c174_234 = arith.constant 174 : index
    %246 = vector.load %arg14[%c0_233, %c174_234] : memref<32x640xf32, #tpu.memory_space<vmem>>, vector<32x384xf32>
    %c0_235 = arith.constant 0 : index
    %c175_236 = arith.constant 175 : index
    %247 = vector.load %arg14[%c0_235, %c175_236] : memref<32x640xf32, #tpu.memory_space<vmem>>, vector<32x384xf32>
    %c0_237 = arith.constant 0 : index
    %c176_238 = arith.constant 176 : index
    %248 = vector.load %arg14[%c0_237, %c176_238] : memref<32x640xf32, #tpu.memory_space<vmem>>, vector<32x384xf32>
    %c0_239 = arith.constant 0 : index
    %c177_240 = arith.constant 177 : index
    %249 = vector.load %arg14[%c0_239, %c177_240] : memref<32x640xf32, #tpu.memory_space<vmem>>, vector<32x384xf32>
    %c0_241 = arith.constant 0 : index
    %c178_242 = arith.constant 178 : index
    %250 = vector.load %arg14[%c0_241, %c178_242] : memref<32x640xf32, #tpu.memory_space<vmem>>, vector<32x384xf32>
    %251 = tpu.concatenate %246, %247, %248, %249, %250 in 0 : vector<32x384xf32>, vector<32x384xf32>, vector<32x384xf32>, vector<32x384xf32>, vector<32x384xf32> -> vector<160x384xf32>
    %c4_243 = arith.constant 4 : index
    %c0_244 = arith.constant 0 : index
    %c0_245 = arith.constant 0 : index
    %252 = vector.load %arg10[%c4_243, %c0_244, %c0_245] : memref<5x3x160xf32, #tpu.memory_space<vmem>>, vector<1x3x160xf32>
    %253 = vector.shape_cast %252 : vector<1x3x160xf32> to vector<3x160xf32>
    %cst_246 = arith.constant dense<0.000000e+00> : vector<3x384xf32>
    %254 = tpu.matmul %253, %251, %cst_246 {dimension_numbers = #tpu.dot_dimension_numbers<[1], [0], [0], [1], [0, 0, 1, 1], [], []>} : vector<3x160xf32>, vector<160x384xf32>, vector<3x384xf32> -> vector<3x384xf32>
    %255 = arith.addf %245, %254 : vector<3x384xf32>
    %c0_247 = arith.constant 0 : index
    %c0_248 = arith.constant 0 : index
    %256 = vector.load %arg11[%c0_247, %c0_248] : memref<3x1xf32, #tpu.memory_space<vmem>>, vector<3x1xf32>
    %257 = vector.broadcast %256 : vector<3x1xf32> to vector<3x384xf32>
    %258 = arith.addf %255, %257 : vector<3x384xf32>
    %c0_249 = arith.constant 0 : index
    %c0_250 = arith.constant 0 : index
    %259 = vector.load %arg3[%c0_249, %c0_250] : memref<384x256xf32, #tpu.memory_space<vmem>>, vector<384x256xf32>
    %cst_251 = arith.constant dense<0.000000e+00> : vector<3x256xf32>
    %260 = tpu.matmul %258, %259, %cst_251 {dimension_numbers = #tpu.dot_dimension_numbers<[1], [0], [0], [1], [0, 0, 1, 1], [], []>} : vector<3x384xf32>, vector<384x256xf32>, vector<3x256xf32> -> vector<3x256xf32>
    %c0_252 = arith.constant 0 : index
    %c0_253 = arith.constant 0 : index
    %c0_254 = arith.constant 0 : index
    %261 = vector.load %arg12[%c0_252, %c0_253, %c0_254] : memref<1x3x256xf32, #tpu.memory_space<vmem>>, vector<1x3x256xf32>
    %262 = vector.shape_cast %261 : vector<1x3x256xf32> to vector<3x256xf32>
    %263 = vector.shape_cast %260 : vector<3x256xf32> to vector<1x3x256xf32>
    tpu.vector_store %arg12[%c0_252, %c0_253, %c0_254], %263 {strides = array<i32>} : memref<1x3x256xf32, #tpu.memory_space<vmem>>, vector<1x3x256xf32>,
    return
  }
  func.func @transform_0(%arg0: i32) -> (i32, i32, i32) {
    %c0_i32 = arith.constant 0 : i32
    %c0_i32_0 = arith.constant 0 : i32
    %c0_i32_1 = arith.constant 0 : i32
    return %arg0, %c0_i32, %c0_i32_0 : i32, i32, i32
  }
  func.func @transform_1(%arg0: i32) -> (i32, i32) {
    %c0_i32 = arith.constant 0 : i32
    %c0_i32_0 = arith.constant 0 : i32
    %c0_i32_1 = arith.constant 0 : i32
    return %c0_i32, %c0_i32_0 : i32, i32
  }
  func.func @transform_2(%arg0: i32) -> (i32, i32) {
    %c0_i32 = arith.constant 0 : i32
    %c0_i32_0 = arith.constant 0 : i32
    %c0_i32_1 = arith.constant 0 : i32
    return %c0_i32, %c0_i32_0 : i32, i32
  }
  func.func @transform_3(%arg0: i32) -> (i32, i32, i32) {
    %c0_i32 = arith.constant 0 : i32
    %c0_i32_0 = arith.constant 0 : i32
    %c0_i32_1 = arith.constant 0 : i32
    %c0_i32_2 = arith.constant 0 : i32
    return %c0_i32, %c0_i32_0, %c0_i32_1 : i32, i32, i32
  }
  func.func @transform_4(%arg0: i32) -> (i32, i32) {
    %c0_i32 = arith.constant 0 : i32
    %c0_i32_0 = arith.constant 0 : i32
    %c0_i32_1 = arith.constant 0 : i32
    return %c0_i32, %c0_i32_0 : i32, i32
  }
  func.func @transform_5(%arg0: i32) -> (i32, i32) {
    %c0_i32 = arith.constant 0 : i32
    %c0_i32_0 = arith.constant 0 : i32
    %c0_i32_1 = arith.constant 0 : i32
    return %c0_i32, %c0_i32_0 : i32, i32
  }
  func.func @transform_6(%arg0: i32) -> (i32, i32) {
    %c0_i32 = arith.constant 0 : i32
    %c0_i32_0 = arith.constant 0 : i32
    %c0_i32_1 = arith.constant 0 : i32
    return %c0_i32, %c0_i32_0 : i32, i32
  }
  func.func @transform_7(%arg0: i32) -> (i32, i32, i32) {
    %c0_i32 = arith.constant 0 : i32
    %c0_i32_0 = arith.constant 0 : i32
    %c0_i32_1 = arith.constant 0 : i32
    %c0_i32_2 = arith.constant 0 : i32
    return %c0_i32, %c0_i32_0, %c0_i32_1 : i32, i32, i32
  }
  func.func @transform_8(%arg0: i32) -> (i32, i32) {
    %c0_i32 = arith.constant 0 : i32
    %c0_i32_0 = arith.constant 0 : i32
    %c0_i32_1 = arith.constant 0 : i32
    return %c0_i32, %c0_i32_0 : i32, i32
  }
  func.func @transform_9(%arg0: i32) -> (i32, i32, i32) {
    %c0_i32 = arith.constant 0 : i32
    %c0_i32_0 = arith.constant 0 : i32
    %c0_i32_1 = arith.constant 0 : i32
    %c0_i32_2 = arith.constant 0 : i32
    return %c0_i32, %c0_i32_0, %c0_i32_1 : i32, i32, i32
  }
  func.func @transform_10(%arg0: i32) -> (i32, i32) {
    %c0_i32 = arith.constant 0 : i32
    %c0_i32_0 = arith.constant 0 : i32
    %c0_i32_1 = arith.constant 0 : i32
    return %c0_i32, %c0_i32_0 : i32, i32
  }
  func.func @transform_11(%arg0: i32) -> (i32, i32, i32) {
    %c0_i32 = arith.constant 0 : i32
    %c0_i32_0 = arith.constant 0 : i32
    %c0_i32_1 = arith.constant 0 : i32
    return %arg0, %c0_i32, %c0_i32_0 : i32, i32, i32
  }
}

</mosaic_0001>

<llo_original>
// kernel: model_b_forward.1
$region0: #{model_b_forward.1}
  #allocation0 [shape = 'u32[]', space=smem, size = 0x4, offset = 0x4, fixed_abs, tag = 'smem constant byte address 0x4 - core index']
  #allocation1 [shape = 'u32[72,128]{1,0:T(1,128)}', space=vmem, size = 0x9000, scoped, tag = 'internal scratch']
  #allocation2 [shape = 'f32[8,640]{1,0:T(8,128)}', space=vmem, size = 0x5000, scoped, tag = 'scratch operand']
  #allocation3 [shape = 'f32[32,640]{1,0:T(8,128)}', space=vmem, size = 0x14000, scoped, tag = 'scratch operand']
  %s0 = inlined_call_operand.vmem [shape: f32[2,8,256], index: 0, kind: input, shape index: {}]
  %s1 = inlined_call_operand.vmem [shape: f32[256,384], index: 1, kind: input, shape index: {}]
  %s2 = inlined_call_operand.vmem [shape: f32[384,256], index: 2, kind: input, shape index: {}]
  %s3 = inlined_call_operand.vmem [shape: f32[9,64,72], index: 3, kind: input, shape index: {}]
  %s4 = inlined_call_operand.vmem [shape: f32[64,1], index: 4, kind: input, shape index: {}]
  %s5 = inlined_call_operand.vmem [shape: f32[32,64], index: 5, kind: input, shape index: {}]
  %s6 = inlined_call_operand.vmem [shape: f32[32,1], index: 6, kind: input, shape index: {}]
  %s7 = inlined_call_operand.vmem [shape: f32[3,32,96], index: 7, kind: input, shape index: {}]
  %s8 = inlined_call_operand.vmem [shape: f32[32,1], index: 8, kind: input, shape index: {}]
  %s9 = inlined_call_operand.vmem [shape: f32[5,3,160], index: 9, kind: input, shape index: {}]
  %s10 = inlined_call_operand.vmem [shape: f32[3,1], index: 10, kind: input, shape index: {}]
  %s11 = inlined_call_operand.vmem [shape: f32[2,3,256], index: 11, kind: output, shape index: {}]
  %s12 = sld [smem:[#allocation0]]
  $region77: #{model_b_forward.1} parent=0
    _
  %s14 = ssub.s32 1, %s12
  %s15 = scalar_select 0, %s14, %s12
  loop: start=0, step=1, limit=4
  $region2: #{model_b_forward.1} parent=0 // loop_pre_header
    _
  $region3: #{model_b_forward.1} parent=0 // loop_header
    %s17 = sphi 0, %s21
    %p18 = scmp.ge.s32.totalorder %s17, 4
    %s27 = sphi 0, %s29
    %s30 = sphi 0, %s27
    %s31 = sphi 0, %s30
    %s47 = sphi 0, %s31
    %s51 = sphi 0, %s51
    %s53 = sphi 0, %s51
    %s54 = sphi 0, %s53
    %s68 = sphi 0, %s54
    %s72 = sphi 0, %s72
    %s74 = sphi 0, %s72
    %s75 = sphi 0, %s74
    %s89 = sphi 0, %s75
    %s93 = sphi 0, %s93
    %s95 = sphi 0, %s93
    %s96 = sphi 0, %s95
    %s110 = sphi 0, %s96
    %s114 = sphi 0, %s114
    %s116 = sphi 0, %s114
    %s117 = sphi 0, %s116
    %s131 = sphi 0, %s117
    %s135 = sphi 0, %s135
    %s137 = sphi 0, %s135
    %s138 = sphi 0, %s137
    %s152 = sphi 0, %s138
    %s156 = sphi 0, %s156
    %s158 = sphi 0, %s156
    %s159 = sphi 0, %s158
    %s173 = sphi 0, %s159
    %s177 = sphi 0, %s177
    %s179 = sphi 0, %s177
    %s180 = sphi 0, %s179
    %s194 = sphi 0, %s180
    %s198 = sphi 0, %s198
    %s200 = sphi 0, %s198
    %s201 = sphi 0, %s200
    %s215 = sphi 0, %s201
    %s219 = sphi 0, %s219
    %s221 = sphi 0, %s219
    %s222 = sphi 0, %s221
    %s236 = sphi 0, %s222
    %s240 = sphi 0, %s240
    %s242 = sphi 0, %s240
    %s243 = sphi 0, %s242
    %s257 = sphi 0, %s243
    %s263 = sphi 0, %s265
    %s266 = sphi 0, %s263
    %s267 = sphi 0, %s266
    %s283 = sphi 0, %s267
  $region4: #{model_b_forward.1} parent=0 // loop_header_branch
    %20 = sbr.rel (%p18) target = $region8
  $region5: #{model_b_forward.1} parent=0 // loop_body
    %s22 = ssub.s32 %s17, 1
    %s23 = ssub.s32 %s17, 2
    %s24 = sadd.s32 %s17, 1
    %s25 = ssub.s32 %s17, %s24
    %p26 = scmp.eq.s32.totalorder %s25, 0
    %s28 = sadd.s32 %s27, 1
    %s29 = scalar_select %p26, %s27, %s28
    %p32 = pneg %p26
    %p33 = scmp.eq.s32.totalorder %s17, 1
    %p34 = por %p32, %p33
    %p35 = scmp.ne.s32.totalorder %s27, %s30
    %p36 = scmp.eq.s32.totalorder %s17, 0
    %p37 = por %p35, %p36
    %p38 = scmp.ne.s32.totalorder %s27, %s30
    %p39 = scmp.eq.s32.totalorder %s22, 1
    %p40 = por %p38, %p39
    %p41 = scmp.ne.s32.totalorder %s30, %s31
    %p42 = scmp.eq.s32.totalorder %s22, 0
    %p43 = por %p41, %p42
    %p44 = scmp.ne.s32.totalorder %s30, %s31
    %p45 = scmp.eq.s32.totalorder %s23, 1
    %p46 = por %p44, %p45
    %p48 = scmp.ne.s32.totalorder %s31, %s47
    %p49 = scmp.eq.s32.totalorder %s23, 0
    %p50 = por %p48, %p49
    %s52 = sadd.s32 %s51, 1
    %p55 = scmp.eq.s32.totalorder %s17, 1
    %p56 = scmp.ne.s32.totalorder %s51, %s53
    %p57 = scmp.eq.s32.totalorder %s17, 0
    %p58 = por %p56, %p57
    %p59 = scmp.ne.s32.totalorder %s51, %s53
    %p60 = scmp.eq.s32.totalorder %s22, 1
    %p61 = por %p59, %p60
    %p62 = scmp.ne.s32.totalorder %s53, %s54
    %p63 = scmp.eq.s32.totalorder %s22, 0
    %p64 = por %p62, %p63
    %p65 = scmp.ne.s32.totalorder %s53, %s54
    %p66 = scmp.eq.s32.totalorder %s23, 1
    %p67 = por %p65, %p66
    %p69 = scmp.ne.s32.totalorder %s54, %s68
    %p70 = scmp.eq.s32.totalorder %s23, 0
    %p71 = por %p69, %p70
    %s73 = sadd.s32 %s72, 1
    %p76 = scmp.eq.s32.totalorder %s17, 1
    %p77 = scmp.ne.s32.totalorder %s72, %s74
    %p78 = scmp.eq.s32.totalorder %s17, 0
    %p79 = por %p77, %p78
    %p80 = scmp.ne.s32.totalorder %s72, %s74
    %p81 = scmp.eq.s32.totalorder %s22, 1
    %p82 = por %p80, %p81
    %p83 = scmp.ne.s32.totalorder %s74, %s75
    %p84 = scmp.eq.s32.totalorder %s22, 0
    %p85 = por %p83, %p84
    %p86 = scmp.ne.s32.totalorder %s74, %s75
    %p87 = scmp.eq.s32.totalorder %s23, 1
    %p88 = por %p86, %p87
    %p90 = scmp.ne.s32.totalorder %s75, %s89
    %p91 = scmp.eq.s32.totalorder %s23, 0
    %p92 = por %p90, %p91
    %s94 = sadd.s32 %s93, 1
    %p97 = scmp.eq.s32.totalorder %s17, 1
    %p98 = scmp.ne.s32.totalorder %s93, %s95
    %p99 = scmp.eq.s32.totalorder %s17, 0
    %p100 = por %p98, %p99
    %p101 = scmp.ne.s32.totalorder %s93, %s95
    %p102 = scmp.eq.s32.totalorder %s22, 1
    %p103 = por %p101, %p102
    %p104 = scmp.ne.s32.totalorder %s95, %s96
    %p105 = scmp.eq.s32.totalorder %s22, 0
    %p106 = por %p104, %p105
    %p107 = scmp.ne.s32.totalorder %s95, %s96
    %p108 = scmp.eq.s32.totalorder %s23, 1
    %p109 = por %p107, %p108
    %p111 = scmp.ne.s32.totalorder %s96, %s110
    %p112 = scmp.eq.s32.totalorder %s23, 0
    %p113 = por %p111, %p112
    %s115 = sadd.s32 %s114, 1
    %p118 = scmp.eq.s32.totalorder %s17, 1
    %p119 = scmp.ne.s32.totalorder %s114, %s116
    %p120 = scmp.eq.s32.totalorder %s17, 0
    %p121 = por %p119, %p120
    %p122 = scmp.ne.s32.totalorder %s114, %s116
    %p123 = scmp.eq.s32.totalorder %s22, 1
    %p124 = por %p122, %p123
    %p125 = scmp.ne.s32.totalorder %s116, %s117
    %p126 = scmp.eq.s32.totalorder %s22, 0
    %p127 = por %p125, %p126
    %p128 = scmp.ne.s32.totalorder %s116, %s117
    %p129 = scmp.eq.s32.totalorder %s23, 1
    %p130 = por %p128, %p129
    %p132 = scmp.ne.s32.totalorder %s117, %s131
    %p133 = scmp.eq.s32.totalorder %s23, 0
    %p134 = por %p132, %p133
    %s136 = sadd.s32 %s135, 1
    %p139 = scmp.eq.s32.totalorder %s17, 1
    %p140 = scmp.ne.s32.totalorder %s135, %s137
    %p141 = scmp.eq.s32.totalorder %s17, 0
    %p142 = por %p140, %p141
    %p143 = scmp.ne.s32.totalorder %s135, %s137
    %p144 = scmp.eq.s32.totalorder %s22, 1
    %p145 = por %p143, %p144
    %p146 = scmp.ne.s32.totalorder %s137, %s138
    %p147 = scmp.eq.s32.totalorder %s22, 0
    %p148 = por %p146, %p147
    %p149 = scmp.ne.s32.totalorder %s137, %s138
    %p150 = scmp.eq.s32.totalorder %s23, 1
    %p151 = por %p149, %p150
    %p153 = scmp.ne.s32.totalorder %s138, %s152
    %p154 = scmp.eq.s32.totalorder %s23, 0
    %p155 = por %p153, %p154
    %s157 = sadd.s32 %s156, 1
    %p160 = scmp.eq.s32.totalorder %s17, 1
    %p161 = scmp.ne.s32.totalorder %s156, %s158
    %p162 = scmp.eq.s32.totalorder %s17, 0
    %p163 = por %p161, %p162
    %p164 = scmp.ne.s32.totalorder %s156, %s158
    %p165 = scmp.eq.s32.totalorder %s22, 1
    %p166 = por %p164, %p165
    %p167 = scmp.ne.s32.totalorder %s158, %s159
    %p168 = scmp.eq.s32.totalorder %s22, 0
    %p169 = por %p167, %p168
    %p170 = scmp.ne.s32.totalorder %s158, %s159
    %p171 = scmp.eq.s32.totalorder %s23, 1
    %p172 = por %p170, %p171
    %p174 = scmp.ne.s32.totalorder %s159, %s173
    %p175 = scmp.eq.s32.totalorder %s23, 0
    %p176 = por %p174, %p175
    %s178 = sadd.s32 %s177, 1
    %p181 = scmp.eq.s32.totalorder %s17, 1
    %p182 = scmp.ne.s32.totalorder %s177, %s179
    %p183 = scmp.eq.s32.totalorder %s17, 0
    %p184 = por %p182, %p183
    %p185 = scmp.ne.s32.totalorder %s177, %s179
    %p186 = scmp.eq.s32.totalorder %s22, 1
    %p187 = por %p185, %p186
    %p188 = scmp.ne.s32.totalorder %s179, %s180
    %p189 = scmp.eq.s32.totalorder %s22, 0
    %p190 = por %p188, %p189
    %p191 = scmp.ne.s32.totalorder %s179, %s180
    %p192 = scmp.eq.s32.totalorder %s23, 1
    %p193 = por %p191, %p192
    %p195 = scmp.ne.s32.totalorder %s180, %s194
    %p196 = scmp.eq.s32.totalorder %s23, 0
    %p197 = por %p195, %p196
    %s199 = sadd.s32 %s198, 1
    %p202 = scmp.eq.s32.totalorder %s17, 1
    %p203 = scmp.ne.s32.totalorder %s198, %s200
    %p204 = scmp.eq.s32.totalorder %s17, 0
    %p205 = por %p203, %p204
    %p206 = scmp.ne.s32.totalorder %s198, %s200
    %p207 = scmp.eq.s32.totalorder %s22, 1
    %p208 = por %p206, %p207
    %p209 = scmp.ne.s32.totalorder %s200, %s201
    %p210 = scmp.eq.s32.totalorder %s22, 0
    %p211 = por %p209, %p210
    %p212 = scmp.ne.s32.totalorder %s200, %s201
    %p213 = scmp.eq.s32.totalorder %s23, 1
    %p214 = por %p212, %p213
    %p216 = scmp.ne.s32.totalorder %s201, %s215
    %p217 = scmp.eq.s32.totalorder %s23, 0
    %p218 = por %p216, %p217
    %s220 = sadd.s32 %s219, 1
    %p223 = scmp.eq.s32.totalorder %s17, 1
    %p224 = scmp.ne.s32.totalorder %s219, %s221
    %p225 = scmp.eq.s32.totalorder %s17, 0
    %p226 = por %p224, %p225
    %p227 = scmp.ne.s32.totalorder %s219, %s221
    %p228 = scmp.eq.s32.totalorder %s22, 1
    %p229 = por %p227, %p228
    %p230 = scmp.ne.s32.totalorder %s221, %s222
    %p231 = scmp.eq.s32.totalorder %s22, 0
    %p232 = por %p230, %p231
    %p233 = scmp.ne.s32.totalorder %s221, %s222
    %p234 = scmp.eq.s32.totalorder %s23, 1
    %p235 = por %p233, %p234
    %p237 = scmp.ne.s32.totalorder %s222, %s236
    %p238 = scmp.eq.s32.totalorder %s23, 0
    %p239 = por %p237, %p238
    %s241 = sadd.s32 %s240, 1
    %p244 = scmp.eq.s32.totalorder %s17, 1
    %p245 = scmp.ne.s32.totalorder %s240, %s242
    %p246 = scmp.eq.s32.totalorder %s17, 0
    %p247 = por %p245, %p246
    %p248 = scmp.ne.s32.totalorder %s240, %s242
    %p249 = scmp.eq.s32.totalorder %s22, 1
    %p250 = por %p248, %p249
    %p251 = scmp.ne.s32.totalorder %s242, %s243
    %p252 = scmp.eq.s32.totalorder %s22, 0
    %p253 = por %p251, %p252
    %p254 = scmp.ne.s32.totalorder %s242, %s243
    %p255 = scmp.eq.s32.totalorder %s23, 1
    %p256 = por %p254, %p255
    %p258 = scmp.ne.s32.totalorder %s243, %s257
    %p259 = scmp.eq.s32.totalorder %s23, 0
    %p260 = por %p258, %p259
    %s261 = ssub.s32 %s17, %s24
    %p262 = scmp.eq.s32.totalorder %s261, 0
    %s264 = sadd.s32 %s263, 1
    %s265 = scalar_select %p262, %s263, %s264
    %p268 = pneg %p262
    %p269 = scmp.eq.s32.totalorder %s17, 1
    %p270 = por %p268, %p269
    %p271 = scmp.ne.s32.totalorder %s263, %s266
    %p272 = scmp.eq.s32.totalorder %s17, 0
    %p273 = por %p271, %p272
    %p274 = scmp.ne.s32.totalorder %s263, %s266
    %p275 = scmp.eq.s32.totalorder %s22, 1
    %p276 = por %p274, %p275
    %p277 = scmp.ne.s32.totalorder %s266, %s267
    %p278 = scmp.eq.s32.totalorder %s22, 0
    %p279 = por %p277, %p278
    %p280 = scmp.ne.s32.totalorder %s266, %s267
    %p281 = scmp.eq.s32.totalorder %s23, 1
    %p282 = por %p280, %p281
    %p284 = scmp.ne.s32.totalorder %s267, %s283
    %p285 = scmp.eq.s32.totalorder %s23, 0
    %p286 = por %p284, %p285
    %p287 = scmp.le.s32.totalorder 1, %s17
    %p288 = scmp.lt.s32.totalorder %s17, 3
    %p289 = pnand %p287, %p288
    %p290 = pneg %p289
    // Predicated region
    $region9: #{model_b_forward.1} parent=5 // pred_check
      _
    $region10: #{model_b_forward.1} parent=5 // pred_check_branch
      %292 = sbr.rel (%p289) target = $region12
    $region11: #{model_b_forward.1} parent=5 // pred_region
      %s293 = ssub.s32 %s17, 1
      // Predicated region
      $region13: #{model_b_forward.1} parent=11 // pred_check
        %p294 = pneg %p64
      $region14: #{model_b_forward.1} parent=11 // pred_check_branch
        %296 = sbr.rel (%p294) target = $region16
      $region15: #{model_b_forward.1} parent=11 // pred_region
        _
      $region16: #{model_b_forward.1} parent=11 // pred_fallthru
        _
      // Predicated region
      $region17: #{model_b_forward.1} parent=11 // pred_check
        %p297 = pneg %p85
      $region18: #{model_b_forward.1} parent=11 // pred_check_branch
        %299 = sbr.rel (%p297) target = $region20
      $region19: #{model_b_forward.1} parent=11 // pred_region
        _
      $region20: #{model_b_forward.1} parent=11 // pred_fallthru
        _
      // Predicated region
      $region21: #{model_b_forward.1} parent=11 // pred_check
        %p300 = pneg %p106
      $region22: #{model_b_forward.1} parent=11 // pred_check_branch
        %302 = sbr.rel (%p300) target = $region24
      $region23: #{model_b_forward.1} parent=11 // pred_region
        _
      $region24: #{model_b_forward.1} parent=11 // pred_fallthru
        _
      // Predicated region
      $region25: #{model_b_forward.1} parent=11 // pred_check
        %p303 = pneg %p127
      $region26: #{model_b_forward.1} parent=11 // pred_check_branch
        %305 = sbr.rel (%p303) target = $region28
      $region27: #{model_b_forward.1} parent=11 // pred_region
        _
      $region28: #{model_b_forward.1} parent=11 // pred_fallthru
        _
      // Predicated region
      $region29: #{model_b_forward.1} parent=11 // pred_check
        %p306 = pneg %p148
      $region30: #{model_b_forward.1} parent=11 // pred_check_branch
        %308 = sbr.rel (%p306) target = $region32
      $region31: #{model_b_forward.1} parent=11 // pred_region
        _
      $region32: #{model_b_forward.1} parent=11 // pred_fallthru
        _
      // Predicated region
      $region33: #{model_b_forward.1} parent=11 // pred_check
        %p309 = pneg %p169
      $region34: #{model_b_forward.1} parent=11 // pred_check_branch
        %311 = sbr.rel (%p309) target = $region36
      $region35: #{model_b_forward.1} parent=11 // pred_region
        _
      $region36: #{model_b_forward.1} parent=11 // pred_fallthru
        _
      // Predicated region
      $region37: #{model_b_forward.1} parent=11 // pred_check
        %p312 = pneg %p190
      $region38: #{model_b_forward.1} parent=11 // pred_check_branch
        %314 = sbr.rel (%p312) target = $region40
      $region39: #{model_b_forward.1} parent=11 // pred_region
        _
      $region40: #{model_b_forward.1} parent=11 // pred_fallthru
        _
      // Predicated region
      $region41: #{model_b_forward.1} parent=11 // pred_check
        %p315 = pneg %p211
      $region42: #{model_b_forward.1} parent=11 // pred_check_branch
        %317 = sbr.rel (%p315) target = $region44
      $region43: #{model_b_forward.1} parent=11 // pred_region
        _
      $region44: #{model_b_forward.1} parent=11 // pred_fallthru
        _
      // Predicated region
      $region45: #{model_b_forward.1} parent=11 // pred_check
        %p318 = pneg %p232
      $region46: #{model_b_forward.1} parent=11 // pred_check_branch
        %320 = sbr.rel (%p318) target = $region48
      $region47: #{model_b_forward.1} parent=11 // pred_region
        _
      $region48: #{model_b_forward.1} parent=11 // pred_fallthru
        _
      // Predicated region
      $region49: #{model_b_forward.1} parent=11 // pred_check
        %p321 = pneg %p253
      $region50: #{model_b_forward.1} parent=11 // pred_check_branch
        %323 = sbr.rel (%p321) target = $region52
      $region51: #{model_b_forward.1} parent=11 // pred_region
        _
      $region52: #{model_b_forward.1} parent=11 // pred_fallthru
        _
    $region12: #{model_b_forward.1} parent=5 // pred_fallthru
      _
    %p324 = scmp.lt.s32.totalorder %s17, 2
    // Predicated region
    $region53: #{model_b_forward.1} parent=5 // pred_check
      %p325 = pneg %p324
    $region54: #{model_b_forward.1} parent=5 // pred_check_branch
      %327 = sbr.rel (%p325) target = $region56
    $region55: #{model_b_forward.1} parent=5 // pred_region
      // Predicated region
      $region57: #{model_b_forward.1} parent=55 // pred_check
        %p328 = pneg %p37
      $region58: #{model_b_forward.1} parent=55 // pred_check_branch
        %330 = sbr.rel (%p328) target = $region60
      $region59: #{model_b_forward.1} parent=55 // pred_region
        %p331 = scmp.lt.s32.totalorder %s17, 1
        %s332 = scalar_select %p331, %s17, 1
        %s333 = smul.addr %s332, 2
        %s334 = smul.addr %s333, 8
        %s335 = scalar_lea.vmem %s0, %s334
      $region60: #{model_b_forward.1} parent=55 // pred_fallthru
        _
    $region56: #{model_b_forward.1} parent=5 // pred_fallthru
      _
    %p336 = scmp.le.s32.totalorder 1, %s17
    %p337 = scmp.lt.s32.totalorder %s17, 3
    %p338 = pnand %p336, %p337
    %p339 = pneg %p338
    // Predicated region
    $region61: #{model_b_forward.1} parent=5 // pred_check
      _
    $region62: #{model_b_forward.1} parent=5 // pred_check_branch
      %341 = sbr.rel (%p338) target = $region64
    $region63: #{model_b_forward.1} parent=5 // pred_region
      %s342 = ssub.s32 %s17, 1
      %p343 = scmp.lt.s32.totalorder %s22, 1
      %s344 = scalar_select %p343, %s22, 1
      %s345 = smul.addr %s344, 2
      %s346 = smul.addr %s345, 8
      %s347 = scalar_lea.vmem %s0, %s346
      %p348 = pneg %p43
      %p349 = pneg %p40
      %p350 = pneg %p64
      %p351 = pneg %p61
      %p352 = pneg %p85
      %p353 = pneg %p82
      %p354 = pneg %p106
      %p355 = pneg %p103
      %p356 = pneg %p127
      %p357 = pneg %p124
      %p358 = pneg %p148
      %p359 = pneg %p145
      %p360 = pneg %p169
      %p361 = pneg %p166
      %p362 = pneg %p190
      %p363 = pneg %p187
      %p364 = pneg %p211
      %p365 = pneg %p208
      %p366 = pneg %p232
      %p367 = pneg %p229
      %p368 = pneg %p253
      %p369 = pneg %p250
      %p370 = pneg %p279
      %p371 = pneg %p276
      %p372 = scmp.lt.s32.totalorder %s22, 1
      %s373 = scalar_select %p372, %s22, 1
      %s374 = smul.addr %s373, 2
      %s375 = smul.addr %s374, 4
      %s376 = scalar_lea.vmem %s11, %s375
      %p377 = scmp.lt.s32.totalorder %s22, 1
      %s378 = scalar_select %p377, %s22, 1
      %s379 = smul.addr %s378, 2
      %s380 = smul.addr %s379, 8
      %s381 = scalar_lea.vmem %s0, %s380
      %p382 = scmp.lt.s32.totalorder %s22, 1
      %s383 = scalar_select %p382, %s22, 1
      %s384 = smul.addr %s383, 2
      %s385 = smul.addr %s384, 4
      %s386 = scalar_lea.vmem %s11, %s385
      %v387 = vlaneseq
      %v388 = vand.u32 %v387, 127
      %v389 = vadd.s32 %v388, 128
      %v390 = vadd.s32 %v388, 256
      %vm391 = vcmp.lt.s32.totalorder %v388, 0
      %v392 = vsub.s32 0, %v388
      %v393 = vsel %vm391, %v392, %v388
      %v394 = vand.u32 %v393, 65535
      %v395 = vshrl.u32 %v393, 16
      %v397 = vmul.u32 %v394, 43691
      %v398 = vmul.u32 %v394, 43690
      %v399 = vmul.u32 %v395, 43691
      %v400 = vmul.u32 %v395, 43690
      %v401 = vshll.u32 %v398, 16
      %v402 = vshrl.u32 %v398, 16
      %v403 = vshll.u32 %v399, 16
      %v404 = vshrl.u32 %v399, 16
      %vm405 = vc.u32 %v397, %v401
      %v406 = vsel %vm405, 1, 0
      %v407 = vadd.s32 %v397, %v401
      %v408 = vadd.s32 %v400, %v406
      %vm409 = vc.u32 %v407, %v403
      %v410 = vsel %vm409, 1, 0
      %v411 = vadd.s32 %v407, %v403
      %v412 = vadd.s32 %v408, %v410
      %v413 = vadd.s32 %v412, %v402
      %v414 = vadd.s32 %v413, %v404
      %v415 = vshrl.u32 %v414, 4
      %v416 = vmul.u32 %v415, 24
      %v417 = vsub.s32 %v393, %v416
      %v418 = vsub.s32 0, %v417
      %v419 = vsel %vm391, %v418, %v417
      %vm420 = vcmp.lt.s32.totalorder %v389, 0
      %v421 = vsub.s32 0, %v389
      %v422 = vsel %vm420, %v421, %v389
      %v423 = vand.u32 %v422, 65535
      %v424 = vshrl.u32 %v422, 16
      %v426 = vmul.u32 %v423, 43691
      %v427 = vmul.u32 %v423, 43690
      %v428 = vmul.u32 %v424, 43691
      %v429 = vmul.u32 %v424, 43690
      %v430 = vshll.u32 %v427, 16
      %v431 = vshrl.u32 %v427, 16
      %v432 = vshll.u32 %v428, 16
      %v433 = vshrl.u32 %v428, 16
      %vm434 = vc.u32 %v426, %v430
      %v435 = vsel %vm434, 1, 0
      %v436 = vadd.s32 %v426, %v430
      %v437 = vadd.s32 %v429, %v435
      %vm438 = vc.u32 %v436, %v432
      %v439 = vsel %vm438, 1, 0
      %v440 = vadd.s32 %v436, %v432
      %v441 = vadd.s32 %v437, %v439
      %v442 = vadd.s32 %v441, %v431
      %v443 = vadd.s32 %v442, %v433
      %v444 = vshrl.u32 %v443, 4
      %v445 = vmul.u32 %v444, 24
      %v446 = vsub.s32 %v422, %v445
      %v447 = vsub.s32 0, %v446
      %v448 = vsel %vm420, %v447, %v446
      %vm449 = vcmp.lt.s32.totalorder %v390, 0
      %v450 = vsub.s32 0, %v390
      %v451 = vsel %vm449, %v450, %v390
      %v452 = vand.u32 %v451, 65535
      %v453 = vshrl.u32 %v451, 16
      %v455 = vmul.u32 %v452, 43691
      %v456 = vmul.u32 %v452, 43690
      %v457 = vmul.u32 %v453, 43691
      %v458 = vmul.u32 %v453, 43690
      %v459 = vshll.u32 %v456, 16
      %v460 = vshrl.u32 %v456, 16
      %v461 = vshll.u32 %v457, 16
      %v462 = vshrl.u32 %v457, 16
      %vm463 = vc.u32 %v455, %v459
      %v464 = vsel %vm463, 1, 0
      %v465 = vadd.s32 %v455, %v459
      %v466 = vadd.s32 %v458, %v464
      %vm467 = vc.u32 %v465, %v461
      %v468 = vsel %vm467, 1, 0
      %v469 = vadd.s32 %v465, %v461
      %v470 = vadd.s32 %v466, %v468
      %v471 = vadd.s32 %v470, %v460
      %v472 = vadd.s32 %v471, %v462
      %v473 = vshrl.u32 %v472, 4
      %v474 = vmul.u32 %v473, 24
      %v475 = vsub.s32 %v451, %v474
      %v476 = vsub.s32 0, %v475
      %v477 = vsel %vm449, %v476, %v475
      %vm478 = vcmp.ne.s32.totalorder %v419, 0
      %vm479 = vcmp.ne.s32.totalorder %v448, 0
      %vm480 = vcmp.ne.s32.totalorder %v477, 0
      %vm481 = vcmp.lt.s32.totalorder %v419, 0
      %vm482 = vcmp.lt.s32.totalorder %v448, 0
      %vm483 = vcmp.lt.s32.totalorder %v477, 0
      %vm484 = vmand %vm481, %vm478
      %vm485 = vmand %vm482, %vm479
      %vm486 = vmand %vm483, %vm480
      %v487 = vadd.s32 %v419, 24
      %v488 = vadd.s32 %v448, 24
      %v489 = vadd.s32 %v477, 24
      %v490 = vsel %vm484, %v487, %v419
      %v491 = vsel %vm485, %v488, %v448
      %v492 = vsel %vm486, %v489, %v477
      %vm493 = vcmp.lt.s32.totalorder %v490, 16
      %vm494 = vcmp.lt.s32.totalorder %v491, 16
      %vm495 = vcmp.lt.s32.totalorder %v492, 16
      %v496 = vld [vmem:[%s381] sm:$0xff]
      %v497 = vld [vmem:[%s381 + $0x8] sm:$0xff]
      %v498 = vld [vmem:[%s1] sm:$0xff]
      %v499 = vld [vmem:[%s1 + $0x8] sm:$0xff]
      %v500 = vld [vmem:[%s1 + $0x10] sm:$0xff]
      %v501 = vld [vmem:[%s1 + $0x18] sm:$0xff]
      %v502 = vld [vmem:[%s1 + $0x20] sm:$0xff]
      %v503 = vld [vmem:[%s1 + $0x28] sm:$0xff]
      %v504 = vld [vmem:[%s1 + $0x30] sm:$0xff]
      %v505 = vld [vmem:[%s1 + $0x38] sm:$0xff]
      %v506 = vld [vmem:[%s1 + $0x40] sm:$0xff]
      %v507 = vld [vmem:[%s1 + $0x48] sm:$0xff]
      %v508 = vld [vmem:[%s1 + $0x50] sm:$0xff]
      %v509 = vld [vmem:[%s1 + $0x58] sm:$0xff]
      %v510 = vld [vmem:[%s1 + $0x60] sm:$0xff]
      %v511 = vld [vmem:[%s1 + $0x68] sm:$0xff]
      %v512 = vld [vmem:[%s1 + $0x70] sm:$0xff]
      %v513 = vld [vmem:[%s1 + $0x78] sm:$0xff]
      %v514 = vld [vmem:[%s1 + $0x80] sm:$0xff]
      %v515 = vld [vmem:[%s1 + $0x88] sm:$0xff]
      %v516 = vld [vmem:[%s1 + $0x90] sm:$0xff]
      %v517 = vld [vmem:[%s1 + $0x98] sm:$0xff]
      %v518 = vld [vmem:[%s1 + $0xa0] sm:$0xff]
      %v519 = vld [vmem:[%s1 + $0xa8] sm:$0xff]
      %v520 = vld [vmem:[%s1 + $0xb0] sm:$0xff]
      %v521 = vld [vmem:[%s1 + $0xb8] sm:$0xff]
      %v522 = vld [vmem:[%s1 + $0xc0] sm:$0xff]
      %v523 = vld [vmem:[%s1 + $0xc8] sm:$0xff]
      %v524 = vld [vmem:[%s1 + $0xd0] sm:$0xff]
      %v525 = vld [vmem:[%s1 + $0xd8] sm:$0xff]
      %v526 = vld [vmem:[%s1 + $0xe0] sm:$0xff]
      %v527 = vld [vmem:[%s1 + $0xe8] sm:$0xff]
      %v528 = vld [vmem:[%s1 + $0xf0] sm:$0xff]
      %v529 = vld [vmem:[%s1 + $0xf8] sm:$0xff]
      %v530 = vld [vmem:[%s1 + $0x100] sm:$0xff]
      %v531 = vld [vmem:[%s1 + $0x108] sm:$0xff]
      %v532 = vld [vmem:[%s1 + $0x110] sm:$0xff]
      %v533 = vld [vmem:[%s1 + $0x118] sm:$0xff]
      %v534 = vld [vmem:[%s1 + $0x120] sm:$0xff]
      %v535 = vld [vmem:[%s1 + $0x128] sm:$0xff]
      %v536 = vld [vmem:[%s1 + $0x130] sm:$0xff]
      %v537 = vld [vmem:[%s1 + $0x138] sm:$0xff]
      %v538 = vld [vmem:[%s1 + $0x140] sm:$0xff]
      %v539 = vld [vmem:[%s1 + $0x148] sm:$0xff]
      %v540 = vld [vmem:[%s1 + $0x150] sm:$0xff]
      %v541 = vld [vmem:[%s1 + $0x158] sm:$0xff]
      %v542 = vld [vmem:[%s1 + $0x160] sm:$0xff]
      %v543 = vld [vmem:[%s1 + $0x168] sm:$0xff]
      %v544 = vld [vmem:[%s1 + $0x170] sm:$0xff]
      %v545 = vld [vmem:[%s1 + $0x178] sm:$0xff]
      %v546 = vld [vmem:[%s1 + $0x180] sm:$0xff]
      %v547 = vld [vmem:[%s1 + $0x188] sm:$0xff]
      %v548 = vld [vmem:[%s1 + $0x190] sm:$0xff]
      %v549 = vld [vmem:[%s1 + $0x198] sm:$0xff]
      %v550 = vld [vmem:[%s1 + $0x1a0] sm:$0xff]
      %v551 = vld [vmem:[%s1 + $0x1a8] sm:$0xff]
      %v552 = vld [vmem:[%s1 + $0x1b0] sm:$0xff]
      %v553 = vld [vmem:[%s1 + $0x1b8] sm:$0xff]
      %v554 = vld [vmem:[%s1 + $0x1c0] sm:$0xff]
      %v555 = vld [vmem:[%s1 + $0x1c8] sm:$0xff]
      %v556 = vld [vmem:[%s1 + $0x1d0] sm:$0xff]
      %v557 = vld [vmem:[%s1 + $0x1d8] sm:$0xff]
      %v558 = vld [vmem:[%s1 + $0x1e0] sm:$0xff]
      %v559 = vld [vmem:[%s1 + $0x1e8] sm:$0xff]
      %v560 = vld [vmem:[%s1 + $0x1f0] sm:$0xff]
      %v561 = vld [vmem:[%s1 + $0x1f8] sm:$0xff]
      %v562 = vld [vmem:[%s1 + $0x200] sm:$0xff]
      %v563 = vld [vmem:[%s1 + $0x208] sm:$0xff]
      %v564 = vld [vmem:[%s1 + $0x210] sm:$0xff]
      %v565 = vld [vmem:[%s1 + $0x218] sm:$0xff]
      %v566 = vld [vmem:[%s1 + $0x220] sm:$0xff]
      %v567 = vld [vmem:[%s1 + $0x228] sm:$0xff]
      %v568 = vld [vmem:[%s1 + $0x230] sm:$0xff]
      %v569 = vld [vmem:[%s1 + $0x238] sm:$0xff]
      %v570 = vld [vmem:[%s1 + $0x240] sm:$0xff]
      %v571 = vld [vmem:[%s1 + $0x248] sm:$0xff]
      %v572 = vld [vmem:[%s1 + $0x250] sm:$0xff]
      %v573 = vld [vmem:[%s1 + $0x258] sm:$0xff]
      %v574 = vld [vmem:[%s1 + $0x260] sm:$0xff]
      %v575 = vld [vmem:[%s1 + $0x268] sm:$0xff]
      %v576 = vld [vmem:[%s1 + $0x270] sm:$0xff]
      %v577 = vld [vmem:[%s1 + $0x278] sm:$0xff]
      %v578 = vld [vmem:[%s1 + $0x280] sm:$0xff]
      %v579 = vld [vmem:[%s1 + $0x288] sm:$0xff]
      %v580 = vld [vmem:[%s1 + $0x290] sm:$0xff]
      %v581 = vld [vmem:[%s1 + $0x298] sm:$0xff]
      %v582 = vld [vmem:[%s1 + $0x2a0] sm:$0xff]
      %v583 = vld [vmem:[%s1 + $0x2a8] sm:$0xff]
      %v584 = vld [vmem:[%s1 + $0x2b0] sm:$0xff]
      %v585 = vld [vmem:[%s1 + $0x2b8] sm:$0xff]
      %v586 = vld [vmem:[%s1 + $0x2c0] sm:$0xff]
      %v587 = vld [vmem:[%s1 + $0x2c8] sm:$0xff]
      %v588 = vld [vmem:[%s1 + $0x2d0] sm:$0xff]
      %v589 = vld [vmem:[%s1 + $0x2d8] sm:$0xff]
      %v590 = vld [vmem:[%s1 + $0x2e0] sm:$0xff]
      %v591 = vld [vmem:[%s1 + $0x2e8] sm:$0xff]
      %v592 = vld [vmem:[%s1 + $0x2f0] sm:$0xff]
      %v593 = vld [vmem:[%s1 + $0x2f8] sm:$0xff]
      %594 = vmatpush.msra.mxu0 %v543
      %595 = vmatpush.msra.mxu0 %v540
      %596 = vmatpush.msra.mxu0 %v537
      %597 = vmatpush.msra.mxu0 %v534
      %598 = vmatpush.msra.mxu0 %v531
      %599 = vmatpush.msra.mxu0 %v528
      %600 = vmatpush.msra.mxu0 %v525
      %601 = vmatpush.msra.mxu0 %v522
      %602 = vmatpush.msra.mxu0 %v519
      %603 = vmatpush.msra.mxu0 %v516
      %604 = vmatpush.msra.mxu0 %v513
      %605 = vmatpush.msra.mxu0 %v510
      %606 = vmatpush.msra.mxu0 %v507
      %607 = vmatpush.msra.mxu0 %v504
      %608 = vmatpush.msra.mxu0 %v501
      %609 = vmatpush.msra.mxu0 %v498
      %610 = vmatmul.f32.gmra.mxu0 %v496
      %v611 = vpop.f32.mrf.mxu0
      %v612 = vadd.f32 0.0, %v611
      %613 = vdwg.mxu0
      %614 = vmatpush.msra.mxu0 %v591
      %615 = vmatpush.msra.mxu0 %v588
      %616 = vmatpush.msra.mxu0 %v585
      %617 = vmatpush.msra.mxu0 %v582
      %618 = vmatpush.msra.mxu0 %v579
      %619 = vmatpush.msra.mxu0 %v576
      %620 = vmatpush.msra.mxu0 %v573
      %621 = vmatpush.msra.mxu0 %v570
      %622 = vmatpush.msra.mxu0 %v567
      %623 = vmatpush.msra.mxu0 %v564
      %624 = vmatpush.msra.mxu0 %v561
      %625 = vmatpush.msra.mxu0 %v558
      %626 = vmatpush.msra.mxu0 %v555
      %627 = vmatpush.msra.mxu0 %v552
      %628 = vmatpush.msra.mxu0 %v549
      %629 = vmatpush.msra.mxu0 %v546
      %630 = vmatmul.f32.gmra.mxu0 %v497
      %v631 = vpop.f32.mrf.mxu0
      %v632 = vadd.f32 %v612, %v631
      %633 = vdwg.mxu0
      %634 = vmatpush.msra.mxu0 %v544
      %635 = vmatpush.msra.mxu0 %v541
      %636 = vmatpush.msra.mxu0 %v538
      %637 = vmatpush.msra.mxu0 %v535
      %638 = vmatpush.msra.mxu0 %v532
      %639 = vmatpush.msra.mxu0 %v529
      %640 = vmatpush.msra.mxu0 %v526
      %641 = vmatpush.msra.mxu0 %v523
      %642 = vmatpush.msra.mxu0 %v520
      %643 = vmatpush.msra.mxu0 %v517
      %644 = vmatpush.msra.mxu0 %v514
      %645 = vmatpush.msra.mxu0 %v511
      %646 = vmatpush.msra.mxu0 %v508
      %647 = vmatpush.msra.mxu0 %v505
      %648 = vmatpush.msra.mxu0 %v502
      %649 = vmatpush.msra.mxu0 %v499
      %650 = vmatmul.f32.gmra.mxu0 %v496
      %v651 = vpop.f32.mrf.mxu0
      %v652 = vadd.f32 0.0, %v651
      %653 = vdwg.mxu0
      %654 = vmatpush.msra.mxu0 %v592
      %655 = vmatpush.msra.mxu0 %v589
      %656 = vmatpush.msra.mxu0 %v586
      %657 = vmatpush.msra.mxu0 %v583
      %658 = vmatpush.msra.mxu0 %v580
      %659 = vmatpush.msra.mxu0 %v577
      %660 = vmatpush.msra.mxu0 %v574
      %661 = vmatpush.msra.mxu0 %v571
      %662 = vmatpush.msra.mxu0 %v568
      %663 = vmatpush.msra.mxu0 %v565
      %664 = vmatpush.msra.mxu0 %v562
      %665 = vmatpush.msra.mxu0 %v559
      %666 = vmatpush.msra.mxu0 %v556
      %667 = vmatpush.msra.mxu0 %v553
      %668 = vmatpush.msra.mxu0 %v550
      %669 = vmatpush.msra.mxu0 %v547
      %670 = vmatmul.f32.gmra.mxu0 %v497
      %v671 = vpop.f32.mrf.mxu0
      %v672 = vadd.f32 %v652, %v671
      %673 = vdwg.mxu0
      %674 = vmatpush.msra.mxu0 %v545
      %675 = vmatpush.msra.mxu0 %v542
      %676 = vmatpush.msra.mxu0 %v539
      %677 = vmatpush.msra.mxu0 %v536
      %678 = vmatpush.msra.mxu0 %v533
      %679 = vmatpush.msra.mxu0 %v530
      %680 = vmatpush.msra.mxu0 %v527
      %681 = vmatpush.msra.mxu0 %v524
      %682 = vmatpush.msra.mxu0 %v521
      %683 = vmatpush.msra.mxu0 %v518
      %684 = vmatpush.msra.mxu0 %v515
      %685 = vmatpush.msra.mxu0 %v512
      %686 = vmatpush.msra.mxu0 %v509
      %687 = vmatpush.msra.mxu0 %v506
      %688 = vmatpush.msra.mxu0 %v503
      %689 = vmatpush.msra.mxu0 %v500
      %690 = vmatmul.f32.gmra.mxu0 %v496
      %v691 = vpop.f32.mrf.mxu0
      %v692 = vadd.f32 0.0, %v691
      %693 = vdwg.mxu0
      %694 = vmatpush.msra.mxu0 %v593
      %695 = vmatpush.msra.mxu0 %v590
      %696 = vmatpush.msra.mxu0 %v587
      %697 = vmatpush.msra.mxu0 %v584
      %698 = vmatpush.msra.mxu0 %v581
      %699 = vmatpush.msra.mxu0 %v578
      %700 = vmatpush.msra.mxu0 %v575
      %701 = vmatpush.msra.mxu0 %v572
      %702 = vmatpush.msra.mxu0 %v569
      %703 = vmatpush.msra.mxu0 %v566
      %704 = vmatpush.msra.mxu0 %v563
      %705 = vmatpush.msra.mxu0 %v560
      %706 = vmatpush.msra.mxu0 %v557
      %707 = vmatpush.msra.mxu0 %v554
      %708 = vmatpush.msra.mxu0 %v551
      %709 = vmatpush.msra.mxu0 %v548
      %710 = vmatmul.f32.gmra.mxu0 %v497
      %v711 = vpop.f32.mrf.mxu0
      %v712 = vadd.f32 %v692, %v711
      %713 = vdwg.mxu0
      %714 = vst [vmem:[#allocation2] sm:$0xff] 0.0
      %715 = vst [vmem:[#allocation2 + $0x20] sm:$0xff] 0.0
      %716 = vst [vmem:[#allocation2 + $0x8] sm:$0xff] %v632
      %717 = vst [vmem:[#allocation2 + $0x10] sm:$0xff] %v672
      %718 = vst [vmem:[#allocation2 + $0x18] sm:$0xff] %v712
      %v719 = vld [vmem:[#allocation2] sm:$0xff]
      %v720 = vld [vmem:[#allocation2 + $0x8] sm:$0xff]
      %v721 = vld [vmem:[#allocation2 + $0x10] sm:$0xff]
      %v722 = vld [vmem:[#allocation2 + $0x18] sm:$0xff]
      %727 = vrot.lane.b32.xlu0 %v719, 127
      %v728 = vpop.permute.xlu0 %727
      %729 = vrot.lane.b32.xlu0 %v720, 127
      %v730 = vpop.permute.xlu0 %729
      %731 = vrot.lane.b32.xlu0 %v721, 127
      %v732 = vpop.permute.xlu0 %731
      %733 = vrot.lane.b32.xlu0 %v722, 127
      %v734 = vpop.permute.xlu0 %733
      %vm735 = vcmask 1039360
      %v736 = vsel %vm735, %v728, %v730
      %v737 = vsel %vm735, %v730, %v732
      %v738 = vsel %vm735, %v732, %v734
      %739 = vrot.lane.b32.xlu0 %v719, 126
      %v740 = vpop.permute.xlu0 %739
      %741 = vrot.lane.b32.xlu0 %v720, 126
      %v742 = vpop.permute.xlu0 %741
      %743 = vrot.lane.b32.xlu0 %v721, 126
      %v744 = vpop.permute.xlu0 %743
      %745 = vrot.lane.b32.xlu0 %v722, 126
      %v746 = vpop.permute.xlu0 %745
      %vm747 = vcmask 1031168
      %v748 = vsel %vm747, %v740, %v742
      %v749 = vsel %vm747, %v742, %v744
      %v750 = vsel %vm747, %v744, %v746
      %751 = vrot.lane.b32.xlu0 %v719, 125
      %v752 = vpop.permute.xlu0 %751
      %753 = vrot.lane.b32.xlu0 %v720, 125
      %v754 = vpop.permute.xlu0 %753
      %755 = vrot.lane.b32.xlu0 %v721, 125
      %v756 = vpop.permute.xlu0 %755
      %757 = vrot.lane.b32.xlu0 %v722, 125
      %v758 = vpop.permute.xlu0 %757
      %vm759 = vcmask 1022976
      %v760 = vsel %vm759, %v752, %v754
      %v761 = vsel %vm759, %v754, %v756
      %v762 = vsel %vm759, %v756, %v758
      %763 = vrot.lane.b32.xlu0 %v719, 124
      %v764 = vpop.permute.xlu0 %763
      %765 = vrot.lane.b32.xlu0 %v720, 124
      %v766 = vpop.permute.xlu0 %765
      %767 = vrot.lane.b32.xlu0 %v721, 124
      %v768 = vpop.permute.xlu0 %767
      %769 = vrot.lane.b32.xlu0 %v722, 124
      %v770 = vpop.permute.xlu0 %769
      %vm771 = vcmask 1014784
      %v772 = vsel %vm771, %v764, %v766
      %v773 = vsel %vm771, %v766, %v768
      %v774 = vsel %vm771, %v768, %v770
      %775 = vrot.lane.b32.xlu0 %v719, 123
      %v776 = vpop.permute.xlu0 %775
      %777 = vrot.lane.b32.xlu0 %v720, 123
      %v778 = vpop.permute.xlu0 %777
      %779 = vrot.lane.b32.xlu0 %v721, 123
      %v780 = vpop.permute.xlu0 %779
      %781 = vrot.lane.b32.xlu0 %v722, 123
      %v782 = vpop.permute.xlu0 %781
      %vm783 = vcmask 1006592
      %v784 = vsel %vm783, %v776, %v778
      %v785 = vsel %vm783, %v778, %v780
      %v786 = vsel %vm783, %v780, %v782
      %787 = vrot.lane.b32.xlu0 %v719, 122
      %v788 = vpop.permute.xlu0 %787
      %789 = vrot.lane.b32.xlu0 %v720, 122
      %v790 = vpop.permute.xlu0 %789
      %791 = vrot.lane.b32.xlu0 %v721, 122
      %v792 = vpop.permute.xlu0 %791
      %793 = vrot.lane.b32.xlu0 %v722, 122
      %v794 = vpop.permute.xlu0 %793
      %vm795 = vcmask 998400
      %v796 = vsel %vm795, %v788, %v790
      %v797 = vsel %vm795, %v790, %v792
      %v798 = vsel %vm795, %v792, %v794
      %799 = vrot.lane.b32.xlu0 %v719, 121
      %v800 = vpop.permute.xlu0 %799
      %801 = vrot.lane.b32.xlu0 %v720, 121
      %v802 = vpop.permute.xlu0 %801
      %803 = vrot.lane.b32.xlu0 %v721, 121
      %v804 = vpop.permute.xlu0 %803
      %805 = vrot.lane.b32.xlu0 %v722, 121
      %v806 = vpop.permute.xlu0 %805
      %vm807 = vcmask 990208
      %v808 = vsel %vm807, %v800, %v802
      %v809 = vsel %vm807, %v802, %v804
      %v810 = vsel %vm807, %v804, %v806
      %811 = vrot.lane.b32.xlu0 %v719, 120
      %v812 = vpop.permute.xlu0 %811
      %813 = vrot.lane.b32.xlu0 %v720, 120
      %v814 = vpop.permute.xlu0 %813
      %815 = vrot.lane.b32.xlu0 %v721, 120
      %v816 = vpop.permute.xlu0 %815
      %817 = vrot.lane.b32.xlu0 %v722, 120
      %v818 = vpop.permute.xlu0 %817
      %vm819 = vcmask 982016
      %v820 = vsel %vm819, %v812, %v814
      %v821 = vsel %vm819, %v814, %v816
      %v822 = vsel %vm819, %v816, %v818
      %v823 = vld [vmem:[%s3] sm:$0xff]
      %v824 = vld [vmem:[%s3 + $0x8] sm:$0xff]
      %v825 = vld [vmem:[%s3 + $0x10] sm:$0xff]
      %v826 = vld [vmem:[%s3 + $0x18] sm:$0xff]
      %v827 = vld [vmem:[%s3 + $0x20] sm:$0xff]
      %v828 = vld [vmem:[%s3 + $0x28] sm:$0xff]
      %v829 = vld [vmem:[%s3 + $0x30] sm:$0xff]
      %v830 = vld [vmem:[%s3 + $0x38] sm:$0xff]
      %s831 = scalar_lea.vmem %s3, 64
      %v832 = vld [vmem:[%s831] sm:$0xff]
      %v833 = vld [vmem:[%s831 + $0x8] sm:$0xff]
      %v834 = vld [vmem:[%s831 + $0x10] sm:$0xff]
      %v835 = vld [vmem:[%s831 + $0x18] sm:$0xff]
      %v836 = vld [vmem:[%s831 + $0x20] sm:$0xff]
      %v837 = vld [vmem:[%s831 + $0x28] sm:$0xff]
      %v838 = vld [vmem:[%s831 + $0x30] sm:$0xff]
      %v839 = vld [vmem:[%s831 + $0x38] sm:$0xff]
      %840 = vrot.lane.b32.xlu0 %v719, 76
      %v841 = vpop.permute.xlu0 %840
      %842 = vrot.lane.b32.xlu0 %v720, 76
      %v843 = vpop.permute.xlu0 %842
      %844 = vrot.lane.b32.xlu0 %v721, 76
      %v845 = vpop.permute.xlu0 %844
      %846 = vrot.lane.b32.xlu0 %v722, 76
      %v847 = vpop.permute.xlu0 %846
      %848 = vrot.lane.b32.xlu0 %v736, 76
      %v849 = vpop.permute.xlu0 %848
      %850 = vrot.lane.b32.xlu0 %v737, 76
      %v851 = vpop.permute.xlu0 %850
      %852 = vrot.lane.b32.xlu0 %v738, 76
      %v853 = vpop.permute.xlu0 %852
      %854 = vrot.lane.b32.xlu0 %v734, 76
      %v855 = vpop.permute.xlu0 %854
      %856 = vrot.lane.b32.xlu0 %v748, 76
      %v857 = vpop.permute.xlu0 %856
      %858 = vrot.lane.b32.xlu0 %v749, 76
      %v859 = vpop.permute.xlu0 %858
      %860 = vrot.lane.b32.xlu0 %v750, 76
      %v861 = vpop.permute.xlu0 %860
      %862 = vrot.lane.b32.xlu0 %v746, 76
      %v863 = vpop.permute.xlu0 %862
      %864 = vrot.lane.b32.xlu0 %v760, 76
      %v865 = vpop.permute.xlu0 %864
      %866 = vrot.lane.b32.xlu0 %v761, 76
      %v867 = vpop.permute.xlu0 %866
      %868 = vrot.lane.b32.xlu0 %v762, 76
      %v869 = vpop.permute.xlu0 %868
      %870 = vrot.lane.b32.xlu0 %v758, 76
      %v871 = vpop.permute.xlu0 %870
      %872 = vrot.lane.b32.xlu0 %v772, 76
      %v873 = vpop.permute.xlu0 %872
      %874 = vrot.lane.b32.xlu0 %v773, 76
      %v875 = vpop.permute.xlu0 %874
      %876 = vrot.lane.b32.xlu0 %v774, 76
      %v877 = vpop.permute.xlu0 %876
      %878 = vrot.lane.b32.xlu0 %v770, 76
      %v879 = vpop.permute.xlu0 %878
      %880 = vrot.lane.b32.xlu0 %v784, 76
      %v881 = vpop.permute.xlu0 %880
      %882 = vrot.lane.b32.xlu0 %v785, 76
      %v883 = vpop.permute.xlu0 %882
      %884 = vrot.lane.b32.xlu0 %v786, 76
      %v885 = vpop.permute.xlu0 %884
      %886 = vrot.lane.b32.xlu0 %v782, 76
      %v887 = vpop.permute.xlu0 %886
      %888 = vrot.lane.b32.xlu0 %v796, 76
      %v889 = vpop.permute.xlu0 %888
      %890 = vrot.lane.b32.xlu0 %v797, 76
      %v891 = vpop.permute.xlu0 %890
      %892 = vrot.lane.b32.xlu0 %v798, 76
      %v893 = vpop.permute.xlu0 %892
      %894 = vrot.lane.b32.xlu0 %v794, 76
      %v895 = vpop.permute.xlu0 %894
      %896 = vrot.lane.b32.xlu0 %v808, 76
      %v897 = vpop.permute.xlu0 %896
      %898 = vrot.lane.b32.xlu0 %v809, 76
      %v899 = vpop.permute.xlu0 %898
      %900 = vrot.lane.b32.xlu0 %v810, 76
      %v901 = vpop.permute.xlu0 %900
      %902 = vrot.lane.b32.xlu0 %v806, 76
      %v903 = vpop.permute.xlu0 %902
      %904 = vrot.lane.b32.xlu0 %v820, 76
      %v905 = vpop.permute.xlu0 %904
      %906 = vrot.lane.b32.xlu0 %v821, 76
      %v907 = vpop.permute.xlu0 %906
      %908 = vrot.lane.b32.xlu0 %v822, 76
      %v909 = vpop.permute.xlu0 %908
      %910 = vrot.lane.b32.xlu0 %v818, 76
      %v911 = vpop.permute.xlu0 %910
      %vm912 = vcmask 621568
      %v913 = vsel %vm912, %v841, %v843
      %v914 = vsel %vm912, %v843, %v845
      %v915 = vsel %vm912, %v845, %v847
      %v916 = vsel %vm912, %v849, %v851
      %v917 = vsel %vm912, %v851, %v853
      %v918 = vsel %vm912, %v853, %v855
      %v919 = vsel %vm912, %v857, %v859
      %v920 = vsel %vm912, %v859, %v861
      %v921 = vsel %vm912, %v861, %v863
      %v922 = vsel %vm912, %v865, %v867
      %v923 = vsel %vm912, %v867, %v869
      %v924 = vsel %vm912, %v869, %v871
      %v925 = vsel %vm912, %v873, %v875
      %v926 = vsel %vm912, %v875, %v877
      %v927 = vsel %vm912, %v877, %v879
      %v928 = vsel %vm912, %v881, %v883
      %v929 = vsel %vm912, %v883, %v885
      %v930 = vsel %vm912, %v885, %v887
      %v931 = vsel %vm912, %v889, %v891
      %v932 = vsel %vm912, %v891, %v893
      %v933 = vsel %vm912, %v893, %v895
      %v934 = vsel %vm912, %v897, %v899
      %v935 = vsel %vm912, %v899, %v901
      %v936 = vsel %vm912, %v901, %v903
      %v937 = vsel %vm912, %v905, %v907
      %v938 = vsel %vm912, %v907, %v909
      %v939 = vsel %vm912, %v909, %v911
      %vm967 = vcmask 588800
      %v969 = vsel %vm967, %v832, 0
      %v972 = vsel %vm967, %v833, 0
      %v975 = vsel %vm967, %v834, 0
      %v978 = vsel %vm967, %v835, 0
      %v981 = vsel %vm967, %v836, 0
      %v984 = vsel %vm967, %v837, 0
      %v987 = vsel %vm967, %v838, 0
      %v990 = vsel %vm967, %v839, 0
      %992 = vmatpush.msra.mxu0 0.0
      %993 = vmatpush.msra.mxu0 0.0
      %994 = vmatpush.msra.mxu0 0.0
      %995 = vmatpush.msra.mxu0 0.0
      %996 = vmatpush.msra.mxu0 0.0
      %997 = vmatpush.msra.mxu0 0.0
      %998 = vmatpush.msra.mxu0 0.0
      %999 = vmatpush.msra.mxu0 %v937
      %1000 = vmatpush.msra.mxu0 %v934
      %1001 = vmatpush.msra.mxu0 %v931
      %1002 = vmatpush.msra.mxu0 %v928
      %1003 = vmatpush.msra.mxu0 %v925
      %1004 = vmatpush.msra.mxu0 %v922
      %1005 = vmatpush.msra.mxu0 %v919
      %1006 = vmatpush.msra.mxu0 %v916
      %1007 = vmatpush.msra.mxu0 %v913
      %1008 = vmatmul.f32.gmra.mxu0 %v969
      %v1009 = vpop.f32.mrf.mxu0
      %v1010 = vadd.f32 0.0, %v1009
      %1011 = vmatmul.f32.gmra.mxu0 %v972
      %v1012 = vpop.f32.mrf.mxu0
      %v1013 = vadd.f32 0.0, %v1012
      %1014 = vmatmul.f32.gmra.mxu0 %v975
      %v1015 = vpop.f32.mrf.mxu0
      %v1016 = vadd.f32 0.0, %v1015
      %1017 = vmatmul.f32.gmra.mxu0 %v978
      %v1018 = vpop.f32.mrf.mxu0
      %v1019 = vadd.f32 0.0, %v1018
      %1020 = vmatmul.f32.gmra.mxu0 %v981
      %v1021 = vpop.f32.mrf.mxu0
      %v1022 = vadd.f32 0.0, %v1021
      %1023 = vmatmul.f32.gmra.mxu0 %v984
      %v1024 = vpop.f32.mrf.mxu0
      %v1025 = vadd.f32 0.0, %v1024
      %1026 = vmatmul.f32.gmra.mxu0 %v987
      %v1027 = vpop.f32.mrf.mxu0
      %v1028 = vadd.f32 0.0, %v1027
      %1029 = vmatmul.f32.gmra.mxu0 %v990
      %v1030 = vpop.f32.mrf.mxu0
      %v1031 = vadd.f32 0.0, %v1030
      %1032 = vdwg.mxu0
      %1033 = vmatpush.msra.mxu0 0.0
      %1034 = vmatpush.msra.mxu0 0.0
      %1035 = vmatpush.msra.mxu0 0.0
      %1036 = vmatpush.msra.mxu0 0.0
      %1037 = vmatpush.msra.mxu0 0.0
      %1038 = vmatpush.msra.mxu0 0.0
      %1039 = vmatpush.msra.mxu0 0.0
      %1040 = vmatpush.msra.mxu0 %v938
      %1041 = vmatpush.msra.mxu0 %v935
      %1042 = vmatpush.msra.mxu0 %v932
      %1043 = vmatpush.msra.mxu0 %v929
      %1044 = vmatpush.msra.mxu0 %v926
      %1045 = vmatpush.msra.mxu0 %v923
      %1046 = vmatpush.msra.mxu0 %v920
      %1047 = vmatpush.msra.mxu0 %v917
      %1048 = vmatpush.msra.mxu0 %v914
      %1049 = vmatmul.f32.gmra.mxu0 %v969
      %v1050 = vpop.f32.mrf.mxu0
      %v1051 = vadd.f32 0.0, %v1050
      %1052 = vmatmul.f32.gmra.mxu0 %v972
      %v1053 = vpop.f32.mrf.mxu0
      %v1054 = vadd.f32 0.0, %v1053
      %1055 = vmatmul.f32.gmra.mxu0 %v975
      %v1056 = vpop.f32.mrf.mxu0
      %v1057 = vadd.f32 0.0, %v1056
      %1058 = vmatmul.f32.gmra.mxu0 %v978
      %v1059 = vpop.f32.mrf.mxu0
      %v1060 = vadd.f32 0.0, %v1059
      %1061 = vmatmul.f32.gmra.mxu0 %v981
      %v1062 = vpop.f32.mrf.mxu0
      %v1063 = vadd.f32 0.0, %v1062
      %1064 = vmatmul.f32.gmra.mxu0 %v984
      %v1065 = vpop.f32.mrf.mxu0
      %v1066 = vadd.f32 0.0, %v1065
      %1067 = vmatmul.f32.gmra.mxu0 %v987
      %v1068 = vpop.f32.mrf.mxu0
      %v1069 = vadd.f32 0.0, %v1068
      %1070 = vmatmul.f32.gmra.mxu0 %v990
      %v1071 = vpop.f32.mrf.mxu0
      %v1072 = vadd.f32 0.0, %v1071
      %1073 = vdwg.mxu0
      %1074 = vmatpush.msra.mxu0 0.0
      %1075 = vmatpush.msra.mxu0 0.0
      %1076 = vmatpush.msra.mxu0 0.0
      %1077 = vmatpush.msra.mxu0 0.0
      %1078 = vmatpush.msra.mxu0 0.0
      %1079 = vmatpush.msra.mxu0 0.0
      %1080 = vmatpush.msra.mxu0 0.0
      %1081 = vmatpush.msra.mxu0 %v939
      %1082 = vmatpush.msra.mxu0 %v936
      %1083 = vmatpush.msra.mxu0 %v933
      %1084 = vmatpush.msra.mxu0 %v930
      %1085 = vmatpush.msra.mxu0 %v927
      %1086 = vmatpush.msra.mxu0 %v924
      %1087 = vmatpush.msra.mxu0 %v921
      %1088 = vmatpush.msra.mxu0 %v918
      %1089 = vmatpush.msra.mxu0 %v915
      %1090 = vmatmul.f32.gmra.mxu0 %v969
      %v1091 = vpop.f32.mrf.mxu0
      %v1092 = vadd.f32 0.0, %v1091
      %1093 = vmatmul.f32.gmra.mxu0 %v972
      %v1094 = vpop.f32.mrf.mxu0
      %v1095 = vadd.f32 0.0, %v1094
      %1096 = vmatmul.f32.gmra.mxu0 %v975
      %v1097 = vpop.f32.mrf.mxu0
      %v1098 = vadd.f32 0.0, %v1097
      %1099 = vmatmul.f32.gmra.mxu0 %v978
      %v1100 = vpop.f32.mrf.mxu0
      %v1101 = vadd.f32 0.0, %v1100
      %1102 = vmatmul.f32.gmra.mxu0 %v981
      %v1103 = vpop.f32.mrf.mxu0
      %v1104 = vadd.f32 0.0, %v1103
      %1105 = vmatmul.f32.gmra.mxu0 %v984
      %v1106 = vpop.f32.mrf.mxu0
      %v1107 = vadd.f32 0.0, %v1106
      %1108 = vmatmul.f32.gmra.mxu0 %v987
      %v1109 = vpop.f32.mrf.mxu0
      %v1110 = vadd.f32 0.0, %v1109
      %1111 = vmatmul.f32.gmra.mxu0 %v990
      %v1112 = vpop.f32.mrf.mxu0
      %v1113 = vadd.f32 0.0, %v1112
      %1114 = vdwg.mxu0
      %1115 = vrot.lane.b32.xlu0 %v719, 100
      %v1116 = vpop.permute.xlu0 %1115
      %1117 = vrot.lane.b32.xlu0 %v720, 100
      %v1118 = vpop.permute.xlu0 %1117
      %1119 = vrot.lane.b32.xlu0 %v721, 100
      %v1120 = vpop.permute.xlu0 %1119
      %1121 = vrot.lane.b32.xlu0 %v722, 100
      %v1122 = vpop.permute.xlu0 %1121
      %1123 = vrot.lane.b32.xlu0 %v736, 100
      %v1124 = vpop.permute.xlu0 %1123
      %1125 = vrot.lane.b32.xlu0 %v737, 100
      %v1126 = vpop.permute.xlu0 %1125
      %1127 = vrot.lane.b32.xlu0 %v738, 100
      %v1128 = vpop.permute.xlu0 %1127
      %1129 = vrot.lane.b32.xlu0 %v734, 100
      %v1130 = vpop.permute.xlu0 %1129
      %1131 = vrot.lane.b32.xlu0 %v748, 100
      %v1132 = vpop.permute.xlu0 %1131
      %1133 = vrot.lane.b32.xlu0 %v749, 100
      %v1134 = vpop.permute.xlu0 %1133
      %1135 = vrot.lane.b32.xlu0 %v750, 100
      %v1136 = vpop.permute.xlu0 %1135
      %1137 = vrot.lane.b32.xlu0 %v746, 100
      %v1138 = vpop.permute.xlu0 %1137
      %1139 = vrot.lane.b32.xlu0 %v760, 100
      %v1140 = vpop.permute.xlu0 %1139
      %1141 = vrot.lane.b32.xlu0 %v761, 100
      %v1142 = vpop.permute.xlu0 %1141
      %1143 = vrot.lane.b32.xlu0 %v762, 100
      %v1144 = vpop.permute.xlu0 %1143
      %1145 = vrot.lane.b32.xlu0 %v758, 100
      %v1146 = vpop.permute.xlu0 %1145
      %1147 = vrot.lane.b32.xlu0 %v772, 100
      %v1148 = vpop.permute.xlu0 %1147
      %1149 = vrot.lane.b32.xlu0 %v773, 100
      %v1150 = vpop.permute.xlu0 %1149
      %1151 = vrot.lane.b32.xlu0 %v774, 100
      %v1152 = vpop.permute.xlu0 %1151
      %1153 = vrot.lane.b32.xlu0 %v770, 100
      %v1154 = vpop.permute.xlu0 %1153
      %1155 = vrot.lane.b32.xlu0 %v784, 100
      %v1156 = vpop.permute.xlu0 %1155
      %1157 = vrot.lane.b32.xlu0 %v785, 100
      %v1158 = vpop.permute.xlu0 %1157
      %1159 = vrot.lane.b32.xlu0 %v786, 100
      %v1160 = vpop.permute.xlu0 %1159
      %1161 = vrot.lane.b32.xlu0 %v782, 100
      %v1162 = vpop.permute.xlu0 %1161
      %1163 = vrot.lane.b32.xlu0 %v796, 100
      %v1164 = vpop.permute.xlu0 %1163
      %1165 = vrot.lane.b32.xlu0 %v797, 100
      %v1166 = vpop.permute.xlu0 %1165
      %1167 = vrot.lane.b32.xlu0 %v798, 100
      %v1168 = vpop.permute.xlu0 %1167
      %1169 = vrot.lane.b32.xlu0 %v794, 100
      %v1170 = vpop.permute.xlu0 %1169
      %1171 = vrot.lane.b32.xlu0 %v808, 100
      %v1172 = vpop.permute.xlu0 %1171
      %1173 = vrot.lane.b32.xlu0 %v809, 100
      %v1174 = vpop.permute.xlu0 %1173
      %1175 = vrot.lane.b32.xlu0 %v810, 100
      %v1176 = vpop.permute.xlu0 %1175
      %1177 = vrot.lane.b32.xlu0 %v806, 100
      %v1178 = vpop.permute.xlu0 %1177
      %1179 = vrot.lane.b32.xlu0 %v820, 100
      %v1180 = vpop.permute.xlu0 %1179
      %1181 = vrot.lane.b32.xlu0 %v821, 100
      %v1182 = vpop.permute.xlu0 %1181
      %1183 = vrot.lane.b32.xlu0 %v822, 100
      %v1184 = vpop.permute.xlu0 %1183
      %1185 = vrot.lane.b32.xlu0 %v818, 100
      %v1186 = vpop.permute.xlu0 %1185
      %vm1187 = vcmask 818176
      %v1188 = vsel %vm1187, %v1116, %v1118
      %v1189 = vsel %vm1187, %v1118, %v1120
      %v1190 = vsel %vm1187, %v1120, %v1122
      %v1191 = vsel %vm1187, %v1124, %v1126
      %v1192 = vsel %vm1187, %v1126, %v1128
      %v1193 = vsel %vm1187, %v1128, %v1130
      %v1194 = vsel %vm1187, %v1132, %v1134
      %v1195 = vsel %vm1187, %v1134, %v1136
      %v1196 = vsel %vm1187, %v1136, %v1138
      %v1197 = vsel %vm1187, %v1140, %v1142
      %v1198 = vsel %vm1187, %v1142, %v1144
      %v1199 = vsel %vm1187, %v1144, %v1146
      %v1200 = vsel %vm1187, %v1148, %v1150
      %v1201 = vsel %vm1187, %v1150, %v1152
      %v1202 = vsel %vm1187, %v1152, %v1154
      %v1203 = vsel %vm1187, %v1156, %v1158
      %v1204 = vsel %vm1187, %v1158, %v1160
      %v1205 = vsel %vm1187, %v1160, %v1162
      %v1206 = vsel %vm1187, %v1164, %v1166
      %v1207 = vsel %vm1187, %v1166, %v1168
      %v1208 = vsel %vm1187, %v1168, %v1170
      %v1209 = vsel %vm1187, %v1172, %v1174
      %v1210 = vsel %vm1187, %v1174, %v1176
      %v1211 = vsel %vm1187, %v1176, %v1178
      %v1212 = vsel %vm1187, %v1180, %v1182
      %v1213 = vsel %vm1187, %v1182, %v1184
      %v1214 = vsel %vm1187, %v1184, %v1186
      %v1243 = vsel %vm967, %v823, 0
      %v1246 = vsel %vm967, %v824, 0
      %v1249 = vsel %vm967, %v825, 0
      %v1252 = vsel %vm967, %v826, 0
      %v1255 = vsel %vm967, %v827, 0
      %v1258 = vsel %vm967, %v828, 0
      %v1261 = vsel %vm967, %v829, 0
      %v1264 = vsel %vm967, %v830, 0
      %1266 = vmatpush.msra.mxu0 0.0
      %1267 = vmatpush.msra.mxu0 0.0
      %1268 = vmatpush.msra.mxu0 0.0
      %1269 = vmatpush.msra.mxu0 0.0
      %1270 = vmatpush.msra.mxu0 0.0
      %1271 = vmatpush.msra.mxu0 0.0
      %1272 = vmatpush.msra.mxu0 0.0
      %1273 = vmatpush.msra.mxu0 %v1212
      %1274 = vmatpush.msra.mxu0 %v1209
      %1275 = vmatpush.msra.mxu0 %v1206
      %1276 = vmatpush.msra.mxu0 %v1203
      %1277 = vmatpush.msra.mxu0 %v1200
      %1278 = vmatpush.msra.mxu0 %v1197
      %1279 = vmatpush.msra.mxu0 %v1194
      %1280 = vmatpush.msra.mxu0 %v1191
      %1281 = vmatpush.msra.mxu0 %v1188
      %1282 = vmatmul.f32.gmra.mxu0 %v1243
      %v1283 = vpop.f32.mrf.mxu0
      %v1284 = vadd.f32 %v1010, %v1283
      %1285 = vmatmul.f32.gmra.mxu0 %v1246
      %v1286 = vpop.f32.mrf.mxu0
      %v1287 = vadd.f32 %v1013, %v1286
      %1288 = vmatmul.f32.gmra.mxu0 %v1249
      %v1289 = vpop.f32.mrf.mxu0
      %v1290 = vadd.f32 %v1016, %v1289
      %1291 = vmatmul.f32.gmra.mxu0 %v1252
      %v1292 = vpop.f32.mrf.mxu0
      %v1293 = vadd.f32 %v1019, %v1292
      %1294 = vmatmul.f32.gmra.mxu0 %v1255
      %v1295 = vpop.f32.mrf.mxu0
      %v1296 = vadd.f32 %v1022, %v1295
      %1297 = vmatmul.f32.gmra.mxu0 %v1258
      %v1298 = vpop.f32.mrf.mxu0
      %v1299 = vadd.f32 %v1025, %v1298
      %1300 = vmatmul.f32.gmra.mxu0 %v1261
      %v1301 = vpop.f32.mrf.mxu0
      %v1302 = vadd.f32 %v1028, %v1301
      %1303 = vmatmul.f32.gmra.mxu0 %v1264
      %v1304 = vpop.f32.mrf.mxu0
      %v1305 = vadd.f32 %v1031, %v1304
      %1306 = vdwg.mxu0
      %1307 = vmatpush.msra.mxu0 0.0
      %1308 = vmatpush.msra.mxu0 0.0
      %1309 = vmatpush.msra.mxu0 0.0
      %1310 = vmatpush.msra.mxu0 0.0
      %1311 = vmatpush.msra.mxu0 0.0
      %1312 = vmatpush.msra.mxu0 0.0
      %1313 = vmatpush.msra.mxu0 0.0
      %1314 = vmatpush.msra.mxu0 %v1213
      %1315 = vmatpush.msra.mxu0 %v1210
      %1316 = vmatpush.msra.mxu0 %v1207
      %1317 = vmatpush.msra.mxu0 %v1204
      %1318 = vmatpush.msra.mxu0 %v1201
      %1319 = vmatpush.msra.mxu0 %v1198
      %1320 = vmatpush.msra.mxu0 %v1195
      %1321 = vmatpush.msra.mxu0 %v1192
      %1322 = vmatpush.msra.mxu0 %v1189
      %1323 = vmatmul.f32.gmra.mxu0 %v1243
      %v1324 = vpop.f32.mrf.mxu0
      %v1325 = vadd.f32 %v1051, %v1324
      %1326 = vmatmul.f32.gmra.mxu0 %v1246
      %v1327 = vpop.f32.mrf.mxu0
      %v1328 = vadd.f32 %v1054, %v1327
      %1329 = vmatmul.f32.gmra.mxu0 %v1249
      %v1330 = vpop.f32.mrf.mxu0
      %v1331 = vadd.f32 %v1057, %v1330
      %1332 = vmatmul.f32.gmra.mxu0 %v1252
      %v1333 = vpop.f32.mrf.mxu0
      %v1334 = vadd.f32 %v1060, %v1333
      %1335 = vmatmul.f32.gmra.mxu0 %v1255
      %v1336 = vpop.f32.mrf.mxu0
      %v1337 = vadd.f32 %v1063, %v1336
      %1338 = vmatmul.f32.gmra.mxu0 %v1258
      %v1339 = vpop.f32.mrf.mxu0
      %v1340 = vadd.f32 %v1066, %v1339
      %1341 = vmatmul.f32.gmra.mxu0 %v1261
      %v1342 = vpop.f32.mrf.mxu0
      %v1343 = vadd.f32 %v1069, %v1342
      %1344 = vmatmul.f32.gmra.mxu0 %v1264
      %v1345 = vpop.f32.mrf.mxu0
      %v1346 = vadd.f32 %v1072, %v1345
      %1347 = vdwg.mxu0
      %1348 = vmatpush.msra.mxu0 0.0
      %1349 = vmatpush.msra.mxu0 0.0
      %1350 = vmatpush.msra.mxu0 0.0
      %1351 = vmatpush.msra.mxu0 0.0
      %1352 = vmatpush.msra.mxu0 0.0
      %1353 = vmatpush.msra.mxu0 0.0
      %1354 = vmatpush.msra.mxu0 0.0
      %1355 = vmatpush.msra.mxu0 %v1214
      %1356 = vmatpush.msra.mxu0 %v1211
      %1357 = vmatpush.msra.mxu0 %v1208
      %1358 = vmatpush.msra.mxu0 %v1205
      %1359 = vmatpush.msra.mxu0 %v1202
      %1360 = vmatpush.msra.mxu0 %v1199
      %1361 = vmatpush.msra.mxu0 %v1196
      %1362 = vmatpush.msra.mxu0 %v1193
      %1363 = vmatpush.msra.mxu0 %v1190
      %1364 = vmatmul.f32.gmra.mxu0 %v1243
      %v1365 = vpop.f32.mrf.mxu0
      %v1366 = vadd.f32 %v1092, %v1365
      %1367 = vmatmul.f32.gmra.mxu0 %v1246
      %v1368 = vpop.f32.mrf.mxu0
      %v1369 = vadd.f32 %v1095, %v1368
      %1370 = vmatmul.f32.gmra.mxu0 %v1249
      %v1371 = vpop.f32.mrf.mxu0
      %v1372 = vadd.f32 %v1098, %v1371
      %1373 = vmatmul.f32.gmra.mxu0 %v1252
      %v1374 = vpop.f32.mrf.mxu0
      %v1375 = vadd.f32 %v1101, %v1374
      %1376 = vmatmul.f32.gmra.mxu0 %v1255
      %v1377 = vpop.f32.mrf.mxu0
      %v1378 = vadd.f32 %v1104, %v1377
      %1379 = vmatmul.f32.gmra.mxu0 %v1258
      %v1380 = vpop.f32.mrf.mxu0
      %v1381 = vadd.f32 %v1107, %v1380
      %1382 = vmatmul.f32.gmra.mxu0 %v1261
      %v1383 = vpop.f32.mrf.mxu0
      %v1384 = vadd.f32 %v1110, %v1383
      %1385 = vmatmul.f32.gmra.mxu0 %v1264
      %v1386 = vpop.f32.mrf.mxu0
      %v1387 = vadd.f32 %v1113, %v1386
      %1388 = vdwg.mxu0
      %s1389 = scalar_lea.vmem %s3, 128
      %v1390 = vld [vmem:[%s1389] sm:$0xff]
      %v1391 = vld [vmem:[%s1389 + $0x8] sm:$0xff]
      %v1392 = vld [vmem:[%s1389 + $0x10] sm:$0xff]
      %v1393 = vld [vmem:[%s1389 + $0x18] sm:$0xff]
      %v1394 = vld [vmem:[%s1389 + $0x20] sm:$0xff]
      %v1395 = vld [vmem:[%s1389 + $0x28] sm:$0xff]
      %v1396 = vld [vmem:[%s1389 + $0x30] sm:$0xff]
      %v1397 = vld [vmem:[%s1389 + $0x38] sm:$0xff]
      %1398 = vrot.lane.b32.xlu0 %v719, 52
      %v1399 = vpop.permute.xlu0 %1398
      %1400 = vrot.lane.b32.xlu0 %v720, 52
      %v1401 = vpop.permute.xlu0 %1400
      %1402 = vrot.lane.b32.xlu0 %v721, 52
      %v1403 = vpop.permute.xlu0 %1402
      %1404 = vrot.lane.b32.xlu0 %v722, 52
      %v1405 = vpop.permute.xlu0 %1404
      %1406 = vrot.lane.b32.xlu0 %v736, 52
      %v1407 = vpop.permute.xlu0 %1406
      %1408 = vrot.lane.b32.xlu0 %v737, 52
      %v1409 = vpop.permute.xlu0 %1408
      %1410 = vrot.lane.b32.xlu0 %v738, 52
      %v1411 = vpop.permute.xlu0 %1410
      %1412 = vrot.lane.b32.xlu0 %v734, 52
      %v1413 = vpop.permute.xlu0 %1412
      %1414 = vrot.lane.b32.xlu0 %v748, 52
      %v1415 = vpop.permute.xlu0 %1414
      %1416 = vrot.lane.b32.xlu0 %v749, 52
      %v1417 = vpop.permute.xlu0 %1416
      %1418 = vrot.lane.b32.xlu0 %v750, 52
      %v1419 = vpop.permute.xlu0 %1418
      %1420 = vrot.lane.b32.xlu0 %v746, 52
      %v1421 = vpop.permute.xlu0 %1420
      %1422 = vrot.lane.b32.xlu0 %v760, 52
      %v1423 = vpop.permute.xlu0 %1422
      %1424 = vrot.lane.b32.xlu0 %v761, 52
      %v1425 = vpop.permute.xlu0 %1424
      %1426 = vrot.lane.b32.xlu0 %v762, 52
      %v1427 = vpop.permute.xlu0 %1426
      %1428 = vrot.lane.b32.xlu0 %v758, 52
      %v1429 = vpop.permute.xlu0 %1428
      %1430 = vrot.lane.b32.xlu0 %v772, 52
      %v1431 = vpop.permute.xlu0 %1430
      %1432 = vrot.lane.b32.xlu0 %v773, 52
      %v1433 = vpop.permute.xlu0 %1432
      %1434 = vrot.lane.b32.xlu0 %v774, 52
      %v1435 = vpop.permute.xlu0 %1434
      %1436 = vrot.lane.b32.xlu0 %v770, 52
      %v1437 = vpop.permute.xlu0 %1436
      %1438 = vrot.lane.b32.xlu0 %v784, 52
      %v1439 = vpop.permute.xlu0 %1438
      %1440 = vrot.lane.b32.xlu0 %v785, 52
      %v1441 = vpop.permute.xlu0 %1440
      %1442 = vrot.lane.b32.xlu0 %v786, 52
      %v1443 = vpop.permute.xlu0 %1442
      %1444 = vrot.lane.b32.xlu0 %v782, 52
      %v1445 = vpop.permute.xlu0 %1444
      %1446 = vrot.lane.b32.xlu0 %v796, 52
      %v1447 = vpop.permute.xlu0 %1446
      %1448 = vrot.lane.b32.xlu0 %v797, 52
      %v1449 = vpop.permute.xlu0 %1448
      %1450 = vrot.lane.b32.xlu0 %v798, 52
      %v1451 = vpop.permute.xlu0 %1450
      %1452 = vrot.lane.b32.xlu0 %v794, 52
      %v1453 = vpop.permute.xlu0 %1452
      %1454 = vrot.lane.b32.xlu0 %v808, 52
      %v1455 = vpop.permute.xlu0 %1454
      %1456 = vrot.lane.b32.xlu0 %v809, 52
      %v1457 = vpop.permute.xlu0 %1456
      %1458 = vrot.lane.b32.xlu0 %v810, 52
      %v1459 = vpop.permute.xlu0 %1458
      %1460 = vrot.lane.b32.xlu0 %v806, 52
      %v1461 = vpop.permute.xlu0 %1460
      %1462 = vrot.lane.b32.xlu0 %v820, 52
      %v1463 = vpop.permute.xlu0 %1462
      %1464 = vrot.lane.b32.xlu0 %v821, 52
      %v1465 = vpop.permute.xlu0 %1464
      %1466 = vrot.lane.b32.xlu0 %v822, 52
      %v1467 = vpop.permute.xlu0 %1466
      %1468 = vrot.lane.b32.xlu0 %v818, 52
      %v1469 = vpop.permute.xlu0 %1468
      %vm1470 = vcmask 424960
      %v1471 = vsel %vm1470, %v1399, %v1401
      %v1472 = vsel %vm1470, %v1401, %v1403
      %v1473 = vsel %vm1470, %v1403, %v1405
      %v1474 = vsel %vm1470, %v1407, %v1409
      %v1475 = vsel %vm1470, %v1409, %v1411
      %v1476 = vsel %vm1470, %v1411, %v1413
      %v1477 = vsel %vm1470, %v1415, %v1417
      %v1478 = vsel %vm1470, %v1417, %v1419
      %v1479 = vsel %vm1470, %v1419, %v1421
      %v1480 = vsel %vm1470, %v1423, %v1425
      %v1481 = vsel %vm1470, %v1425, %v1427
      %v1482 = vsel %vm1470, %v1427, %v1429
      %v1483 = vsel %vm1470, %v1431, %v1433
      %v1484 = vsel %vm1470, %v1433, %v1435
      %v1485 = vsel %vm1470, %v1435, %v1437
      %v1486 = vsel %vm1470, %v1439, %v1441
      %v1487 = vsel %vm1470, %v1441, %v1443
      %v1488 = vsel %vm1470, %v1443, %v1445
      %v1489 = vsel %vm1470, %v1447, %v1449
      %v1490 = vsel %vm1470, %v1449, %v1451
      %v1491 = vsel %vm1470, %v1451, %v1453
      %v1492 = vsel %vm1470, %v1455, %v1457
      %v1493 = vsel %vm1470, %v1457, %v1459
      %v1494 = vsel %vm1470, %v1459, %v1461
      %v1495 = vsel %vm1470, %v1463, %v1465
      %v1496 = vsel %vm1470, %v1465, %v1467
      %v1497 = vsel %vm1470, %v1467, %v1469
      %v1526 = vsel %vm967, %v1390, 0
      %v1529 = vsel %vm967, %v1391, 0
      %v1532 = vsel %vm967, %v1392, 0
      %v1535 = vsel %vm967, %v1393, 0
      %v1538 = vsel %vm967, %v1394, 0
      %v1541 = vsel %vm967, %v1395, 0
      %v1544 = vsel %vm967, %v1396, 0
      %v1547 = vsel %vm967, %v1397, 0
      %1549 = vmatpush.msra.mxu0 0.0
      %1550 = vmatpush.msra.mxu0 0.0
      %1551 = vmatpush.msra.mxu0 0.0
      %1552 = vmatpush.msra.mxu0 0.0
      %1553 = vmatpush.msra.mxu0 0.0
      %1554 = vmatpush.msra.mxu0 0.0
      %1555 = vmatpush.msra.mxu0 0.0
      %1556 = vmatpush.msra.mxu0 %v1495
      %1557 = vmatpush.msra.mxu0 %v1492
      %1558 = vmatpush.msra.mxu0 %v1489
      %1559 = vmatpush.msra.mxu0 %v1486
      %1560 = vmatpush.msra.mxu0 %v1483
      %1561 = vmatpush.msra.mxu0 %v1480
      %1562 = vmatpush.msra.mxu0 %v1477
      %1563 = vmatpush.msra.mxu0 %v1474
      %1564 = vmatpush.msra.mxu0 %v1471
      %1565 = vmatmul.f32.gmra.mxu0 %v1526
      %v1566 = vpop.f32.mrf.mxu0
      %v1567 = vadd.f32 0.0, %v1566
      %1568 = vmatmul.f32.gmra.mxu0 %v1529
      %v1569 = vpop.f32.mrf.mxu0
      %v1570 = vadd.f32 0.0, %v1569
      %1571 = vmatmul.f32.gmra.mxu0 %v1532
      %v1572 = vpop.f32.mrf.mxu0
      %v1573 = vadd.f32 0.0, %v1572
      %1574 = vmatmul.f32.gmra.mxu0 %v1535
      %v1575 = vpop.f32.mrf.mxu0
      %v1576 = vadd.f32 0.0, %v1575
      %1577 = vmatmul.f32.gmra.mxu0 %v1538
      %v1578 = vpop.f32.mrf.mxu0
      %v1579 = vadd.f32 0.0, %v1578
      %1580 = vmatmul.f32.gmra.mxu0 %v1541
      %v1581 = vpop.f32.mrf.mxu0
      %v1582 = vadd.f32 0.0, %v1581
      %1583 = vmatmul.f32.gmra.mxu0 %v1544
      %v1584 = vpop.f32.mrf.mxu0
      %v1585 = vadd.f32 0.0, %v1584
      %1586 = vmatmul.f32.gmra.mxu0 %v1547
      %v1587 = vpop.f32.mrf.mxu0
      %v1588 = vadd.f32 0.0, %v1587
      %1589 = vdwg.mxu0
      %1590 = vmatpush.msra.mxu0 0.0
      %1591 = vmatpush.msra.mxu0 0.0
      %1592 = vmatpush.msra.mxu0 0.0
      %1593 = vmatpush.msra.mxu0 0.0
      %1594 = vmatpush.msra.mxu0 0.0
      %1595 = vmatpush.msra.mxu0 0.0
      %1596 = vmatpush.msra.mxu0 0.0
      %1597 = vmatpush.msra.mxu0 %v1496
      %1598 = vmatpush.msra.mxu0 %v1493
      %1599 = vmatpush.msra.mxu0 %v1490
      %1600 = vmatpush.msra.mxu0 %v1487
      %1601 = vmatpush.msra.mxu0 %v1484
      %1602 = vmatpush.msra.mxu0 %v1481
      %1603 = vmatpush.msra.mxu0 %v1478
      %1604 = vmatpush.msra.mxu0 %v1475
      %1605 = vmatpush.msra.mxu0 %v1472
      %1606 = vmatmul.f32.gmra.mxu0 %v1526
      %v1607 = vpop.f32.mrf.mxu0
      %v1608 = vadd.f32 0.0, %v1607
      %1609 = vmatmul.f32.gmra.mxu0 %v1529
      %v1610 = vpop.f32.mrf.mxu0
      %v1611 = vadd.f32 0.0, %v1610
      %1612 = vmatmul.f32.gmra.mxu0 %v1532
      %v1613 = vpop.f32.mrf.mxu0
      %v1614 = vadd.f32 0.0, %v1613
      %1615 = vmatmul.f32.gmra.mxu0 %v1535
      %v1616 = vpop.f32.mrf.mxu0
      %v1617 = vadd.f32 0.0, %v1616
      %1618 = vmatmul.f32.gmra.mxu0 %v1538
      %v1619 = vpop.f32.mrf.mxu0
      %v1620 = vadd.f32 0.0, %v1619
      %1621 = vmatmul.f32.gmra.mxu0 %v1541
      %v1622 = vpop.f32.mrf.mxu0
      %v1623 = vadd.f32 0.0, %v1622
      %1624 = vmatmul.f32.gmra.mxu0 %v1544
      %v1625 = vpop.f32.mrf.mxu0
      %v1626 = vadd.f32 0.0, %v1625
      %1627 = vmatmul.f32.gmra.mxu0 %v1547
      %v1628 = vpop.f32.mrf.mxu0
      %v1629 = vadd.f32 0.0, %v1628
      %1630 = vdwg.mxu0
      %1631 = vmatpush.msra.mxu0 0.0
      %1632 = vmatpush.msra.mxu0 0.0
      %1633 = vmatpush.msra.mxu0 0.0
      %1634 = vmatpush.msra.mxu0 0.0
      %1635 = vmatpush.msra.mxu0 0.0
      %1636 = vmatpush.msra.mxu0 0.0
      %1637 = vmatpush.msra.mxu0 0.0
      %1638 = vmatpush.msra.mxu0 %v1497
      %1639 = vmatpush.msra.mxu0 %v1494
      %1640 = vmatpush.msra.mxu0 %v1491
      %1641 = vmatpush.msra.mxu0 %v1488
      %1642 = vmatpush.msra.mxu0 %v1485
      %1643 = vmatpush.msra.mxu0 %v1482
      %1644 = vmatpush.msra.mxu0 %v1479
      %1645 = vmatpush.msra.mxu0 %v1476
      %1646 = vmatpush.msra.mxu0 %v1473
      %1647 = vmatmul.f32.gmra.mxu0 %v1526
      %v1648 = vpop.f32.mrf.mxu0
      %v1649 = vadd.f32 0.0, %v1648
      %1650 = vmatmul.f32.gmra.mxu0 %v1529
      %v1651 = vpop.f32.mrf.mxu0
      %v1652 = vadd.f32 0.0, %v1651
      %1653 = vmatmul.f32.gmra.mxu0 %v1532
      %v1654 = vpop.f32.mrf.mxu0
      %v1655 = vadd.f32 0.0, %v1654
      %1656 = vmatmul.f32.gmra.mxu0 %v1535
      %v1657 = vpop.f32.mrf.mxu0
      %v1658 = vadd.f32 0.0, %v1657
      %1659 = vmatmul.f32.gmra.mxu0 %v1538
      %v1660 = vpop.f32.mrf.mxu0
      %v1661 = vadd.f32 0.0, %v1660
      %1662 = vmatmul.f32.gmra.mxu0 %v1541
      %v1663 = vpop.f32.mrf.mxu0
      %v1664 = vadd.f32 0.0, %v1663
      %1665 = vmatmul.f32.gmra.mxu0 %v1544
      %v1666 = vpop.f32.mrf.mxu0
      %v1667 = vadd.f32 0.0, %v1666
      %1668 = vmatmul.f32.gmra.mxu0 %v1547
      %v1669 = vpop.f32.mrf.mxu0
      %v1670 = vadd.f32 0.0, %v1669
      %1671 = vdwg.mxu0
      %v1672 = vadd.f32 %v1284, %v1567
      %v1673 = vadd.f32 %v1325, %v1608
      %v1674 = vadd.f32 %v1366, %v1649
      %v1675 = vadd.f32 %v1287, %v1570
      %v1676 = vadd.f32 %v1328, %v1611
      %v1677 = vadd.f32 %v1369, %v1652
      %v1678 = vadd.f32 %v1290, %v1573
      %v1679 = vadd.f32 %v1331, %v1614
      %v1680 = vadd.f32 %v1372, %v1655
      %v1681 = vadd.f32 %v1293, %v1576
      %v1682 = vadd.f32 %v1334, %v1617
      %v1683 = vadd.f32 %v1375, %v1658
      %v1684 = vadd.f32 %v1296, %v1579
      %v1685 = vadd.f32 %v1337, %v1620
      %v1686 = vadd.f32 %v1378, %v1661
      %v1687 = vadd.f32 %v1299, %v1582
      %v1688 = vadd.f32 %v1340, %v1623
      %v1689 = vadd.f32 %v1381, %v1664
      %v1690 = vadd.f32 %v1302, %v1585
      %v1691 = vadd.f32 %v1343, %v1626
      %v1692 = vadd.f32 %v1384, %v1667
      %v1693 = vadd.f32 %v1305, %v1588
      %v1694 = vadd.f32 %v1346, %v1629
      %v1695 = vadd.f32 %v1387, %v1670
      %s1696 = scalar_lea.vmem %s3, 192
      %v1697 = vld [vmem:[%s1696] sm:$0xff]
      %v1698 = vld [vmem:[%s1696 + $0x8] sm:$0xff]
      %v1699 = vld [vmem:[%s1696 + $0x10] sm:$0xff]
      %v1700 = vld [vmem:[%s1696 + $0x18] sm:$0xff]
      %v1701 = vld [vmem:[%s1696 + $0x20] sm:$0xff]
      %v1702 = vld [vmem:[%s1696 + $0x28] sm:$0xff]
      %v1703 = vld [vmem:[%s1696 + $0x30] sm:$0xff]
      %v1704 = vld [vmem:[%s1696 + $0x38] sm:$0xff]
      %1705 = vrot.lane.b32.xlu0 %v719, 28
      %v1706 = vpop.permute.xlu0 %1705
      %1707 = vrot.lane.b32.xlu0 %v720, 28
      %v1708 = vpop.permute.xlu0 %1707
      %1709 = vrot.lane.b32.xlu0 %v721, 28
      %v1710 = vpop.permute.xlu0 %1709
      %1711 = vrot.lane.b32.xlu0 %v722, 28
      %v1712 = vpop.permute.xlu0 %1711
      %1713 = vrot.lane.b32.xlu0 %v736, 28
      %v1714 = vpop.permute.xlu0 %1713
      %1715 = vrot.lane.b32.xlu0 %v737, 28
      %v1716 = vpop.permute.xlu0 %1715
      %1717 = vrot.lane.b32.xlu0 %v738, 28
      %v1718 = vpop.permute.xlu0 %1717
      %1719 = vrot.lane.b32.xlu0 %v734, 28
      %v1720 = vpop.permute.xlu0 %1719
      %1721 = vrot.lane.b32.xlu0 %v748, 28
      %v1722 = vpop.permute.xlu0 %1721
      %1723 = vrot.lane.b32.xlu0 %v749, 28
      %v1724 = vpop.permute.xlu0 %1723
      %1725 = vrot.lane.b32.xlu0 %v750, 28
      %v1726 = vpop.permute.xlu0 %1725
      %1727 = vrot.lane.b32.xlu0 %v746, 28
      %v1728 = vpop.permute.xlu0 %1727
      %1729 = vrot.lane.b32.xlu0 %v760, 28
      %v1730 = vpop.permute.xlu0 %1729
      %1731 = vrot.lane.b32.xlu0 %v761, 28
      %v1732 = vpop.permute.xlu0 %1731
      %1733 = vrot.lane.b32.xlu0 %v762, 28
      %v1734 = vpop.permute.xlu0 %1733
      %1735 = vrot.lane.b32.xlu0 %v758, 28
      %v1736 = vpop.permute.xlu0 %1735
      %1737 = vrot.lane.b32.xlu0 %v772, 28
      %v1738 = vpop.permute.xlu0 %1737
      %1739 = vrot.lane.b32.xlu0 %v773, 28
      %v1740 = vpop.permute.xlu0 %1739
      %1741 = vrot.lane.b32.xlu0 %v774, 28
      %v1742 = vpop.permute.xlu0 %1741
      %1743 = vrot.lane.b32.xlu0 %v770, 28
      %v1744 = vpop.permute.xlu0 %1743
      %1745 = vrot.lane.b32.xlu0 %v784, 28
      %v1746 = vpop.permute.xlu0 %1745
      %1747 = vrot.lane.b32.xlu0 %v785, 28
      %v1748 = vpop.permute.xlu0 %1747
      %1749 = vrot.lane.b32.xlu0 %v786, 28
      %v1750 = vpop.permute.xlu0 %1749
      %1751 = vrot.lane.b32.xlu0 %v782, 28
      %v1752 = vpop.permute.xlu0 %1751
      %1753 = vrot.lane.b32.xlu0 %v796, 28
      %v1754 = vpop.permute.xlu0 %1753
      %1755 = vrot.lane.b32.xlu0 %v797, 28
      %v1756 = vpop.permute.xlu0 %1755
      %1757 = vrot.lane.b32.xlu0 %v798, 28
      %v1758 = vpop.permute.xlu0 %1757
      %1759 = vrot.lane.b32.xlu0 %v794, 28
      %v1760 = vpop.permute.xlu0 %1759
      %1761 = vrot.lane.b32.xlu0 %v808, 28
      %v1762 = vpop.permute.xlu0 %1761
      %1763 = vrot.lane.b32.xlu0 %v809, 28
      %v1764 = vpop.permute.xlu0 %1763
      %1765 = vrot.lane.b32.xlu0 %v810, 28
      %v1766 = vpop.permute.xlu0 %1765
      %1767 = vrot.lane.b32.xlu0 %v806, 28
      %v1768 = vpop.permute.xlu0 %1767
      %1769 = vrot.lane.b32.xlu0 %v820, 28
      %v1770 = vpop.permute.xlu0 %1769
      %1771 = vrot.lane.b32.xlu0 %v821, 28
      %v1772 = vpop.permute.xlu0 %1771
      %1773 = vrot.lane.b32.xlu0 %v822, 28
      %v1774 = vpop.permute.xlu0 %1773
      %1775 = vrot.lane.b32.xlu0 %v818, 28
      %v1776 = vpop.permute.xlu0 %1775
      %vm1777 = vcmask 228352
      %v1778 = vsel %vm1777, %v1706, %v1708
      %v1779 = vsel %vm1777, %v1708, %v1710
      %v1780 = vsel %vm1777, %v1710, %v1712
      %v1781 = vsel %vm1777, %v1714, %v1716
      %v1782 = vsel %vm1777, %v1716, %v1718
      %v1783 = vsel %vm1777, %v1718, %v1720
      %v1784 = vsel %vm1777, %v1722, %v1724
      %v1785 = vsel %vm1777, %v1724, %v1726
      %v1786 = vsel %vm1777, %v1726, %v1728
      %v1787 = vsel %vm1777, %v1730, %v1732
      %v1788 = vsel %vm1777, %v1732, %v1734
      %v1789 = vsel %vm1777, %v1734, %v1736
      %v1790 = vsel %vm1777, %v1738, %v1740
      %v1791 = vsel %vm1777, %v1740, %v1742
      %v1792 = vsel %vm1777, %v1742, %v1744
      %v1793 = vsel %vm1777, %v1746, %v1748
      %v1794 = vsel %vm1777, %v1748, %v1750
      %v1795 = vsel %vm1777, %v1750, %v1752
      %v1796 = vsel %vm1777, %v1754, %v1756
      %v1797 = vsel %vm1777, %v1756, %v1758
      %v1798 = vsel %vm1777, %v1758, %v1760
      %v1799 = vsel %vm1777, %v1762, %v1764
      %v1800 = vsel %vm1777, %v1764, %v1766
      %v1801 = vsel %vm1777, %v1766, %v1768
      %v1802 = vsel %vm1777, %v1770, %v1772
      %v1803 = vsel %vm1777, %v1772, %v1774
      %v1804 = vsel %vm1777, %v1774, %v1776
      %v1833 = vsel %vm967, %v1697, 0
      %v1836 = vsel %vm967, %v1698, 0
      %v1839 = vsel %vm967, %v1699, 0
      %v1842 = vsel %vm967, %v1700, 0
      %v1845 = vsel %vm967, %v1701, 0
      %v1848 = vsel %vm967, %v1702, 0
      %v1851 = vsel %vm967, %v1703, 0
      %v1854 = vsel %vm967, %v1704, 0
      %1856 = vmatpush.msra.mxu0 0.0
      %1857 = vmatpush.msra.mxu0 0.0
      %1858 = vmatpush.msra.mxu0 0.0
      %1859 = vmatpush.msra.mxu0 0.0
      %1860 = vmatpush.msra.mxu0 0.0
      %1861 = vmatpush.msra.mxu0 0.0
      %1862 = vmatpush.msra.mxu0 0.0
      %1863 = vmatpush.msra.mxu0 %v1802
      %1864 = vmatpush.msra.mxu0 %v1799
      %1865 = vmatpush.msra.mxu0 %v1796
      %1866 = vmatpush.msra.mxu0 %v1793
      %1867 = vmatpush.msra.mxu0 %v1790
      %1868 = vmatpush.msra.mxu0 %v1787
      %1869 = vmatpush.msra.mxu0 %v1784
      %1870 = vmatpush.msra.mxu0 %v1781
      %1871 = vmatpush.msra.mxu0 %v1778
      %1872 = vmatmul.f32.gmra.mxu0 %v1833
      %v1873 = vpop.f32.mrf.mxu0
      %v1874 = vadd.f32 0.0, %v1873
      %1875 = vmatmul.f32.gmra.mxu0 %v1836
      %v1876 = vpop.f32.mrf.mxu0
      %v1877 = vadd.f32 0.0, %v1876
      %1878 = vmatmul.f32.gmra.mxu0 %v1839
      %v1879 = vpop.f32.mrf.mxu0
      %v1880 = vadd.f32 0.0, %v1879
      %1881 = vmatmul.f32.gmra.mxu0 %v1842
      %v1882 = vpop.f32.mrf.mxu0
      %v1883 = vadd.f32 0.0, %v1882
      %1884 = vmatmul.f32.gmra.mxu0 %v1845
      %v1885 = vpop.f32.mrf.mxu0
      %v1886 = vadd.f32 0.0, %v1885
      %1887 = vmatmul.f32.gmra.mxu0 %v1848
      %v1888 = vpop.f32.mrf.mxu0
      %v1889 = vadd.f32 0.0, %v1888
      %1890 = vmatmul.f32.gmra.mxu0 %v1851
      %v1891 = vpop.f32.mrf.mxu0
      %v1892 = vadd.f32 0.0, %v1891
      %1893 = vmatmul.f32.gmra.mxu0 %v1854
      %v1894 = vpop.f32.mrf.mxu0
      %v1895 = vadd.f32 0.0, %v1894
      %1896 = vdwg.mxu0
      %1897 = vmatpush.msra.mxu0 0.0
      %1898 = vmatpush.msra.mxu0 0.0
      %1899 = vmatpush.msra.mxu0 0.0
      %1900 = vmatpush.msra.mxu0 0.0
      %1901 = vmatpush.msra.mxu0 0.0
      %1902 = vmatpush.msra.mxu0 0.0
      %1903 = vmatpush.msra.mxu0 0.0
      %1904 = vmatpush.msra.mxu0 %v1803
      %1905 = vmatpush.msra.mxu0 %v1800
      %1906 = vmatpush.msra.mxu0 %v1797
      %1907 = vmatpush.msra.mxu0 %v1794
      %1908 = vmatpush.msra.mxu0 %v1791
      %1909 = vmatpush.msra.mxu0 %v1788
      %1910 = vmatpush.msra.mxu0 %v1785
      %1911 = vmatpush.msra.mxu0 %v1782
      %1912 = vmatpush.msra.mxu0 %v1779
      %1913 = vmatmul.f32.gmra.mxu0 %v1833
      %v1914 = vpop.f32.mrf.mxu0
      %v1915 = vadd.f32 0.0, %v1914
      %1916 = vmatmul.f32.gmra.mxu0 %v1836
      %v1917 = vpop.f32.mrf.mxu0
      %v1918 = vadd.f32 0.0, %v1917
      %1919 = vmatmul.f32.gmra.mxu0 %v1839
      %v1920 = vpop.f32.mrf.mxu0
      %v1921 = vadd.f32 0.0, %v1920
      %1922 = vmatmul.f32.gmra.mxu0 %v1842
      %v1923 = vpop.f32.mrf.mxu0
      %v1924 = vadd.f32 0.0, %v1923
      %1925 = vmatmul.f32.gmra.mxu0 %v1845
      %v1926 = vpop.f32.mrf.mxu0
      %v1927 = vadd.f32 0.0, %v1926
      %1928 = vmatmul.f32.gmra.mxu0 %v1848
      %v1929 = vpop.f32.mrf.mxu0
      %v1930 = vadd.f32 0.0, %v1929
      %1931 = vmatmul.f32.gmra.mxu0 %v1851
      %v1932 = vpop.f32.mrf.mxu0
      %v1933 = vadd.f32 0.0, %v1932
      %1934 = vmatmul.f32.gmra.mxu0 %v1854
      %v1935 = vpop.f32.mrf.mxu0
      %v1936 = vadd.f32 0.0, %v1935
      %1937 = vdwg.mxu0
      %1938 = vmatpush.msra.mxu0 0.0
      %1939 = vmatpush.msra.mxu0 0.0
      %1940 = vmatpush.msra.mxu0 0.0
      %1941 = vmatpush.msra.mxu0 0.0
      %1942 = vmatpush.msra.mxu0 0.0
      %1943 = vmatpush.msra.mxu0 0.0
      %1944 = vmatpush.msra.mxu0 0.0
      %1945 = vmatpush.msra.mxu0 %v1804
      %1946 = vmatpush.msra.mxu0 %v1801
      %1947 = vmatpush.msra.mxu0 %v1798
      %1948 = vmatpush.msra.mxu0 %v1795
      %1949 = vmatpush.msra.mxu0 %v1792
      %1950 = vmatpush.msra.mxu0 %v1789
      %1951 = vmatpush.msra.mxu0 %v1786
      %1952 = vmatpush.msra.mxu0 %v1783
      %1953 = vmatpush.msra.mxu0 %v1780
      %1954 = vmatmul.f32.gmra.mxu0 %v1833
      %v1955 = vpop.f32.mrf.mxu0
      %v1956 = vadd.f32 0.0, %v1955
      %1957 = vmatmul.f32.gmra.mxu0 %v1836
      %v1958 = vpop.f32.mrf.mxu0
      %v1959 = vadd.f32 0.0, %v1958
      %1960 = vmatmul.f32.gmra.mxu0 %v1839
      %v1961 = vpop.f32.mrf.mxu0
      %v1962 = vadd.f32 0.0, %v1961
      %1963 = vmatmul.f32.gmra.mxu0 %v1842
      %v1964 = vpop.f32.mrf.mxu0
      %v1965 = vadd.f32 0.0, %v1964
      %1966 = vmatmul.f32.gmra.mxu0 %v1845
      %v1967 = vpop.f32.mrf.mxu0
      %v1968 = vadd.f32 0.0, %v1967
      %1969 = vmatmul.f32.gmra.mxu0 %v1848
      %v1970 = vpop.f32.mrf.mxu0
      %v1971 = vadd.f32 0.0, %v1970
      %1972 = vmatmul.f32.gmra.mxu0 %v1851
      %v1973 = vpop.f32.mrf.mxu0
      %v1974 = vadd.f32 0.0, %v1973
      %1975 = vmatmul.f32.gmra.mxu0 %v1854
      %v1976 = vpop.f32.mrf.mxu0
      %v1977 = vadd.f32 0.0, %v1976
      %1978 = vdwg.mxu0
      %v1979 = vadd.f32 %v1672, %v1874
      %v1980 = vadd.f32 %v1673, %v1915
      %v1981 = vadd.f32 %v1674, %v1956
      %v1982 = vadd.f32 %v1675, %v1877
      %v1983 = vadd.f32 %v1676, %v1918
      %v1984 = vadd.f32 %v1677, %v1959
      %v1985 = vadd.f32 %v1678, %v1880
      %v1986 = vadd.f32 %v1679, %v1921
      %v1987 = vadd.f32 %v1680, %v1962
      %v1988 = vadd.f32 %v1681, %v1883
      %v1989 = vadd.f32 %v1682, %v1924
      %v1990 = vadd.f32 %v1683, %v1965
      %v1991 = vadd.f32 %v1684, %v1886
      %v1992 = vadd.f32 %v1685, %v1927
      %v1993 = vadd.f32 %v1686, %v1968
      %v1994 = vadd.f32 %v1687, %v1889
      %v1995 = vadd.f32 %v1688, %v1930
      %v1996 = vadd.f32 %v1689, %v1971
      %v1997 = vadd.f32 %v1690, %v1892
      %v1998 = vadd.f32 %v1691, %v1933
      %v1999 = vadd.f32 %v1692, %v1974
      %v2000 = vadd.f32 %v1693, %v1895
      %v2001 = vadd.f32 %v1694, %v1936
      %v2002 = vadd.f32 %v1695, %v1977
      %v2003 = vld [vmem:[#allocation2 + $0x8] sm:$0xff]
      %v2004 = vld [vmem:[#allocation2 + $0x10] sm:$0xff]
      %v2005 = vld [vmem:[#allocation2 + $0x18] sm:$0xff]
      %v2006 = vld [vmem:[#allocation2 + $0x20] sm:$0xff]
      %2011 = vrot.lane.b32.xlu0 %v2003, 123
      %v2012 = vpop.permute.xlu0 %2011
      %2013 = vrot.lane.b32.xlu0 %v2004, 123
      %v2014 = vpop.permute.xlu0 %2013
      %2015 = vrot.lane.b32.xlu0 %v2005, 123
      %v2016 = vpop.permute.xlu0 %2015
      %2017 = vrot.lane.b32.xlu0 %v2006, 123
      %v2018 = vpop.permute.xlu0 %2017
      %v2019 = vsel %vm783, %v2012, %v2014
      %v2020 = vsel %vm783, %v2014, %v2016
      %v2021 = vsel %vm783, %v2016, %v2018
      %2022 = vrot.lane.b32.xlu0 %v2003, 122
      %v2023 = vpop.permute.xlu0 %2022
      %2024 = vrot.lane.b32.xlu0 %v2004, 122
      %v2025 = vpop.permute.xlu0 %2024
      %2026 = vrot.lane.b32.xlu0 %v2005, 122
      %v2027 = vpop.permute.xlu0 %2026
      %2028 = vrot.lane.b32.xlu0 %v2006, 122
      %v2029 = vpop.permute.xlu0 %2028
      %v2030 = vsel %vm795, %v2023, %v2025
      %v2031 = vsel %vm795, %v2025, %v2027
      %v2032 = vsel %vm795, %v2027, %v2029
      %2033 = vrot.lane.b32.xlu0 %v2003, 121
      %v2034 = vpop.permute.xlu0 %2033
      %2035 = vrot.lane.b32.xlu0 %v2004, 121
      %v2036 = vpop.permute.xlu0 %2035
      %2037 = vrot.lane.b32.xlu0 %v2005, 121
      %v2038 = vpop.permute.xlu0 %2037
      %2039 = vrot.lane.b32.xlu0 %v2006, 121
      %v2040 = vpop.permute.xlu0 %2039
      %v2041 = vsel %vm807, %v2034, %v2036
      %v2042 = vsel %vm807, %v2036, %v2038
      %v2043 = vsel %vm807, %v2038, %v2040
      %2044 = vrot.lane.b32.xlu0 %v2003, 120
      %v2045 = vpop.permute.xlu0 %2044
      %2046 = vrot.lane.b32.xlu0 %v2004, 120
      %v2047 = vpop.permute.xlu0 %2046
      %2048 = vrot.lane.b32.xlu0 %v2005, 120
      %v2049 = vpop.permute.xlu0 %2048
      %2050 = vrot.lane.b32.xlu0 %v2006, 120
      %v2051 = vpop.permute.xlu0 %2050
      %v2052 = vsel %vm819, %v2045, %v2047
      %v2053 = vsel %vm819, %v2047, %v2049
      %v2054 = vsel %vm819, %v2049, %v2051
      %s2055 = scalar_lea.vmem %s3, 256
      %v2056 = vld [vmem:[%s2055] sm:$0xff]
      %v2057 = vld [vmem:[%s2055 + $0x8] sm:$0xff]
      %v2058 = vld [vmem:[%s2055 + $0x10] sm:$0xff]
      %v2059 = vld [vmem:[%s2055 + $0x18] sm:$0xff]
      %v2060 = vld [vmem:[%s2055 + $0x20] sm:$0xff]
      %v2061 = vld [vmem:[%s2055 + $0x28] sm:$0xff]
      %v2062 = vld [vmem:[%s2055 + $0x30] sm:$0xff]
      %v2063 = vld [vmem:[%s2055 + $0x38] sm:$0xff]
      %2064 = vrot.lane.b32.xlu0 %v719, 4
      %v2065 = vpop.permute.xlu0 %2064
      %2066 = vrot.lane.b32.xlu0 %v720, 4
      %v2067 = vpop.permute.xlu0 %2066
      %2068 = vrot.lane.b32.xlu0 %v721, 4
      %v2069 = vpop.permute.xlu0 %2068
      %2070 = vrot.lane.b32.xlu0 %v722, 4
      %v2071 = vpop.permute.xlu0 %2070
      %2072 = vrot.lane.b32.xlu0 %v736, 4
      %v2073 = vpop.permute.xlu0 %2072
      %2074 = vrot.lane.b32.xlu0 %v737, 4
      %v2075 = vpop.permute.xlu0 %2074
      %2076 = vrot.lane.b32.xlu0 %v738, 4
      %v2077 = vpop.permute.xlu0 %2076
      %2078 = vrot.lane.b32.xlu0 %v734, 4
      %v2079 = vpop.permute.xlu0 %2078
      %2080 = vrot.lane.b32.xlu0 %v748, 4
      %v2081 = vpop.permute.xlu0 %2080
      %2082 = vrot.lane.b32.xlu0 %v749, 4
      %v2083 = vpop.permute.xlu0 %2082
      %2084 = vrot.lane.b32.xlu0 %v750, 4
      %v2085 = vpop.permute.xlu0 %2084
      %2086 = vrot.lane.b32.xlu0 %v746, 4
      %v2087 = vpop.permute.xlu0 %2086
      %2088 = vrot.lane.b32.xlu0 %v760, 4
      %v2089 = vpop.permute.xlu0 %2088
      %2090 = vrot.lane.b32.xlu0 %v761, 4
      %v2091 = vpop.permute.xlu0 %2090
      %2092 = vrot.lane.b32.xlu0 %v762, 4
      %v2093 = vpop.permute.xlu0 %2092
      %2094 = vrot.lane.b32.xlu0 %v758, 4
      %v2095 = vpop.permute.xlu0 %2094
      %2096 = vrot.lane.b32.xlu0 %v766, 4
      %v2097 = vpop.permute.xlu0 %2096
      %2098 = vrot.lane.b32.xlu0 %v773, 4
      %v2099 = vpop.permute.xlu0 %2098
      %2100 = vrot.lane.b32.xlu0 %v774, 4
      %v2101 = vpop.permute.xlu0 %2100
      %2102 = vrot.lane.b32.xlu0 %v770, 4
      %v2103 = vpop.permute.xlu0 %2102
      %2104 = vrot.lane.b32.xlu0 %v2012, 4
      %v2105 = vpop.permute.xlu0 %2104
      %2106 = vrot.lane.b32.xlu0 %v2019, 4
      %v2107 = vpop.permute.xlu0 %2106
      %2108 = vrot.lane.b32.xlu0 %v2020, 4
      %v2109 = vpop.permute.xlu0 %2108
      %2110 = vrot.lane.b32.xlu0 %v2021, 4
      %v2111 = vpop.permute.xlu0 %2110
      %2112 = vrot.lane.b32.xlu0 %v2023, 4
      %v2113 = vpop.permute.xlu0 %2112
      %2114 = vrot.lane.b32.xlu0 %v2030, 4
      %v2115 = vpop.permute.xlu0 %2114
      %2116 = vrot.lane.b32.xlu0 %v2031, 4
      %v2117 = vpop.permute.xlu0 %2116
      %2118 = vrot.lane.b32.xlu0 %v2032, 4
      %v2119 = vpop.permute.xlu0 %2118
      %2120 = vrot.lane.b32.xlu0 %v2034, 4
      %v2121 = vpop.permute.xlu0 %2120
      %2122 = vrot.lane.b32.xlu0 %v2041, 4
      %v2123 = vpop.permute.xlu0 %2122
      %2124 = vrot.lane.b32.xlu0 %v2042, 4
      %v2125 = vpop.permute.xlu0 %2124
      %2126 = vrot.lane.b32.xlu0 %v2043, 4
      %v2127 = vpop.permute.xlu0 %2126
      %2128 = vrot.lane.b32.xlu0 %v2045, 4
      %v2129 = vpop.permute.xlu0 %2128
      %2130 = vrot.lane.b32.xlu0 %v2052, 4
      %v2131 = vpop.permute.xlu0 %2130
      %2132 = vrot.lane.b32.xlu0 %v2053, 4
      %v2133 = vpop.permute.xlu0 %2132
      %2134 = vrot.lane.b32.xlu0 %v2054, 4
      %v2135 = vpop.permute.xlu0 %2134
      %vm2136 = vcmask 31744
      %v2137 = vsel %vm2136, %v2065, %v2067
      %v2138 = vsel %vm2136, %v2067, %v2069
      %v2139 = vsel %vm2136, %v2069, %v2071
      %v2140 = vsel %vm2136, %v2073, %v2075
      %v2141 = vsel %vm2136, %v2075, %v2077
      %v2142 = vsel %vm2136, %v2077, %v2079
      %v2143 = vsel %vm2136, %v2081, %v2083
      %v2144 = vsel %vm2136, %v2083, %v2085
      %v2145 = vsel %vm2136, %v2085, %v2087
      %v2146 = vsel %vm2136, %v2089, %v2091
      %v2147 = vsel %vm2136, %v2091, %v2093
      %v2148 = vsel %vm2136, %v2093, %v2095
      %v2149 = vsel %vm2136, %v2097, %v2099
      %v2150 = vsel %vm2136, %v2099, %v2101
      %v2151 = vsel %vm2136, %v2101, %v2103
      %v2152 = vsel %vm2136, %v2105, %v2107
      %v2153 = vsel %vm2136, %v2107, %v2109
      %v2154 = vsel %vm2136, %v2109, %v2111
      %v2155 = vsel %vm2136, %v2113, %v2115
      %v2156 = vsel %vm2136, %v2115, %v2117
      %v2157 = vsel %vm2136, %v2117, %v2119
      %v2158 = vsel %vm2136, %v2121, %v2123
      %v2159 = vsel %vm2136, %v2123, %v2125
      %v2160 = vsel %vm2136, %v2125, %v2127
      %v2161 = vsel %vm2136, %v2129, %v2131
      %v2162 = vsel %vm2136, %v2131, %v2133
      %v2163 = vsel %vm2136, %v2133, %v2135
      %v2192 = vsel %vm967, %v2056, 0
      %v2195 = vsel %vm967, %v2057, 0
      %v2198 = vsel %vm967, %v2058, 0
      %v2201 = vsel %vm967, %v2059, 0
      %v2204 = vsel %vm967, %v2060, 0
      %v2207 = vsel %vm967, %v2061, 0
      %v2210 = vsel %vm967, %v2062, 0
      %v2213 = vsel %vm967, %v2063, 0
      %2215 = vmatpush.msra.mxu0 0.0
      %2216 = vmatpush.msra.mxu0 0.0
      %2217 = vmatpush.msra.mxu0 0.0
      %2218 = vmatpush.msra.mxu0 0.0
      %2219 = vmatpush.msra.mxu0 0.0
      %2220 = vmatpush.msra.mxu0 0.0
      %2221 = vmatpush.msra.mxu0 0.0
      %2222 = vmatpush.msra.mxu0 %v2161
      %2223 = vmatpush.msra.mxu0 %v2158
      %2224 = vmatpush.msra.mxu0 %v2155
      %2225 = vmatpush.msra.mxu0 %v2152
      %2226 = vmatpush.msra.mxu0 %v2149
      %2227 = vmatpush.msra.mxu0 %v2146
      %2228 = vmatpush.msra.mxu0 %v2143
      %2229 = vmatpush.msra.mxu0 %v2140
      %2230 = vmatpush.msra.mxu0 %v2137
      %2231 = vmatmul.f32.gmra.mxu0 %v2192
      %v2232 = vpop.f32.mrf.mxu0
      %v2233 = vadd.f32 0.0, %v2232
      %2234 = vmatmul.f32.gmra.mxu0 %v2195
      %v2235 = vpop.f32.mrf.mxu0
      %v2236 = vadd.f32 0.0, %v2235
      %2237 = vmatmul.f32.gmra.mxu0 %v2198
      %v2238 = vpop.f32.mrf.mxu0
      %v2239 = vadd.f32 0.0, %v2238
      %2240 = vmatmul.f32.gmra.mxu0 %v2201
      %v2241 = vpop.f32.mrf.mxu0
      %v2242 = vadd.f32 0.0, %v2241
      %2243 = vmatmul.f32.gmra.mxu0 %v2204
      %v2244 = vpop.f32.mrf.mxu0
      %v2245 = vadd.f32 0.0, %v2244
      %2246 = vmatmul.f32.gmra.mxu0 %v2207
      %v2247 = vpop.f32.mrf.mxu0
      %v2248 = vadd.f32 0.0, %v2247
      %2249 = vmatmul.f32.gmra.mxu0 %v2210
      %v2250 = vpop.f32.mrf.mxu0
      %v2251 = vadd.f32 0.0, %v2250
      %2252 = vmatmul.f32.gmra.mxu0 %v2213
      %v2253 = vpop.f32.mrf.mxu0
      %v2254 = vadd.f32 0.0, %v2253
      %2255 = vdwg.mxu0
      %2256 = vmatpush.msra.mxu0 0.0
      %2257 = vmatpush.msra.mxu0 0.0
      %2258 = vmatpush.msra.mxu0 0.0
      %2259 = vmatpush.msra.mxu0 0.0
      %2260 = vmatpush.msra.mxu0 0.0
      %2261 = vmatpush.msra.mxu0 0.0
      %2262 = vmatpush.msra.mxu0 0.0
      %2263 = vmatpush.msra.mxu0 %v2162
      %2264 = vmatpush.msra.mxu0 %v2159
      %2265 = vmatpush.msra.mxu0 %v2156
      %2266 = vmatpush.msra.mxu0 %v2153
      %2267 = vmatpush.msra.mxu0 %v2150
      %2268 = vmatpush.msra.mxu0 %v2147
      %2269 = vmatpush.msra.mxu0 %v2144
      %2270 = vmatpush.msra.mxu0 %v2141
      %2271 = vmatpush.msra.mxu0 %v2138
      %2272 = vmatmul.f32.gmra.mxu0 %v2192
      %v2273 = vpop.f32.mrf.mxu0
      %v2274 = vadd.f32 0.0, %v2273
      %2275 = vmatmul.f32.gmra.mxu0 %v2195
      %v2276 = vpop.f32.mrf.mxu0
      %v2277 = vadd.f32 0.0, %v2276
      %2278 = vmatmul.f32.gmra.mxu0 %v2198
      %v2279 = vpop.f32.mrf.mxu0
      %v2280 = vadd.f32 0.0, %v2279
      %2281 = vmatmul.f32.gmra.mxu0 %v2201
      %v2282 = vpop.f32.mrf.mxu0
      %v2283 = vadd.f32 0.0, %v2282
      %2284 = vmatmul.f32.gmra.mxu0 %v2204
      %v2285 = vpop.f32.mrf.mxu0
      %v2286 = vadd.f32 0.0, %v2285
      %2287 = vmatmul.f32.gmra.mxu0 %v2207
      %v2288 = vpop.f32.mrf.mxu0
      %v2289 = vadd.f32 0.0, %v2288
      %2290 = vmatmul.f32.gmra.mxu0 %v2210
      %v2291 = vpop.f32.mrf.mxu0
      %v2292 = vadd.f32 0.0, %v2291
      %2293 = vmatmul.f32.gmra.mxu0 %v2213
      %v2294 = vpop.f32.mrf.mxu0
      %v2295 = vadd.f32 0.0, %v2294
      %2296 = vdwg.mxu0
      %2297 = vmatpush.msra.mxu0 0.0
      %2298 = vmatpush.msra.mxu0 0.0
      %2299 = vmatpush.msra.mxu0 0.0
      %2300 = vmatpush.msra.mxu0 0.0
      %2301 = vmatpush.msra.mxu0 0.0
      %2302 = vmatpush.msra.mxu0 0.0
      %2303 = vmatpush.msra.mxu0 0.0
      %2304 = vmatpush.msra.mxu0 %v2163
      %2305 = vmatpush.msra.mxu0 %v2160
      %2306 = vmatpush.msra.mxu0 %v2157
      %2307 = vmatpush.msra.mxu0 %v2154
      %2308 = vmatpush.msra.mxu0 %v2151
      %2309 = vmatpush.msra.mxu0 %v2148
      %2310 = vmatpush.msra.mxu0 %v2145
      %2311 = vmatpush.msra.mxu0 %v2142
      %2312 = vmatpush.msra.mxu0 %v2139
      %2313 = vmatmul.f32.gmra.mxu0 %v2192
      %v2314 = vpop.f32.mrf.mxu0
      %v2315 = vadd.f32 0.0, %v2314
      %2316 = vmatmul.f32.gmra.mxu0 %v2195
      %v2317 = vpop.f32.mrf.mxu0
      %v2318 = vadd.f32 0.0, %v2317
      %2319 = vmatmul.f32.gmra.mxu0 %v2198
      %v2320 = vpop.f32.mrf.mxu0
      %v2321 = vadd.f32 0.0, %v2320
      %2322 = vmatmul.f32.gmra.mxu0 %v2201
      %v2323 = vpop.f32.mrf.mxu0
      %v2324 = vadd.f32 0.0, %v2323
      %2325 = vmatmul.f32.gmra.mxu0 %v2204
      %v2326 = vpop.f32.mrf.mxu0
      %v2327 = vadd.f32 0.0, %v2326
      %2328 = vmatmul.f32.gmra.mxu0 %v2207
      %v2329 = vpop.f32.mrf.mxu0
      %v2330 = vadd.f32 0.0, %v2329
      %2331 = vmatmul.f32.gmra.mxu0 %v2210
      %v2332 = vpop.f32.mrf.mxu0
      %v2333 = vadd.f32 0.0, %v2332
      %2334 = vmatmul.f32.gmra.mxu0 %v2213
      %v2335 = vpop.f32.mrf.mxu0
      %v2336 = vadd.f32 0.0, %v2335
      %2337 = vdwg.mxu0
      %v2338 = vadd.f32 %v1979, %v2233
      %v2339 = vadd.f32 %v1980, %v2274
      %v2340 = vadd.f32 %v1981, %v2315
      %v2341 = vadd.f32 %v1982, %v2236
      %v2342 = vadd.f32 %v1983, %v2277
      %v2343 = vadd.f32 %v1984, %v2318
      %v2344 = vadd.f32 %v1985, %v2239
      %v2345 = vadd.f32 %v1986, %v2280
      %v2346 = vadd.f32 %v1987, %v2321
      %v2347 = vadd.f32 %v1988, %v2242
      %v2348 = vadd.f32 %v1989, %v2283
      %v2349 = vadd.f32 %v1990, %v2324
      %v2350 = vadd.f32 %v1991, %v2245
      %v2351 = vadd.f32 %v1992, %v2286
      %v2352 = vadd.f32 %v1993, %v2327
      %v2353 = vadd.f32 %v1994, %v2248
      %v2354 = vadd.f32 %v1995, %v2289
      %v2355 = vadd.f32 %v1996, %v2330
      %v2356 = vadd.f32 %v1997, %v2251
      %v2357 = vadd.f32 %v1998, %v2292
      %v2358 = vadd.f32 %v1999, %v2333
      %v2359 = vadd.f32 %v2000, %v2254
      %v2360 = vadd.f32 %v2001, %v2295
      %v2361 = vadd.f32 %v2002, %v2336
      %2362 = vrot.lane.b32.xlu0 %v2003, 127
      %v2363 = vpop.permute.xlu0 %2362
      %2364 = vrot.lane.b32.xlu0 %v2004, 127
      %v2365 = vpop.permute.xlu0 %2364
      %2366 = vrot.lane.b32.xlu0 %v2005, 127
      %v2367 = vpop.permute.xlu0 %2366
      %2368 = vrot.lane.b32.xlu0 %v2006, 127
      %v2369 = vpop.permute.xlu0 %2368
      %v2370 = vsel %vm735, %v2363, %v2365
      %v2371 = vsel %vm735, %v2365, %v2367
      %v2372 = vsel %vm735, %v2367, %v2369
      %2373 = vrot.lane.b32.xlu0 %v2003, 126
      %v2374 = vpop.permute.xlu0 %2373
      %2375 = vrot.lane.b32.xlu0 %v2004, 126
      %v2376 = vpop.permute.xlu0 %2375
      %2377 = vrot.lane.b32.xlu0 %v2005, 126
      %v2378 = vpop.permute.xlu0 %2377
      %2379 = vrot.lane.b32.xlu0 %v2006, 126
      %v2380 = vpop.permute.xlu0 %2379
      %v2381 = vsel %vm747, %v2374, %v2376
      %v2382 = vsel %vm747, %v2376, %v2378
      %v2383 = vsel %vm747, %v2378, %v2380
      %2384 = vrot.lane.b32.xlu0 %v2003, 125
      %v2385 = vpop.permute.xlu0 %2384
      %2386 = vrot.lane.b32.xlu0 %v2004, 125
      %v2387 = vpop.permute.xlu0 %2386
      %2388 = vrot.lane.b32.xlu0 %v2005, 125
      %v2389 = vpop.permute.xlu0 %2388
      %2390 = vrot.lane.b32.xlu0 %v2006, 125
      %v2391 = vpop.permute.xlu0 %2390
      %v2392 = vsel %vm759, %v2385, %v2387
      %v2393 = vsel %vm759, %v2387, %v2389
      %v2394 = vsel %vm759, %v2389, %v2391
      %2395 = vrot.lane.b32.xlu0 %v2003, 124
      %v2396 = vpop.permute.xlu0 %2395
      %2397 = vrot.lane.b32.xlu0 %v2004, 124
      %v2398 = vpop.permute.xlu0 %2397
      %2399 = vrot.lane.b32.xlu0 %v2005, 124
      %v2400 = vpop.permute.xlu0 %2399
      %2401 = vrot.lane.b32.xlu0 %v2006, 124
      %v2402 = vpop.permute.xlu0 %2401
      %v2403 = vsel %vm771, %v2396, %v2398
      %v2404 = vsel %vm771, %v2398, %v2400
      %v2405 = vsel %vm771, %v2400, %v2402
      %s2406 = scalar_lea.vmem %s3, 320
      %v2407 = vld [vmem:[%s2406] sm:$0xff]
      %v2408 = vld [vmem:[%s2406 + $0x8] sm:$0xff]
      %v2409 = vld [vmem:[%s2406 + $0x10] sm:$0xff]
      %v2410 = vld [vmem:[%s2406 + $0x18] sm:$0xff]
      %v2411 = vld [vmem:[%s2406 + $0x20] sm:$0xff]
      %v2412 = vld [vmem:[%s2406 + $0x28] sm:$0xff]
      %v2413 = vld [vmem:[%s2406 + $0x30] sm:$0xff]
      %v2414 = vld [vmem:[%s2406 + $0x38] sm:$0xff]
      %2415 = vrot.lane.b32.xlu0 %v2003, 108
      %v2416 = vpop.permute.xlu0 %2415
      %2417 = vrot.lane.b32.xlu0 %v2004, 108
      %v2418 = vpop.permute.xlu0 %2417
      %2419 = vrot.lane.b32.xlu0 %v2005, 108
      %v2420 = vpop.permute.xlu0 %2419
      %2421 = vrot.lane.b32.xlu0 %v2006, 108
      %v2422 = vpop.permute.xlu0 %2421
      %2423 = vrot.lane.b32.xlu0 %v2370, 108
      %v2424 = vpop.permute.xlu0 %2423
      %2425 = vrot.lane.b32.xlu0 %v2371, 108
      %v2426 = vpop.permute.xlu0 %2425
      %2427 = vrot.lane.b32.xlu0 %v2372, 108
      %v2428 = vpop.permute.xlu0 %2427
      %2429 = vrot.lane.b32.xlu0 %v2369, 108
      %v2430 = vpop.permute.xlu0 %2429
      %2431 = vrot.lane.b32.xlu0 %v2381, 108
      %v2432 = vpop.permute.xlu0 %2431
      %2433 = vrot.lane.b32.xlu0 %v2382, 108
      %v2434 = vpop.permute.xlu0 %2433
      %2435 = vrot.lane.b32.xlu0 %v2383, 108
      %v2436 = vpop.permute.xlu0 %2435
      %2437 = vrot.lane.b32.xlu0 %v2380, 108
      %v2438 = vpop.permute.xlu0 %2437
      %2439 = vrot.lane.b32.xlu0 %v2392, 108
      %v2440 = vpop.permute.xlu0 %2439
      %2441 = vrot.lane.b32.xlu0 %v2393, 108
      %v2442 = vpop.permute.xlu0 %2441
      %2443 = vrot.lane.b32.xlu0 %v2394, 108
      %v2444 = vpop.permute.xlu0 %2443
      %2445 = vrot.lane.b32.xlu0 %v2391, 108
      %v2446 = vpop.permute.xlu0 %2445
      %2447 = vrot.lane.b32.xlu0 %v2403, 108
      %v2448 = vpop.permute.xlu0 %2447
      %2449 = vrot.lane.b32.xlu0 %v2404, 108
      %v2450 = vpop.permute.xlu0 %2449
      %2451 = vrot.lane.b32.xlu0 %v2405, 108
      %v2452 = vpop.permute.xlu0 %2451
      %2453 = vrot.lane.b32.xlu0 %v2402, 108
      %v2454 = vpop.permute.xlu0 %2453
      %2455 = vrot.lane.b32.xlu0 %v2019, 108
      %v2456 = vpop.permute.xlu0 %2455
      %2457 = vrot.lane.b32.xlu0 %v2020, 108
      %v2458 = vpop.permute.xlu0 %2457
      %2459 = vrot.lane.b32.xlu0 %v2021, 108
      %v2460 = vpop.permute.xlu0 %2459
      %2461 = vrot.lane.b32.xlu0 %v2018, 108
      %v2462 = vpop.permute.xlu0 %2461
      %2463 = vrot.lane.b32.xlu0 %v2030, 108
      %v2464 = vpop.permute.xlu0 %2463
      %2465 = vrot.lane.b32.xlu0 %v2031, 108
      %v2466 = vpop.permute.xlu0 %2465
      %2467 = vrot.lane.b32.xlu0 %v2032, 108
      %v2468 = vpop.permute.xlu0 %2467
      %2469 = vrot.lane.b32.xlu0 %v2029, 108
      %v2470 = vpop.permute.xlu0 %2469
      %2471 = vrot.lane.b32.xlu0 %v2041, 108
      %v2472 = vpop.permute.xlu0 %2471
      %2473 = vrot.lane.b32.xlu0 %v2042, 108
      %v2474 = vpop.permute.xlu0 %2473
      %2475 = vrot.lane.b32.xlu0 %v2043, 108
      %v2476 = vpop.permute.xlu0 %2475
      %2477 = vrot.lane.b32.xlu0 %v2040, 108
      %v2478 = vpop.permute.xlu0 %2477
      %2479 = vrot.lane.b32.xlu0 %v2052, 108
      %v2480 = vpop.permute.xlu0 %2479
      %2481 = vrot.lane.b32.xlu0 %v2053, 108
      %v2482 = vpop.permute.xlu0 %2481
      %2483 = vrot.lane.b32.xlu0 %v2054, 108
      %v2484 = vpop.permute.xlu0 %2483
      %2485 = vrot.lane.b32.xlu0 %v2051, 108
      %v2486 = vpop.permute.xlu0 %2485
      %vm2487 = vcmask 883712
      %v2488 = vsel %vm2487, %v2416, %v2418
      %v2489 = vsel %vm2487, %v2418, %v2420
      %v2490 = vsel %vm2487, %v2420, %v2422
      %v2491 = vsel %vm2487, %v2424, %v2426
      %v2492 = vsel %vm2487, %v2426, %v2428
      %v2493 = vsel %vm2487, %v2428, %v2430
      %v2494 = vsel %vm2487, %v2432, %v2434
      %v2495 = vsel %vm2487, %v2434, %v2436
      %v2496 = vsel %vm2487, %v2436, %v2438
      %v2497 = vsel %vm2487, %v2440, %v2442
      %v2498 = vsel %vm2487, %v2442, %v2444
      %v2499 = vsel %vm2487, %v2444, %v2446
      %v2500 = vsel %vm2487, %v2448, %v2450
      %v2501 = vsel %vm2487, %v2450, %v2452
      %v2502 = vsel %vm2487, %v2452, %v2454
      %v2503 = vsel %vm2487, %v2456, %v2458
      %v2504 = vsel %vm2487, %v2458, %v2460
      %v2505 = vsel %vm2487, %v2460, %v2462
      %v2506 = vsel %vm2487, %v2464, %v2466
      %v2507 = vsel %vm2487, %v2466, %v2468
      %v2508 = vsel %vm2487, %v2468, %v2470
      %v2509 = vsel %vm2487, %v2472, %v2474
      %v2510 = vsel %vm2487, %v2474, %v2476
      %v2511 = vsel %vm2487, %v2476, %v2478
      %v2512 = vsel %vm2487, %v2480, %v2482
      %v2513 = vsel %vm2487, %v2482, %v2484
      %v2514 = vsel %vm2487, %v2484, %v2486
      %v2543 = vsel %vm967, %v2407, 0
      %v2546 = vsel %vm967, %v2408, 0
      %v2549 = vsel %vm967, %v2409, 0
      %v2552 = vsel %vm967, %v2410, 0
      %v2555 = vsel %vm967, %v2411, 0
      %v2558 = vsel %vm967, %v2412, 0
      %v2561 = vsel %vm967, %v2413, 0
      %v2564 = vsel %vm967, %v2414, 0
      %2566 = vmatpush.msra.mxu0 0.0
      %2567 = vmatpush.msra.mxu0 0.0
      %2568 = vmatpush.msra.mxu0 0.0
      %2569 = vmatpush.msra.mxu0 0.0
      %2570 = vmatpush.msra.mxu0 0.0
      %2571 = vmatpush.msra.mxu0 0.0
      %2572 = vmatpush.msra.mxu0 0.0
      %2573 = vmatpush.msra.mxu0 %v2512
      %2574 = vmatpush.msra.mxu0 %v2509
      %2575 = vmatpush.msra.mxu0 %v2506
      %2576 = vmatpush.msra.mxu0 %v2503
      %2577 = vmatpush.msra.mxu0 %v2500
      %2578 = vmatpush.msra.mxu0 %v2497
      %2579 = vmatpush.msra.mxu0 %v2494
      %2580 = vmatpush.msra.mxu0 %v2491
      %2581 = vmatpush.msra.mxu0 %v2488
      %2582 = vmatmul.f32.gmra.mxu0 %v2543
      %v2583 = vpop.f32.mrf.mxu0
      %v2584 = vadd.f32 0.0, %v2583
      %2585 = vmatmul.f32.gmra.mxu0 %v2546
      %v2586 = vpop.f32.mrf.mxu0
      %v2587 = vadd.f32 0.0, %v2586
      %2588 = vmatmul.f32.gmra.mxu0 %v2549
      %v2589 = vpop.f32.mrf.mxu0
      %v2590 = vadd.f32 0.0, %v2589
      %2591 = vmatmul.f32.gmra.mxu0 %v2552
      %v2592 = vpop.f32.mrf.mxu0
      %v2593 = vadd.f32 0.0, %v2592
      %2594 = vmatmul.f32.gmra.mxu0 %v2555
      %v2595 = vpop.f32.mrf.mxu0
      %v2596 = vadd.f32 0.0, %v2595
      %2597 = vmatmul.f32.gmra.mxu0 %v2558
      %v2598 = vpop.f32.mrf.mxu0
      %v2599 = vadd.f32 0.0, %v2598
      %2600 = vmatmul.f32.gmra.mxu0 %v2561
      %v2601 = vpop.f32.mrf.mxu0
      %v2602 = vadd.f32 0.0, %v2601
      %2603 = vmatmul.f32.gmra.mxu0 %v2564
      %v2604 = vpop.f32.mrf.mxu0
      %v2605 = vadd.f32 0.0, %v2604
      %2606 = vdwg.mxu0
      %2607 = vmatpush.msra.mxu0 0.0
      %2608 = vmatpush.msra.mxu0 0.0
      %2609 = vmatpush.msra.mxu0 0.0
      %2610 = vmatpush.msra.mxu0 0.0
      %2611 = vmatpush.msra.mxu0 0.0
      %2612 = vmatpush.msra.mxu0 0.0
      %2613 = vmatpush.msra.mxu0 0.0
      %2614 = vmatpush.msra.mxu0 %v2513
      %2615 = vmatpush.msra.mxu0 %v2510
      %2616 = vmatpush.msra.mxu0 %v2507
      %2617 = vmatpush.msra.mxu0 %v2504
      %2618 = vmatpush.msra.mxu0 %v2501
      %2619 = vmatpush.msra.mxu0 %v2498
      %2620 = vmatpush.msra.mxu0 %v2495
      %2621 = vmatpush.msra.mxu0 %v2492
      %2622 = vmatpush.msra.mxu0 %v2489
      %2623 = vmatmul.f32.gmra.mxu0 %v2543
      %v2624 = vpop.f32.mrf.mxu0
      %v2625 = vadd.f32 0.0, %v2624
      %2626 = vmatmul.f32.gmra.mxu0 %v2546
      %v2627 = vpop.f32.mrf.mxu0
      %v2628 = vadd.f32 0.0, %v2627
      %2629 = vmatmul.f32.gmra.mxu0 %v2549
      %v2630 = vpop.f32.mrf.mxu0
      %v2631 = vadd.f32 0.0, %v2630
      %2632 = vmatmul.f32.gmra.mxu0 %v2552
      %v2633 = vpop.f32.mrf.mxu0
      %v2634 = vadd.f32 0.0, %v2633
      %2635 = vmatmul.f32.gmra.mxu0 %v2555
      %v2636 = vpop.f32.mrf.mxu0
      %v2637 = vadd.f32 0.0, %v2636
      %2638 = vmatmul.f32.gmra.mxu0 %v2558
      %v2639 = vpop.f32.mrf.mxu0
      %v2640 = vadd.f32 0.0, %v2639
      %2641 = vmatmul.f32.gmra.mxu0 %v2561
      %v2642 = vpop.f32.mrf.mxu0
      %v2643 = vadd.f32 0.0, %v2642
      %2644 = vmatmul.f32.gmra.mxu0 %v2564
      %v2645 = vpop.f32.mrf.mxu0
      %v2646 = vadd.f32 0.0, %v2645
      %2647 = vdwg.mxu0
      %2648 = vmatpush.msra.mxu0 0.0
      %2649 = vmatpush.msra.mxu0 0.0
      %2650 = vmatpush.msra.mxu0 0.0
      %2651 = vmatpush.msra.mxu0 0.0
      %2652 = vmatpush.msra.mxu0 0.0
      %2653 = vmatpush.msra.mxu0 0.0
      %2654 = vmatpush.msra.mxu0 0.0
      %2655 = vmatpush.msra.mxu0 %v2514
      %2656 = vmatpush.msra.mxu0 %v2511
      %2657 = vmatpush.msra.mxu0 %v2508
      %2658 = vmatpush.msra.mxu0 %v2505
      %2659 = vmatpush.msra.mxu0 %v2502
      %2660 = vmatpush.msra.mxu0 %v2499
      %2661 = vmatpush.msra.mxu0 %v2496
      %2662 = vmatpush.msra.mxu0 %v2493
      %2663 = vmatpush.msra.mxu0 %v2490
      %2664 = vmatmul.f32.gmra.mxu0 %v2543
      %v2665 = vpop.f32.mrf.mxu0
      %v2666 = vadd.f32 0.0, %v2665
      %2667 = vmatmul.f32.gmra.mxu0 %v2546
      %v2668 = vpop.f32.mrf.mxu0
      %v2669 = vadd.f32 0.0, %v2668
      %2670 = vmatmul.f32.gmra.mxu0 %v2549
      %v2671 = vpop.f32.mrf.mxu0
      %v2672 = vadd.f32 0.0, %v2671
      %2673 = vmatmul.f32.gmra.mxu0 %v2552
      %v2674 = vpop.f32.mrf.mxu0
      %v2675 = vadd.f32 0.0, %v2674
      %2676 = vmatmul.f32.gmra.mxu0 %v2555
      %v2677 = vpop.f32.mrf.mxu0
      %v2678 = vadd.f32 0.0, %v2677
      %2679 = vmatmul.f32.gmra.mxu0 %v2558
      %v2680 = vpop.f32.mrf.mxu0
      %v2681 = vadd.f32 0.0, %v2680
      %2682 = vmatmul.f32.gmra.mxu0 %v2561
      %v2683 = vpop.f32.mrf.mxu0
      %v2684 = vadd.f32 0.0, %v2683
      %2685 = vmatmul.f32.gmra.mxu0 %v2564
      %v2686 = vpop.f32.mrf.mxu0
      %v2687 = vadd.f32 0.0, %v2686
      %2688 = vdwg.mxu0
      %v2689 = vadd.f32 %v2338, %v2584
      %v2690 = vadd.f32 %v2339, %v2625
      %v2691 = vadd.f32 %v2340, %v2666
      %v2692 = vadd.f32 %v2341, %v2587
      %v2693 = vadd.f32 %v2342, %v2628
      %v2694 = vadd.f32 %v2343, %v2669
      %v2695 = vadd.f32 %v2344, %v2590
      %v2696 = vadd.f32 %v2345, %v2631
      %v2697 = vadd.f32 %v2346, %v2672
      %v2698 = vadd.f32 %v2347, %v2593
      %v2699 = vadd.f32 %v2348, %v2634
      %v2700 = vadd.f32 %v2349, %v2675
      %v2701 = vadd.f32 %v2350, %v2596
      %v2702 = vadd.f32 %v2351, %v2637
      %v2703 = vadd.f32 %v2352, %v2678
      %v2704 = vadd.f32 %v2353, %v2599
      %v2705 = vadd.f32 %v2354, %v2640
      %v2706 = vadd.f32 %v2355, %v2681
      %v2707 = vadd.f32 %v2356, %v2602
      %v2708 = vadd.f32 %v2357, %v2643
      %v2709 = vadd.f32 %v2358, %v2684
      %v2710 = vadd.f32 %v2359, %v2605
      %v2711 = vadd.f32 %v2360, %v2646
      %v2712 = vadd.f32 %v2361, %v2687
      %s2713 = scalar_lea.vmem %s3, 384
      %v2714 = vld [vmem:[%s2713] sm:$0xff]
      %v2715 = vld [vmem:[%s2713 + $0x8] sm:$0xff]
      %v2716 = vld [vmem:[%s2713 + $0x10] sm:$0xff]
      %v2717 = vld [vmem:[%s2713 + $0x18] sm:$0xff]
      %v2718 = vld [vmem:[%s2713 + $0x20] sm:$0xff]
      %v2719 = vld [vmem:[%s2713 + $0x28] sm:$0xff]
      %v2720 = vld [vmem:[%s2713 + $0x30] sm:$0xff]
      %v2721 = vld [vmem:[%s2713 + $0x38] sm:$0xff]
      %2722 = vrot.lane.b32.xlu0 %v2003, 84
      %v2723 = vpop.permute.xlu0 %2722
      %2724 = vrot.lane.b32.xlu0 %v2004, 84
      %v2725 = vpop.permute.xlu0 %2724
      %2726 = vrot.lane.b32.xlu0 %v2005, 84
      %v2727 = vpop.permute.xlu0 %2726
      %2728 = vrot.lane.b32.xlu0 %v2006, 84
      %v2729 = vpop.permute.xlu0 %2728
      %2730 = vrot.lane.b32.xlu0 %v2370, 84
      %v2731 = vpop.permute.xlu0 %2730
      %2732 = vrot.lane.b32.xlu0 %v2371, 84
      %v2733 = vpop.permute.xlu0 %2732
      %2734 = vrot.lane.b32.xlu0 %v2372, 84
      %v2735 = vpop.permute.xlu0 %2734
      %2736 = vrot.lane.b32.xlu0 %v2369, 84
      %v2737 = vpop.permute.xlu0 %2736
      %2738 = vrot.lane.b32.xlu0 %v2381, 84
      %v2739 = vpop.permute.xlu0 %2738
      %2740 = vrot.lane.b32.xlu0 %v2382, 84
      %v2741 = vpop.permute.xlu0 %2740
      %2742 = vrot.lane.b32.xlu0 %v2383, 84
      %v2743 = vpop.permute.xlu0 %2742
      %2744 = vrot.lane.b32.xlu0 %v2380, 84
      %v2745 = vpop.permute.xlu0 %2744
      %2746 = vrot.lane.b32.xlu0 %v2392, 84
      %v2747 = vpop.permute.xlu0 %2746
      %2748 = vrot.lane.b32.xlu0 %v2393, 84
      %v2749 = vpop.permute.xlu0 %2748
      %2750 = vrot.lane.b32.xlu0 %v2394, 84
      %v2751 = vpop.permute.xlu0 %2750
      %2752 = vrot.lane.b32.xlu0 %v2391, 84
      %v2753 = vpop.permute.xlu0 %2752
      %2754 = vrot.lane.b32.xlu0 %v2403, 84
      %v2755 = vpop.permute.xlu0 %2754
      %2756 = vrot.lane.b32.xlu0 %v2404, 84
      %v2757 = vpop.permute.xlu0 %2756
      %2758 = vrot.lane.b32.xlu0 %v2405, 84
      %v2759 = vpop.permute.xlu0 %2758
      %2760 = vrot.lane.b32.xlu0 %v2402, 84
      %v2761 = vpop.permute.xlu0 %2760
      %2762 = vrot.lane.b32.xlu0 %v2019, 84
      %v2763 = vpop.permute.xlu0 %2762
      %2764 = vrot.lane.b32.xlu0 %v2020, 84
      %v2765 = vpop.permute.xlu0 %2764
      %2766 = vrot.lane.b32.xlu0 %v2021, 84
      %v2767 = vpop.permute.xlu0 %2766
      %2768 = vrot.lane.b32.xlu0 %v2018, 84
      %v2769 = vpop.permute.xlu0 %2768
      %2770 = vrot.lane.b32.xlu0 %v2030, 84
      %v2771 = vpop.permute.xlu0 %2770
      %2772 = vrot.lane.b32.xlu0 %v2031, 84
      %v2773 = vpop.permute.xlu0 %2772
      %2774 = vrot.lane.b32.xlu0 %v2032, 84
      %v2775 = vpop.permute.xlu0 %2774
      %2776 = vrot.lane.b32.xlu0 %v2029, 84
      %v2777 = vpop.permute.xlu0 %2776
      %2778 = vrot.lane.b32.xlu0 %v2041, 84
      %v2779 = vpop.permute.xlu0 %2778
      %2780 = vrot.lane.b32.xlu0 %v2042, 84
      %v2781 = vpop.permute.xlu0 %2780
      %2782 = vrot.lane.b32.xlu0 %v2043, 84
      %v2783 = vpop.permute.xlu0 %2782
      %2784 = vrot.lane.b32.xlu0 %v2040, 84
      %v2785 = vpop.permute.xlu0 %2784
      %2786 = vrot.lane.b32.xlu0 %v2052, 84
      %v2787 = vpop.permute.xlu0 %2786
      %2788 = vrot.lane.b32.xlu0 %v2053, 84
      %v2789 = vpop.permute.xlu0 %2788
      %2790 = vrot.lane.b32.xlu0 %v2054, 84
      %v2791 = vpop.permute.xlu0 %2790
      %2792 = vrot.lane.b32.xlu0 %v2051, 84
      %v2793 = vpop.permute.xlu0 %2792
      %vm2794 = vcmask 687104
      %v2795 = vsel %vm2794, %v2723, %v2725
      %v2796 = vsel %vm2794, %v2725, %v2727
      %v2797 = vsel %vm2794, %v2727, %v2729
      %v2798 = vsel %vm2794, %v2731, %v2733
      %v2799 = vsel %vm2794, %v2733, %v2735
      %v2800 = vsel %vm2794, %v2735, %v2737
      %v2801 = vsel %vm2794, %v2739, %v2741
      %v2802 = vsel %vm2794, %v2741, %v2743
      %v2803 = vsel %vm2794, %v2743, %v2745
      %v2804 = vsel %vm2794, %v2747, %v2749
      %v2805 = vsel %vm2794, %v2749, %v2751
      %v2806 = vsel %vm2794, %v2751, %v2753
      %v2807 = vsel %vm2794, %v2755, %v2757
      %v2808 = vsel %vm2794, %v2757, %v2759
      %v2809 = vsel %vm2794, %v2759, %v2761
      %v2810 = vsel %vm2794, %v2763, %v2765
      %v2811 = vsel %vm2794, %v2765, %v2767
      %v2812 = vsel %vm2794, %v2767, %v2769
      %v2813 = vsel %vm2794, %v2771, %v2773
      %v2814 = vsel %vm2794, %v2773, %v2775
      %v2815 = vsel %vm2794, %v2775, %v2777
      %v2816 = vsel %vm2794, %v2779, %v2781
      %v2817 = vsel %vm2794, %v2781, %v2783
      %v2818 = vsel %vm2794, %v2783, %v2785
      %v2819 = vsel %vm2794, %v2787, %v2789
      %v2820 = vsel %vm2794, %v2789, %v2791
      %v2821 = vsel %vm2794, %v2791, %v2793
      %v2850 = vsel %vm967, %v2714, 0
      %v2853 = vsel %vm967, %v2715, 0
      %v2856 = vsel %vm967, %v2716, 0
      %v2859 = vsel %vm967, %v2717, 0
      %v2862 = vsel %vm967, %v2718, 0
      %v2865 = vsel %vm967, %v2719, 0
      %v2868 = vsel %vm967, %v2720, 0
      %v2871 = vsel %vm967, %v2721, 0
      %2873 = vmatpush.msra.mxu0 0.0
      %2874 = vmatpush.msra.mxu0 0.0
      %2875 = vmatpush.msra.mxu0 0.0
      %2876 = vmatpush.msra.mxu0 0.0
      %2877 = vmatpush.msra.mxu0 0.0
      %2878 = vmatpush.msra.mxu0 0.0
      %2879 = vmatpush.msra.mxu0 0.0
      %2880 = vmatpush.msra.mxu0 %v2819
      %2881 = vmatpush.msra.mxu0 %v2816
      %2882 = vmatpush.msra.mxu0 %v2813
      %2883 = vmatpush.msra.mxu0 %v2810
      %2884 = vmatpush.msra.mxu0 %v2807
      %2885 = vmatpush.msra.mxu0 %v2804
      %2886 = vmatpush.msra.mxu0 %v2801
      %2887 = vmatpush.msra.mxu0 %v2798
      %2888 = vmatpush.msra.mxu0 %v2795
      %2889 = vmatmul.f32.gmra.mxu0 %v2850
      %v2890 = vpop.f32.mrf.mxu0
      %v2891 = vadd.f32 0.0, %v2890
      %2892 = vmatmul.f32.gmra.mxu0 %v2853
      %v2893 = vpop.f32.mrf.mxu0
      %v2894 = vadd.f32 0.0, %v2893
      %2895 = vmatmul.f32.gmra.mxu0 %v2856
      %v2896 = vpop.f32.mrf.mxu0
      %v2897 = vadd.f32 0.0, %v2896
      %2898 = vmatmul.f32.gmra.mxu0 %v2859
      %v2899 = vpop.f32.mrf.mxu0
      %v2900 = vadd.f32 0.0, %v2899
      %2901 = vmatmul.f32.gmra.mxu0 %v2862
      %v2902 = vpop.f32.mrf.mxu0
      %v2903 = vadd.f32 0.0, %v2902
      %2904 = vmatmul.f32.gmra.mxu0 %v2865
      %v2905 = vpop.f32.mrf.mxu0
      %v2906 = vadd.f32 0.0, %v2905
      %2907 = vmatmul.f32.gmra.mxu0 %v2868
      %v2908 = vpop.f32.mrf.mxu0
      %v2909 = vadd.f32 0.0, %v2908
      %2910 = vmatmul.f32.gmra.mxu0 %v2871
      %v2911 = vpop.f32.mrf.mxu0
      %v2912 = vadd.f32 0.0, %v2911
      %2913 = vdwg.mxu0
      %2914 = vmatpush.msra.mxu0 0.0
      %2915 = vmatpush.msra.mxu0 0.0
      %2916 = vmatpush.msra.mxu0 0.0
      %2917 = vmatpush.msra.mxu0 0.0
      %2918 = vmatpush.msra.mxu0 0.0
      %2919 = vmatpush.msra.mxu0 0.0
      %2920 = vmatpush.msra.mxu0 0.0
      %2921 = vmatpush.msra.mxu0 %v2820
      %2922 = vmatpush.msra.mxu0 %v2817
      %2923 = vmatpush.msra.mxu0 %v2814
      %2924 = vmatpush.msra.mxu0 %v2811
      %2925 = vmatpush.msra.mxu0 %v2808
      %2926 = vmatpush.msra.mxu0 %v2805
      %2927 = vmatpush.msra.mxu0 %v2802
      %2928 = vmatpush.msra.mxu0 %v2799
      %2929 = vmatpush.msra.mxu0 %v2796
      %2930 = vmatmul.f32.gmra.mxu0 %v2850
      %v2931 = vpop.f32.mrf.mxu0
      %v2932 = vadd.f32 0.0, %v2931
      %2933 = vmatmul.f32.gmra.mxu0 %v2853
      %v2934 = vpop.f32.mrf.mxu0
      %v2935 = vadd.f32 0.0, %v2934
      %2936 = vmatmul.f32.gmra.mxu0 %v2856
      %v2937 = vpop.f32.mrf.mxu0
      %v2938 = vadd.f32 0.0, %v2937
      %2939 = vmatmul.f32.gmra.mxu0 %v2859
      %v2940 = vpop.f32.mrf.mxu0
      %v2941 = vadd.f32 0.0, %v2940
      %2942 = vmatmul.f32.gmra.mxu0 %v2862
      %v2943 = vpop.f32.mrf.mxu0
      %v2944 = vadd.f32 0.0, %v2943
      %2945 = vmatmul.f32.gmra.mxu0 %v2865
      %v2946 = vpop.f32.mrf.mxu0
      %v2947 = vadd.f32 0.0, %v2946
      %2948 = vmatmul.f32.gmra.mxu0 %v2868
      %v2949 = vpop.f32.mrf.mxu0
      %v2950 = vadd.f32 0.0, %v2949
      %2951 = vmatmul.f32.gmra.mxu0 %v2871
      %v2952 = vpop.f32.mrf.mxu0
      %v2953 = vadd.f32 0.0, %v2952
      %2954 = vdwg.mxu0
      %2955 = vmatpush.msra.mxu0 0.0
      %2956 = vmatpush.msra.mxu0 0.0
      %2957 = vmatpush.msra.mxu0 0.0
      %2958 = vmatpush.msra.mxu0 0.0
      %2959 = vmatpush.msra.mxu0 0.0
      %2960 = vmatpush.msra.mxu0 0.0
      %2961 = vmatpush.msra.mxu0 0.0
      %2962 = vmatpush.msra.mxu0 %v2821
      %2963 = vmatpush.msra.mxu0 %v2818
      %2964 = vmatpush.msra.mxu0 %v2815
      %2965 = vmatpush.msra.mxu0 %v2812
      %2966 = vmatpush.msra.mxu0 %v2809
      %2967 = vmatpush.msra.mxu0 %v2806
      %2968 = vmatpush.msra.mxu0 %v2803
      %2969 = vmatpush.msra.mxu0 %v2800
      %2970 = vmatpush.msra.mxu0 %v2797
      %2971 = vmatmul.f32.gmra.mxu0 %v2850
      %v2972 = vpop.f32.mrf.mxu0
      %v2973 = vadd.f32 0.0, %v2972
      %2974 = vmatmul.f32.gmra.mxu0 %v2853
      %v2975 = vpop.f32.mrf.mxu0
      %v2976 = vadd.f32 0.0, %v2975
      %2977 = vmatmul.f32.gmra.mxu0 %v2856
      %v2978 = vpop.f32.mrf.mxu0
      %v2979 = vadd.f32 0.0, %v2978
      %2980 = vmatmul.f32.gmra.mxu0 %v2859
      %v2981 = vpop.f32.mrf.mxu0
      %v2982 = vadd.f32 0.0, %v2981
      %2983 = vmatmul.f32.gmra.mxu0 %v2862
      %v2984 = vpop.f32.mrf.mxu0
      %v2985 = vadd.f32 0.0, %v2984
      %2986 = vmatmul.f32.gmra.mxu0 %v2865
      %v2987 = vpop.f32.mrf.mxu0
      %v2988 = vadd.f32 0.0, %v2987
      %2989 = vmatmul.f32.gmra.mxu0 %v2868
      %v2990 = vpop.f32.mrf.mxu0
      %v2991 = vadd.f32 0.0, %v2990
      %2992 = vmatmul.f32.gmra.mxu0 %v2871
      %v2993 = vpop.f32.mrf.mxu0
      %v2994 = vadd.f32 0.0, %v2993
      %2995 = vdwg.mxu0
      %v2996 = vadd.f32 %v2689, %v2891
      %v2997 = vadd.f32 %v2690, %v2932
      %v2998 = vadd.f32 %v2691, %v2973
      %v2999 = vadd.f32 %v2692, %v2894
      %v3000 = vadd.f32 %v2693, %v2935
      %v3001 = vadd.f32 %v2694, %v2976
      %v3002 = vadd.f32 %v2695, %v2897
      %v3003 = vadd.f32 %v2696, %v2938
      %v3004 = vadd.f32 %v2697, %v2979
      %v3005 = vadd.f32 %v2698, %v2900
      %v3006 = vadd.f32 %v2699, %v2941
      %v3007 = vadd.f32 %v2700, %v2982
      %v3008 = vadd.f32 %v2701, %v2903
      %v3009 = vadd.f32 %v2702, %v2944
      %v3010 = vadd.f32 %v2703, %v2985
      %v3011 = vadd.f32 %v2704, %v2906
      %v3012 = vadd.f32 %v2705, %v2947
      %v3013 = vadd.f32 %v2706, %v2988
      %v3014 = vadd.f32 %v2707, %v2909
      %v3015 = vadd.f32 %v2708, %v2950
      %v3016 = vadd.f32 %v2709, %v2991
      %v3017 = vadd.f32 %v2710, %v2912
      %v3018 = vadd.f32 %v2711, %v2953
      %v3019 = vadd.f32 %v2712, %v2994
      %s3020 = scalar_lea.vmem %s3, 448
      %v3021 = vld [vmem:[%s3020] sm:$0xff]
      %v3022 = vld [vmem:[%s3020 + $0x8] sm:$0xff]
      %v3023 = vld [vmem:[%s3020 + $0x10] sm:$0xff]
      %v3024 = vld [vmem:[%s3020 + $0x18] sm:$0xff]
      %v3025 = vld [vmem:[%s3020 + $0x20] sm:$0xff]
      %v3026 = vld [vmem:[%s3020 + $0x28] sm:$0xff]
      %v3027 = vld [vmem:[%s3020 + $0x30] sm:$0xff]
      %v3028 = vld [vmem:[%s3020 + $0x38] sm:$0xff]
      %3029 = vrot.lane.b32.xlu0 %v2003, 60
      %v3030 = vpop.permute.xlu0 %3029
      %3031 = vrot.lane.b32.xlu0 %v2004, 60
      %v3032 = vpop.permute.xlu0 %3031
      %3033 = vrot.lane.b32.xlu0 %v2005, 60
      %v3034 = vpop.permute.xlu0 %3033
      %3035 = vrot.lane.b32.xlu0 %v2006, 60
      %v3036 = vpop.permute.xlu0 %3035
      %3037 = vrot.lane.b32.xlu0 %v2370, 60
      %v3038 = vpop.permute.xlu0 %3037
      %3039 = vrot.lane.b32.xlu0 %v2371, 60
      %v3040 = vpop.permute.xlu0 %3039
      %3041 = vrot.lane.b32.xlu0 %v2372, 60
      %v3042 = vpop.permute.xlu0 %3041
      %3043 = vrot.lane.b32.xlu0 %v2369, 60
      %v3044 = vpop.permute.xlu0 %3043
      %3045 = vrot.lane.b32.xlu0 %v2381, 60
      %v3046 = vpop.permute.xlu0 %3045
      %3047 = vrot.lane.b32.xlu0 %v2382, 60
      %v3048 = vpop.permute.xlu0 %3047
      %3049 = vrot.lane.b32.xlu0 %v2383, 60
      %v3050 = vpop.permute.xlu0 %3049
      %3051 = vrot.lane.b32.xlu0 %v2380, 60
      %v3052 = vpop.permute.xlu0 %3051
      %3053 = vrot.lane.b32.xlu0 %v2392, 60
      %v3054 = vpop.permute.xlu0 %3053
      %3055 = vrot.lane.b32.xlu0 %v2393, 60
      %v3056 = vpop.permute.xlu0 %3055
      %3057 = vrot.lane.b32.xlu0 %v2394, 60
      %v3058 = vpop.permute.xlu0 %3057
      %3059 = vrot.lane.b32.xlu0 %v2391, 60
      %v3060 = vpop.permute.xlu0 %3059
      %3061 = vrot.lane.b32.xlu0 %v2403, 60
      %v3062 = vpop.permute.xlu0 %3061
      %3063 = vrot.lane.b32.xlu0 %v2404, 60
      %v3064 = vpop.permute.xlu0 %3063
      %3065 = vrot.lane.b32.xlu0 %v2405, 60
      %v3066 = vpop.permute.xlu0 %3065
      %3067 = vrot.lane.b32.xlu0 %v2402, 60
      %v3068 = vpop.permute.xlu0 %3067
      %3069 = vrot.lane.b32.xlu0 %v2019, 60
      %v3070 = vpop.permute.xlu0 %3069
      %3071 = vrot.lane.b32.xlu0 %v2020, 60
      %v3072 = vpop.permute.xlu0 %3071
      %3073 = vrot.lane.b32.xlu0 %v2021, 60
      %v3074 = vpop.permute.xlu0 %3073
      %3075 = vrot.lane.b32.xlu0 %v2018, 60
      %v3076 = vpop.permute.xlu0 %3075
      %3077 = vrot.lane.b32.xlu0 %v2030, 60
      %v3078 = vpop.permute.xlu0 %3077
      %3079 = vrot.lane.b32.xlu0 %v2031, 60
      %v3080 = vpop.permute.xlu0 %3079
      %3081 = vrot.lane.b32.xlu0 %v2032, 60
      %v3082 = vpop.permute.xlu0 %3081
      %3083 = vrot.lane.b32.xlu0 %v2029, 60
      %v3084 = vpop.permute.xlu0 %3083
      %3085 = vrot.lane.b32.xlu0 %v2041, 60
      %v3086 = vpop.permute.xlu0 %3085
      %3087 = vrot.lane.b32.xlu0 %v2042, 60
      %v3088 = vpop.permute.xlu0 %3087
      %3089 = vrot.lane.b32.xlu0 %v2043, 60
      %v3090 = vpop.permute.xlu0 %3089
      %3091 = vrot.lane.b32.xlu0 %v2040, 60
      %v3092 = vpop.permute.xlu0 %3091
      %3093 = vrot.lane.b32.xlu0 %v2052, 60
      %v3094 = vpop.permute.xlu0 %3093
      %3095 = vrot.lane.b32.xlu0 %v2053, 60
      %v3096 = vpop.permute.xlu0 %3095
      %3097 = vrot.lane.b32.xlu0 %v2054, 60
      %v3098 = vpop.permute.xlu0 %3097
      %3099 = vrot.lane.b32.xlu0 %v2051, 60
      %v3100 = vpop.permute.xlu0 %3099
      %vm3101 = vcmask 490496
      %v3102 = vsel %vm3101, %v3030, %v3032
      %v3103 = vsel %vm3101, %v3032, %v3034
      %v3104 = vsel %vm3101, %v3034, %v3036
      %v3105 = vsel %vm3101, %v3038, %v3040
      %v3106 = vsel %vm3101, %v3040, %v3042
      %v3107 = vsel %vm3101, %v3042, %v3044
      %v3108 = vsel %vm3101, %v3046, %v3048
      %v3109 = vsel %vm3101, %v3048, %v3050
      %v3110 = vsel %vm3101, %v3050, %v3052
      %v3111 = vsel %vm3101, %v3054, %v3056
      %v3112 = vsel %vm3101, %v3056, %v3058
      %v3113 = vsel %vm3101, %v3058, %v3060
      %v3114 = vsel %vm3101, %v3062, %v3064
      %v3115 = vsel %vm3101, %v3064, %v3066
      %v3116 = vsel %vm3101, %v3066, %v3068
      %v3117 = vsel %vm3101, %v3070, %v3072
      %v3118 = vsel %vm3101, %v3072, %v3074
      %v3119 = vsel %vm3101, %v3074, %v3076
      %v3120 = vsel %vm3101, %v3078, %v3080
      %v3121 = vsel %vm3101, %v3080, %v3082
      %v3122 = vsel %vm3101, %v3082, %v3084
      %v3123 = vsel %vm3101, %v3086, %v3088
      %v3124 = vsel %vm3101, %v3088, %v3090
      %v3125 = vsel %vm3101, %v3090, %v3092
      %v3126 = vsel %vm3101, %v3094, %v3096
      %v3127 = vsel %vm3101, %v3096, %v3098
      %v3128 = vsel %vm3101, %v3098, %v3100
      %v3157 = vsel %vm967, %v3021, 0
      %v3160 = vsel %vm967, %v3022, 0
      %v3163 = vsel %vm967, %v3023, 0
      %v3166 = vsel %vm967, %v3024, 0
      %v3169 = vsel %vm967, %v3025, 0
      %v3172 = vsel %vm967, %v3026, 0
      %v3175 = vsel %vm967, %v3027, 0
      %v3178 = vsel %vm967, %v3028, 0
      %3180 = vmatpush.msra.mxu0 0.0
      %3181 = vmatpush.msra.mxu0 0.0
      %3182 = vmatpush.msra.mxu0 0.0
      %3183 = vmatpush.msra.mxu0 0.0
      %3184 = vmatpush.msra.mxu0 0.0
      %3185 = vmatpush.msra.mxu0 0.0
      %3186 = vmatpush.msra.mxu0 0.0
      %3187 = vmatpush.msra.mxu0 %v3126
      %3188 = vmatpush.msra.mxu0 %v3123
      %3189 = vmatpush.msra.mxu0 %v3120
      %3190 = vmatpush.msra.mxu0 %v3117
      %3191 = vmatpush.msra.mxu0 %v3114
      %3192 = vmatpush.msra.mxu0 %v3111
      %3193 = vmatpush.msra.mxu0 %v3108
      %3194 = vmatpush.msra.mxu0 %v3105
      %3195 = vmatpush.msra.mxu0 %v3102
      %3196 = vmatmul.f32.gmra.mxu0 %v3157
      %v3197 = vpop.f32.mrf.mxu0
      %v3198 = vadd.f32 0.0, %v3197
      %3199 = vmatmul.f32.gmra.mxu0 %v3160
      %v3200 = vpop.f32.mrf.mxu0
      %v3201 = vadd.f32 0.0, %v3200
      %3202 = vmatmul.f32.gmra.mxu0 %v3163
      %v3203 = vpop.f32.mrf.mxu0
      %v3204 = vadd.f32 0.0, %v3203
      %3205 = vmatmul.f32.gmra.mxu0 %v3166
      %v3206 = vpop.f32.mrf.mxu0
      %v3207 = vadd.f32 0.0, %v3206
      %3208 = vmatmul.f32.gmra.mxu0 %v3169
      %v3209 = vpop.f32.mrf.mxu0
      %v3210 = vadd.f32 0.0, %v3209
      %3211 = vmatmul.f32.gmra.mxu0 %v3172
      %v3212 = vpop.f32.mrf.mxu0
      %v3213 = vadd.f32 0.0, %v3212
      %3214 = vmatmul.f32.gmra.mxu0 %v3175
      %v3215 = vpop.f32.mrf.mxu0
      %v3216 = vadd.f32 0.0, %v3215
      %3217 = vmatmul.f32.gmra.mxu0 %v3178
      %v3218 = vpop.f32.mrf.mxu0
      %v3219 = vadd.f32 0.0, %v3218
      %3220 = vdwg.mxu0
      %3221 = vmatpush.msra.mxu0 0.0
      %3222 = vmatpush.msra.mxu0 0.0
      %3223 = vmatpush.msra.mxu0 0.0
      %3224 = vmatpush.msra.mxu0 0.0
      %3225 = vmatpush.msra.mxu0 0.0
      %3226 = vmatpush.msra.mxu0 0.0
      %3227 = vmatpush.msra.mxu0 0.0
      %3228 = vmatpush.msra.mxu0 %v3127
      %3229 = vmatpush.msra.mxu0 %v3124
      %3230 = vmatpush.msra.mxu0 %v3121
      %3231 = vmatpush.msra.mxu0 %v3118
      %3232 = vmatpush.msra.mxu0 %v3115
      %3233 = vmatpush.msra.mxu0 %v3112
      %3234 = vmatpush.msra.mxu0 %v3109
      %3235 = vmatpush.msra.mxu0 %v3106
      %3236 = vmatpush.msra.mxu0 %v3103
      %3237 = vmatmul.f32.gmra.mxu0 %v3157
      %v3238 = vpop.f32.mrf.mxu0
      %v3239 = vadd.f32 0.0, %v3238
      %3240 = vmatmul.f32.gmra.mxu0 %v3160
      %v3241 = vpop.f32.mrf.mxu0
      %v3242 = vadd.f32 0.0, %v3241
      %3243 = vmatmul.f32.gmra.mxu0 %v3163
      %v3244 = vpop.f32.mrf.mxu0
      %v3245 = vadd.f32 0.0, %v3244
      %3246 = vmatmul.f32.gmra.mxu0 %v3166
      %v3247 = vpop.f32.mrf.mxu0
      %v3248 = vadd.f32 0.0, %v3247
      %3249 = vmatmul.f32.gmra.mxu0 %v3169
      %v3250 = vpop.f32.mrf.mxu0
      %v3251 = vadd.f32 0.0, %v3250
      %3252 = vmatmul.f32.gmra.mxu0 %v3172
      %v3253 = vpop.f32.mrf.mxu0
      %v3254 = vadd.f32 0.0, %v3253
      %3255 = vmatmul.f32.gmra.mxu0 %v3175
      %v3256 = vpop.f32.mrf.mxu0
      %v3257 = vadd.f32 0.0, %v3256
      %3258 = vmatmul.f32.gmra.mxu0 %v3178
      %v3259 = vpop.f32.mrf.mxu0
      %v3260 = vadd.f32 0.0, %v3259
      %3261 = vdwg.mxu0
      %3262 = vmatpush.msra.mxu0 0.0
      %3263 = vmatpush.msra.mxu0 0.0
      %3264 = vmatpush.msra.mxu0 0.0
      %3265 = vmatpush.msra.mxu0 0.0
      %3266 = vmatpush.msra.mxu0 0.0
      %3267 = vmatpush.msra.mxu0 0.0
      %3268 = vmatpush.msra.mxu0 0.0
      %3269 = vmatpush.msra.mxu0 %v3128
      %3270 = vmatpush.msra.mxu0 %v3125
      %3271 = vmatpush.msra.mxu0 %v3122
      %3272 = vmatpush.msra.mxu0 %v3119
      %3273 = vmatpush.msra.mxu0 %v3116
      %3274 = vmatpush.msra.mxu0 %v3113
      %3275 = vmatpush.msra.mxu0 %v3110
      %3276 = vmatpush.msra.mxu0 %v3107
      %3277 = vmatpush.msra.mxu0 %v3104
      %3278 = vmatmul.f32.gmra.mxu0 %v3157
      %v3279 = vpop.f32.mrf.mxu0
      %v3280 = vadd.f32 0.0, %v3279
      %3281 = vmatmul.f32.gmra.mxu0 %v3160
      %v3282 = vpop.f32.mrf.mxu0
      %v3283 = vadd.f32 0.0, %v3282
      %3284 = vmatmul.f32.gmra.mxu0 %v3163
      %v3285 = vpop.f32.mrf.mxu0
      %v3286 = vadd.f32 0.0, %v3285
      %3287 = vmatmul.f32.gmra.mxu0 %v3166
      %v3288 = vpop.f32.mrf.mxu0
      %v3289 = vadd.f32 0.0, %v3288
      %3290 = vmatmul.f32.gmra.mxu0 %v3169
      %v3291 = vpop.f32.mrf.mxu0
      %v3292 = vadd.f32 0.0, %v3291
      %3293 = vmatmul.f32.gmra.mxu0 %v3172
      %v3294 = vpop.f32.mrf.mxu0
      %v3295 = vadd.f32 0.0, %v3294
      %3296 = vmatmul.f32.gmra.mxu0 %v3175
      %v3297 = vpop.f32.mrf.mxu0
      %v3298 = vadd.f32 0.0, %v3297
      %3299 = vmatmul.f32.gmra.mxu0 %v3178
      %v3300 = vpop.f32.mrf.mxu0
      %v3301 = vadd.f32 0.0, %v3300
      %3302 = vdwg.mxu0
      %v3303 = vadd.f32 %v2996, %v3198
      %v3304 = vadd.f32 %v2997, %v3239
      %v3305 = vadd.f32 %v2998, %v3280
      %v3306 = vadd.f32 %v2999, %v3201
      %v3307 = vadd.f32 %v3000, %v3242
      %v3308 = vadd.f32 %v3001, %v3283
      %v3309 = vadd.f32 %v3002, %v3204
      %v3310 = vadd.f32 %v3003, %v3245
      %v3311 = vadd.f32 %v3004, %v3286
      %v3312 = vadd.f32 %v3005, %v3207
      %v3313 = vadd.f32 %v3006, %v3248
      %v3314 = vadd.f32 %v3007, %v3289
      %v3315 = vadd.f32 %v3008, %v3210
      %v3316 = vadd.f32 %v3009, %v3251
      %v3317 = vadd.f32 %v3010, %v3292
      %v3318 = vadd.f32 %v3011, %v3213
      %v3319 = vadd.f32 %v3012, %v3254
      %v3320 = vadd.f32 %v3013, %v3295
      %v3321 = vadd.f32 %v3014, %v3216
      %v3322 = vadd.f32 %v3015, %v3257
      %v3323 = vadd.f32 %v3016, %v3298
      %v3324 = vadd.f32 %v3017, %v3219
      %v3325 = vadd.f32 %v3018, %v3260
      %v3326 = vadd.f32 %v3019, %v3301
      %s3327 = scalar_lea.vmem %s3, 512
      %v3328 = vld [vmem:[%s3327] sm:$0xff]
      %v3329 = vld [vmem:[%s3327 + $0x8] sm:$0xff]
      %v3330 = vld [vmem:[%s3327 + $0x10] sm:$0xff]
      %v3331 = vld [vmem:[%s3327 + $0x18] sm:$0xff]
      %v3332 = vld [vmem:[%s3327 + $0x20] sm:$0xff]
      %v3333 = vld [vmem:[%s3327 + $0x28] sm:$0xff]
      %v3334 = vld [vmem:[%s3327 + $0x30] sm:$0xff]
      %v3335 = vld [vmem:[%s3327 + $0x38] sm:$0xff]
      %3336 = vrot.lane.b32.xlu0 %v2003, 36
      %v3337 = vpop.permute.xlu0 %3336
      %3338 = vrot.lane.b32.xlu0 %v2004, 36
      %v3339 = vpop.permute.xlu0 %3338
      %3340 = vrot.lane.b32.xlu0 %v2005, 36
      %v3341 = vpop.permute.xlu0 %3340
      %3342 = vrot.lane.b32.xlu0 %v2006, 36
      %v3343 = vpop.permute.xlu0 %3342
      %3344 = vrot.lane.b32.xlu0 %v2370, 36
      %v3345 = vpop.permute.xlu0 %3344
      %3346 = vrot.lane.b32.xlu0 %v2371, 36
      %v3347 = vpop.permute.xlu0 %3346
      %3348 = vrot.lane.b32.xlu0 %v2372, 36
      %v3349 = vpop.permute.xlu0 %3348
      %3350 = vrot.lane.b32.xlu0 %v2369, 36
      %v3351 = vpop.permute.xlu0 %3350
      %3352 = vrot.lane.b32.xlu0 %v2381, 36
      %v3353 = vpop.permute.xlu0 %3352
      %3354 = vrot.lane.b32.xlu0 %v2382, 36
      %v3355 = vpop.permute.xlu0 %3354
      %3356 = vrot.lane.b32.xlu0 %v2383, 36
      %v3357 = vpop.permute.xlu0 %3356
      %3358 = vrot.lane.b32.xlu0 %v2380, 36
      %v3359 = vpop.permute.xlu0 %3358
      %3360 = vrot.lane.b32.xlu0 %v2392, 36
      %v3361 = vpop.permute.xlu0 %3360
      %3362 = vrot.lane.b32.xlu0 %v2393, 36
      %v3363 = vpop.permute.xlu0 %3362
      %3364 = vrot.lane.b32.xlu0 %v2394, 36
      %v3365 = vpop.permute.xlu0 %3364
      %3366 = vrot.lane.b32.xlu0 %v2391, 36
      %v3367 = vpop.permute.xlu0 %3366
      %3368 = vrot.lane.b32.xlu0 %v2403, 36
      %v3369 = vpop.permute.xlu0 %3368
      %3370 = vrot.lane.b32.xlu0 %v2404, 36
      %v3371 = vpop.permute.xlu0 %3370
      %3372 = vrot.lane.b32.xlu0 %v2405, 36
      %v3373 = vpop.permute.xlu0 %3372
      %3374 = vrot.lane.b32.xlu0 %v2402, 36
      %v3375 = vpop.permute.xlu0 %3374
      %3376 = vrot.lane.b32.xlu0 %v2019, 36
      %v3377 = vpop.permute.xlu0 %3376
      %3378 = vrot.lane.b32.xlu0 %v2020, 36
      %v3379 = vpop.permute.xlu0 %3378
      %3380 = vrot.lane.b32.xlu0 %v2021, 36
      %v3381 = vpop.permute.xlu0 %3380
      %3382 = vrot.lane.b32.xlu0 %v2018, 36
      %v3383 = vpop.permute.xlu0 %3382
      %3384 = vrot.lane.b32.xlu0 %v2030, 36
      %v3385 = vpop.permute.xlu0 %3384
      %3386 = vrot.lane.b32.xlu0 %v2031, 36
      %v3387 = vpop.permute.xlu0 %3386
      %3388 = vrot.lane.b32.xlu0 %v2032, 36
      %v3389 = vpop.permute.xlu0 %3388
      %3390 = vrot.lane.b32.xlu0 %v2029, 36
      %v3391 = vpop.permute.xlu0 %3390
      %3392 = vrot.lane.b32.xlu0 %v2041, 36
      %v3393 = vpop.permute.xlu0 %3392
      %3394 = vrot.lane.b32.xlu0 %v2042, 36
      %v3395 = vpop.permute.xlu0 %3394
      %3396 = vrot.lane.b32.xlu0 %v2043, 36
      %v3397 = vpop.permute.xlu0 %3396
      %3398 = vrot.lane.b32.xlu0 %v2040, 36
      %v3399 = vpop.permute.xlu0 %3398
      %3400 = vrot.lane.b32.xlu0 %v2052, 36
      %v3401 = vpop.permute.xlu0 %3400
      %3402 = vrot.lane.b32.xlu0 %v2053, 36
      %v3403 = vpop.permute.xlu0 %3402
      %3404 = vrot.lane.b32.xlu0 %v2054, 36
      %v3405 = vpop.permute.xlu0 %3404
      %3406 = vrot.lane.b32.xlu0 %v2051, 36
      %v3407 = vpop.permute.xlu0 %3406
      %vm3408 = vcmask 293888
      %v3409 = vsel %vm3408, %v3337, %v3339
      %v3410 = vsel %vm3408, %v3339, %v3341
      %v3411 = vsel %vm3408, %v3341, %v3343
      %v3412 = vsel %vm3408, %v3345, %v3347
      %v3413 = vsel %vm3408, %v3347, %v3349
      %v3414 = vsel %vm3408, %v3349, %v3351
      %v3415 = vsel %vm3408, %v3353, %v3355
      %v3416 = vsel %vm3408, %v3355, %v3357
      %v3417 = vsel %vm3408, %v3357, %v3359
      %v3418 = vsel %vm3408, %v3361, %v3363
      %v3419 = vsel %vm3408, %v3363, %v3365
      %v3420 = vsel %vm3408, %v3365, %v3367
      %v3421 = vsel %vm3408, %v3369, %v3371
      %v3422 = vsel %vm3408, %v3371, %v3373
      %v3423 = vsel %vm3408, %v3373, %v3375
      %v3424 = vsel %vm3408, %v3377, %v3379
      %v3425 = vsel %vm3408, %v3379, %v3381
      %v3426 = vsel %vm3408, %v3381, %v3383
      %v3427 = vsel %vm3408, %v3385, %v3387
      %v3428 = vsel %vm3408, %v3387, %v3389
      %v3429 = vsel %vm3408, %v3389, %v3391
      %v3430 = vsel %vm3408, %v3393, %v3395
      %v3431 = vsel %vm3408, %v3395, %v3397
      %v3432 = vsel %vm3408, %v3397, %v3399
      %v3433 = vsel %vm3408, %v3401, %v3403
      %v3434 = vsel %vm3408, %v3403, %v3405
      %v3435 = vsel %vm3408, %v3405, %v3407
      %v3464 = vsel %vm967, %v3328, 0
      %v3467 = vsel %vm967, %v3329, 0
      %v3470 = vsel %vm967, %v3330, 0
      %v3473 = vsel %vm967, %v3331, 0
      %v3476 = vsel %vm967, %v3332, 0
      %v3479 = vsel %vm967, %v3333, 0
      %v3482 = vsel %vm967, %v3334, 0
      %v3485 = vsel %vm967, %v3335, 0
      %3487 = vmatpush.msra.mxu0 0.0
      %3488 = vmatpush.msra.mxu0 0.0
      %3489 = vmatpush.msra.mxu0 0.0
      %3490 = vmatpush.msra.mxu0 0.0
      %3491 = vmatpush.msra.mxu0 0.0
      %3492 = vmatpush.msra.mxu0 0.0
      %3493 = vmatpush.msra.mxu0 0.0
      %3494 = vmatpush.msra.mxu0 %v3433
      %3495 = vmatpush.msra.mxu0 %v3430
      %3496 = vmatpush.msra.mxu0 %v3427
      %3497 = vmatpush.msra.mxu0 %v3424
      %3498 = vmatpush.msra.mxu0 %v3421
      %3499 = vmatpush.msra.mxu0 %v3418
      %3500 = vmatpush.msra.mxu0 %v3415
      %3501 = vmatpush.msra.mxu0 %v3412
      %3502 = vmatpush.msra.mxu0 %v3409
      %3503 = vmatmul.f32.gmra.mxu0 %v3464
      %v3504 = vpop.f32.mrf.mxu0
      %v3505 = vadd.f32 0.0, %v3504
      %3506 = vmatmul.f32.gmra.mxu0 %v3467
      %v3507 = vpop.f32.mrf.mxu0
      %v3508 = vadd.f32 0.0, %v3507
      %3509 = vmatmul.f32.gmra.mxu0 %v3470
      %v3510 = vpop.f32.mrf.mxu0
      %v3511 = vadd.f32 0.0, %v3510
      %3512 = vmatmul.f32.gmra.mxu0 %v3473
      %v3513 = vpop.f32.mrf.mxu0
      %v3514 = vadd.f32 0.0, %v3513
      %3515 = vmatmul.f32.gmra.mxu0 %v3476
      %v3516 = vpop.f32.mrf.mxu0
      %v3517 = vadd.f32 0.0, %v3516
      %3518 = vmatmul.f32.gmra.mxu0 %v3479
      %v3519 = vpop.f32.mrf.mxu0
      %v3520 = vadd.f32 0.0, %v3519
      %3521 = vmatmul.f32.gmra.mxu0 %v3482
      %v3522 = vpop.f32.mrf.mxu0
      %v3523 = vadd.f32 0.0, %v3522
      %3524 = vmatmul.f32.gmra.mxu0 %v3485
      %v3525 = vpop.f32.mrf.mxu0
      %v3526 = vadd.f32 0.0, %v3525
      %3527 = vdwg.mxu0
      %3528 = vmatpush.msra.mxu0 0.0
      %3529 = vmatpush.msra.mxu0 0.0
      %3530 = vmatpush.msra.mxu0 0.0
      %3531 = vmatpush.msra.mxu0 0.0
      %3532 = vmatpush.msra.mxu0 0.0
      %3533 = vmatpush.msra.mxu0 0.0
      %3534 = vmatpush.msra.mxu0 0.0
      %3535 = vmatpush.msra.mxu0 %v3434
      %3536 = vmatpush.msra.mxu0 %v3431
      %3537 = vmatpush.msra.mxu0 %v3428
      %3538 = vmatpush.msra.mxu0 %v3425
      %3539 = vmatpush.msra.mxu0 %v3422
      %3540 = vmatpush.msra.mxu0 %v3419
      %3541 = vmatpush.msra.mxu0 %v3416
      %3542 = vmatpush.msra.mxu0 %v3413
      %3543 = vmatpush.msra.mxu0 %v3410
      %3544 = vmatmul.f32.gmra.mxu0 %v3464
      %v3545 = vpop.f32.mrf.mxu0
      %v3546 = vadd.f32 0.0, %v3545
      %3547 = vmatmul.f32.gmra.mxu0 %v3467
      %v3548 = vpop.f32.mrf.mxu0
      %v3549 = vadd.f32 0.0, %v3548
      %3550 = vmatmul.f32.gmra.mxu0 %v3470
      %v3551 = vpop.f32.mrf.mxu0
      %v3552 = vadd.f32 0.0, %v3551
      %3553 = vmatmul.f32.gmra.mxu0 %v3473
      %v3554 = vpop.f32.mrf.mxu0
      %v3555 = vadd.f32 0.0, %v3554
      %3556 = vmatmul.f32.gmra.mxu0 %v3476
      %v3557 = vpop.f32.mrf.mxu0
      %v3558 = vadd.f32 0.0, %v3557
      %3559 = vmatmul.f32.gmra.mxu0 %v3479
      %v3560 = vpop.f32.mrf.mxu0
      %v3561 = vadd.f32 0.0, %v3560
      %3562 = vmatmul.f32.gmra.mxu0 %v3482
      %v3563 = vpop.f32.mrf.mxu0
      %v3564 = vadd.f32 0.0, %v3563
      %3565 = vmatmul.f32.gmra.mxu0 %v3485
      %v3566 = vpop.f32.mrf.mxu0
      %v3567 = vadd.f32 0.0, %v3566
      %3568 = vdwg.mxu0
      %3569 = vmatpush.msra.mxu0 0.0
      %3570 = vmatpush.msra.mxu0 0.0
      %3571 = vmatpush.msra.mxu0 0.0
      %3572 = vmatpush.msra.mxu0 0.0
      %3573 = vmatpush.msra.mxu0 0.0
      %3574 = vmatpush.msra.mxu0 0.0
      %3575 = vmatpush.msra.mxu0 0.0
      %3576 = vmatpush.msra.mxu0 %v3435
      %3577 = vmatpush.msra.mxu0 %v3432
      %3578 = vmatpush.msra.mxu0 %v3429
      %3579 = vmatpush.msra.mxu0 %v3426
      %3580 = vmatpush.msra.mxu0 %v3423
      %3581 = vmatpush.msra.mxu0 %v3420
      %3582 = vmatpush.msra.mxu0 %v3417
      %3583 = vmatpush.msra.mxu0 %v3414
      %3584 = vmatpush.msra.mxu0 %v3411
      %3585 = vmatmul.f32.gmra.mxu0 %v3464
      %v3586 = vpop.f32.mrf.mxu0
      %v3587 = vadd.f32 0.0, %v3586
      %3588 = vmatmul.f32.gmra.mxu0 %v3467
      %v3589 = vpop.f32.mrf.mxu0
      %v3590 = vadd.f32 0.0, %v3589
      %3591 = vmatmul.f32.gmra.mxu0 %v3470
      %v3592 = vpop.f32.mrf.mxu0
      %v3593 = vadd.f32 0.0, %v3592
      %3594 = vmatmul.f32.gmra.mxu0 %v3473
      %v3595 = vpop.f32.mrf.mxu0
      %v3596 = vadd.f32 0.0, %v3595
      %3597 = vmatmul.f32.gmra.mxu0 %v3476
      %v3598 = vpop.f32.mrf.mxu0
      %v3599 = vadd.f32 0.0, %v3598
      %3600 = vmatmul.f32.gmra.mxu0 %v3479
      %v3601 = vpop.f32.mrf.mxu0
      %v3602 = vadd.f32 0.0, %v3601
      %3603 = vmatmul.f32.gmra.mxu0 %v3482
      %v3604 = vpop.f32.mrf.mxu0
      %v3605 = vadd.f32 0.0, %v3604
      %3606 = vmatmul.f32.gmra.mxu0 %v3485
      %v3607 = vpop.f32.mrf.mxu0
      %v3608 = vadd.f32 0.0, %v3607
      %3609 = vdwg.mxu0
      %v3610 = vadd.f32 %v3303, %v3505
      %v3611 = vadd.f32 %v3304, %v3546
      %v3612 = vadd.f32 %v3305, %v3587
      %v3613 = vadd.f32 %v3306, %v3508
      %v3614 = vadd.f32 %v3307, %v3549
      %v3615 = vadd.f32 %v3308, %v3590
      %v3616 = vadd.f32 %v3309, %v3511
      %v3617 = vadd.f32 %v3310, %v3552
      %v3618 = vadd.f32 %v3311, %v3593
      %v3619 = vadd.f32 %v3312, %v3514
      %v3620 = vadd.f32 %v3313, %v3555
      %v3621 = vadd.f32 %v3314, %v3596
      %v3622 = vadd.f32 %v3315, %v3517
      %v3623 = vadd.f32 %v3316, %v3558
      %v3624 = vadd.f32 %v3317, %v3599
      %v3625 = vadd.f32 %v3318, %v3520
      %v3626 = vadd.f32 %v3319, %v3561
      %v3627 = vadd.f32 %v3320, %v3602
      %v3628 = vadd.f32 %v3321, %v3523
      %v3629 = vadd.f32 %v3322, %v3564
      %v3630 = vadd.f32 %v3323, %v3605
      %v3631 = vadd.f32 %v3324, %v3526
      %v3632 = vadd.f32 %v3325, %v3567
      %v3633 = vadd.f32 %v3326, %v3608
      %v3634 = vld [vmem:[%s4] sm:$0xff]
      %v3635 = vld [vmem:[%s4 + $0x8] sm:$0xff]
      %v3636 = vld [vmem:[%s4 + $0x10] sm:$0xff]
      %v3637 = vld [vmem:[%s4 + $0x18] sm:$0xff]
      %v3638 = vld [vmem:[%s4 + $0x20] sm:$0xff]
      %v3639 = vld [vmem:[%s4 + $0x28] sm:$0xff]
      %v3640 = vld [vmem:[%s4 + $0x30] sm:$0xff]
      %v3641 = vld [vmem:[%s4 + $0x38] sm:$0xff]
      %3643 = vset.pattern.permute.xlu0 0
      %3644 = vperm.xlu0 %3643, %v3634
      %v3645 = vpop.permute.xlu0 %3644
      %3648 = vset.pattern.permute.xlu0 0
      %3649 = vperm.xlu0 %3648, %v3635
      %v3650 = vpop.permute.xlu0 %3649
      %3653 = vset.pattern.permute.xlu0 0
      %3654 = vperm.xlu0 %3653, %v3636
      %v3655 = vpop.permute.xlu0 %3654
      %3658 = vset.pattern.permute.xlu0 0
      %3659 = vperm.xlu0 %3658, %v3637
      %v3660 = vpop.permute.xlu0 %3659
      %3663 = vset.pattern.permute.xlu0 0
      %3664 = vperm.xlu0 %3663, %v3638
      %v3665 = vpop.permute.xlu0 %3664
      %3668 = vset.pattern.permute.xlu0 0
      %3669 = vperm.xlu0 %3668, %v3639
      %v3670 = vpop.permute.xlu0 %3669
      %3673 = vset.pattern.permute.xlu0 0
      %3674 = vperm.xlu0 %3673, %v3640
      %v3675 = vpop.permute.xlu0 %3674
      %3678 = vset.pattern.permute.xlu0 0
      %3679 = vperm.xlu0 %3678, %v3641
      %v3680 = vpop.permute.xlu0 %3679
      %v3682 = vadd.f32 %v3610, %v3645
      %v3683 = vadd.f32 %v3611, %v3645
      %v3684 = vadd.f32 %v3612, %v3645
      %v3685 = vadd.f32 %v3613, %v3650
      %v3686 = vadd.f32 %v3614, %v3650
      %v3687 = vadd.f32 %v3615, %v3650
      %v3688 = vadd.f32 %v3616, %v3655
      %v3689 = vadd.f32 %v3617, %v3655
      %v3690 = vadd.f32 %v3618, %v3655
      %v3691 = vadd.f32 %v3619, %v3660
      %v3692 = vadd.f32 %v3620, %v3660
      %v3693 = vadd.f32 %v3621, %v3660
      %v3694 = vadd.f32 %v3622, %v3665
      %v3695 = vadd.f32 %v3623, %v3665
      %v3696 = vadd.f32 %v3624, %v3665
      %v3697 = vadd.f32 %v3625, %v3670
      %v3698 = vadd.f32 %v3626, %v3670
      %v3699 = vadd.f32 %v3627, %v3670
      %v3700 = vadd.f32 %v3628, %v3675
      %v3701 = vadd.f32 %v3629, %v3675
      %v3702 = vadd.f32 %v3630, %v3675
      %v3703 = vadd.f32 %v3631, %v3680
      %v3704 = vadd.f32 %v3632, %v3680
      %v3705 = vadd.f32 %v3633, %v3680
      %v3706 = vmax.f32 %v3682, 0.0
      %v3707 = vmax.f32 %v3683, 0.0
      %v3708 = vmax.f32 %v3684, 0.0
      %v3709 = vmax.f32 %v3685, 0.0
      %v3710 = vmax.f32 %v3686, 0.0
      %v3711 = vmax.f32 %v3687, 0.0
      %v3712 = vmax.f32 %v3688, 0.0
      %v3713 = vmax.f32 %v3689, 0.0
      %v3714 = vmax.f32 %v3690, 0.0
      %v3715 = vmax.f32 %v3691, 0.0
      %v3716 = vmax.f32 %v3692, 0.0
      %v3717 = vmax.f32 %v3693, 0.0
      %v3718 = vmax.f32 %v3694, 0.0
      %v3719 = vmax.f32 %v3695, 0.0
      %v3720 = vmax.f32 %v3696, 0.0
      %v3721 = vmax.f32 %v3697, 0.0
      %v3722 = vmax.f32 %v3698, 0.0
      %v3723 = vmax.f32 %v3699, 0.0
      %v3724 = vmax.f32 %v3700, 0.0
      %v3725 = vmax.f32 %v3701, 0.0
      %v3726 = vmax.f32 %v3702, 0.0
      %v3727 = vmax.f32 %v3703, 0.0
      %v3728 = vmax.f32 %v3704, 0.0
      %v3729 = vmax.f32 %v3705, 0.0
      %v3730 = vld [vmem:[%s5] sm:$0xff]
      %v3731 = vld [vmem:[%s5 + $0x8] sm:$0xff]
      %v3732 = vld [vmem:[%s5 + $0x10] sm:$0xff]
      %v3733 = vld [vmem:[%s5 + $0x18] sm:$0xff]
      %v3734 = vld [vmem:[%s6] sm:$0xff]
      %v3735 = vld [vmem:[%s6 + $0x8] sm:$0xff]
      %v3736 = vld [vmem:[%s6 + $0x10] sm:$0xff]
      %v3737 = vld [vmem:[%s6 + $0x18] sm:$0xff]
      %3739 = vset.pattern.permute.xlu0 0
      %3740 = vperm.xlu0 %3739, %v3734
      %v3741 = vpop.permute.xlu0 %3740
      %3744 = vset.pattern.permute.xlu0 0
      %3745 = vperm.xlu0 %3744, %v3735
      %v3746 = vpop.permute.xlu0 %3745
      %3749 = vset.pattern.permute.xlu0 0
      %3750 = vperm.xlu0 %3749, %v3736
      %v3751 = vpop.permute.xlu0 %3750
      %3754 = vset.pattern.permute.xlu0 0
      %3755 = vperm.xlu0 %3754, %v3737
      %v3756 = vpop.permute.xlu0 %3755
      %vm3758 = vcmask 523264
      %v3760 = vsel %vm3758, %v3730, 0
      %v3763 = vsel %vm3758, %v3731, 0
      %v3766 = vsel %vm3758, %v3732, 0
      %v3769 = vsel %vm3758, %v3733, 0
      %3771 = vmatpush.msra.mxu0 0.0
      %3772 = vmatpush.msra.mxu0 0.0
      %3773 = vmatpush.msra.mxu0 0.0
      %3774 = vmatpush.msra.mxu0 0.0
      %3775 = vmatpush.msra.mxu0 0.0
      %3776 = vmatpush.msra.mxu0 0.0
      %3777 = vmatpush.msra.mxu0 0.0
      %3778 = vmatpush.msra.mxu0 0.0
      %3779 = vmatpush.msra.mxu0 %v3727
      %3780 = vmatpush.msra.mxu0 %v3724
      %3781 = vmatpush.msra.mxu0 %v3721
      %3782 = vmatpush.msra.mxu0 %v3718
      %3783 = vmatpush.msra.mxu0 %v3715
      %3784 = vmatpush.msra.mxu0 %v3712
      %3785 = vmatpush.msra.mxu0 %v3709
      %3786 = vmatpush.msra.mxu0 %v3706
      %3787 = vmatmul.f32.gmra.mxu0 %v3760
      %v3788 = vpop.f32.mrf.mxu0
      %v3789 = vadd.f32 %v3741, %v3788
      %3790 = vmatmul.f32.gmra.mxu0 %v3763
      %v3791 = vpop.f32.mrf.mxu0
      %v3792 = vadd.f32 %v3746, %v3791
      %3793 = vmatmul.f32.gmra.mxu0 %v3766
      %v3794 = vpop.f32.mrf.mxu0
      %v3795 = vadd.f32 %v3751, %v3794
      %3796 = vmatmul.f32.gmra.mxu0 %v3769
      %v3797 = vpop.f32.mrf.mxu0
      %v3798 = vadd.f32 %v3756, %v3797
      %3799 = vdwg.mxu0
      %3800 = vmatpush.msra.mxu0 0.0
      %3801 = vmatpush.msra.mxu0 0.0
      %3802 = vmatpush.msra.mxu0 0.0
      %3803 = vmatpush.msra.mxu0 0.0
      %3804 = vmatpush.msra.mxu0 0.0
      %3805 = vmatpush.msra.mxu0 0.0
      %3806 = vmatpush.msra.mxu0 0.0
      %3807 = vmatpush.msra.mxu0 0.0
      %3808 = vmatpush.msra.mxu0 %v3728
      %3809 = vmatpush.msra.mxu0 %v3725
      %3810 = vmatpush.msra.mxu0 %v3722
      %3811 = vmatpush.msra.mxu0 %v3719
      %3812 = vmatpush.msra.mxu0 %v3716
      %3813 = vmatpush.msra.mxu0 %v3713
      %3814 = vmatpush.msra.mxu0 %v3710
      %3815 = vmatpush.msra.mxu0 %v3707
      %3816 = vmatmul.f32.gmra.mxu0 %v3760
      %v3817 = vpop.f32.mrf.mxu0
      %v3818 = vadd.f32 %v3741, %v3817
      %3819 = vmatmul.f32.gmra.mxu0 %v3763
      %v3820 = vpop.f32.mrf.mxu0
      %v3821 = vadd.f32 %v3746, %v3820
      %3822 = vmatmul.f32.gmra.mxu0 %v3766
      %v3823 = vpop.f32.mrf.mxu0
      %v3824 = vadd.f32 %v3751, %v3823
      %3825 = vmatmul.f32.gmra.mxu0 %v3769
      %v3826 = vpop.f32.mrf.mxu0
      %v3827 = vadd.f32 %v3756, %v3826
      %3828 = vdwg.mxu0
      %3829 = vmatpush.msra.mxu0 0.0
      %3830 = vmatpush.msra.mxu0 0.0
      %3831 = vmatpush.msra.mxu0 0.0
      %3832 = vmatpush.msra.mxu0 0.0
      %3833 = vmatpush.msra.mxu0 0.0
      %3834 = vmatpush.msra.mxu0 0.0
      %3835 = vmatpush.msra.mxu0 0.0
      %3836 = vmatpush.msra.mxu0 0.0
      %3837 = vmatpush.msra.mxu0 %v3729
      %3838 = vmatpush.msra.mxu0 %v3726
      %3839 = vmatpush.msra.mxu0 %v3723
      %3840 = vmatpush.msra.mxu0 %v3720
      %3841 = vmatpush.msra.mxu0 %v3717
      %3842 = vmatpush.msra.mxu0 %v3714
      %3843 = vmatpush.msra.mxu0 %v3711
      %3844 = vmatpush.msra.mxu0 %v3708
      %3845 = vmatmul.f32.gmra.mxu0 %v3760
      %v3846 = vpop.f32.mrf.mxu0
      %v3847 = vadd.f32 %v3741, %v3846
      %3848 = vmatmul.f32.gmra.mxu0 %v3763
      %v3849 = vpop.f32.mrf.mxu0
      %v3850 = vadd.f32 %v3746, %v3849
      %3851 = vmatmul.f32.gmra.mxu0 %v3766
      %v3852 = vpop.f32.mrf.mxu0
      %v3853 = vadd.f32 %v3751, %v3852
      %3854 = vmatmul.f32.gmra.mxu0 %v3769
      %v3855 = vpop.f32.mrf.mxu0
      %v3856 = vadd.f32 %v3756, %v3855
      %3857 = vdwg.mxu0
      %v3858 = vmax.f32 %v3789, 0.0
      %v3859 = vmax.f32 %v3818, 0.0
      %v3860 = vmax.f32 %v3847, 0.0
      %v3861 = vmax.f32 %v3792, 0.0
      %v3862 = vmax.f32 %v3821, 0.0
      %v3863 = vmax.f32 %v3850, 0.0
      %v3864 = vmax.f32 %v3795, 0.0
      %v3865 = vmax.f32 %v3824, 0.0
      %v3866 = vmax.f32 %v3853, 0.0
      %v3867 = vmax.f32 %v3798, 0.0
      %v3868 = vmax.f32 %v3827, 0.0
      %v3869 = vmax.f32 %v3856, 0.0
      %3870 = vst [vmem:[#allocation3] sm:$0xff] 0.0
      %3871 = vst [vmem:[#allocation3 + $0x28] sm:$0xff] 0.0
      %3872 = vst [vmem:[#allocation3 + $0x50] sm:$0xff] 0.0
      %3873 = vst [vmem:[#allocation3 + $0x78] sm:$0xff] 0.0
      %3874 = vst [vmem:[#allocation3 + $0x20] sm:$0xff] 0.0
      %3875 = vst [vmem:[#allocation3 + $0x48] sm:$0xff] 0.0
      %3876 = vst [vmem:[#allocation3 + $0x70] sm:$0xff] 0.0
      %3877 = vst [vmem:[#allocation3 + $0x98] sm:$0xff] 0.0
      %v3878 = vsel %vm493, 1, 0
      %v3879 = vsel %vm494, 1, 0
      %v3880 = vsel %vm495, 1, 0
      %vm3881 = vcmp.eq.s32.totalorder %v3878, 1
      %vm3882 = vcmp.eq.s32.totalorder %v3879, 1
      %vm3883 = vcmp.eq.s32.totalorder %v3880, 1
      %v3884 = vsel %vm3881, %v3858, 0.0
      %v3885 = vsel %vm3882, %v3859, 0.0
      %v3886 = vsel %vm3883, %v3860, 0.0
      %v3887 = vsel %vm3881, %v3861, 0.0
      %v3888 = vsel %vm3882, %v3862, 0.0
      %v3889 = vsel %vm3883, %v3863, 0.0
      %v3890 = vsel %vm3881, %v3864, 0.0
      %v3891 = vsel %vm3882, %v3865, 0.0
      %v3892 = vsel %vm3883, %v3866, 0.0
      %v3893 = vsel %vm3881, %v3867, 0.0
      %v3894 = vsel %vm3882, %v3868, 0.0
      %v3895 = vsel %vm3883, %v3869, 0.0
      %3896 = vst [vmem:[#allocation3 + $0x8] sm:$0xff] %v3884
      %3897 = vst [vmem:[#allocation3 + $0x10] sm:$0xff] %v3885
      %3898 = vst [vmem:[#allocation3 + $0x18] sm:$0xff] %v3886
      %3899 = vst [vmem:[#allocation3 + $0x30] sm:$0xff] %v3887
      %3900 = vst [vmem:[#allocation3 + $0x38] sm:$0xff] %v3888
      %3901 = vst [vmem:[#allocation3 + $0x40] sm:$0xff] %v3889
      %3902 = vst [vmem:[#allocation3 + $0x58] sm:$0xff] %v3890
      %3903 = vst [vmem:[#allocation3 + $0x60] sm:$0xff] %v3891
      %3904 = vst [vmem:[#allocation3 + $0x68] sm:$0xff] %v3892
      %3905 = vst [vmem:[#allocation3 + $0x80] sm:$0xff] %v3893
      %3906 = vst [vmem:[#allocation3 + $0x88] sm:$0xff] %v3894
      %3907 = vst [vmem:[#allocation3 + $0x90] sm:$0xff] %v3895
      %v3908 = vld [vmem:[#allocation3] sm:$0xff]
      %v3909 = vld [vmem:[#allocation3 + $0x8] sm:$0xff]
      %v3910 = vld [vmem:[#allocation3 + $0x10] sm:$0xff]
      %v3911 = vld [vmem:[#allocation3 + $0x18] sm:$0xff]
      %v3912 = vld [vmem:[#allocation3 + $0x28] sm:$0xff]
      %v3913 = vld [vmem:[#allocation3 + $0x30] sm:$0xff]
      %v3914 = vld [vmem:[#allocation3 + $0x38] sm:$0xff]
      %v3915 = vld [vmem:[#allocation3 + $0x40] sm:$0xff]
      %v3916 = vld [vmem:[#allocation3 + $0x50] sm:$0xff]
      %v3917 = vld [vmem:[#allocation3 + $0x58] sm:$0xff]
      %v3918 = vld [vmem:[#allocation3 + $0x60] sm:$0xff]
      %v3919 = vld [vmem:[#allocation3 + $0x68] sm:$0xff]
      %v3920 = vld [vmem:[#allocation3 + $0x78] sm:$0xff]
      %v3921 = vld [vmem:[#allocation3 + $0x80] sm:$0xff]
      %v3922 = vld [vmem:[#allocation3 + $0x88] sm:$0xff]
      %v3923 = vld [vmem:[#allocation3 + $0x90] sm:$0xff]
      %3940 = vrot.lane.b32.xlu0 %v3908, 127
      %v3941 = vpop.permute.xlu0 %3940
      %3942 = vrot.lane.b32.xlu0 %v3909, 127
      %v3943 = vpop.permute.xlu0 %3942
      %3944 = vrot.lane.b32.xlu0 %v3910, 127
      %v3945 = vpop.permute.xlu0 %3944
      %3946 = vrot.lane.b32.xlu0 %v3911, 127
      %v3947 = vpop.permute.xlu0 %3946
      %3948 = vrot.lane.b32.xlu0 %v3912, 127
      %v3949 = vpop.permute.xlu0 %3948
      %3950 = vrot.lane.b32.xlu0 %v3913, 127
      %v3951 = vpop.permute.xlu0 %3950
      %3952 = vrot.lane.b32.xlu0 %v3914, 127
      %v3953 = vpop.permute.xlu0 %3952
      %3954 = vrot.lane.b32.xlu0 %v3915, 127
      %v3955 = vpop.permute.xlu0 %3954
      %3956 = vrot.lane.b32.xlu0 %v3916, 127
      %v3957 = vpop.permute.xlu0 %3956
      %3958 = vrot.lane.b32.xlu0 %v3917, 127
      %v3959 = vpop.permute.xlu0 %3958
      %3960 = vrot.lane.b32.xlu0 %v3918, 127
      %v3961 = vpop.permute.xlu0 %3960
      %3962 = vrot.lane.b32.xlu0 %v3919, 127
      %v3963 = vpop.permute.xlu0 %3962
      %3964 = vrot.lane.b32.xlu0 %v3920, 127
      %v3965 = vpop.permute.xlu0 %3964
      %3966 = vrot.lane.b32.xlu0 %v3921, 127
      %v3967 = vpop.permute.xlu0 %3966
      %3968 = vrot.lane.b32.xlu0 %v3922, 127
      %v3969 = vpop.permute.xlu0 %3968
      %3970 = vrot.lane.b32.xlu0 %v3923, 127
      %v3971 = vpop.permute.xlu0 %3970
      %v3972 = vsel %vm735, %v3941, %v3943
      %v3973 = vsel %vm735, %v3943, %v3945
      %v3974 = vsel %vm735, %v3945, %v3947
      %v3975 = vsel %vm735, %v3949, %v3951
      %v3976 = vsel %vm735, %v3951, %v3953
      %v3977 = vsel %vm735, %v3953, %v3955
      %v3978 = vsel %vm735, %v3957, %v3959
      %v3979 = vsel %vm735, %v3959, %v3961
      %v3980 = vsel %vm735, %v3961, %v3963
      %v3981 = vsel %vm735, %v3965, %v3967
      %v3982 = vsel %vm735, %v3967, %v3969
      %v3983 = vsel %vm735, %v3969, %v3971
      %3984 = vrot.lane.b32.xlu0 %v3908, 126
      %v3985 = vpop.permute.xlu0 %3984
      %3986 = vrot.lane.b32.xlu0 %v3909, 126
      %v3987 = vpop.permute.xlu0 %3986
      %3988 = vrot.lane.b32.xlu0 %v3910, 126
      %v3989 = vpop.permute.xlu0 %3988
      %3990 = vrot.lane.b32.xlu0 %v3911, 126
      %v3991 = vpop.permute.xlu0 %3990
      %3992 = vrot.lane.b32.xlu0 %v3912, 126
      %v3993 = vpop.permute.xlu0 %3992
      %3994 = vrot.lane.b32.xlu0 %v3913, 126
      %v3995 = vpop.permute.xlu0 %3994
      %3996 = vrot.lane.b32.xlu0 %v3914, 126
      %v3997 = vpop.permute.xlu0 %3996
      %3998 = vrot.lane.b32.xlu0 %v3915, 126
      %v3999 = vpop.permute.xlu0 %3998
      %4000 = vrot.lane.b32.xlu0 %v3916, 126
      %v4001 = vpop.permute.xlu0 %4000
      %4002 = vrot.lane.b32.xlu0 %v3917, 126
      %v4003 = vpop.permute.xlu0 %4002
      %4004 = vrot.lane.b32.xlu0 %v3918, 126
      %v4005 = vpop.permute.xlu0 %4004
      %4006 = vrot.lane.b32.xlu0 %v3919, 126
      %v4007 = vpop.permute.xlu0 %4006
      %4008 = vrot.lane.b32.xlu0 %v3920, 126
      %v4009 = vpop.permute.xlu0 %4008
      %4010 = vrot.lane.b32.xlu0 %v3921, 126
      %v4011 = vpop.permute.xlu0 %4010
      %4012 = vrot.lane.b32.xlu0 %v3922, 126
      %v4013 = vpop.permute.xlu0 %4012
      %4014 = vrot.lane.b32.xlu0 %v3923, 126
      %v4015 = vpop.permute.xlu0 %4014
      %v4016 = vsel %vm747, %v3985, %v3987
      %v4017 = vsel %vm747, %v3987, %v3989
      %v4018 = vsel %vm747, %v3989, %v3991
      %v4019 = vsel %vm747, %v3993, %v3995
      %v4020 = vsel %vm747, %v3995, %v3997
      %v4021 = vsel %vm747, %v3997, %v3999
      %v4022 = vsel %vm747, %v4001, %v4003
      %v4023 = vsel %vm747, %v4003, %v4005
      %v4024 = vsel %vm747, %v4005, %v4007
      %v4025 = vsel %vm747, %v4009, %v4011
      %v4026 = vsel %vm747, %v4011, %v4013
      %v4027 = vsel %vm747, %v4013, %v4015
      %v4028 = vld [vmem:[%s7] sm:$0xff]
      %v4029 = vld [vmem:[%s7 + $0x8] sm:$0xff]
      %v4030 = vld [vmem:[%s7 + $0x10] sm:$0xff]
      %v4031 = vld [vmem:[%s7 + $0x18] sm:$0xff]
      %v4032 = vld [vmem:[#allocation3 + $0x8] sm:$0xff]
      %v4033 = vld [vmem:[#allocation3 + $0x10] sm:$0xff]
      %v4034 = vld [vmem:[#allocation3 + $0x18] sm:$0xff]
      %v4035 = vld [vmem:[#allocation3 + $0x20] sm:$0xff]
      %v4036 = vld [vmem:[#allocation3 + $0x30] sm:$0xff]
      %v4037 = vld [vmem:[#allocation3 + $0x38] sm:$0xff]
      %v4038 = vld [vmem:[#allocation3 + $0x40] sm:$0xff]
      %v4039 = vld [vmem:[#allocation3 + $0x48] sm:$0xff]
      %v4040 = vld [vmem:[#allocation3 + $0x58] sm:$0xff]
      %v4041 = vld [vmem:[#allocation3 + $0x60] sm:$0xff]
      %v4042 = vld [vmem:[#allocation3 + $0x68] sm:$0xff]
      %v4043 = vld [vmem:[#allocation3 + $0x70] sm:$0xff]
      %v4044 = vld [vmem:[#allocation3 + $0x80] sm:$0xff]
      %v4045 = vld [vmem:[#allocation3 + $0x88] sm:$0xff]
      %v4046 = vld [vmem:[#allocation3 + $0x90] sm:$0xff]
      %v4047 = vld [vmem:[#allocation3 + $0x98] sm:$0xff]
      %4064 = vrot.lane.b32.xlu0 %v4032, 126
      %v4065 = vpop.permute.xlu0 %4064
      %4066 = vrot.lane.b32.xlu0 %v4033, 126
      %v4067 = vpop.permute.xlu0 %4066
      %4068 = vrot.lane.b32.xlu0 %v4034, 126
      %v4069 = vpop.permute.xlu0 %4068
      %4070 = vrot.lane.b32.xlu0 %v4035, 126
      %v4071 = vpop.permute.xlu0 %4070
      %4072 = vrot.lane.b32.xlu0 %v4036, 126
      %v4073 = vpop.permute.xlu0 %4072
      %4074 = vrot.lane.b32.xlu0 %v4037, 126
      %v4075 = vpop.permute.xlu0 %4074
      %4076 = vrot.lane.b32.xlu0 %v4038, 126
      %v4077 = vpop.permute.xlu0 %4076
      %4078 = vrot.lane.b32.xlu0 %v4039, 126
      %v4079 = vpop.permute.xlu0 %4078
      %4080 = vrot.lane.b32.xlu0 %v4040, 126
      %v4081 = vpop.permute.xlu0 %4080
      %4082 = vrot.lane.b32.xlu0 %v4041, 126
      %v4083 = vpop.permute.xlu0 %4082
      %4084 = vrot.lane.b32.xlu0 %v4042, 126
      %v4085 = vpop.permute.xlu0 %4084
      %4086 = vrot.lane.b32.xlu0 %v4043, 126
      %v4087 = vpop.permute.xlu0 %4086
      %4088 = vrot.lane.b32.xlu0 %v4044, 126
      %v4089 = vpop.permute.xlu0 %4088
      %4090 = vrot.lane.b32.xlu0 %v4045, 126
      %v4091 = vpop.permute.xlu0 %4090
      %4092 = vrot.lane.b32.xlu0 %v4046, 126
      %v4093 = vpop.permute.xlu0 %4092
      %4094 = vrot.lane.b32.xlu0 %v4047, 126
      %v4095 = vpop.permute.xlu0 %4094
      %v4096 = vsel %vm747, %v4065, %v4067
      %v4097 = vsel %vm747, %v4067, %v4069
      %v4098 = vsel %vm747, %v4069, %v4071
      %v4099 = vsel %vm747, %v4073, %v4075
      %v4100 = vsel %vm747, %v4075, %v4077
      %v4101 = vsel %vm747, %v4077, %v4079
      %v4102 = vsel %vm747, %v4081, %v4083
      %v4103 = vsel %vm747, %v4083, %v4085
      %v4104 = vsel %vm747, %v4085, %v4087
      %v4105 = vsel %vm747, %v4089, %v4091
      %v4106 = vsel %vm747, %v4091, %v4093
      %v4107 = vsel %vm747, %v4093, %v4095
      %s4108 = scalar_lea.vmem %s7, 32
      %v4109 = vld [vmem:[%s4108] sm:$0xff]
      %v4110 = vld [vmem:[%s4108 + $0x8] sm:$0xff]
      %v4111 = vld [vmem:[%s4108 + $0x10] sm:$0xff]
      %v4112 = vld [vmem:[%s4108 + $0x18] sm:$0xff]
      %4113 = vrot.lane.b32.xlu0 %v3908, 1
      %v4114 = vpop.permute.xlu0 %4113
      %4115 = vrot.lane.b32.xlu0 %v3909, 1
      %v4116 = vpop.permute.xlu0 %4115
      %4117 = vrot.lane.b32.xlu0 %v3910, 1
      %v4118 = vpop.permute.xlu0 %4117
      %4119 = vrot.lane.b32.xlu0 %v3911, 1
      %v4120 = vpop.permute.xlu0 %4119
      %4121 = vrot.lane.b32.xlu0 %v3912, 1
      %v4122 = vpop.permute.xlu0 %4121
      %4123 = vrot.lane.b32.xlu0 %v3913, 1
      %v4124 = vpop.permute.xlu0 %4123
      %4125 = vrot.lane.b32.xlu0 %v3914, 1
      %v4126 = vpop.permute.xlu0 %4125
      %4127 = vrot.lane.b32.xlu0 %v3915, 1
      %v4128 = vpop.permute.xlu0 %4127
      %4129 = vrot.lane.b32.xlu0 %v3916, 1
      %v4130 = vpop.permute.xlu0 %4129
      %4131 = vrot.lane.b32.xlu0 %v3917, 1
      %v4132 = vpop.permute.xlu0 %4131
      %4133 = vrot.lane.b32.xlu0 %v3918, 1
      %v4134 = vpop.permute.xlu0 %4133
      %4135 = vrot.lane.b32.xlu0 %v3919, 1
      %v4136 = vpop.permute.xlu0 %4135
      %4137 = vrot.lane.b32.xlu0 %v3920, 1
      %v4138 = vpop.permute.xlu0 %4137
      %4139 = vrot.lane.b32.xlu0 %v3921, 1
      %v4140 = vpop.permute.xlu0 %4139
      %4141 = vrot.lane.b32.xlu0 %v3922, 1
      %v4142 = vpop.permute.xlu0 %4141
      %4143 = vrot.lane.b32.xlu0 %v3923, 1
      %v4144 = vpop.permute.xlu0 %4143
      %4145 = vrot.lane.b32.xlu0 %v3943, 1
      %v4146 = vpop.permute.xlu0 %4145
      %4147 = vrot.lane.b32.xlu0 %v3973, 1
      %v4148 = vpop.permute.xlu0 %4147
      %4149 = vrot.lane.b32.xlu0 %v3974, 1
      %v4150 = vpop.permute.xlu0 %4149
      %4151 = vrot.lane.b32.xlu0 %v3947, 1
      %v4152 = vpop.permute.xlu0 %4151
      %4153 = vrot.lane.b32.xlu0 %v3951, 1
      %v4154 = vpop.permute.xlu0 %4153
      %4155 = vrot.lane.b32.xlu0 %v3976, 1
      %v4156 = vpop.permute.xlu0 %4155
      %4157 = vrot.lane.b32.xlu0 %v3977, 1
      %v4158 = vpop.permute.xlu0 %4157
      %4159 = vrot.lane.b32.xlu0 %v3955, 1
      %v4160 = vpop.permute.xlu0 %4159
      %4161 = vrot.lane.b32.xlu0 %v3959, 1
      %v4162 = vpop.permute.xlu0 %4161
      %4163 = vrot.lane.b32.xlu0 %v3979, 1
      %v4164 = vpop.permute.xlu0 %4163
      %4165 = vrot.lane.b32.xlu0 %v3980, 1
      %v4166 = vpop.permute.xlu0 %4165
      %4167 = vrot.lane.b32.xlu0 %v3963, 1
      %v4168 = vpop.permute.xlu0 %4167
      %4169 = vrot.lane.b32.xlu0 %v3967, 1
      %v4170 = vpop.permute.xlu0 %4169
      %4171 = vrot.lane.b32.xlu0 %v3982, 1
      %v4172 = vpop.permute.xlu0 %4171
      %4173 = vrot.lane.b32.xlu0 %v3983, 1
      %v4174 = vpop.permute.xlu0 %4173
      %4175 = vrot.lane.b32.xlu0 %v3971, 1
      %v4176 = vpop.permute.xlu0 %4175
      %4177 = vrot.lane.b32.xlu0 %v4065, 1
      %v4178 = vpop.permute.xlu0 %4177
      %4179 = vrot.lane.b32.xlu0 %v4096, 1
      %v4180 = vpop.permute.xlu0 %4179
      %4181 = vrot.lane.b32.xlu0 %v4097, 1
      %v4182 = vpop.permute.xlu0 %4181
      %4183 = vrot.lane.b32.xlu0 %v4098, 1
      %v4184 = vpop.permute.xlu0 %4183
      %4185 = vrot.lane.b32.xlu0 %v4073, 1
      %v4186 = vpop.permute.xlu0 %4185
      %4187 = vrot.lane.b32.xlu0 %v4099, 1
      %v4188 = vpop.permute.xlu0 %4187
      %4189 = vrot.lane.b32.xlu0 %v4100, 1
      %v4190 = vpop.permute.xlu0 %4189
      %4191 = vrot.lane.b32.xlu0 %v4101, 1
      %v4192 = vpop.permute.xlu0 %4191
      %4193 = vrot.lane.b32.xlu0 %v4081, 1
      %v4194 = vpop.permute.xlu0 %4193
      %4195 = vrot.lane.b32.xlu0 %v4102, 1
      %v4196 = vpop.permute.xlu0 %4195
      %4197 = vrot.lane.b32.xlu0 %v4103, 1
      %v4198 = vpop.permute.xlu0 %4197
      %4199 = vrot.lane.b32.xlu0 %v4104, 1
      %v4200 = vpop.permute.xlu0 %4199
      %4201 = vrot.lane.b32.xlu0 %v4089, 1
      %v4202 = vpop.permute.xlu0 %4201
      %4203 = vrot.lane.b32.xlu0 %v4105, 1
      %v4204 = vpop.permute.xlu0 %4203
      %4205 = vrot.lane.b32.xlu0 %v4106, 1
      %v4206 = vpop.permute.xlu0 %4205
      %4207 = vrot.lane.b32.xlu0 %v4107, 1
      %v4208 = vpop.permute.xlu0 %4207
      %vm4209 = vcmask 7168
      %v4210 = vsel %vm4209, %v4114, %v4116
      %v4211 = vsel %vm4209, %v4116, %v4118
      %v4212 = vsel %vm4209, %v4118, %v4120
      %v4213 = vsel %vm4209, %v4122, %v4124
      %v4214 = vsel %vm4209, %v4124, %v4126
      %v4215 = vsel %vm4209, %v4126, %v4128
      %v4216 = vsel %vm4209, %v4130, %v4132
      %v4217 = vsel %vm4209, %v4132, %v4134
      %v4218 = vsel %vm4209, %v4134, %v4136
      %v4219 = vsel %vm4209, %v4138, %v4140
      %v4220 = vsel %vm4209, %v4140, %v4142
      %v4221 = vsel %vm4209, %v4142, %v4144
      %v4222 = vsel %vm4209, %v4146, %v4148
      %v4223 = vsel %vm4209, %v4148, %v4150
      %v4224 = vsel %vm4209, %v4150, %v4152
      %v4225 = vsel %vm4209, %v4154, %v4156
      %v4226 = vsel %vm4209, %v4156, %v4158
      %v4227 = vsel %vm4209, %v4158, %v4160
      %v4228 = vsel %vm4209, %v4162, %v4164
      %v4229 = vsel %vm4209, %v4164, %v4166
      %v4230 = vsel %vm4209, %v4166, %v4168
      %v4231 = vsel %vm4209, %v4170, %v4172
      %v4232 = vsel %vm4209, %v4172, %v4174
      %v4233 = vsel %vm4209, %v4174, %v4176
      %v4234 = vsel %vm4209, %v4178, %v4180
      %v4235 = vsel %vm4209, %v4180, %v4182
      %v4236 = vsel %vm4209, %v4182, %v4184
      %v4237 = vsel %vm4209, %v4186, %v4188
      %v4238 = vsel %vm4209, %v4188, %v4190
      %v4239 = vsel %vm4209, %v4190, %v4192
      %v4240 = vsel %vm4209, %v4194, %v4196
      %v4241 = vsel %vm4209, %v4196, %v4198
      %v4242 = vsel %vm4209, %v4198, %v4200
      %v4243 = vsel %vm4209, %v4202, %v4204
      %v4244 = vsel %vm4209, %v4204, %v4206
      %v4245 = vsel %vm4209, %v4206, %v4208
      %vm4282 = vcmask 785408
      %v4284 = vsel %vm4282, %v4109, 0
      %v4287 = vsel %vm4282, %v4110, 0
      %v4290 = vsel %vm4282, %v4111, 0
      %v4293 = vsel %vm4282, %v4112, 0
      %4295 = vmatpush.msra.mxu0 0.0
      %4296 = vmatpush.msra.mxu0 0.0
      %4297 = vmatpush.msra.mxu0 0.0
      %4298 = vmatpush.msra.mxu0 0.0
      %4299 = vmatpush.msra.mxu0 %v4243
      %4300 = vmatpush.msra.mxu0 %v4240
      %4301 = vmatpush.msra.mxu0 %v4237
      %4302 = vmatpush.msra.mxu0 %v4234
      %4303 = vmatpush.msra.mxu0 %v4231
      %4304 = vmatpush.msra.mxu0 %v4228
      %4305 = vmatpush.msra.mxu0 %v4225
      %4306 = vmatpush.msra.mxu0 %v4222
      %4307 = vmatpush.msra.mxu0 %v4219
      %4308 = vmatpush.msra.mxu0 %v4216
      %4309 = vmatpush.msra.mxu0 %v4213
      %4310 = vmatpush.msra.mxu0 %v4210
      %4311 = vmatmul.f32.gmra.mxu0 %v4284
      %v4312 = vpop.f32.mrf.mxu0
      %v4313 = vadd.f32 0.0, %v4312
      %4314 = vmatmul.f32.gmra.mxu0 %v4287
      %v4315 = vpop.f32.mrf.mxu0
      %v4316 = vadd.f32 0.0, %v4315
      %4317 = vmatmul.f32.gmra.mxu0 %v4290
      %v4318 = vpop.f32.mrf.mxu0
      %v4319 = vadd.f32 0.0, %v4318
      %4320 = vmatmul.f32.gmra.mxu0 %v4293
      %v4321 = vpop.f32.mrf.mxu0
      %v4322 = vadd.f32 0.0, %v4321
      %4323 = vdwg.mxu0
      %4324 = vmatpush.msra.mxu0 0.0
      %4325 = vmatpush.msra.mxu0 0.0
      %4326 = vmatpush.msra.mxu0 0.0
      %4327 = vmatpush.msra.mxu0 0.0
      %4328 = vmatpush.msra.mxu0 %v4244
      %4329 = vmatpush.msra.mxu0 %v4241
      %4330 = vmatpush.msra.mxu0 %v4238
      %4331 = vmatpush.msra.mxu0 %v4235
      %4332 = vmatpush.msra.mxu0 %v4232
      %4333 = vmatpush.msra.mxu0 %v4229
      %4334 = vmatpush.msra.mxu0 %v4226
      %4335 = vmatpush.msra.mxu0 %v4223
      %4336 = vmatpush.msra.mxu0 %v4220
      %4337 = vmatpush.msra.mxu0 %v4217
      %4338 = vmatpush.msra.mxu0 %v4214
      %4339 = vmatpush.msra.mxu0 %v4211
      %4340 = vmatmul.f32.gmra.mxu0 %v4284
      %v4341 = vpop.f32.mrf.mxu0
      %v4342 = vadd.f32 0.0, %v4341
      %4343 = vmatmul.f32.gmra.mxu0 %v4287
      %v4344 = vpop.f32.mrf.mxu0
      %v4345 = vadd.f32 0.0, %v4344
      %4346 = vmatmul.f32.gmra.mxu0 %v4290
      %v4347 = vpop.f32.mrf.mxu0
      %v4348 = vadd.f32 0.0, %v4347
      %4349 = vmatmul.f32.gmra.mxu0 %v4293
      %v4350 = vpop.f32.mrf.mxu0
      %v4351 = vadd.f32 0.0, %v4350
      %4352 = vdwg.mxu0
      %4353 = vmatpush.msra.mxu0 0.0
      %4354 = vmatpush.msra.mxu0 0.0
      %4355 = vmatpush.msra.mxu0 0.0
      %4356 = vmatpush.msra.mxu0 0.0
      %4357 = vmatpush.msra.mxu0 %v4245
      %4358 = vmatpush.msra.mxu0 %v4242
      %4359 = vmatpush.msra.mxu0 %v4239
      %4360 = vmatpush.msra.mxu0 %v4236
      %4361 = vmatpush.msra.mxu0 %v4233
      %4362 = vmatpush.msra.mxu0 %v4230
      %4363 = vmatpush.msra.mxu0 %v4227
      %4364 = vmatpush.msra.mxu0 %v4224
      %4365 = vmatpush.msra.mxu0 %v4221
      %4366 = vmatpush.msra.mxu0 %v4218
      %4367 = vmatpush.msra.mxu0 %v4215
      %4368 = vmatpush.msra.mxu0 %v4212
      %4369 = vmatmul.f32.gmra.mxu0 %v4284
      %v4370 = vpop.f32.mrf.mxu0
      %v4371 = vadd.f32 0.0, %v4370
      %4372 = vmatmul.f32.gmra.mxu0 %v4287
      %v4373 = vpop.f32.mrf.mxu0
      %v4374 = vadd.f32 0.0, %v4373
      %4375 = vmatmul.f32.gmra.mxu0 %v4290
      %v4376 = vpop.f32.mrf.mxu0
      %v4377 = vadd.f32 0.0, %v4376
      %4378 = vmatmul.f32.gmra.mxu0 %v4293
      %v4379 = vpop.f32.mrf.mxu0
      %v4380 = vadd.f32 0.0, %v4379
      %4381 = vdwg.mxu0
      %4382 = vrot.lane.b32.xlu0 %v3908, 25
      %v4383 = vpop.permute.xlu0 %4382
      %4384 = vrot.lane.b32.xlu0 %v3909, 25
      %v4385 = vpop.permute.xlu0 %4384
      %4386 = vrot.lane.b32.xlu0 %v3910, 25
      %v4387 = vpop.permute.xlu0 %4386
      %4388 = vrot.lane.b32.xlu0 %v3911, 25
      %v4389 = vpop.permute.xlu0 %4388
      %4390 = vrot.lane.b32.xlu0 %v3912, 25
      %v4391 = vpop.permute.xlu0 %4390
      %4392 = vrot.lane.b32.xlu0 %v3913, 25
      %v4393 = vpop.permute.xlu0 %4392
      %4394 = vrot.lane.b32.xlu0 %v3914, 25
      %v4395 = vpop.permute.xlu0 %4394
      %4396 = vrot.lane.b32.xlu0 %v3915, 25
      %v4397 = vpop.permute.xlu0 %4396
      %4398 = vrot.lane.b32.xlu0 %v3916, 25
      %v4399 = vpop.permute.xlu0 %4398
      %4400 = vrot.lane.b32.xlu0 %v3917, 25
      %v4401 = vpop.permute.xlu0 %4400
      %4402 = vrot.lane.b32.xlu0 %v3918, 25
      %v4403 = vpop.permute.xlu0 %4402
      %4404 = vrot.lane.b32.xlu0 %v3919, 25
      %v4405 = vpop.permute.xlu0 %4404
      %4406 = vrot.lane.b32.xlu0 %v3920, 25
      %v4407 = vpop.permute.xlu0 %4406
      %4408 = vrot.lane.b32.xlu0 %v3921, 25
      %v4409 = vpop.permute.xlu0 %4408
      %4410 = vrot.lane.b32.xlu0 %v3922, 25
      %v4411 = vpop.permute.xlu0 %4410
      %4412 = vrot.lane.b32.xlu0 %v3923, 25
      %v4413 = vpop.permute.xlu0 %4412
      %4414 = vrot.lane.b32.xlu0 %v3972, 25
      %v4415 = vpop.permute.xlu0 %4414
      %4416 = vrot.lane.b32.xlu0 %v3973, 25
      %v4417 = vpop.permute.xlu0 %4416
      %4418 = vrot.lane.b32.xlu0 %v3974, 25
      %v4419 = vpop.permute.xlu0 %4418
      %4420 = vrot.lane.b32.xlu0 %v3947, 25
      %v4421 = vpop.permute.xlu0 %4420
      %4422 = vrot.lane.b32.xlu0 %v3975, 25
      %v4423 = vpop.permute.xlu0 %4422
      %4424 = vrot.lane.b32.xlu0 %v3976, 25
      %v4425 = vpop.permute.xlu0 %4424
      %4426 = vrot.lane.b32.xlu0 %v3977, 25
      %v4427 = vpop.permute.xlu0 %4426
      %4428 = vrot.lane.b32.xlu0 %v3955, 25
      %v4429 = vpop.permute.xlu0 %4428
      %4430 = vrot.lane.b32.xlu0 %v3978, 25
      %v4431 = vpop.permute.xlu0 %4430
      %4432 = vrot.lane.b32.xlu0 %v3979, 25
      %v4433 = vpop.permute.xlu0 %4432
      %4434 = vrot.lane.b32.xlu0 %v3980, 25
      %v4435 = vpop.permute.xlu0 %4434
      %4436 = vrot.lane.b32.xlu0 %v3963, 25
      %v4437 = vpop.permute.xlu0 %4436
      %4438 = vrot.lane.b32.xlu0 %v3981, 25
      %v4439 = vpop.permute.xlu0 %4438
      %4440 = vrot.lane.b32.xlu0 %v3982, 25
      %v4441 = vpop.permute.xlu0 %4440
      %4442 = vrot.lane.b32.xlu0 %v3983, 25
      %v4443 = vpop.permute.xlu0 %4442
      %4444 = vrot.lane.b32.xlu0 %v3971, 25
      %v4445 = vpop.permute.xlu0 %4444
      %4446 = vrot.lane.b32.xlu0 %v4016, 25
      %v4447 = vpop.permute.xlu0 %4446
      %4448 = vrot.lane.b32.xlu0 %v4017, 25
      %v4449 = vpop.permute.xlu0 %4448
      %4450 = vrot.lane.b32.xlu0 %v4018, 25
      %v4451 = vpop.permute.xlu0 %4450
      %4452 = vrot.lane.b32.xlu0 %v3991, 25
      %v4453 = vpop.permute.xlu0 %4452
      %4454 = vrot.lane.b32.xlu0 %v4019, 25
      %v4455 = vpop.permute.xlu0 %4454
      %4456 = vrot.lane.b32.xlu0 %v4020, 25
      %v4457 = vpop.permute.xlu0 %4456
      %4458 = vrot.lane.b32.xlu0 %v4021, 25
      %v4459 = vpop.permute.xlu0 %4458
      %4460 = vrot.lane.b32.xlu0 %v3999, 25
      %v4461 = vpop.permute.xlu0 %4460
      %4462 = vrot.lane.b32.xlu0 %v4022, 25
      %v4463 = vpop.permute.xlu0 %4462
      %4464 = vrot.lane.b32.xlu0 %v4023, 25
      %v4465 = vpop.permute.xlu0 %4464
      %4466 = vrot.lane.b32.xlu0 %v4024, 25
      %v4467 = vpop.permute.xlu0 %4466
      %4468 = vrot.lane.b32.xlu0 %v4007, 25
      %v4469 = vpop.permute.xlu0 %4468
      %4470 = vrot.lane.b32.xlu0 %v4025, 25
      %v4471 = vpop.permute.xlu0 %4470
      %4472 = vrot.lane.b32.xlu0 %v4026, 25
      %v4473 = vpop.permute.xlu0 %4472
      %4474 = vrot.lane.b32.xlu0 %v4027, 25
      %v4475 = vpop.permute.xlu0 %4474
      %4476 = vrot.lane.b32.xlu0 %v4015, 25
      %v4477 = vpop.permute.xlu0 %4476
      %vm4478 = vcmask 203776
      %v4479 = vsel %vm4478, %v4383, %v4385
      %v4480 = vsel %vm4478, %v4385, %v4387
      %v4481 = vsel %vm4478, %v4387, %v4389
      %v4482 = vsel %vm4478, %v4391, %v4393
      %v4483 = vsel %vm4478, %v4393, %v4395
      %v4484 = vsel %vm4478, %v4395, %v4397
      %v4485 = vsel %vm4478, %v4399, %v4401
      %v4486 = vsel %vm4478, %v4401, %v4403
      %v4487 = vsel %vm4478, %v4403, %v4405
      %v4488 = vsel %vm4478, %v4407, %v4409
      %v4489 = vsel %vm4478, %v4409, %v4411
      %v4490 = vsel %vm4478, %v4411, %v4413
      %v4491 = vsel %vm4478, %v4415, %v4417
      %v4492 = vsel %vm4478, %v4417, %v4419
      %v4493 = vsel %vm4478, %v4419, %v4421
      %v4494 = vsel %vm4478, %v4423, %v4425
      %v4495 = vsel %vm4478, %v4425, %v4427
      %v4496 = vsel %vm4478, %v4427, %v4429
      %v4497 = vsel %vm4478, %v4431, %v4433
      %v4498 = vsel %vm4478, %v4433, %v4435
      %v4499 = vsel %vm4478, %v4435, %v4437
      %v4500 = vsel %vm4478, %v4439, %v4441
      %v4501 = vsel %vm4478, %v4441, %v4443
      %v4502 = vsel %vm4478, %v4443, %v4445
      %v4503 = vsel %vm4478, %v4447, %v4449
      %v4504 = vsel %vm4478, %v4449, %v4451
      %v4505 = vsel %vm4478, %v4451, %v4453
      %v4506 = vsel %vm4478, %v4455, %v4457
      %v4507 = vsel %vm4478, %v4457, %v4459
      %v4508 = vsel %vm4478, %v4459, %v4461
      %v4509 = vsel %vm4478, %v4463, %v4465
      %v4510 = vsel %vm4478, %v4465, %v4467
      %v4511 = vsel %vm4478, %v4467, %v4469
      %v4512 = vsel %vm4478, %v4471, %v4473
      %v4513 = vsel %vm4478, %v4473, %v4475
      %v4514 = vsel %vm4478, %v4475, %v4477
      %v4552 = vsel %vm4282, %v4028, 0
      %v4555 = vsel %vm4282, %v4029, 0
      %v4558 = vsel %vm4282, %v4030, 0
      %v4561 = vsel %vm4282, %v4031, 0
      %4563 = vmatpush.msra.mxu0 0.0
      %4564 = vmatpush.msra.mxu0 0.0
      %4565 = vmatpush.msra.mxu0 0.0
      %4566 = vmatpush.msra.mxu0 0.0
      %4567 = vmatpush.msra.mxu0 %v4512
      %4568 = vmatpush.msra.mxu0 %v4509
      %4569 = vmatpush.msra.mxu0 %v4506
      %4570 = vmatpush.msra.mxu0 %v4503
      %4571 = vmatpush.msra.mxu0 %v4500
      %4572 = vmatpush.msra.mxu0 %v4497
      %4573 = vmatpush.msra.mxu0 %v4494
      %4574 = vmatpush.msra.mxu0 %v4491
      %4575 = vmatpush.msra.mxu0 %v4488
      %4576 = vmatpush.msra.mxu0 %v4485
      %4577 = vmatpush.msra.mxu0 %v4482
      %4578 = vmatpush.msra.mxu0 %v4479
      %4579 = vmatmul.f32.gmra.mxu0 %v4552
      %v4580 = vpop.f32.mrf.mxu0
      %v4581 = vadd.f32 %v4313, %v4580
      %4582 = vmatmul.f32.gmra.mxu0 %v4555
      %v4583 = vpop.f32.mrf.mxu0
      %v4584 = vadd.f32 %v4316, %v4583
      %4585 = vmatmul.f32.gmra.mxu0 %v4558
      %v4586 = vpop.f32.mrf.mxu0
      %v4587 = vadd.f32 %v4319, %v4586
      %4588 = vmatmul.f32.gmra.mxu0 %v4561
      %v4589 = vpop.f32.mrf.mxu0
      %v4590 = vadd.f32 %v4322, %v4589
      %4591 = vdwg.mxu0
      %4592 = vmatpush.msra.mxu0 0.0
      %4593 = vmatpush.msra.mxu0 0.0
      %4594 = vmatpush.msra.mxu0 0.0
      %4595 = vmatpush.msra.mxu0 0.0
      %4596 = vmatpush.msra.mxu0 %v4513
      %4597 = vmatpush.msra.mxu0 %v4510
      %4598 = vmatpush.msra.mxu0 %v4507
      %4599 = vmatpush.msra.mxu0 %v4504
      %4600 = vmatpush.msra.mxu0 %v4501
      %4601 = vmatpush.msra.mxu0 %v4498
      %4602 = vmatpush.msra.mxu0 %v4495
      %4603 = vmatpush.msra.mxu0 %v4492
      %4604 = vmatpush.msra.mxu0 %v4489
      %4605 = vmatpush.msra.mxu0 %v4486
      %4606 = vmatpush.msra.mxu0 %v4483
      %4607 = vmatpush.msra.mxu0 %v4480
      %4608 = vmatmul.f32.gmra.mxu0 %v4552
      %v4609 = vpop.f32.mrf.mxu0
      %v4610 = vadd.f32 %v4342, %v4609
      %4611 = vmatmul.f32.gmra.mxu0 %v4555
      %v4612 = vpop.f32.mrf.mxu0
      %v4613 = vadd.f32 %v4345, %v4612
      %4614 = vmatmul.f32.gmra.mxu0 %v4558
      %v4615 = vpop.f32.mrf.mxu0
      %v4616 = vadd.f32 %v4348, %v4615
      %4617 = vmatmul.f32.gmra.mxu0 %v4561
      %v4618 = vpop.f32.mrf.mxu0
      %v4619 = vadd.f32 %v4351, %v4618
      %4620 = vdwg.mxu0
      %4621 = vmatpush.msra.mxu0 0.0
      %4622 = vmatpush.msra.mxu0 0.0
      %4623 = vmatpush.msra.mxu0 0.0
      %4624 = vmatpush.msra.mxu0 0.0
      %4625 = vmatpush.msra.mxu0 %v4514
      %4626 = vmatpush.msra.mxu0 %v4511
      %4627 = vmatpush.msra.mxu0 %v4508
      %4628 = vmatpush.msra.mxu0 %v4505
      %4629 = vmatpush.msra.mxu0 %v4502
      %4630 = vmatpush.msra.mxu0 %v4499
      %4631 = vmatpush.msra.mxu0 %v4496
      %4632 = vmatpush.msra.mxu0 %v4493
      %4633 = vmatpush.msra.mxu0 %v4490
      %4634 = vmatpush.msra.mxu0 %v4487
      %4635 = vmatpush.msra.mxu0 %v4484
      %4636 = vmatpush.msra.mxu0 %v4481
      %4637 = vmatmul.f32.gmra.mxu0 %v4552
      %v4638 = vpop.f32.mrf.mxu0
      %v4639 = vadd.f32 %v4371, %v4638
      %4640 = vmatmul.f32.gmra.mxu0 %v4555
      %v4641 = vpop.f32.mrf.mxu0
      %v4642 = vadd.f32 %v4374, %v4641
      %4643 = vmatmul.f32.gmra.mxu0 %v4558
      %v4644 = vpop.f32.mrf.mxu0
      %v4645 = vadd.f32 %v4377, %v4644
      %4646 = vmatmul.f32.gmra.mxu0 %v4561
      %v4647 = vpop.f32.mrf.mxu0
      %v4648 = vadd.f32 %v4380, %v4647
      %4649 = vdwg.mxu0
      %4650 = vrot.lane.b32.xlu0 %v4032, 127
      %v4651 = vpop.permute.xlu0 %4650
      %4652 = vrot.lane.b32.xlu0 %v4033, 127
      %v4653 = vpop.permute.xlu0 %4652
      %4654 = vrot.lane.b32.xlu0 %v4034, 127
      %v4655 = vpop.permute.xlu0 %4654
      %4656 = vrot.lane.b32.xlu0 %v4035, 127
      %v4657 = vpop.permute.xlu0 %4656
      %4658 = vrot.lane.b32.xlu0 %v4036, 127
      %v4659 = vpop.permute.xlu0 %4658
      %4660 = vrot.lane.b32.xlu0 %v4037, 127
      %v4661 = vpop.permute.xlu0 %4660
      %4662 = vrot.lane.b32.xlu0 %v4038, 127
      %v4663 = vpop.permute.xlu0 %4662
      %4664 = vrot.lane.b32.xlu0 %v4039, 127
      %v4665 = vpop.permute.xlu0 %4664
      %4666 = vrot.lane.b32.xlu0 %v4040, 127
      %v4667 = vpop.permute.xlu0 %4666
      %4668 = vrot.lane.b32.xlu0 %v4041, 127
      %v4669 = vpop.permute.xlu0 %4668
      %4670 = vrot.lane.b32.xlu0 %v4042, 127
      %v4671 = vpop.permute.xlu0 %4670
      %4672 = vrot.lane.b32.xlu0 %v4043, 127
      %v4673 = vpop.permute.xlu0 %4672
      %4674 = vrot.lane.b32.xlu0 %v4044, 127
      %v4675 = vpop.permute.xlu0 %4674
      %4676 = vrot.lane.b32.xlu0 %v4045, 127
      %v4677 = vpop.permute.xlu0 %4676
      %4678 = vrot.lane.b32.xlu0 %v4046, 127
      %v4679 = vpop.permute.xlu0 %4678
      %4680 = vrot.lane.b32.xlu0 %v4047, 127
      %v4681 = vpop.permute.xlu0 %4680
      %v4682 = vsel %vm735, %v4651, %v4653
      %v4683 = vsel %vm735, %v4653, %v4655
      %v4684 = vsel %vm735, %v4655, %v4657
      %v4685 = vsel %vm735, %v4659, %v4661
      %v4686 = vsel %vm735, %v4661, %v4663
      %v4687 = vsel %vm735, %v4663, %v4665
      %v4688 = vsel %vm735, %v4667, %v4669
      %v4689 = vsel %vm735, %v4669, %v4671
      %v4690 = vsel %vm735, %v4671, %v4673
      %v4691 = vsel %vm735, %v4675, %v4677
      %v4692 = vsel %vm735, %v4677, %v4679
      %v4693 = vsel %vm735, %v4679, %v4681
      %s4694 = scalar_lea.vmem %s7, 64
      %v4695 = vld [vmem:[%s4694] sm:$0xff]
      %v4696 = vld [vmem:[%s4694 + $0x8] sm:$0xff]
      %v4697 = vld [vmem:[%s4694 + $0x10] sm:$0xff]
      %v4698 = vld [vmem:[%s4694 + $0x18] sm:$0xff]
      %4699 = vrot.lane.b32.xlu0 %v4032, 105
      %v4700 = vpop.permute.xlu0 %4699
      %4701 = vrot.lane.b32.xlu0 %v4033, 105
      %v4702 = vpop.permute.xlu0 %4701
      %4703 = vrot.lane.b32.xlu0 %v4034, 105
      %v4704 = vpop.permute.xlu0 %4703
      %4705 = vrot.lane.b32.xlu0 %v4035, 105
      %v4706 = vpop.permute.xlu0 %4705
      %4707 = vrot.lane.b32.xlu0 %v4036, 105
      %v4708 = vpop.permute.xlu0 %4707
      %4709 = vrot.lane.b32.xlu0 %v4037, 105
      %v4710 = vpop.permute.xlu0 %4709
      %4711 = vrot.lane.b32.xlu0 %v4038, 105
      %v4712 = vpop.permute.xlu0 %4711
      %4713 = vrot.lane.b32.xlu0 %v4039, 105
      %v4714 = vpop.permute.xlu0 %4713
      %4715 = vrot.lane.b32.xlu0 %v4040, 105
      %v4716 = vpop.permute.xlu0 %4715
      %4717 = vrot.lane.b32.xlu0 %v4041, 105
      %v4718 = vpop.permute.xlu0 %4717
      %4719 = vrot.lane.b32.xlu0 %v4042, 105
      %v4720 = vpop.permute.xlu0 %4719
      %4721 = vrot.lane.b32.xlu0 %v4043, 105
      %v4722 = vpop.permute.xlu0 %4721
      %4723 = vrot.lane.b32.xlu0 %v4044, 105
      %v4724 = vpop.permute.xlu0 %4723
      %4725 = vrot.lane.b32.xlu0 %v4045, 105
      %v4726 = vpop.permute.xlu0 %4725
      %4727 = vrot.lane.b32.xlu0 %v4046, 105
      %v4728 = vpop.permute.xlu0 %4727
      %4729 = vrot.lane.b32.xlu0 %v4047, 105
      %v4730 = vpop.permute.xlu0 %4729
      %4731 = vrot.lane.b32.xlu0 %v4682, 105
      %v4732 = vpop.permute.xlu0 %4731
      %4733 = vrot.lane.b32.xlu0 %v4683, 105
      %v4734 = vpop.permute.xlu0 %4733
      %4735 = vrot.lane.b32.xlu0 %v4684, 105
      %v4736 = vpop.permute.xlu0 %4735
      %4737 = vrot.lane.b32.xlu0 %v4657, 105
      %v4738 = vpop.permute.xlu0 %4737
      %4739 = vrot.lane.b32.xlu0 %v4685, 105
      %v4740 = vpop.permute.xlu0 %4739
      %4741 = vrot.lane.b32.xlu0 %v4686, 105
      %v4742 = vpop.permute.xlu0 %4741
      %4743 = vrot.lane.b32.xlu0 %v4687, 105
      %v4744 = vpop.permute.xlu0 %4743
      %4745 = vrot.lane.b32.xlu0 %v4665, 105
      %v4746 = vpop.permute.xlu0 %4745
      %4747 = vrot.lane.b32.xlu0 %v4688, 105
      %v4748 = vpop.permute.xlu0 %4747
      %4749 = vrot.lane.b32.xlu0 %v4689, 105
      %v4750 = vpop.permute.xlu0 %4749
      %4751 = vrot.lane.b32.xlu0 %v4690, 105
      %v4752 = vpop.permute.xlu0 %4751
      %4753 = vrot.lane.b32.xlu0 %v4673, 105
      %v4754 = vpop.permute.xlu0 %4753
      %4755 = vrot.lane.b32.xlu0 %v4691, 105
      %v4756 = vpop.permute.xlu0 %4755
      %4757 = vrot.lane.b32.xlu0 %v4692, 105
      %v4758 = vpop.permute.xlu0 %4757
      %4759 = vrot.lane.b32.xlu0 %v4693, 105
      %v4760 = vpop.permute.xlu0 %4759
      %4761 = vrot.lane.b32.xlu0 %v4681, 105
      %v4762 = vpop.permute.xlu0 %4761
      %4763 = vrot.lane.b32.xlu0 %v4096, 105
      %v4764 = vpop.permute.xlu0 %4763
      %4765 = vrot.lane.b32.xlu0 %v4097, 105
      %v4766 = vpop.permute.xlu0 %4765
      %4767 = vrot.lane.b32.xlu0 %v4098, 105
      %v4768 = vpop.permute.xlu0 %4767
      %4769 = vrot.lane.b32.xlu0 %v4071, 105
      %v4770 = vpop.permute.xlu0 %4769
      %4771 = vrot.lane.b32.xlu0 %v4099, 105
      %v4772 = vpop.permute.xlu0 %4771
      %4773 = vrot.lane.b32.xlu0 %v4100, 105
      %v4774 = vpop.permute.xlu0 %4773
      %4775 = vrot.lane.b32.xlu0 %v4101, 105
      %v4776 = vpop.permute.xlu0 %4775
      %4777 = vrot.lane.b32.xlu0 %v4079, 105
      %v4778 = vpop.permute.xlu0 %4777
      %4779 = vrot.lane.b32.xlu0 %v4102, 105
      %v4780 = vpop.permute.xlu0 %4779
      %4781 = vrot.lane.b32.xlu0 %v4103, 105
      %v4782 = vpop.permute.xlu0 %4781
      %4783 = vrot.lane.b32.xlu0 %v4104, 105
      %v4784 = vpop.permute.xlu0 %4783
      %4785 = vrot.lane.b32.xlu0 %v4087, 105
      %v4786 = vpop.permute.xlu0 %4785
      %4787 = vrot.lane.b32.xlu0 %v4105, 105
      %v4788 = vpop.permute.xlu0 %4787
      %4789 = vrot.lane.b32.xlu0 %v4106, 105
      %v4790 = vpop.permute.xlu0 %4789
      %4791 = vrot.lane.b32.xlu0 %v4107, 105
      %v4792 = vpop.permute.xlu0 %4791
      %4793 = vrot.lane.b32.xlu0 %v4095, 105
      %v4794 = vpop.permute.xlu0 %4793
      %vm4795 = vcmask 859136
      %v4796 = vsel %vm4795, %v4700, %v4702
      %v4797 = vsel %vm4795, %v4702, %v4704
      %v4798 = vsel %vm4795, %v4704, %v4706
      %v4799 = vsel %vm4795, %v4708, %v4710
      %v4800 = vsel %vm4795, %v4710, %v4712
      %v4801 = vsel %vm4795, %v4712, %v4714
      %v4802 = vsel %vm4795, %v4716, %v4718
      %v4803 = vsel %vm4795, %v4718, %v4720
      %v4804 = vsel %vm4795, %v4720, %v4722
      %v4805 = vsel %vm4795, %v4724, %v4726
      %v4806 = vsel %vm4795, %v4726, %v4728
      %v4807 = vsel %vm4795, %v4728, %v4730
      %v4808 = vsel %vm4795, %v4732, %v4734
      %v4809 = vsel %vm4795, %v4734, %v4736
      %v4810 = vsel %vm4795, %v4736, %v4738
      %v4811 = vsel %vm4795, %v4740, %v4742
      %v4812 = vsel %vm4795, %v4742, %v4744
      %v4813 = vsel %vm4795, %v4744, %v4746
      %v4814 = vsel %vm4795, %v4748, %v4750
      %v4815 = vsel %vm4795, %v4750, %v4752
      %v4816 = vsel %vm4795, %v4752, %v4754
      %v4817 = vsel %vm4795, %v4756, %v4758
      %v4818 = vsel %vm4795, %v4758, %v4760
      %v4819 = vsel %vm4795, %v4760, %v4762
      %v4820 = vsel %vm4795, %v4764, %v4766
      %v4821 = vsel %vm4795, %v4766, %v4768
      %v4822 = vsel %vm4795, %v4768, %v4770
      %v4823 = vsel %vm4795, %v4772, %v4774
      %v4824 = vsel %vm4795, %v4774, %v4776
      %v4825 = vsel %vm4795, %v4776, %v4778
      %v4826 = vsel %vm4795, %v4780, %v4782
      %v4827 = vsel %vm4795, %v4782, %v4784
      %v4828 = vsel %vm4795, %v4784, %v4786
      %v4829 = vsel %vm4795, %v4788, %v4790
      %v4830 = vsel %vm4795, %v4790, %v4792
      %v4831 = vsel %vm4795, %v4792, %v4794
      %v4869 = vsel %vm4282, %v4695, 0
      %v4872 = vsel %vm4282, %v4696, 0
      %v4875 = vsel %vm4282, %v4697, 0
      %v4878 = vsel %vm4282, %v4698, 0
      %4880 = vmatpush.msra.mxu0 0.0
      %4881 = vmatpush.msra.mxu0 0.0
      %4882 = vmatpush.msra.mxu0 0.0
      %4883 = vmatpush.msra.mxu0 0.0
      %4884 = vmatpush.msra.mxu0 %v4829
      %4885 = vmatpush.msra.mxu0 %v4826
      %4886 = vmatpush.msra.mxu0 %v4823
      %4887 = vmatpush.msra.mxu0 %v4820
      %4888 = vmatpush.msra.mxu0 %v4817
      %4889 = vmatpush.msra.mxu0 %v4814
      %4890 = vmatpush.msra.mxu0 %v4811
      %4891 = vmatpush.msra.mxu0 %v4808
      %4892 = vmatpush.msra.mxu0 %v4805
      %4893 = vmatpush.msra.mxu0 %v4802
      %4894 = vmatpush.msra.mxu0 %v4799
      %4895 = vmatpush.msra.mxu0 %v4796
      %4896 = vmatmul.f32.gmra.mxu0 %v4869
      %v4897 = vpop.f32.mrf.mxu0
      %v4898 = vadd.f32 0.0, %v4897
      %4899 = vmatmul.f32.gmra.mxu0 %v4872
      %v4900 = vpop.f32.mrf.mxu0
      %v4901 = vadd.f32 0.0, %v4900
      %4902 = vmatmul.f32.gmra.mxu0 %v4875
      %v4903 = vpop.f32.mrf.mxu0
      %v4904 = vadd.f32 0.0, %v4903
      %4905 = vmatmul.f32.gmra.mxu0 %v4878
      %v4906 = vpop.f32.mrf.mxu0
      %v4907 = vadd.f32 0.0, %v4906
      %4908 = vdwg.mxu0
      %4909 = vmatpush.msra.mxu0 0.0
      %4910 = vmatpush.msra.mxu0 0.0
      %4911 = vmatpush.msra.mxu0 0.0
      %4912 = vmatpush.msra.mxu0 0.0
      %4913 = vmatpush.msra.mxu0 %v4830
      %4914 = vmatpush.msra.mxu0 %v4827
      %4915 = vmatpush.msra.mxu0 %v4824
      %4916 = vmatpush.msra.mxu0 %v4821
      %4917 = vmatpush.msra.mxu0 %v4818
      %4918 = vmatpush.msra.mxu0 %v4815
      %4919 = vmatpush.msra.mxu0 %v4812
      %4920 = vmatpush.msra.mxu0 %v4809
      %4921 = vmatpush.msra.mxu0 %v4806
      %4922 = vmatpush.msra.mxu0 %v4803
      %4923 = vmatpush.msra.mxu0 %v4800
      %4924 = vmatpush.msra.mxu0 %v4797
      %4925 = vmatmul.f32.gmra.mxu0 %v4869
      %v4926 = vpop.f32.mrf.mxu0
      %v4927 = vadd.f32 0.0, %v4926
      %4928 = vmatmul.f32.gmra.mxu0 %v4872
      %v4929 = vpop.f32.mrf.mxu0
      %v4930 = vadd.f32 0.0, %v4929
      %4931 = vmatmul.f32.gmra.mxu0 %v4875
      %v4932 = vpop.f32.mrf.mxu0
      %v4933 = vadd.f32 0.0, %v4932
      %4934 = vmatmul.f32.gmra.mxu0 %v4878
      %v4935 = vpop.f32.mrf.mxu0
      %v4936 = vadd.f32 0.0, %v4935
      %4937 = vdwg.mxu0
      %4938 = vmatpush.msra.mxu0 0.0
      %4939 = vmatpush.msra.mxu0 0.0
      %4940 = vmatpush.msra.mxu0 0.0
      %4941 = vmatpush.msra.mxu0 0.0
      %4942 = vmatpush.msra.mxu0 %v4831
      %4943 = vmatpush.msra.mxu0 %v4828
      %4944 = vmatpush.msra.mxu0 %v4825
      %4945 = vmatpush.msra.mxu0 %v4822
      %4946 = vmatpush.msra.mxu0 %v4819
      %4947 = vmatpush.msra.mxu0 %v4816
      %4948 = vmatpush.msra.mxu0 %v4813
      %4949 = vmatpush.msra.mxu0 %v4810
      %4950 = vmatpush.msra.mxu0 %v4807
      %4951 = vmatpush.msra.mxu0 %v4804
      %4952 = vmatpush.msra.mxu0 %v4801
      %4953 = vmatpush.msra.mxu0 %v4798
      %4954 = vmatmul.f32.gmra.mxu0 %v4869
      %v4955 = vpop.f32.mrf.mxu0
      %v4956 = vadd.f32 0.0, %v4955
      %4957 = vmatmul.f32.gmra.mxu0 %v4872
      %v4958 = vpop.f32.mrf.mxu0
      %v4959 = vadd.f32 0.0, %v4958
      %4960 = vmatmul.f32.gmra.mxu0 %v4875
      %v4961 = vpop.f32.mrf.mxu0
      %v4962 = vadd.f32 0.0, %v4961
      %4963 = vmatmul.f32.gmra.mxu0 %v4878
      %v4964 = vpop.f32.mrf.mxu0
      %v4965 = vadd.f32 0.0, %v4964
      %4966 = vdwg.mxu0
      %v4967 = vadd.f32 %v4581, %v4898
      %v4968 = vadd.f32 %v4610, %v4927
      %v4969 = vadd.f32 %v4639, %v4956
      %v4970 = vadd.f32 %v4584, %v4901
      %v4971 = vadd.f32 %v4613, %v4930
      %v4972 = vadd.f32 %v4642, %v4959
      %v4973 = vadd.f32 %v4587, %v4904
      %v4974 = vadd.f32 %v4616, %v4933
      %v4975 = vadd.f32 %v4645, %v4962
      %v4976 = vadd.f32 %v4590, %v4907
      %v4977 = vadd.f32 %v4619, %v4936
      %v4978 = vadd.f32 %v4648, %v4965
      %v4979 = vld [vmem:[%s8] sm:$0xff]
      %v4980 = vld [vmem:[%s8 + $0x8] sm:$0xff]
      %v4981 = vld [vmem:[%s8 + $0x10] sm:$0xff]
      %v4982 = vld [vmem:[%s8 + $0x18] sm:$0xff]
      %4984 = vset.pattern.permute.xlu0 0
      %4985 = vperm.xlu0 %4984, %v4979
      %v4986 = vpop.permute.xlu0 %4985
      %4989 = vset.pattern.permute.xlu0 0
      %4990 = vperm.xlu0 %4989, %v4980
      %v4991 = vpop.permute.xlu0 %4990
      %4994 = vset.pattern.permute.xlu0 0
      %4995 = vperm.xlu0 %4994, %v4981
      %v4996 = vpop.permute.xlu0 %4995
      %4999 = vset.pattern.permute.xlu0 0
      %5000 = vperm.xlu0 %4999, %v4982
      %v5001 = vpop.permute.xlu0 %5000
      %v5003 = vadd.f32 %v4967, %v4986
      %v5004 = vadd.f32 %v4968, %v4986
      %v5005 = vadd.f32 %v4969, %v4986
      %v5006 = vadd.f32 %v4970, %v4991
      %v5007 = vadd.f32 %v4971, %v4991
      %v5008 = vadd.f32 %v4972, %v4991
      %v5009 = vadd.f32 %v4973, %v4996
      %v5010 = vadd.f32 %v4974, %v4996
      %v5011 = vadd.f32 %v4975, %v4996
      %v5012 = vadd.f32 %v4976, %v5001
      %v5013 = vadd.f32 %v4977, %v5001
      %v5014 = vadd.f32 %v4978, %v5001
      %v5015 = vmax.f32 %v5003, 0.0
      %v5016 = vmax.f32 %v5004, 0.0
      %v5017 = vmax.f32 %v5005, 0.0
      %v5018 = vmax.f32 %v5006, 0.0
      %v5019 = vmax.f32 %v5007, 0.0
      %v5020 = vmax.f32 %v5008, 0.0
      %v5021 = vmax.f32 %v5009, 0.0
      %v5022 = vmax.f32 %v5010, 0.0
      %v5023 = vmax.f32 %v5011, 0.0
      %v5024 = vmax.f32 %v5012, 0.0
      %v5025 = vmax.f32 %v5013, 0.0
      %v5026 = vmax.f32 %v5014, 0.0
      %v5027 = vsel %vm3881, %v5015, 0.0
      %v5028 = vsel %vm3882, %v5016, 0.0
      %v5029 = vsel %vm3883, %v5017, 0.0
      %v5030 = vsel %vm3881, %v5018, 0.0
      %v5031 = vsel %vm3882, %v5019, 0.0
      %v5032 = vsel %vm3883, %v5020, 0.0
      %v5033 = vsel %vm3881, %v5021, 0.0
      %v5034 = vsel %vm3882, %v5022, 0.0
      %v5035 = vsel %vm3883, %v5023, 0.0
      %v5036 = vsel %vm3881, %v5024, 0.0
      %v5037 = vsel %vm3882, %v5025, 0.0
      %v5038 = vsel %vm3883, %v5026, 0.0
      %5039 = vst [vmem:[#allocation3 + $0x8] sm:$0xff] %v5027
      %5040 = vst [vmem:[#allocation3 + $0x10] sm:$0xff] %v5028
      %5041 = vst [vmem:[#allocation3 + $0x18] sm:$0xff] %v5029
      %5042 = vst [vmem:[#allocation3 + $0x30] sm:$0xff] %v5030
      %5043 = vst [vmem:[#allocation3 + $0x38] sm:$0xff] %v5031
      %5044 = vst [vmem:[#allocation3 + $0x40] sm:$0xff] %v5032
      %5045 = vst [vmem:[#allocation3 + $0x58] sm:$0xff] %v5033
      %5046 = vst [vmem:[#allocation3 + $0x60] sm:$0xff] %v5034
      %5047 = vst [vmem:[#allocation3 + $0x68] sm:$0xff] %v5035
      %5048 = vst [vmem:[#allocation3 + $0x80] sm:$0xff] %v5036
      %5049 = vst [vmem:[#allocation3 + $0x88] sm:$0xff] %v5037
      %5050 = vst [vmem:[#allocation3 + $0x90] sm:$0xff] %v5038
      %v5051 = vld [vmem:[#allocation3] sm:$0xff]
      %v5052 = vld [vmem:[#allocation3 + $0x8] sm:$0xff]
      %v5053 = vld [vmem:[#allocation3 + $0x10] sm:$0xff]
      %v5054 = vld [vmem:[#allocation3 + $0x18] sm:$0xff]
      %v5055 = vld [vmem:[#allocation3 + $0x28] sm:$0xff]
      %v5056 = vld [vmem:[#allocation3 + $0x30] sm:$0xff]
      %v5057 = vld [vmem:[#allocation3 + $0x38] sm:$0xff]
      %v5058 = vld [vmem:[#allocation3 + $0x40] sm:$0xff]
      %v5059 = vld [vmem:[#allocation3 + $0x50] sm:$0xff]
      %v5060 = vld [vmem:[#allocation3 + $0x58] sm:$0xff]
      %v5061 = vld [vmem:[#allocation3 + $0x60] sm:$0xff]
      %v5062 = vld [vmem:[#allocation3 + $0x68] sm:$0xff]
      %v5063 = vld [vmem:[#allocation3 + $0x78] sm:$0xff]
      %v5064 = vld [vmem:[#allocation3 + $0x80] sm:$0xff]
      %v5065 = vld [vmem:[#allocation3 + $0x88] sm:$0xff]
      %v5066 = vld [vmem:[#allocation3 + $0x90] sm:$0xff]
      %5083 = vrot.lane.b32.xlu0 %v5051, 127
      %v5084 = vpop.permute.xlu0 %5083
      %5085 = vrot.lane.b32.xlu0 %v5052, 127
      %v5086 = vpop.permute.xlu0 %5085
      %5087 = vrot.lane.b32.xlu0 %v5053, 127
      %v5088 = vpop.permute.xlu0 %5087
      %5089 = vrot.lane.b32.xlu0 %v5054, 127
      %v5090 = vpop.permute.xlu0 %5089
      %5091 = vrot.lane.b32.xlu0 %v5055, 127
      %v5092 = vpop.permute.xlu0 %5091
      %5093 = vrot.lane.b32.xlu0 %v5056, 127
      %v5094 = vpop.permute.xlu0 %5093
      %5095 = vrot.lane.b32.xlu0 %v5057, 127
      %v5096 = vpop.permute.xlu0 %5095
      %5097 = vrot.lane.b32.xlu0 %v5058, 127
      %v5098 = vpop.permute.xlu0 %5097
      %5099 = vrot.lane.b32.xlu0 %v5059, 127
      %v5100 = vpop.permute.xlu0 %5099
      %5101 = vrot.lane.b32.xlu0 %v5060, 127
      %v5102 = vpop.permute.xlu0 %5101
      %5103 = vrot.lane.b32.xlu0 %v5061, 127
      %v5104 = vpop.permute.xlu0 %5103
      %5105 = vrot.lane.b32.xlu0 %v5062, 127
      %v5106 = vpop.permute.xlu0 %5105
      %5107 = vrot.lane.b32.xlu0 %v5063, 127
      %v5108 = vpop.permute.xlu0 %5107
      %5109 = vrot.lane.b32.xlu0 %v5064, 127
      %v5110 = vpop.permute.xlu0 %5109
      %5111 = vrot.lane.b32.xlu0 %v5065, 127
      %v5112 = vpop.permute.xlu0 %5111
      %5113 = vrot.lane.b32.xlu0 %v5066, 127
      %v5114 = vpop.permute.xlu0 %5113
      %v5115 = vsel %vm735, %v5084, %v5086
      %v5116 = vsel %vm735, %v5086, %v5088
      %v5117 = vsel %vm735, %v5088, %v5090
      %v5118 = vsel %vm735, %v5092, %v5094
      %v5119 = vsel %vm735, %v5094, %v5096
      %v5120 = vsel %vm735, %v5096, %v5098
      %v5121 = vsel %vm735, %v5100, %v5102
      %v5122 = vsel %vm735, %v5102, %v5104
      %v5123 = vsel %vm735, %v5104, %v5106
      %v5124 = vsel %vm735, %v5108, %v5110
      %v5125 = vsel %vm735, %v5110, %v5112
      %v5126 = vsel %vm735, %v5112, %v5114
      %5127 = vrot.lane.b32.xlu0 %v5051, 126
      %v5128 = vpop.permute.xlu0 %5127
      %5129 = vrot.lane.b32.xlu0 %v5052, 126
      %v5130 = vpop.permute.xlu0 %5129
      %5131 = vrot.lane.b32.xlu0 %v5053, 126
      %v5132 = vpop.permute.xlu0 %5131
      %5133 = vrot.lane.b32.xlu0 %v5054, 126
      %v5134 = vpop.permute.xlu0 %5133
      %5135 = vrot.lane.b32.xlu0 %v5055, 126
      %v5136 = vpop.permute.xlu0 %5135
      %5137 = vrot.lane.b32.xlu0 %v5056, 126
      %v5138 = vpop.permute.xlu0 %5137
      %5139 = vrot.lane.b32.xlu0 %v5057, 126
      %v5140 = vpop.permute.xlu0 %5139
      %5141 = vrot.lane.b32.xlu0 %v5058, 126
      %v5142 = vpop.permute.xlu0 %5141
      %5143 = vrot.lane.b32.xlu0 %v5059, 126
      %v5144 = vpop.permute.xlu0 %5143
      %5145 = vrot.lane.b32.xlu0 %v5060, 126
      %v5146 = vpop.permute.xlu0 %5145
      %5147 = vrot.lane.b32.xlu0 %v5061, 126
      %v5148 = vpop.permute.xlu0 %5147
      %5149 = vrot.lane.b32.xlu0 %v5062, 126
      %v5150 = vpop.permute.xlu0 %5149
      %5151 = vrot.lane.b32.xlu0 %v5063, 126
      %v5152 = vpop.permute.xlu0 %5151
      %5153 = vrot.lane.b32.xlu0 %v5064, 126
      %v5154 = vpop.permute.xlu0 %5153
      %5155 = vrot.lane.b32.xlu0 %v5065, 126
      %v5156 = vpop.permute.xlu0 %5155
      %5157 = vrot.lane.b32.xlu0 %v5066, 126
      %v5158 = vpop.permute.xlu0 %5157
      %v5159 = vsel %vm747, %v5128, %v5130
      %v5160 = vsel %vm747, %v5130, %v5132
      %v5161 = vsel %vm747, %v5132, %v5134
      %v5162 = vsel %vm747, %v5136, %v5138
      %v5163 = vsel %vm747, %v5138, %v5140
      %v5164 = vsel %vm747, %v5140, %v5142
      %v5165 = vsel %vm747, %v5144, %v5146
      %v5166 = vsel %vm747, %v5146, %v5148
      %v5167 = vsel %vm747, %v5148, %v5150
      %v5168 = vsel %vm747, %v5152, %v5154
      %v5169 = vsel %vm747, %v5154, %v5156
      %v5170 = vsel %vm747, %v5156, %v5158
      %5171 = vrot.lane.b32.xlu0 %v5051, 125
      %v5172 = vpop.permute.xlu0 %5171
      %5173 = vrot.lane.b32.xlu0 %v5052, 125
      %v5174 = vpop.permute.xlu0 %5173
      %5175 = vrot.lane.b32.xlu0 %v5053, 125
      %v5176 = vpop.permute.xlu0 %5175
      %5177 = vrot.lane.b32.xlu0 %v5054, 125
      %v5178 = vpop.permute.xlu0 %5177
      %5179 = vrot.lane.b32.xlu0 %v5055, 125
      %v5180 = vpop.permute.xlu0 %5179
      %5181 = vrot.lane.b32.xlu0 %v5056, 125
      %v5182 = vpop.permute.xlu0 %5181
      %5183 = vrot.lane.b32.xlu0 %v5057, 125
      %v5184 = vpop.permute.xlu0 %5183
      %5185 = vrot.lane.b32.xlu0 %v5058, 125
      %v5186 = vpop.permute.xlu0 %5185
      %5187 = vrot.lane.b32.xlu0 %v5059, 125
      %v5188 = vpop.permute.xlu0 %5187
      %5189 = vrot.lane.b32.xlu0 %v5060, 125
      %v5190 = vpop.permute.xlu0 %5189
      %5191 = vrot.lane.b32.xlu0 %v5061, 125
      %v5192 = vpop.permute.xlu0 %5191
      %5193 = vrot.lane.b32.xlu0 %v5062, 125
      %v5194 = vpop.permute.xlu0 %5193
      %5195 = vrot.lane.b32.xlu0 %v5063, 125
      %v5196 = vpop.permute.xlu0 %5195
      %5197 = vrot.lane.b32.xlu0 %v5064, 125
      %v5198 = vpop.permute.xlu0 %5197
      %5199 = vrot.lane.b32.xlu0 %v5065, 125
      %v5200 = vpop.permute.xlu0 %5199
      %5201 = vrot.lane.b32.xlu0 %v5066, 125
      %v5202 = vpop.permute.xlu0 %5201
      %v5203 = vsel %vm759, %v5172, %v5174
      %v5204 = vsel %vm759, %v5174, %v5176
      %v5205 = vsel %vm759, %v5176, %v5178
      %v5206 = vsel %vm759, %v5180, %v5182
      %v5207 = vsel %vm759, %v5182, %v5184
      %v5208 = vsel %vm759, %v5184, %v5186
      %v5209 = vsel %vm759, %v5188, %v5190
      %v5210 = vsel %vm759, %v5190, %v5192
      %v5211 = vsel %vm759, %v5192, %v5194
      %v5212 = vsel %vm759, %v5196, %v5198
      %v5213 = vsel %vm759, %v5198, %v5200
      %v5214 = vsel %vm759, %v5200, %v5202
      %5215 = vrot.lane.b32.xlu0 %v5051, 124
      %v5216 = vpop.permute.xlu0 %5215
      %5217 = vrot.lane.b32.xlu0 %v5052, 124
      %v5218 = vpop.permute.xlu0 %5217
      %5219 = vrot.lane.b32.xlu0 %v5053, 124
      %v5220 = vpop.permute.xlu0 %5219
      %5221 = vrot.lane.b32.xlu0 %v5054, 124
      %v5222 = vpop.permute.xlu0 %5221
      %5223 = vrot.lane.b32.xlu0 %v5055, 124
      %v5224 = vpop.permute.xlu0 %5223
      %5225 = vrot.lane.b32.xlu0 %v5056, 124
      %v5226 = vpop.permute.xlu0 %5225
      %5227 = vrot.lane.b32.xlu0 %v5057, 124
      %v5228 = vpop.permute.xlu0 %5227
      %5229 = vrot.lane.b32.xlu0 %v5058, 124
      %v5230 = vpop.permute.xlu0 %5229
      %5231 = vrot.lane.b32.xlu0 %v5059, 124
      %v5232 = vpop.permute.xlu0 %5231
      %5233 = vrot.lane.b32.xlu0 %v5060, 124
      %v5234 = vpop.permute.xlu0 %5233
      %5235 = vrot.lane.b32.xlu0 %v5061, 124
      %v5236 = vpop.permute.xlu0 %5235
      %5237 = vrot.lane.b32.xlu0 %v5062, 124
      %v5238 = vpop.permute.xlu0 %5237
      %5239 = vrot.lane.b32.xlu0 %v5063, 124
      %v5240 = vpop.permute.xlu0 %5239
      %5241 = vrot.lane.b32.xlu0 %v5064, 124
      %v5242 = vpop.permute.xlu0 %5241
      %5243 = vrot.lane.b32.xlu0 %v5065, 124
      %v5244 = vpop.permute.xlu0 %5243
      %5245 = vrot.lane.b32.xlu0 %v5066, 124
      %v5246 = vpop.permute.xlu0 %5245
      %v5247 = vsel %vm771, %v5216, %v5218
      %v5248 = vsel %vm771, %v5218, %v5220
      %v5249 = vsel %vm771, %v5220, %v5222
      %v5250 = vsel %vm771, %v5224, %v5226
      %v5251 = vsel %vm771, %v5226, %v5228
      %v5252 = vsel %vm771, %v5228, %v5230
      %v5253 = vsel %vm771, %v5232, %v5234
      %v5254 = vsel %vm771, %v5234, %v5236
      %v5255 = vsel %vm771, %v5236, %v5238
      %v5256 = vsel %vm771, %v5240, %v5242
      %v5257 = vsel %vm771, %v5242, %v5244
      %v5258 = vsel %vm771, %v5244, %v5246
      %v5259 = vld [vmem:[%s9] sm:$0x77]
      %s5260 = scalar_lea.vmem %s9, 8
      %v5261 = vld [vmem:[%s5260] sm:$0x77]
      %5263 = vst [vmem:[#allocation1] ss:$2 sm:$0xff] %v5261
      %v5264 = vld.sshfl [vmem:[#allocation1] sm:$0xff pattern:$0x75316420]
      %v5265 = vld.sshfl [vmem:[#allocation1 + $0x8] sm:$0xff pattern:$0x75316420]
      %5267 = vrot.lane.b32.xlu0 %v5051, 26
      %v5268 = vpop.permute.xlu0 %5267
      %5269 = vrot.lane.b32.xlu0 %v5052, 26
      %v5270 = vpop.permute.xlu0 %5269
      %5271 = vrot.lane.b32.xlu0 %v5053, 26
      %v5272 = vpop.permute.xlu0 %5271
      %5273 = vrot.lane.b32.xlu0 %v5054, 26
      %v5274 = vpop.permute.xlu0 %5273
      %5275 = vrot.lane.b32.xlu0 %v5055, 26
      %v5276 = vpop.permute.xlu0 %5275
      %5277 = vrot.lane.b32.xlu0 %v5056, 26
      %v5278 = vpop.permute.xlu0 %5277
      %5279 = vrot.lane.b32.xlu0 %v5057, 26
      %v5280 = vpop.permute.xlu0 %5279
      %5281 = vrot.lane.b32.xlu0 %v5058, 26
      %v5282 = vpop.permute.xlu0 %5281
      %5283 = vrot.lane.b32.xlu0 %v5059, 26
      %v5284 = vpop.permute.xlu0 %5283
      %5285 = vrot.lane.b32.xlu0 %v5060, 26
      %v5286 = vpop.permute.xlu0 %5285
      %5287 = vrot.lane.b32.xlu0 %v5061, 26
      %v5288 = vpop.permute.xlu0 %5287
      %5289 = vrot.lane.b32.xlu0 %v5062, 26
      %v5290 = vpop.permute.xlu0 %5289
      %5291 = vrot.lane.b32.xlu0 %v5063, 26
      %v5292 = vpop.permute.xlu0 %5291
      %5293 = vrot.lane.b32.xlu0 %v5064, 26
      %v5294 = vpop.permute.xlu0 %5293
      %5295 = vrot.lane.b32.xlu0 %v5065, 26
      %v5296 = vpop.permute.xlu0 %5295
      %5297 = vrot.lane.b32.xlu0 %v5066, 26
      %v5298 = vpop.permute.xlu0 %5297
      %5299 = vrot.lane.b32.xlu0 %v5115, 26
      %v5300 = vpop.permute.xlu0 %5299
      %5301 = vrot.lane.b32.xlu0 %v5116, 26
      %v5302 = vpop.permute.xlu0 %5301
      %5303 = vrot.lane.b32.xlu0 %v5117, 26
      %v5304 = vpop.permute.xlu0 %5303
      %5305 = vrot.lane.b32.xlu0 %v5090, 26
      %v5306 = vpop.permute.xlu0 %5305
      %5307 = vrot.lane.b32.xlu0 %v5118, 26
      %v5308 = vpop.permute.xlu0 %5307
      %5309 = vrot.lane.b32.xlu0 %v5119, 26
      %v5310 = vpop.permute.xlu0 %5309
      %5311 = vrot.lane.b32.xlu0 %v5120, 26
      %v5312 = vpop.permute.xlu0 %5311
      %5313 = vrot.lane.b32.xlu0 %v5098, 26
      %v5314 = vpop.permute.xlu0 %5313
      %5315 = vrot.lane.b32.xlu0 %v5121, 26
      %v5316 = vpop.permute.xlu0 %5315
      %5317 = vrot.lane.b32.xlu0 %v5122, 26
      %v5318 = vpop.permute.xlu0 %5317
      %5319 = vrot.lane.b32.xlu0 %v5123, 26
      %v5320 = vpop.permute.xlu0 %5319
      %5321 = vrot.lane.b32.xlu0 %v5106, 26
      %v5322 = vpop.permute.xlu0 %5321
      %5323 = vrot.lane.b32.xlu0 %v5124, 26
      %v5324 = vpop.permute.xlu0 %5323
      %5325 = vrot.lane.b32.xlu0 %v5125, 26
      %v5326 = vpop.permute.xlu0 %5325
      %5327 = vrot.lane.b32.xlu0 %v5126, 26
      %v5328 = vpop.permute.xlu0 %5327
      %5329 = vrot.lane.b32.xlu0 %v5114, 26
      %v5330 = vpop.permute.xlu0 %5329
      %5331 = vrot.lane.b32.xlu0 %v5159, 26
      %v5332 = vpop.permute.xlu0 %5331
      %5333 = vrot.lane.b32.xlu0 %v5160, 26
      %v5334 = vpop.permute.xlu0 %5333
      %5335 = vrot.lane.b32.xlu0 %v5161, 26
      %v5336 = vpop.permute.xlu0 %5335
      %5337 = vrot.lane.b32.xlu0 %v5134, 26
      %v5338 = vpop.permute.xlu0 %5337
      %5339 = vrot.lane.b32.xlu0 %v5162, 26
      %v5340 = vpop.permute.xlu0 %5339
      %5341 = vrot.lane.b32.xlu0 %v5163, 26
      %v5342 = vpop.permute.xlu0 %5341
      %5343 = vrot.lane.b32.xlu0 %v5164, 26
      %v5344 = vpop.permute.xlu0 %5343
      %5345 = vrot.lane.b32.xlu0 %v5142, 26
      %v5346 = vpop.permute.xlu0 %5345
      %5347 = vrot.lane.b32.xlu0 %v5165, 26
      %v5348 = vpop.permute.xlu0 %5347
      %5349 = vrot.lane.b32.xlu0 %v5166, 26
      %v5350 = vpop.permute.xlu0 %5349
      %5351 = vrot.lane.b32.xlu0 %v5167, 26
      %v5352 = vpop.permute.xlu0 %5351
      %5353 = vrot.lane.b32.xlu0 %v5150, 26
      %v5354 = vpop.permute.xlu0 %5353
      %5355 = vrot.lane.b32.xlu0 %v5168, 26
      %v5356 = vpop.permute.xlu0 %5355
      %5357 = vrot.lane.b32.xlu0 %v5169, 26
      %v5358 = vpop.permute.xlu0 %5357
      %5359 = vrot.lane.b32.xlu0 %v5170, 26
      %v5360 = vpop.permute.xlu0 %5359
      %5361 = vrot.lane.b32.xlu0 %v5158, 26
      %v5362 = vpop.permute.xlu0 %5361
      %5363 = vrot.lane.b32.xlu0 %v5203, 26
      %v5364 = vpop.permute.xlu0 %5363
      %5365 = vrot.lane.b32.xlu0 %v5204, 26
      %v5366 = vpop.permute.xlu0 %5365
      %5367 = vrot.lane.b32.xlu0 %v5205, 26
      %v5368 = vpop.permute.xlu0 %5367
      %5369 = vrot.lane.b32.xlu0 %v5178, 26
      %v5370 = vpop.permute.xlu0 %5369
      %5371 = vrot.lane.b32.xlu0 %v5206, 26
      %v5372 = vpop.permute.xlu0 %5371
      %5373 = vrot.lane.b32.xlu0 %v5207, 26
      %v5374 = vpop.permute.xlu0 %5373
      %5375 = vrot.lane.b32.xlu0 %v5208, 26
      %v5376 = vpop.permute.xlu0 %5375
      %5377 = vrot.lane.b32.xlu0 %v5186, 26
      %v5378 = vpop.permute.xlu0 %5377
      %5379 = vrot.lane.b32.xlu0 %v5209, 26
      %v5380 = vpop.permute.xlu0 %5379
      %5381 = vrot.lane.b32.xlu0 %v5210, 26
      %v5382 = vpop.permute.xlu0 %5381
      %5383 = vrot.lane.b32.xlu0 %v5211, 26
      %v5384 = vpop.permute.xlu0 %5383
      %5385 = vrot.lane.b32.xlu0 %v5194, 26
      %v5386 = vpop.permute.xlu0 %5385
      %5387 = vrot.lane.b32.xlu0 %v5212, 26
      %v5388 = vpop.permute.xlu0 %5387
      %5389 = vrot.lane.b32.xlu0 %v5213, 26
      %v5390 = vpop.permute.xlu0 %5389
      %5391 = vrot.lane.b32.xlu0 %v5214, 26
      %v5392 = vpop.permute.xlu0 %5391
      %5393 = vrot.lane.b32.xlu0 %v5202, 26
      %v5394 = vpop.permute.xlu0 %5393
      %5395 = vrot.lane.b32.xlu0 %v5247, 26
      %v5396 = vpop.permute.xlu0 %5395
      %5397 = vrot.lane.b32.xlu0 %v5248, 26
      %v5398 = vpop.permute.xlu0 %5397
      %5399 = vrot.lane.b32.xlu0 %v5249, 26
      %v5400 = vpop.permute.xlu0 %5399
      %5401 = vrot.lane.b32.xlu0 %v5222, 26
      %v5402 = vpop.permute.xlu0 %5401
      %5403 = vrot.lane.b32.xlu0 %v5250, 26
      %v5404 = vpop.permute.xlu0 %5403
      %5405 = vrot.lane.b32.xlu0 %v5251, 26
      %v5406 = vpop.permute.xlu0 %5405
      %5407 = vrot.lane.b32.xlu0 %v5252, 26
      %v5408 = vpop.permute.xlu0 %5407
      %5409 = vrot.lane.b32.xlu0 %v5230, 26
      %v5410 = vpop.permute.xlu0 %5409
      %5411 = vrot.lane.b32.xlu0 %v5253, 26
      %v5412 = vpop.permute.xlu0 %5411
      %5413 = vrot.lane.b32.xlu0 %v5254, 26
      %v5414 = vpop.permute.xlu0 %5413
      %5415 = vrot.lane.b32.xlu0 %v5255, 26
      %v5416 = vpop.permute.xlu0 %5415
      %5417 = vrot.lane.b32.xlu0 %v5238, 26
      %v5418 = vpop.permute.xlu0 %5417
      %5419 = vrot.lane.b32.xlu0 %v5256, 26
      %v5420 = vpop.permute.xlu0 %5419
      %5421 = vrot.lane.b32.xlu0 %v5257, 26
      %v5422 = vpop.permute.xlu0 %5421
      %5423 = vrot.lane.b32.xlu0 %v5258, 26
      %v5424 = vpop.permute.xlu0 %5423
      %5425 = vrot.lane.b32.xlu0 %v5246, 26
      %v5426 = vpop.permute.xlu0 %5425
      %vm5427 = vcmask 211968
      %v5428 = vsel %vm5427, %v5268, %v5270
      %v5429 = vsel %vm5427, %v5270, %v5272
      %v5430 = vsel %vm5427, %v5272, %v5274
      %v5431 = vsel %vm5427, %v5276, %v5278
      %v5432 = vsel %vm5427, %v5278, %v5280
      %v5433 = vsel %vm5427, %v5280, %v5282
      %v5434 = vsel %vm5427, %v5284, %v5286
      %v5435 = vsel %vm5427, %v5286, %v5288
      %v5436 = vsel %vm5427, %v5288, %v5290
      %v5437 = vsel %vm5427, %v5292, %v5294
      %v5438 = vsel %vm5427, %v5294, %v5296
      %v5439 = vsel %vm5427, %v5296, %v5298
      %v5440 = vsel %vm5427, %v5300, %v5302
      %v5441 = vsel %vm5427, %v5302, %v5304
      %v5442 = vsel %vm5427, %v5304, %v5306
      %v5443 = vsel %vm5427, %v5308, %v5310
      %v5444 = vsel %vm5427, %v5310, %v5312
      %v5445 = vsel %vm5427, %v5312, %v5314
      %v5446 = vsel %vm5427, %v5316, %v5318
      %v5447 = vsel %vm5427, %v5318, %v5320
      %v5448 = vsel %vm5427, %v5320, %v5322
      %v5449 = vsel %vm5427, %v5324, %v5326
      %v5450 = vsel %vm5427, %v5326, %v5328
      %v5451 = vsel %vm5427, %v5328, %v5330
      %v5452 = vsel %vm5427, %v5332, %v5334
      %v5453 = vsel %vm5427, %v5334, %v5336
      %v5454 = vsel %vm5427, %v5336, %v5338
      %v5455 = vsel %vm5427, %v5340, %v5342
      %v5456 = vsel %vm5427, %v5342, %v5344
      %v5457 = vsel %vm5427, %v5344, %v5346
      %v5458 = vsel %vm5427, %v5348, %v5350
      %v5459 = vsel %vm5427, %v5350, %v5352
      %v5460 = vsel %vm5427, %v5352, %v5354
      %v5461 = vsel %vm5427, %v5356, %v5358
      %v5462 = vsel %vm5427, %v5358, %v5360
      %v5463 = vsel %vm5427, %v5360, %v5362
      %v5464 = vsel %vm5427, %v5364, %v5366
      %v5465 = vsel %vm5427, %v5366, %v5368
      %v5466 = vsel %vm5427, %v5368, %v5370
      %v5467 = vsel %vm5427, %v5372, %v5374
      %v5468 = vsel %vm5427, %v5374, %v5376
      %v5469 = vsel %vm5427, %v5376, %v5378
      %v5470 = vsel %vm5427, %v5380, %v5382
      %v5471 = vsel %vm5427, %v5382, %v5384
      %v5472 = vsel %vm5427, %v5384, %v5386
      %v5473 = vsel %vm5427, %v5388, %v5390
      %v5474 = vsel %vm5427, %v5390, %v5392
      %v5475 = vsel %vm5427, %v5392, %v5394
      %v5476 = vsel %vm5427, %v5396, %v5398
      %v5477 = vsel %vm5427, %v5398, %v5400
      %v5478 = vsel %vm5427, %v5400, %v5402
      %v5479 = vsel %vm5427, %v5404, %v5406
      %v5480 = vsel %vm5427, %v5406, %v5408
      %v5481 = vsel %vm5427, %v5408, %v5410
      %v5482 = vsel %vm5427, %v5412, %v5414
      %v5483 = vsel %vm5427, %v5414, %v5416
      %v5484 = vsel %vm5427, %v5416, %v5418
      %v5485 = vsel %vm5427, %v5420, %v5422
      %v5486 = vsel %vm5427, %v5422, %v5424
      %v5487 = vsel %vm5427, %v5424, %v5426
      %vm5548 = vcmask 261120
      %v5549 = vsel %vm5548, %v5265, 0
      %5551 = vmatpush.msra.mxu0 %v5473
      %5552 = vmatpush.msra.mxu0 %v5470
      %5553 = vmatpush.msra.mxu0 %v5467
      %5554 = vmatpush.msra.mxu0 %v5464
      %5555 = vmatpush.msra.mxu0 %v5461
      %5556 = vmatpush.msra.mxu0 %v5458
      %5557 = vmatpush.msra.mxu0 %v5455
      %5558 = vmatpush.msra.mxu0 %v5452
      %5559 = vmatpush.msra.mxu0 %v5449
      %5560 = vmatpush.msra.mxu0 %v5446
      %5561 = vmatpush.msra.mxu0 %v5443
      %5562 = vmatpush.msra.mxu0 %v5440
      %5563 = vmatpush.msra.mxu0 %v5437
      %5564 = vmatpush.msra.mxu0 %v5434
      %5565 = vmatpush.msra.mxu0 %v5431
      %5566 = vmatpush.msra.mxu0 %v5428
      %5567 = vmatmul.f32.gmra.mxu0 %v5264
      %v5568 = vpop.f32.mrf.mxu0
      %v5569 = vadd.f32 0.0, %v5568
      %5570 = vdwg.mxu0
      %5571 = vmatpush.msra.mxu0 0.0
      %5572 = vmatpush.msra.mxu0 0.0
      %5573 = vmatpush.msra.mxu0 0.0
      %5574 = vmatpush.msra.mxu0 0.0
      %5575 = vmatpush.msra.mxu0 0.0
      %5576 = vmatpush.msra.mxu0 0.0
      %5577 = vmatpush.msra.mxu0 0.0
      %5578 = vmatpush.msra.mxu0 0.0
      %5579 = vmatpush.msra.mxu0 0.0
      %5580 = vmatpush.msra.mxu0 0.0
      %5581 = vmatpush.msra.mxu0 0.0
      %5582 = vmatpush.msra.mxu0 0.0
      %5583 = vmatpush.msra.mxu0 %v5485
      %5584 = vmatpush.msra.mxu0 %v5482
      %5585 = vmatpush.msra.mxu0 %v5479
      %5586 = vmatpush.msra.mxu0 %v5476
      %5587 = vmatmul.f32.gmra.mxu0 %v5549
      %v5588 = vpop.f32.mrf.mxu0
      %v5589 = vadd.f32 %v5569, %v5588
      %5590 = vdwg.mxu0
      %5591 = vmatpush.msra.mxu0 %v5474
      %5592 = vmatpush.msra.mxu0 %v5471
      %5593 = vmatpush.msra.mxu0 %v5468
      %5594 = vmatpush.msra.mxu0 %v5465
      %5595 = vmatpush.msra.mxu0 %v5462
      %5596 = vmatpush.msra.mxu0 %v5459
      %5597 = vmatpush.msra.mxu0 %v5456
      %5598 = vmatpush.msra.mxu0 %v5453
      %5599 = vmatpush.msra.mxu0 %v5450
      %5600 = vmatpush.msra.mxu0 %v5447
      %5601 = vmatpush.msra.mxu0 %v5444
      %5602 = vmatpush.msra.mxu0 %v5441
      %5603 = vmatpush.msra.mxu0 %v5438
      %5604 = vmatpush.msra.mxu0 %v5435
      %5605 = vmatpush.msra.mxu0 %v5432
      %5606 = vmatpush.msra.mxu0 %v5429
      %5607 = vmatmul.f32.gmra.mxu0 %v5264
      %v5608 = vpop.f32.mrf.mxu0
      %v5609 = vadd.f32 0.0, %v5608
      %5610 = vdwg.mxu0
      %5611 = vmatpush.msra.mxu0 0.0
      %5612 = vmatpush.msra.mxu0 0.0
      %5613 = vmatpush.msra.mxu0 0.0
      %5614 = vmatpush.msra.mxu0 0.0
      %5615 = vmatpush.msra.mxu0 0.0
      %5616 = vmatpush.msra.mxu0 0.0
      %5617 = vmatpush.msra.mxu0 0.0
      %5618 = vmatpush.msra.mxu0 0.0
      %5619 = vmatpush.msra.mxu0 0.0
      %5620 = vmatpush.msra.mxu0 0.0
      %5621 = vmatpush.msra.mxu0 0.0
      %5622 = vmatpush.msra.mxu0 0.0
      %5623 = vmatpush.msra.mxu0 %v5486
      %5624 = vmatpush.msra.mxu0 %v5483
      %5625 = vmatpush.msra.mxu0 %v5480
      %5626 = vmatpush.msra.mxu0 %v5477
      %5627 = vmatmul.f32.gmra.mxu0 %v5549
      %v5628 = vpop.f32.mrf.mxu0
      %v5629 = vadd.f32 %v5609, %v5628
      %5630 = vdwg.mxu0
      %5631 = vmatpush.msra.mxu0 %v5475
      %5632 = vmatpush.msra.mxu0 %v5472
      %5633 = vmatpush.msra.mxu0 %v5469
      %5634 = vmatpush.msra.mxu0 %v5466
      %5635 = vmatpush.msra.mxu0 %v5463
      %5636 = vmatpush.msra.mxu0 %v5460
      %5637 = vmatpush.msra.mxu0 %v5457
      %5638 = vmatpush.msra.mxu0 %v5454
      %5639 = vmatpush.msra.mxu0 %v5451
      %5640 = vmatpush.msra.mxu0 %v5448
      %5641 = vmatpush.msra.mxu0 %v5445
      %5642 = vmatpush.msra.mxu0 %v5442
      %5643 = vmatpush.msra.mxu0 %v5439
      %5644 = vmatpush.msra.mxu0 %v5436
      %5645 = vmatpush.msra.mxu0 %v5433
      %5646 = vmatpush.msra.mxu0 %v5430
      %5647 = vmatmul.f32.gmra.mxu0 %v5264
      %v5648 = vpop.f32.mrf.mxu0
      %v5649 = vadd.f32 0.0, %v5648
      %5650 = vdwg.mxu0
      %5651 = vmatpush.msra.mxu0 0.0
      %5652 = vmatpush.msra.mxu0 0.0
      %5653 = vmatpush.msra.mxu0 0.0
      %5654 = vmatpush.msra.mxu0 0.0
      %5655 = vmatpush.msra.mxu0 0.0
      %5656 = vmatpush.msra.mxu0 0.0
      %5657 = vmatpush.msra.mxu0 0.0
      %5658 = vmatpush.msra.mxu0 0.0
      %5659 = vmatpush.msra.mxu0 0.0
      %5660 = vmatpush.msra.mxu0 0.0
      %5661 = vmatpush.msra.mxu0 0.0
      %5662 = vmatpush.msra.mxu0 0.0
      %5663 = vmatpush.msra.mxu0 %v5487
      %5664 = vmatpush.msra.mxu0 %v5484
      %5665 = vmatpush.msra.mxu0 %v5481
      %5666 = vmatpush.msra.mxu0 %v5478
      %5667 = vmatmul.f32.gmra.mxu0 %v5549
      %v5668 = vpop.f32.mrf.mxu0
      %v5669 = vadd.f32 %v5649, %v5668
      %5670 = vdwg.mxu0
      %5672 = vst [vmem:[#allocation1] ss:$2 sm:$0xff] %v5259
      %v5673 = vld.sshfl [vmem:[#allocation1] sm:$0xff pattern:$0x75316420]
      %v5674 = vld.sshfl [vmem:[#allocation1 + $0x8] sm:$0xff pattern:$0x75316420]
      %5676 = vrot.lane.b32.xlu0 %v5051, 50
      %v5677 = vpop.permute.xlu0 %5676
      %5678 = vrot.lane.b32.xlu0 %v5052, 50
      %v5679 = vpop.permute.xlu0 %5678
      %5680 = vrot.lane.b32.xlu0 %v5053, 50
      %v5681 = vpop.permute.xlu0 %5680
      %5682 = vrot.lane.b32.xlu0 %v5054, 50
      %v5683 = vpop.permute.xlu0 %5682
      %5684 = vrot.lane.b32.xlu0 %v5055, 50
      %v5685 = vpop.permute.xlu0 %5684
      %5686 = vrot.lane.b32.xlu0 %v5056, 50
      %v5687 = vpop.permute.xlu0 %5686
      %5688 = vrot.lane.b32.xlu0 %v5057, 50
      %v5689 = vpop.permute.xlu0 %5688
      %5690 = vrot.lane.b32.xlu0 %v5058, 50
      %v5691 = vpop.permute.xlu0 %5690
      %5692 = vrot.lane.b32.xlu0 %v5059, 50
      %v5693 = vpop.permute.xlu0 %5692
      %5694 = vrot.lane.b32.xlu0 %v5060, 50
      %v5695 = vpop.permute.xlu0 %5694
      %5696 = vrot.lane.b32.xlu0 %v5061, 50
      %v5697 = vpop.permute.xlu0 %5696
      %5698 = vrot.lane.b32.xlu0 %v5062, 50
      %v5699 = vpop.permute.xlu0 %5698
      %5700 = vrot.lane.b32.xlu0 %v5063, 50
      %v5701 = vpop.permute.xlu0 %5700
      %5702 = vrot.lane.b32.xlu0 %v5064, 50
      %v5703 = vpop.permute.xlu0 %5702
      %5704 = vrot.lane.b32.xlu0 %v5065, 50
      %v5705 = vpop.permute.xlu0 %5704
      %5706 = vrot.lane.b32.xlu0 %v5066, 50
      %v5707 = vpop.permute.xlu0 %5706
      %5708 = vrot.lane.b32.xlu0 %v5115, 50
      %v5709 = vpop.permute.xlu0 %5708
      %5710 = vrot.lane.b32.xlu0 %v5116, 50
      %v5711 = vpop.permute.xlu0 %5710
      %5712 = vrot.lane.b32.xlu0 %v5117, 50
      %v5713 = vpop.permute.xlu0 %5712
      %5714 = vrot.lane.b32.xlu0 %v5090, 50
      %v5715 = vpop.permute.xlu0 %5714
      %5716 = vrot.lane.b32.xlu0 %v5118, 50
      %v5717 = vpop.permute.xlu0 %5716
      %5718 = vrot.lane.b32.xlu0 %v5119, 50
      %v5719 = vpop.permute.xlu0 %5718
      %5720 = vrot.lane.b32.xlu0 %v5120, 50
      %v5721 = vpop.permute.xlu0 %5720
      %5722 = vrot.lane.b32.xlu0 %v5098, 50
      %v5723 = vpop.permute.xlu0 %5722
      %5724 = vrot.lane.b32.xlu0 %v5121, 50
      %v5725 = vpop.permute.xlu0 %5724
      %5726 = vrot.lane.b32.xlu0 %v5122, 50
      %v5727 = vpop.permute.xlu0 %5726
      %5728 = vrot.lane.b32.xlu0 %v5123, 50
      %v5729 = vpop.permute.xlu0 %5728
      %5730 = vrot.lane.b32.xlu0 %v5106, 50
      %v5731 = vpop.permute.xlu0 %5730
      %5732 = vrot.lane.b32.xlu0 %v5124, 50
      %v5733 = vpop.permute.xlu0 %5732
      %5734 = vrot.lane.b32.xlu0 %v5125, 50
      %v5735 = vpop.permute.xlu0 %5734
      %5736 = vrot.lane.b32.xlu0 %v5126, 50
      %v5737 = vpop.permute.xlu0 %5736
      %5738 = vrot.lane.b32.xlu0 %v5114, 50
      %v5739 = vpop.permute.xlu0 %5738
      %5740 = vrot.lane.b32.xlu0 %v5159, 50
      %v5741 = vpop.permute.xlu0 %5740
      %5742 = vrot.lane.b32.xlu0 %v5160, 50
      %v5743 = vpop.permute.xlu0 %5742
      %5744 = vrot.lane.b32.xlu0 %v5161, 50
      %v5745 = vpop.permute.xlu0 %5744
      %5746 = vrot.lane.b32.xlu0 %v5134, 50
      %v5747 = vpop.permute.xlu0 %5746
      %5748 = vrot.lane.b32.xlu0 %v5162, 50
      %v5749 = vpop.permute.xlu0 %5748
      %5750 = vrot.lane.b32.xlu0 %v5163, 50
      %v5751 = vpop.permute.xlu0 %5750
      %5752 = vrot.lane.b32.xlu0 %v5164, 50
      %v5753 = vpop.permute.xlu0 %5752
      %5754 = vrot.lane.b32.xlu0 %v5142, 50
      %v5755 = vpop.permute.xlu0 %5754
      %5756 = vrot.lane.b32.xlu0 %v5165, 50
      %v5757 = vpop.permute.xlu0 %5756
      %5758 = vrot.lane.b32.xlu0 %v5166, 50
      %v5759 = vpop.permute.xlu0 %5758
      %5760 = vrot.lane.b32.xlu0 %v5167, 50
      %v5761 = vpop.permute.xlu0 %5760
      %5762 = vrot.lane.b32.xlu0 %v5150, 50
      %v5763 = vpop.permute.xlu0 %5762
      %5764 = vrot.lane.b32.xlu0 %v5168, 50
      %v5765 = vpop.permute.xlu0 %5764
      %5766 = vrot.lane.b32.xlu0 %v5169, 50
      %v5767 = vpop.permute.xlu0 %5766
      %5768 = vrot.lane.b32.xlu0 %v5170, 50
      %v5769 = vpop.permute.xlu0 %5768
      %5770 = vrot.lane.b32.xlu0 %v5158, 50
      %v5771 = vpop.permute.xlu0 %5770
      %5772 = vrot.lane.b32.xlu0 %v5203, 50
      %v5773 = vpop.permute.xlu0 %5772
      %5774 = vrot.lane.b32.xlu0 %v5204, 50
      %v5775 = vpop.permute.xlu0 %5774
      %5776 = vrot.lane.b32.xlu0 %v5205, 50
      %v5777 = vpop.permute.xlu0 %5776
      %5778 = vrot.lane.b32.xlu0 %v5178, 50
      %v5779 = vpop.permute.xlu0 %5778
      %5780 = vrot.lane.b32.xlu0 %v5206, 50
      %v5781 = vpop.permute.xlu0 %5780
      %5782 = vrot.lane.b32.xlu0 %v5207, 50
      %v5783 = vpop.permute.xlu0 %5782
      %5784 = vrot.lane.b32.xlu0 %v5208, 50
      %v5785 = vpop.permute.xlu0 %5784
      %5786 = vrot.lane.b32.xlu0 %v5186, 50
      %v5787 = vpop.permute.xlu0 %5786
      %5788 = vrot.lane.b32.xlu0 %v5209, 50
      %v5789 = vpop.permute.xlu0 %5788
      %5790 = vrot.lane.b32.xlu0 %v5210, 50
      %v5791 = vpop.permute.xlu0 %5790
      %5792 = vrot.lane.b32.xlu0 %v5211, 50
      %v5793 = vpop.permute.xlu0 %5792
      %5794 = vrot.lane.b32.xlu0 %v5194, 50
      %v5795 = vpop.permute.xlu0 %5794
      %5796 = vrot.lane.b32.xlu0 %v5212, 50
      %v5797 = vpop.permute.xlu0 %5796
      %5798 = vrot.lane.b32.xlu0 %v5213, 50
      %v5799 = vpop.permute.xlu0 %5798
      %5800 = vrot.lane.b32.xlu0 %v5214, 50
      %v5801 = vpop.permute.xlu0 %5800
      %5802 = vrot.lane.b32.xlu0 %v5202, 50
      %v5803 = vpop.permute.xlu0 %5802
      %5804 = vrot.lane.b32.xlu0 %v5247, 50
      %v5805 = vpop.permute.xlu0 %5804
      %5806 = vrot.lane.b32.xlu0 %v5248, 50
      %v5807 = vpop.permute.xlu0 %5806
      %5808 = vrot.lane.b32.xlu0 %v5249, 50
      %v5809 = vpop.permute.xlu0 %5808
      %5810 = vrot.lane.b32.xlu0 %v5222, 50
      %v5811 = vpop.permute.xlu0 %5810
      %5812 = vrot.lane.b32.xlu0 %v5250, 50
      %v5813 = vpop.permute.xlu0 %5812
      %5814 = vrot.lane.b32.xlu0 %v5251, 50
      %v5815 = vpop.permute.xlu0 %5814
      %5816 = vrot.lane.b32.xlu0 %v5252, 50
      %v5817 = vpop.permute.xlu0 %5816
      %5818 = vrot.lane.b32.xlu0 %v5230, 50
      %v5819 = vpop.permute.xlu0 %5818
      %5820 = vrot.lane.b32.xlu0 %v5253, 50
      %v5821 = vpop.permute.xlu0 %5820
      %5822 = vrot.lane.b32.xlu0 %v5254, 50
      %v5823 = vpop.permute.xlu0 %5822
      %5824 = vrot.lane.b32.xlu0 %v5255, 50
      %v5825 = vpop.permute.xlu0 %5824
      %5826 = vrot.lane.b32.xlu0 %v5238, 50
      %v5827 = vpop.permute.xlu0 %5826
      %5828 = vrot.lane.b32.xlu0 %v5256, 50
      %v5829 = vpop.permute.xlu0 %5828
      %5830 = vrot.lane.b32.xlu0 %v5257, 50
      %v5831 = vpop.permute.xlu0 %5830
      %5832 = vrot.lane.b32.xlu0 %v5258, 50
      %v5833 = vpop.permute.xlu0 %5832
      %5834 = vrot.lane.b32.xlu0 %v5246, 50
      %v5835 = vpop.permute.xlu0 %5834
      %vm5836 = vcmask 408576
      %v5837 = vsel %vm5836, %v5677, %v5679
      %v5838 = vsel %vm5836, %v5679, %v5681
      %v5839 = vsel %vm5836, %v5681, %v5683
      %v5840 = vsel %vm5836, %v5685, %v5687
      %v5841 = vsel %vm5836, %v5687, %v5689
      %v5842 = vsel %vm5836, %v5689, %v5691
      %v5843 = vsel %vm5836, %v5693, %v5695
      %v5844 = vsel %vm5836, %v5695, %v5697
      %v5845 = vsel %vm5836, %v5697, %v5699
      %v5846 = vsel %vm5836, %v5701, %v5703
      %v5847 = vsel %vm5836, %v5703, %v5705
      %v5848 = vsel %vm5836, %v5705, %v5707
      %v5849 = vsel %vm5836, %v5709, %v5711
      %v5850 = vsel %vm5836, %v5711, %v5713
      %v5851 = vsel %vm5836, %v5713, %v5715
      %v5852 = vsel %vm5836, %v5717, %v5719
      %v5853 = vsel %vm5836, %v5719, %v5721
      %v5854 = vsel %vm5836, %v5721, %v5723
      %v5855 = vsel %vm5836, %v5725, %v5727
      %v5856 = vsel %vm5836, %v5727, %v5729
      %v5857 = vsel %vm5836, %v5729, %v5731
      %v5858 = vsel %vm5836, %v5733, %v5735
      %v5859 = vsel %vm5836, %v5735, %v5737
      %v5860 = vsel %vm5836, %v5737, %v5739
      %v5861 = vsel %vm5836, %v5741, %v5743
      %v5862 = vsel %vm5836, %v5743, %v5745
      %v5863 = vsel %vm5836, %v5745, %v5747
      %v5864 = vsel %vm5836, %v5749, %v5751
      %v5865 = vsel %vm5836, %v5751, %v5753
      %v5866 = vsel %vm5836, %v5753, %v5755
      %v5867 = vsel %vm5836, %v5757, %v5759
      %v5868 = vsel %vm5836, %v5759, %v5761
      %v5869 = vsel %vm5836, %v5761, %v5763
      %v5870 = vsel %vm5836, %v5765, %v5767
      %v5871 = vsel %vm5836, %v5767, %v5769
      %v5872 = vsel %vm5836, %v5769, %v5771
      %v5873 = vsel %vm5836, %v5773, %v5775
      %v5874 = vsel %vm5836, %v5775, %v5777
      %v5875 = vsel %vm5836, %v5777, %v5779
      %v5876 = vsel %vm5836, %v5781, %v5783
      %v5877 = vsel %vm5836, %v5783, %v5785
      %v5878 = vsel %vm5836, %v5785, %v5787
      %v5879 = vsel %vm5836, %v5789, %v5791
      %v5880 = vsel %vm5836, %v5791, %v5793
      %v5881 = vsel %vm5836, %v5793, %v5795
      %v5882 = vsel %vm5836, %v5797, %v5799
      %v5883 = vsel %vm5836, %v5799, %v5801
      %v5884 = vsel %vm5836, %v5801, %v5803
      %v5885 = vsel %vm5836, %v5805, %v5807
      %v5886 = vsel %vm5836, %v5807, %v5809
      %v5887 = vsel %vm5836, %v5809, %v5811
      %v5888 = vsel %vm5836, %v5813, %v5815
      %v5889 = vsel %vm5836, %v5815, %v5817
      %v5890 = vsel %vm5836, %v5817, %v5819
      %v5891 = vsel %vm5836, %v5821, %v5823
      %v5892 = vsel %vm5836, %v5823, %v5825
      %v5893 = vsel %vm5836, %v5825, %v5827
      %v5894 = vsel %vm5836, %v5829, %v5831
      %v5895 = vsel %vm5836, %v5831, %v5833
      %v5896 = vsel %vm5836, %v5833, %v5835
      %v5957 = vsel %vm5548, %v5674, 0
      %5959 = vmatpush.msra.mxu0 %v5882
      %5960 = vmatpush.msra.mxu0 %v5879
      %5961 = vmatpush.msra.mxu0 %v5876
      %5962 = vmatpush.msra.mxu0 %v5873
      %5963 = vmatpush.msra.mxu0 %v5870
      %5964 = vmatpush.msra.mxu0 %v5867
      %5965 = vmatpush.msra.mxu0 %v5864
      %5966 = vmatpush.msra.mxu0 %v5861
      %5967 = vmatpush.msra.mxu0 %v5858
      %5968 = vmatpush.msra.mxu0 %v5855
      %5969 = vmatpush.msra.mxu0 %v5852
      %5970 = vmatpush.msra.mxu0 %v5849
      %5971 = vmatpush.msra.mxu0 %v5846
      %5972 = vmatpush.msra.mxu0 %v5843
      %5973 = vmatpush.msra.mxu0 %v5840
      %5974 = vmatpush.msra.mxu0 %v5837
      %5975 = vmatmul.f32.gmra.mxu0 %v5673
      %v5976 = vpop.f32.mrf.mxu0
      %v5977 = vadd.f32 %v5589, %v5976
      %5978 = vdwg.mxu0
      %5979 = vmatpush.msra.mxu0 0.0
      %5980 = vmatpush.msra.mxu0 0.0
      %5981 = vmatpush.msra.mxu0 0.0
      %5982 = vmatpush.msra.mxu0 0.0
      %5983 = vmatpush.msra.mxu0 0.0
      %5984 = vmatpush.msra.mxu0 0.0
      %5985 = vmatpush.msra.mxu0 0.0
      %5986 = vmatpush.msra.mxu0 0.0
      %5987 = vmatpush.msra.mxu0 0.0
      %5988 = vmatpush.msra.mxu0 0.0
      %5989 = vmatpush.msra.mxu0 0.0
      %5990 = vmatpush.msra.mxu0 0.0
      %5991 = vmatpush.msra.mxu0 %v5894
      %5992 = vmatpush.msra.mxu0 %v5891
      %5993 = vmatpush.msra.mxu0 %v5888
      %5994 = vmatpush.msra.mxu0 %v5885
      %5995 = vmatmul.f32.gmra.mxu0 %v5957
      %v5996 = vpop.f32.mrf.mxu0
      %v5997 = vadd.f32 %v5977, %v5996
      %5998 = vdwg.mxu0
      %5999 = vmatpush.msra.mxu0 %v5883
      %6000 = vmatpush.msra.mxu0 %v5880
      %6001 = vmatpush.msra.mxu0 %v5877
      %6002 = vmatpush.msra.mxu0 %v5874
      %6003 = vmatpush.msra.mxu0 %v5871
      %6004 = vmatpush.msra.mxu0 %v5868
      %6005 = vmatpush.msra.mxu0 %v5865
      %6006 = vmatpush.msra.mxu0 %v5862
      %6007 = vmatpush.msra.mxu0 %v5859
      %6008 = vmatpush.msra.mxu0 %v5856
      %6009 = vmatpush.msra.mxu0 %v5853
      %6010 = vmatpush.msra.mxu0 %v5850
      %6011 = vmatpush.msra.mxu0 %v5847
      %6012 = vmatpush.msra.mxu0 %v5844
      %6013 = vmatpush.msra.mxu0 %v5841
      %6014 = vmatpush.msra.mxu0 %v5838
      %6015 = vmatmul.f32.gmra.mxu0 %v5673
      %v6016 = vpop.f32.mrf.mxu0
      %v6017 = vadd.f32 %v5629, %v6016
      %6018 = vdwg.mxu0
      %6019 = vmatpush.msra.mxu0 0.0
      %6020 = vmatpush.msra.mxu0 0.0
      %6021 = vmatpush.msra.mxu0 0.0
      %6022 = vmatpush.msra.mxu0 0.0
      %6023 = vmatpush.msra.mxu0 0.0
      %6024 = vmatpush.msra.mxu0 0.0
      %6025 = vmatpush.msra.mxu0 0.0
      %6026 = vmatpush.msra.mxu0 0.0
      %6027 = vmatpush.msra.mxu0 0.0
      %6028 = vmatpush.msra.mxu0 0.0
      %6029 = vmatpush.msra.mxu0 0.0
      %6030 = vmatpush.msra.mxu0 0.0
      %6031 = vmatpush.msra.mxu0 %v5895
      %6032 = vmatpush.msra.mxu0 %v5892
      %6033 = vmatpush.msra.mxu0 %v5889
      %6034 = vmatpush.msra.mxu0 %v5886
      %6035 = vmatmul.f32.gmra.mxu0 %v5957
      %v6036 = vpop.f32.mrf.mxu0
      %v6037 = vadd.f32 %v6017, %v6036
      %6038 = vdwg.mxu0
      %6039 = vmatpush.msra.mxu0 %v5884
      %6040 = vmatpush.msra.mxu0 %v5881
      %6041 = vmatpush.msra.mxu0 %v5878
      %6042 = vmatpush.msra.mxu0 %v5875
      %6043 = vmatpush.msra.mxu0 %v5872
      %6044 = vmatpush.msra.mxu0 %v5869
      %6045 = vmatpush.msra.mxu0 %v5866
      %6046 = vmatpush.msra.mxu0 %v5863
      %6047 = vmatpush.msra.mxu0 %v5860
      %6048 = vmatpush.msra.mxu0 %v5857
      %6049 = vmatpush.msra.mxu0 %v5854
      %6050 = vmatpush.msra.mxu0 %v5851
      %6051 = vmatpush.msra.mxu0 %v5848
      %6052 = vmatpush.msra.mxu0 %v5845
      %6053 = vmatpush.msra.mxu0 %v5842
      %6054 = vmatpush.msra.mxu0 %v5839
      %6055 = vmatmul.f32.gmra.mxu0 %v5673
      %v6056 = vpop.f32.mrf.mxu0
      %v6057 = vadd.f32 %v5669, %v6056
      %6058 = vdwg.mxu0
      %6059 = vmatpush.msra.mxu0 0.0
      %6060 = vmatpush.msra.mxu0 0.0
      %6061 = vmatpush.msra.mxu0 0.0
      %6062 = vmatpush.msra.mxu0 0.0
      %6063 = vmatpush.msra.mxu0 0.0
      %6064 = vmatpush.msra.mxu0 0.0
      %6065 = vmatpush.msra.mxu0 0.0
      %6066 = vmatpush.msra.mxu0 0.0
      %6067 = vmatpush.msra.mxu0 0.0
      %6068 = vmatpush.msra.mxu0 0.0
      %6069 = vmatpush.msra.mxu0 0.0
      %6070 = vmatpush.msra.mxu0 0.0
      %6071 = vmatpush.msra.mxu0 %v5896
      %6072 = vmatpush.msra.mxu0 %v5893
      %6073 = vmatpush.msra.mxu0 %v5890
      %6074 = vmatpush.msra.mxu0 %v5887
      %6075 = vmatmul.f32.gmra.mxu0 %v5957
      %v6076 = vpop.f32.mrf.mxu0
      %v6077 = vadd.f32 %v6057, %v6076
      %6078 = vdwg.mxu0
      %v6079 = vld [vmem:[#allocation3] sm:$0xff]
      %v6080 = vld [vmem:[#allocation3 + $0x8] sm:$0xff]
      %v6081 = vld [vmem:[#allocation3 + $0x10] sm:$0xff]
      %v6082 = vld [vmem:[#allocation3 + $0x18] sm:$0xff]
      %v6083 = vld [vmem:[#allocation3 + $0x28] sm:$0xff]
      %v6084 = vld [vmem:[#allocation3 + $0x30] sm:$0xff]
      %v6085 = vld [vmem:[#allocation3 + $0x38] sm:$0xff]
      %v6086 = vld [vmem:[#allocation3 + $0x40] sm:$0xff]
      %v6087 = vld [vmem:[#allocation3 + $0x50] sm:$0xff]
      %v6088 = vld [vmem:[#allocation3 + $0x58] sm:$0xff]
      %v6089 = vld [vmem:[#allocation3 + $0x60] sm:$0xff]
      %v6090 = vld [vmem:[#allocation3 + $0x68] sm:$0xff]
      %v6091 = vld [vmem:[#allocation3 + $0x78] sm:$0xff]
      %v6092 = vld [vmem:[#allocation3 + $0x80] sm:$0xff]
      %v6093 = vld [vmem:[#allocation3 + $0x88] sm:$0xff]
      %v6094 = vld [vmem:[#allocation3 + $0x90] sm:$0xff]
      %v6095 = vld [vmem:[#allocation3 + $0x8] sm:$0xff]
      %v6096 = vld [vmem:[#allocation3 + $0x10] sm:$0xff]
      %v6097 = vld [vmem:[#allocation3 + $0x18] sm:$0xff]
      %v6098 = vld [vmem:[#allocation3 + $0x20] sm:$0xff]
      %v6099 = vld [vmem:[#allocation3 + $0x30] sm:$0xff]
      %v6100 = vld [vmem:[#allocation3 + $0x38] sm:$0xff]
      %v6101 = vld [vmem:[#allocation3 + $0x40] sm:$0xff]
      %v6102 = vld [vmem:[#allocation3 + $0x48] sm:$0xff]
      %v6103 = vld [vmem:[#allocation3 + $0x58] sm:$0xff]
      %v6104 = vld [vmem:[#allocation3 + $0x60] sm:$0xff]
      %v6105 = vld [vmem:[#allocation3 + $0x68] sm:$0xff]
      %v6106 = vld [vmem:[#allocation3 + $0x70] sm:$0xff]
      %v6107 = vld [vmem:[#allocation3 + $0x80] sm:$0xff]
      %v6108 = vld [vmem:[#allocation3 + $0x88] sm:$0xff]
      %v6109 = vld [vmem:[#allocation3 + $0x90] sm:$0xff]
      %v6110 = vld [vmem:[#allocation3 + $0x98] sm:$0xff]
      %6127 = vrot.lane.b32.xlu0 %v6079, 127
      %v6128 = vpop.permute.xlu0 %6127
      %6129 = vrot.lane.b32.xlu0 %v6080, 127
      %v6130 = vpop.permute.xlu0 %6129
      %6131 = vrot.lane.b32.xlu0 %v6081, 127
      %v6132 = vpop.permute.xlu0 %6131
      %6133 = vrot.lane.b32.xlu0 %v6082, 127
      %v6134 = vpop.permute.xlu0 %6133
      %6135 = vrot.lane.b32.xlu0 %v6083, 127
      %v6136 = vpop.permute.xlu0 %6135
      %6137 = vrot.lane.b32.xlu0 %v6084, 127
      %v6138 = vpop.permute.xlu0 %6137
      %6139 = vrot.lane.b32.xlu0 %v6085, 127
      %v6140 = vpop.permute.xlu0 %6139
      %6141 = vrot.lane.b32.xlu0 %v6086, 127
      %v6142 = vpop.permute.xlu0 %6141
      %6143 = vrot.lane.b32.xlu0 %v6087, 127
      %v6144 = vpop.permute.xlu0 %6143
      %6145 = vrot.lane.b32.xlu0 %v6088, 127
      %v6146 = vpop.permute.xlu0 %6145
      %6147 = vrot.lane.b32.xlu0 %v6089, 127
      %v6148 = vpop.permute.xlu0 %6147
      %6149 = vrot.lane.b32.xlu0 %v6090, 127
      %v6150 = vpop.permute.xlu0 %6149
      %6151 = vrot.lane.b32.xlu0 %v6091, 127
      %v6152 = vpop.permute.xlu0 %6151
      %6153 = vrot.lane.b32.xlu0 %v6092, 127
      %v6154 = vpop.permute.xlu0 %6153
      %6155 = vrot.lane.b32.xlu0 %v6093, 127
      %v6156 = vpop.permute.xlu0 %6155
      %6157 = vrot.lane.b32.xlu0 %v6094, 127
      %v6158 = vpop.permute.xlu0 %6157
      %v6159 = vsel %vm735, %v6128, %v6130
      %v6160 = vsel %vm735, %v6130, %v6132
      %v6161 = vsel %vm735, %v6132, %v6134
      %v6162 = vsel %vm735, %v6136, %v6138
      %v6163 = vsel %vm735, %v6138, %v6140
      %v6164 = vsel %vm735, %v6140, %v6142
      %v6165 = vsel %vm735, %v6144, %v6146
      %v6166 = vsel %vm735, %v6146, %v6148
      %v6167 = vsel %vm735, %v6148, %v6150
      %v6168 = vsel %vm735, %v6152, %v6154
      %v6169 = vsel %vm735, %v6154, %v6156
      %v6170 = vsel %vm735, %v6156, %v6158
      %6171 = vrot.lane.b32.xlu0 %v6080, 126
      %v6172 = vpop.permute.xlu0 %6171
      %6173 = vrot.lane.b32.xlu0 %v6081, 126
      %v6174 = vpop.permute.xlu0 %6173
      %6175 = vrot.lane.b32.xlu0 %v6082, 126
      %v6176 = vpop.permute.xlu0 %6175
      %6177 = vrot.lane.b32.xlu0 %v6084, 126
      %v6178 = vpop.permute.xlu0 %6177
      %6179 = vrot.lane.b32.xlu0 %v6085, 126
      %v6180 = vpop.permute.xlu0 %6179
      %6181 = vrot.lane.b32.xlu0 %v6086, 126
      %v6182 = vpop.permute.xlu0 %6181
      %6183 = vrot.lane.b32.xlu0 %v6088, 126
      %v6184 = vpop.permute.xlu0 %6183
      %6185 = vrot.lane.b32.xlu0 %v6089, 126
      %v6186 = vpop.permute.xlu0 %6185
      %6187 = vrot.lane.b32.xlu0 %v6090, 126
      %v6188 = vpop.permute.xlu0 %6187
      %6189 = vrot.lane.b32.xlu0 %v6092, 126
      %v6190 = vpop.permute.xlu0 %6189
      %6191 = vrot.lane.b32.xlu0 %v6093, 126
      %v6192 = vpop.permute.xlu0 %6191
      %6193 = vrot.lane.b32.xlu0 %v6094, 126
      %v6194 = vpop.permute.xlu0 %6193
      %v6195 = vsel %vm747, %v6172, %v6174
      %v6196 = vsel %vm747, %v6174, %v6176
      %v6197 = vsel %vm747, %v6178, %v6180
      %v6198 = vsel %vm747, %v6180, %v6182
      %v6199 = vsel %vm747, %v6184, %v6186
      %v6200 = vsel %vm747, %v6186, %v6188
      %v6201 = vsel %vm747, %v6190, %v6192
      %v6202 = vsel %vm747, %v6192, %v6194
      %6219 = vrot.lane.b32.xlu0 %v6095, 125
      %v6220 = vpop.permute.xlu0 %6219
      %6221 = vrot.lane.b32.xlu0 %v6096, 125
      %v6222 = vpop.permute.xlu0 %6221
      %6223 = vrot.lane.b32.xlu0 %v6097, 125
      %v6224 = vpop.permute.xlu0 %6223
      %6225 = vrot.lane.b32.xlu0 %v6098, 125
      %v6226 = vpop.permute.xlu0 %6225
      %6227 = vrot.lane.b32.xlu0 %v6099, 125
      %v6228 = vpop.permute.xlu0 %6227
      %6229 = vrot.lane.b32.xlu0 %v6100, 125
      %v6230 = vpop.permute.xlu0 %6229
      %6231 = vrot.lane.b32.xlu0 %v6101, 125
      %v6232 = vpop.permute.xlu0 %6231
      %6233 = vrot.lane.b32.xlu0 %v6102, 125
      %v6234 = vpop.permute.xlu0 %6233
      %6235 = vrot.lane.b32.xlu0 %v6103, 125
      %v6236 = vpop.permute.xlu0 %6235
      %6237 = vrot.lane.b32.xlu0 %v6104, 125
      %v6238 = vpop.permute.xlu0 %6237
      %6239 = vrot.lane.b32.xlu0 %v6105, 125
      %v6240 = vpop.permute.xlu0 %6239
      %6241 = vrot.lane.b32.xlu0 %v6106, 125
      %v6242 = vpop.permute.xlu0 %6241
      %6243 = vrot.lane.b32.xlu0 %v6107, 125
      %v6244 = vpop.permute.xlu0 %6243
      %6245 = vrot.lane.b32.xlu0 %v6108, 125
      %v6246 = vpop.permute.xlu0 %6245
      %6247 = vrot.lane.b32.xlu0 %v6109, 125
      %v6248 = vpop.permute.xlu0 %6247
      %6249 = vrot.lane.b32.xlu0 %v6110, 125
      %v6250 = vpop.permute.xlu0 %6249
      %v6251 = vsel %vm759, %v6220, %v6222
      %v6252 = vsel %vm759, %v6222, %v6224
      %v6253 = vsel %vm759, %v6224, %v6226
      %v6254 = vsel %vm759, %v6228, %v6230
      %v6255 = vsel %vm759, %v6230, %v6232
      %v6256 = vsel %vm759, %v6232, %v6234
      %v6257 = vsel %vm759, %v6236, %v6238
      %v6258 = vsel %vm759, %v6238, %v6240
      %v6259 = vsel %vm759, %v6240, %v6242
      %v6260 = vsel %vm759, %v6244, %v6246
      %v6261 = vsel %vm759, %v6246, %v6248
      %v6262 = vsel %vm759, %v6248, %v6250
      %6263 = vrot.lane.b32.xlu0 %v6095, 124
      %v6264 = vpop.permute.xlu0 %6263
      %6265 = vrot.lane.b32.xlu0 %v6096, 124
      %v6266 = vpop.permute.xlu0 %6265
      %6267 = vrot.lane.b32.xlu0 %v6097, 124
      %v6268 = vpop.permute.xlu0 %6267
      %6269 = vrot.lane.b32.xlu0 %v6098, 124
      %v6270 = vpop.permute.xlu0 %6269
      %6271 = vrot.lane.b32.xlu0 %v6099, 124
      %v6272 = vpop.permute.xlu0 %6271
      %6273 = vrot.lane.b32.xlu0 %v6100, 124
      %v6274 = vpop.permute.xlu0 %6273
      %6275 = vrot.lane.b32.xlu0 %v6101, 124
      %v6276 = vpop.permute.xlu0 %6275
      %6277 = vrot.lane.b32.xlu0 %v6102, 124
      %v6278 = vpop.permute.xlu0 %6277
      %6279 = vrot.lane.b32.xlu0 %v6103, 124
      %v6280 = vpop.permute.xlu0 %6279
      %6281 = vrot.lane.b32.xlu0 %v6104, 124
      %v6282 = vpop.permute.xlu0 %6281
      %6283 = vrot.lane.b32.xlu0 %v6105, 124
      %v6284 = vpop.permute.xlu0 %6283
      %6285 = vrot.lane.b32.xlu0 %v6106, 124
      %v6286 = vpop.permute.xlu0 %6285
      %6287 = vrot.lane.b32.xlu0 %v6107, 124
      %v6288 = vpop.permute.xlu0 %6287
      %6289 = vrot.lane.b32.xlu0 %v6108, 124
      %v6290 = vpop.permute.xlu0 %6289
      %6291 = vrot.lane.b32.xlu0 %v6109, 124
      %v6292 = vpop.permute.xlu0 %6291
      %6293 = vrot.lane.b32.xlu0 %v6110, 124
      %v6294 = vpop.permute.xlu0 %6293
      %v6295 = vsel %vm771, %v6264, %v6266
      %v6296 = vsel %vm771, %v6266, %v6268
      %v6297 = vsel %vm771, %v6268, %v6270
      %v6298 = vsel %vm771, %v6272, %v6274
      %v6299 = vsel %vm771, %v6274, %v6276
      %v6300 = vsel %vm771, %v6276, %v6278
      %v6301 = vsel %vm771, %v6280, %v6282
      %v6302 = vsel %vm771, %v6282, %v6284
      %v6303 = vsel %vm771, %v6284, %v6286
      %v6304 = vsel %vm771, %v6288, %v6290
      %v6305 = vsel %vm771, %v6290, %v6292
      %v6306 = vsel %vm771, %v6292, %v6294
      %s6307 = scalar_lea.vmem %s9, 16
      %v6308 = vld [vmem:[%s6307] sm:$0x77]
      %6310 = vst [vmem:[#allocation1] ss:$2 sm:$0xff] %v6308
      %v6311 = vld.sshfl [vmem:[#allocation1] sm:$0xff pattern:$0x75316420]
      %v6312 = vld.sshfl [vmem:[#allocation1 + $0x8] sm:$0xff pattern:$0x75316420]
      %6314 = vrot.lane.b32.xlu0 %v6079, 2
      %v6315 = vpop.permute.xlu0 %6314
      %6316 = vrot.lane.b32.xlu0 %v6080, 2
      %v6317 = vpop.permute.xlu0 %6316
      %6318 = vrot.lane.b32.xlu0 %v6081, 2
      %v6319 = vpop.permute.xlu0 %6318
      %6320 = vrot.lane.b32.xlu0 %v6082, 2
      %v6321 = vpop.permute.xlu0 %6320
      %6322 = vrot.lane.b32.xlu0 %v6083, 2
      %v6323 = vpop.permute.xlu0 %6322
      %6324 = vrot.lane.b32.xlu0 %v6084, 2
      %v6325 = vpop.permute.xlu0 %6324
      %6326 = vrot.lane.b32.xlu0 %v6085, 2
      %v6327 = vpop.permute.xlu0 %6326
      %6328 = vrot.lane.b32.xlu0 %v6086, 2
      %v6329 = vpop.permute.xlu0 %6328
      %6330 = vrot.lane.b32.xlu0 %v6087, 2
      %v6331 = vpop.permute.xlu0 %6330
      %6332 = vrot.lane.b32.xlu0 %v6088, 2
      %v6333 = vpop.permute.xlu0 %6332
      %6334 = vrot.lane.b32.xlu0 %v6089, 2
      %v6335 = vpop.permute.xlu0 %6334
      %6336 = vrot.lane.b32.xlu0 %v6090, 2
      %v6337 = vpop.permute.xlu0 %6336
      %6338 = vrot.lane.b32.xlu0 %v6091, 2
      %v6339 = vpop.permute.xlu0 %6338
      %6340 = vrot.lane.b32.xlu0 %v6092, 2
      %v6341 = vpop.permute.xlu0 %6340
      %6342 = vrot.lane.b32.xlu0 %v6093, 2
      %v6343 = vpop.permute.xlu0 %6342
      %6344 = vrot.lane.b32.xlu0 %v6094, 2
      %v6345 = vpop.permute.xlu0 %6344
      %6346 = vrot.lane.b32.xlu0 %v6159, 2
      %v6347 = vpop.permute.xlu0 %6346
      %6348 = vrot.lane.b32.xlu0 %v6160, 2
      %v6349 = vpop.permute.xlu0 %6348
      %6350 = vrot.lane.b32.xlu0 %v6161, 2
      %v6351 = vpop.permute.xlu0 %6350
      %6352 = vrot.lane.b32.xlu0 %v6134, 2
      %v6353 = vpop.permute.xlu0 %6352
      %6354 = vrot.lane.b32.xlu0 %v6162, 2
      %v6355 = vpop.permute.xlu0 %6354
      %6356 = vrot.lane.b32.xlu0 %v6163, 2
      %v6357 = vpop.permute.xlu0 %6356
      %6358 = vrot.lane.b32.xlu0 %v6164, 2
      %v6359 = vpop.permute.xlu0 %6358
      %6360 = vrot.lane.b32.xlu0 %v6142, 2
      %v6361 = vpop.permute.xlu0 %6360
      %6362 = vrot.lane.b32.xlu0 %v6165, 2
      %v6363 = vpop.permute.xlu0 %6362
      %6364 = vrot.lane.b32.xlu0 %v6166, 2
      %v6365 = vpop.permute.xlu0 %6364
      %6366 = vrot.lane.b32.xlu0 %v6167, 2
      %v6367 = vpop.permute.xlu0 %6366
      %6368 = vrot.lane.b32.xlu0 %v6150, 2
      %v6369 = vpop.permute.xlu0 %6368
      %6370 = vrot.lane.b32.xlu0 %v6168, 2
      %v6371 = vpop.permute.xlu0 %6370
      %6372 = vrot.lane.b32.xlu0 %v6169, 2
      %v6373 = vpop.permute.xlu0 %6372
      %6374 = vrot.lane.b32.xlu0 %v6170, 2
      %v6375 = vpop.permute.xlu0 %6374
      %6376 = vrot.lane.b32.xlu0 %v6158, 2
      %v6377 = vpop.permute.xlu0 %6376
      %6378 = vrot.lane.b32.xlu0 %v6172, 2
      %v6379 = vpop.permute.xlu0 %6378
      %6380 = vrot.lane.b32.xlu0 %v6195, 2
      %v6381 = vpop.permute.xlu0 %6380
      %6382 = vrot.lane.b32.xlu0 %v6196, 2
      %v6383 = vpop.permute.xlu0 %6382
      %6384 = vrot.lane.b32.xlu0 %v6176, 2
      %v6385 = vpop.permute.xlu0 %6384
      %6386 = vrot.lane.b32.xlu0 %v6178, 2
      %v6387 = vpop.permute.xlu0 %6386
      %6388 = vrot.lane.b32.xlu0 %v6197, 2
      %v6389 = vpop.permute.xlu0 %6388
      %6390 = vrot.lane.b32.xlu0 %v6198, 2
      %v6391 = vpop.permute.xlu0 %6390
      %6392 = vrot.lane.b32.xlu0 %v6182, 2
      %v6393 = vpop.permute.xlu0 %6392
      %6394 = vrot.lane.b32.xlu0 %v6184, 2
      %v6395 = vpop.permute.xlu0 %6394
      %6396 = vrot.lane.b32.xlu0 %v6199, 2
      %v6397 = vpop.permute.xlu0 %6396
      %6398 = vrot.lane.b32.xlu0 %v6200, 2
      %v6399 = vpop.permute.xlu0 %6398
      %6400 = vrot.lane.b32.xlu0 %v6188, 2
      %v6401 = vpop.permute.xlu0 %6400
      %6402 = vrot.lane.b32.xlu0 %v6190, 2
      %v6403 = vpop.permute.xlu0 %6402
      %6404 = vrot.lane.b32.xlu0 %v6201, 2
      %v6405 = vpop.permute.xlu0 %6404
      %6406 = vrot.lane.b32.xlu0 %v6202, 2
      %v6407 = vpop.permute.xlu0 %6406
      %6408 = vrot.lane.b32.xlu0 %v6194, 2
      %v6409 = vpop.permute.xlu0 %6408
      %6410 = vrot.lane.b32.xlu0 %v6220, 2
      %v6411 = vpop.permute.xlu0 %6410
      %6412 = vrot.lane.b32.xlu0 %v6251, 2
      %v6413 = vpop.permute.xlu0 %6412
      %6414 = vrot.lane.b32.xlu0 %v6252, 2
      %v6415 = vpop.permute.xlu0 %6414
      %6416 = vrot.lane.b32.xlu0 %v6253, 2
      %v6417 = vpop.permute.xlu0 %6416
      %6418 = vrot.lane.b32.xlu0 %v6228, 2
      %v6419 = vpop.permute.xlu0 %6418
      %6420 = vrot.lane.b32.xlu0 %v6254, 2
      %v6421 = vpop.permute.xlu0 %6420
      %6422 = vrot.lane.b32.xlu0 %v6255, 2
      %v6423 = vpop.permute.xlu0 %6422
      %6424 = vrot.lane.b32.xlu0 %v6256, 2
      %v6425 = vpop.permute.xlu0 %6424
      %6426 = vrot.lane.b32.xlu0 %v6236, 2
      %v6427 = vpop.permute.xlu0 %6426
      %6428 = vrot.lane.b32.xlu0 %v6257, 2
      %v6429 = vpop.permute.xlu0 %6428
      %6430 = vrot.lane.b32.xlu0 %v6258, 2
      %v6431 = vpop.permute.xlu0 %6430
      %6432 = vrot.lane.b32.xlu0 %v6259, 2
      %v6433 = vpop.permute.xlu0 %6432
      %6434 = vrot.lane.b32.xlu0 %v6244, 2
      %v6435 = vpop.permute.xlu0 %6434
      %6436 = vrot.lane.b32.xlu0 %v6260, 2
      %v6437 = vpop.permute.xlu0 %6436
      %6438 = vrot.lane.b32.xlu0 %v6261, 2
      %v6439 = vpop.permute.xlu0 %6438
      %6440 = vrot.lane.b32.xlu0 %v6262, 2
      %v6441 = vpop.permute.xlu0 %6440
      %6442 = vrot.lane.b32.xlu0 %v6264, 2
      %v6443 = vpop.permute.xlu0 %6442
      %6444 = vrot.lane.b32.xlu0 %v6295, 2
      %v6445 = vpop.permute.xlu0 %6444
      %6446 = vrot.lane.b32.xlu0 %v6296, 2
      %v6447 = vpop.permute.xlu0 %6446
      %6448 = vrot.lane.b32.xlu0 %v6297, 2
      %v6449 = vpop.permute.xlu0 %6448
      %6450 = vrot.lane.b32.xlu0 %v6272, 2
      %v6451 = vpop.permute.xlu0 %6450
      %6452 = vrot.lane.b32.xlu0 %v6298, 2
      %v6453 = vpop.permute.xlu0 %6452
      %6454 = vrot.lane.b32.xlu0 %v6299, 2
      %v6455 = vpop.permute.xlu0 %6454
      %6456 = vrot.lane.b32.xlu0 %v6300, 2
      %v6457 = vpop.permute.xlu0 %6456
      %6458 = vrot.lane.b32.xlu0 %v6280, 2
      %v6459 = vpop.permute.xlu0 %6458
      %6460 = vrot.lane.b32.xlu0 %v6301, 2
      %v6461 = vpop.permute.xlu0 %6460
      %6462 = vrot.lane.b32.xlu0 %v6302, 2
      %v6463 = vpop.permute.xlu0 %6462
      %6464 = vrot.lane.b32.xlu0 %v6303, 2
      %v6465 = vpop.permute.xlu0 %6464
      %6466 = vrot.lane.b32.xlu0 %v6288, 2
      %v6467 = vpop.permute.xlu0 %6466
      %6468 = vrot.lane.b32.xlu0 %v6304, 2
      %v6469 = vpop.permute.xlu0 %6468
      %6470 = vrot.lane.b32.xlu0 %v6305, 2
      %v6471 = vpop.permute.xlu0 %6470
      %6472 = vrot.lane.b32.xlu0 %v6306, 2
      %v6473 = vpop.permute.xlu0 %6472
      %vm6474 = vcmask 15360
      %v6475 = vsel %vm6474, %v6315, %v6317
      %v6476 = vsel %vm6474, %v6317, %v6319
      %v6477 = vsel %vm6474, %v6319, %v6321
      %v6478 = vsel %vm6474, %v6323, %v6325
      %v6479 = vsel %vm6474, %v6325, %v6327
      %v6480 = vsel %vm6474, %v6327, %v6329
      %v6481 = vsel %vm6474, %v6331, %v6333
      %v6482 = vsel %vm6474, %v6333, %v6335
      %v6483 = vsel %vm6474, %v6335, %v6337
      %v6484 = vsel %vm6474, %v6339, %v6341
      %v6485 = vsel %vm6474, %v6341, %v6343
      %v6486 = vsel %vm6474, %v6343, %v6345
      %v6487 = vsel %vm6474, %v6347, %v6349
      %v6488 = vsel %vm6474, %v6349, %v6351
      %v6489 = vsel %vm6474, %v6351, %v6353
      %v6490 = vsel %vm6474, %v6355, %v6357
      %v6491 = vsel %vm6474, %v6357, %v6359
      %v6492 = vsel %vm6474, %v6359, %v6361
      %v6493 = vsel %vm6474, %v6363, %v6365
      %v6494 = vsel %vm6474, %v6365, %v6367
      %v6495 = vsel %vm6474, %v6367, %v6369
      %v6496 = vsel %vm6474, %v6371, %v6373
      %v6497 = vsel %vm6474, %v6373, %v6375
      %v6498 = vsel %vm6474, %v6375, %v6377
      %v6499 = vsel %vm6474, %v6379, %v6381
      %v6500 = vsel %vm6474, %v6381, %v6383
      %v6501 = vsel %vm6474, %v6383, %v6385
      %v6502 = vsel %vm6474, %v6387, %v6389
      %v6503 = vsel %vm6474, %v6389, %v6391
      %v6504 = vsel %vm6474, %v6391, %v6393
      %v6505 = vsel %vm6474, %v6395, %v6397
      %v6506 = vsel %vm6474, %v6397, %v6399
      %v6507 = vsel %vm6474, %v6399, %v6401
      %v6508 = vsel %vm6474, %v6403, %v6405
      %v6509 = vsel %vm6474, %v6405, %v6407
      %v6510 = vsel %vm6474, %v6407, %v6409
      %v6511 = vsel %vm6474, %v6411, %v6413
      %v6512 = vsel %vm6474, %v6413, %v6415
      %v6513 = vsel %vm6474, %v6415, %v6417
      %v6514 = vsel %vm6474, %v6419, %v6421
      %v6515 = vsel %vm6474, %v6421, %v6423
      %v6516 = vsel %vm6474, %v6423, %v6425
      %v6517 = vsel %vm6474, %v6427, %v6429
      %v6518 = vsel %vm6474, %v6429, %v6431
      %v6519 = vsel %vm6474, %v6431, %v6433
      %v6520 = vsel %vm6474, %v6435, %v6437
      %v6521 = vsel %vm6474, %v6437, %v6439
      %v6522 = vsel %vm6474, %v6439, %v6441
      %v6523 = vsel %vm6474, %v6443, %v6445
      %v6524 = vsel %vm6474, %v6445, %v6447
      %v6525 = vsel %vm6474, %v6447, %v6449
      %v6526 = vsel %vm6474, %v6451, %v6453
      %v6527 = vsel %vm6474, %v6453, %v6455
      %v6528 = vsel %vm6474, %v6455, %v6457
      %v6529 = vsel %vm6474, %v6459, %v6461
      %v6530 = vsel %vm6474, %v6461, %v6463
      %v6531 = vsel %vm6474, %v6463, %v6465
      %v6532 = vsel %vm6474, %v6467, %v6469
      %v6533 = vsel %vm6474, %v6469, %v6471
      %v6534 = vsel %vm6474, %v6471, %v6473
      %v6595 = vsel %vm5548, %v6312, 0
      %6597 = vmatpush.msra.mxu0 %v6520
      %6598 = vmatpush.msra.mxu0 %v6517
      %6599 = vmatpush.msra.mxu0 %v6514
      %6600 = vmatpush.msra.mxu0 %v6511
      %6601 = vmatpush.msra.mxu0 %v6508
      %6602 = vmatpush.msra.mxu0 %v6505
      %6603 = vmatpush.msra.mxu0 %v6502
      %6604 = vmatpush.msra.mxu0 %v6499
      %6605 = vmatpush.msra.mxu0 %v6496
      %6606 = vmatpush.msra.mxu0 %v6493
      %6607 = vmatpush.msra.mxu0 %v6490
      %6608 = vmatpush.msra.mxu0 %v6487
      %6609 = vmatpush.msra.mxu0 %v6484
      %6610 = vmatpush.msra.mxu0 %v6481
      %6611 = vmatpush.msra.mxu0 %v6478
      %6612 = vmatpush.msra.mxu0 %v6475
      %6613 = vmatmul.f32.gmra.mxu0 %v6311
      %v6614 = vpop.f32.mrf.mxu0
      %v6615 = vadd.f32 0.0, %v6614
      %6616 = vdwg.mxu0
      %6617 = vmatpush.msra.mxu0 0.0
      %6618 = vmatpush.msra.mxu0 0.0
      %6619 = vmatpush.msra.mxu0 0.0
      %6620 = vmatpush.msra.mxu0 0.0
      %6621 = vmatpush.msra.mxu0 0.0
      %6622 = vmatpush.msra.mxu0 0.0
      %6623 = vmatpush.msra.mxu0 0.0
      %6624 = vmatpush.msra.mxu0 0.0
      %6625 = vmatpush.msra.mxu0 0.0
      %6626 = vmatpush.msra.mxu0 0.0
      %6627 = vmatpush.msra.mxu0 0.0
      %6628 = vmatpush.msra.mxu0 0.0
      %6629 = vmatpush.msra.mxu0 %v6532
      %6630 = vmatpush.msra.mxu0 %v6529
      %6631 = vmatpush.msra.mxu0 %v6526
      %6632 = vmatpush.msra.mxu0 %v6523
      %6633 = vmatmul.f32.gmra.mxu0 %v6595
      %v6634 = vpop.f32.mrf.mxu0
      %v6635 = vadd.f32 %v6615, %v6634
      %6636 = vdwg.mxu0
      %6637 = vmatpush.msra.mxu0 %v6521
      %6638 = vmatpush.msra.mxu0 %v6518
      %6639 = vmatpush.msra.mxu0 %v6515
      %6640 = vmatpush.msra.mxu0 %v6512
      %6641 = vmatpush.msra.mxu0 %v6509
      %6642 = vmatpush.msra.mxu0 %v6506
      %6643 = vmatpush.msra.mxu0 %v6503
      %6644 = vmatpush.msra.mxu0 %v6500
      %6645 = vmatpush.msra.mxu0 %v6497
      %6646 = vmatpush.msra.mxu0 %v6494
      %6647 = vmatpush.msra.mxu0 %v6491
      %6648 = vmatpush.msra.mxu0 %v6488
      %6649 = vmatpush.msra.mxu0 %v6485
      %6650 = vmatpush.msra.mxu0 %v6482
      %6651 = vmatpush.msra.mxu0 %v6479
      %6652 = vmatpush.msra.mxu0 %v6476
      %6653 = vmatmul.f32.gmra.mxu0 %v6311
      %v6654 = vpop.f32.mrf.mxu0
      %v6655 = vadd.f32 0.0, %v6654
      %6656 = vdwg.mxu0
      %6657 = vmatpush.msra.mxu0 0.0
      %6658 = vmatpush.msra.mxu0 0.0
      %6659 = vmatpush.msra.mxu0 0.0
      %6660 = vmatpush.msra.mxu0 0.0
      %6661 = vmatpush.msra.mxu0 0.0
      %6662 = vmatpush.msra.mxu0 0.0
      %6663 = vmatpush.msra.mxu0 0.0
      %6664 = vmatpush.msra.mxu0 0.0
      %6665 = vmatpush.msra.mxu0 0.0
      %6666 = vmatpush.msra.mxu0 0.0
      %6667 = vmatpush.msra.mxu0 0.0
      %6668 = vmatpush.msra.mxu0 0.0
      %6669 = vmatpush.msra.mxu0 %v6533
      %6670 = vmatpush.msra.mxu0 %v6530
      %6671 = vmatpush.msra.mxu0 %v6527
      %6672 = vmatpush.msra.mxu0 %v6524
      %6673 = vmatmul.f32.gmra.mxu0 %v6595
      %v6674 = vpop.f32.mrf.mxu0
      %v6675 = vadd.f32 %v6655, %v6674
      %6676 = vdwg.mxu0
      %6677 = vmatpush.msra.mxu0 %v6522
      %6678 = vmatpush.msra.mxu0 %v6519
      %6679 = vmatpush.msra.mxu0 %v6516
      %6680 = vmatpush.msra.mxu0 %v6513
      %6681 = vmatpush.msra.mxu0 %v6510
      %6682 = vmatpush.msra.mxu0 %v6507
      %6683 = vmatpush.msra.mxu0 %v6504
      %6684 = vmatpush.msra.mxu0 %v6501
      %6685 = vmatpush.msra.mxu0 %v6498
      %6686 = vmatpush.msra.mxu0 %v6495
      %6687 = vmatpush.msra.mxu0 %v6492
      %6688 = vmatpush.msra.mxu0 %v6489
      %6689 = vmatpush.msra.mxu0 %v6486
      %6690 = vmatpush.msra.mxu0 %v6483
      %6691 = vmatpush.msra.mxu0 %v6480
      %6692 = vmatpush.msra.mxu0 %v6477
      %6693 = vmatmul.f32.gmra.mxu0 %v6311
      %v6694 = vpop.f32.mrf.mxu0
      %v6695 = vadd.f32 0.0, %v6694
      %6696 = vdwg.mxu0
      %6697 = vmatpush.msra.mxu0 0.0
      %6698 = vmatpush.msra.mxu0 0.0
      %6699 = vmatpush.msra.mxu0 0.0
      %6700 = vmatpush.msra.mxu0 0.0
      %6701 = vmatpush.msra.mxu0 0.0
      %6702 = vmatpush.msra.mxu0 0.0
      %6703 = vmatpush.msra.mxu0 0.0
      %6704 = vmatpush.msra.mxu0 0.0
      %6705 = vmatpush.msra.mxu0 0.0
      %6706 = vmatpush.msra.mxu0 0.0
      %6707 = vmatpush.msra.mxu0 0.0
      %6708 = vmatpush.msra.mxu0 0.0
      %6709 = vmatpush.msra.mxu0 %v6534
      %6710 = vmatpush.msra.mxu0 %v6531
      %6711 = vmatpush.msra.mxu0 %v6528
      %6712 = vmatpush.msra.mxu0 %v6525
      %6713 = vmatmul.f32.gmra.mxu0 %v6595
      %v6714 = vpop.f32.mrf.mxu0
      %v6715 = vadd.f32 %v6695, %v6714
      %6716 = vdwg.mxu0
      %v6717 = vadd.f32 %v5997, %v6635
      %v6718 = vadd.f32 %v6037, %v6675
      %v6719 = vadd.f32 %v6077, %v6715
      %v6720 = vld [vmem:[#allocation3 + $0x8] sm:$0xff]
      %v6721 = vld [vmem:[#allocation3 + $0x10] sm:$0xff]
      %v6722 = vld [vmem:[#allocation3 + $0x18] sm:$0xff]
      %v6723 = vld [vmem:[#allocation3 + $0x20] sm:$0xff]
      %v6724 = vld [vmem:[#allocation3 + $0x30] sm:$0xff]
      %v6725 = vld [vmem:[#allocation3 + $0x38] sm:$0xff]
      %v6726 = vld [vmem:[#allocation3 + $0x40] sm:$0xff]
      %v6727 = vld [vmem:[#allocation3 + $0x48] sm:$0xff]
      %v6728 = vld [vmem:[#allocation3 + $0x58] sm:$0xff]
      %v6729 = vld [vmem:[#allocation3 + $0x60] sm:$0xff]
      %v6730 = vld [vmem:[#allocation3 + $0x68] sm:$0xff]
      %v6731 = vld [vmem:[#allocation3 + $0x70] sm:$0xff]
      %v6732 = vld [vmem:[#allocation3 + $0x80] sm:$0xff]
      %v6733 = vld [vmem:[#allocation3 + $0x88] sm:$0xff]
      %v6734 = vld [vmem:[#allocation3 + $0x90] sm:$0xff]
      %v6735 = vld [vmem:[#allocation3 + $0x98] sm:$0xff]
      %6752 = vrot.lane.b32.xlu0 %v6720, 127
      %v6753 = vpop.permute.xlu0 %6752
      %6754 = vrot.lane.b32.xlu0 %v6721, 127
      %v6755 = vpop.permute.xlu0 %6754
      %6756 = vrot.lane.b32.xlu0 %v6722, 127
      %v6757 = vpop.permute.xlu0 %6756
      %6758 = vrot.lane.b32.xlu0 %v6723, 127
      %v6759 = vpop.permute.xlu0 %6758
      %6760 = vrot.lane.b32.xlu0 %v6724, 127
      %v6761 = vpop.permute.xlu0 %6760
      %6762 = vrot.lane.b32.xlu0 %v6725, 127
      %v6763 = vpop.permute.xlu0 %6762
      %6764 = vrot.lane.b32.xlu0 %v6726, 127
      %v6765 = vpop.permute.xlu0 %6764
      %6766 = vrot.lane.b32.xlu0 %v6727, 127
      %v6767 = vpop.permute.xlu0 %6766
      %6768 = vrot.lane.b32.xlu0 %v6728, 127
      %v6769 = vpop.permute.xlu0 %6768
      %6770 = vrot.lane.b32.xlu0 %v6729, 127
      %v6771 = vpop.permute.xlu0 %6770
      %6772 = vrot.lane.b32.xlu0 %v6730, 127
      %v6773 = vpop.permute.xlu0 %6772
      %6774 = vrot.lane.b32.xlu0 %v6731, 127
      %v6775 = vpop.permute.xlu0 %6774
      %6776 = vrot.lane.b32.xlu0 %v6732, 127
      %v6777 = vpop.permute.xlu0 %6776
      %6778 = vrot.lane.b32.xlu0 %v6733, 127
      %v6779 = vpop.permute.xlu0 %6778
      %6780 = vrot.lane.b32.xlu0 %v6734, 127
      %v6781 = vpop.permute.xlu0 %6780
      %6782 = vrot.lane.b32.xlu0 %v6735, 127
      %v6783 = vpop.permute.xlu0 %6782
      %v6784 = vsel %vm735, %v6753, %v6755
      %v6785 = vsel %vm735, %v6755, %v6757
      %v6786 = vsel %vm735, %v6757, %v6759
      %v6787 = vsel %vm735, %v6761, %v6763
      %v6788 = vsel %vm735, %v6763, %v6765
      %v6789 = vsel %vm735, %v6765, %v6767
      %v6790 = vsel %vm735, %v6769, %v6771
      %v6791 = vsel %vm735, %v6771, %v6773
      %v6792 = vsel %vm735, %v6773, %v6775
      %v6793 = vsel %vm735, %v6777, %v6779
      %v6794 = vsel %vm735, %v6779, %v6781
      %v6795 = vsel %vm735, %v6781, %v6783
      %6796 = vrot.lane.b32.xlu0 %v6720, 126
      %v6797 = vpop.permute.xlu0 %6796
      %6798 = vrot.lane.b32.xlu0 %v6721, 126
      %v6799 = vpop.permute.xlu0 %6798
      %6800 = vrot.lane.b32.xlu0 %v6722, 126
      %v6801 = vpop.permute.xlu0 %6800
      %6802 = vrot.lane.b32.xlu0 %v6723, 126
      %v6803 = vpop.permute.xlu0 %6802
      %6804 = vrot.lane.b32.xlu0 %v6724, 126
      %v6805 = vpop.permute.xlu0 %6804
      %6806 = vrot.lane.b32.xlu0 %v6725, 126
      %v6807 = vpop.permute.xlu0 %6806
      %6808 = vrot.lane.b32.xlu0 %v6726, 126
      %v6809 = vpop.permute.xlu0 %6808
      %6810 = vrot.lane.b32.xlu0 %v6727, 126
      %v6811 = vpop.permute.xlu0 %6810
      %6812 = vrot.lane.b32.xlu0 %v6728, 126
      %v6813 = vpop.permute.xlu0 %6812
      %6814 = vrot.lane.b32.xlu0 %v6729, 126
      %v6815 = vpop.permute.xlu0 %6814
      %6816 = vrot.lane.b32.xlu0 %v6730, 126
      %v6817 = vpop.permute.xlu0 %6816
      %6818 = vrot.lane.b32.xlu0 %v6731, 126
      %v6819 = vpop.permute.xlu0 %6818
      %6820 = vrot.lane.b32.xlu0 %v6732, 126
      %v6821 = vpop.permute.xlu0 %6820
      %6822 = vrot.lane.b32.xlu0 %v6733, 126
      %v6823 = vpop.permute.xlu0 %6822
      %6824 = vrot.lane.b32.xlu0 %v6734, 126
      %v6825 = vpop.permute.xlu0 %6824
      %6826 = vrot.lane.b32.xlu0 %v6735, 126
      %v6827 = vpop.permute.xlu0 %6826
      %v6828 = vsel %vm747, %v6797, %v6799
      %v6829 = vsel %vm747, %v6799, %v6801
      %v6830 = vsel %vm747, %v6801, %v6803
      %v6831 = vsel %vm747, %v6805, %v6807
      %v6832 = vsel %vm747, %v6807, %v6809
      %v6833 = vsel %vm747, %v6809, %v6811
      %v6834 = vsel %vm747, %v6813, %v6815
      %v6835 = vsel %vm747, %v6815, %v6817
      %v6836 = vsel %vm747, %v6817, %v6819
      %v6837 = vsel %vm747, %v6821, %v6823
      %v6838 = vsel %vm747, %v6823, %v6825
      %v6839 = vsel %vm747, %v6825, %v6827
      %6840 = vrot.lane.b32.xlu0 %v6720, 125
      %v6841 = vpop.permute.xlu0 %6840
      %6842 = vrot.lane.b32.xlu0 %v6721, 125
      %v6843 = vpop.permute.xlu0 %6842
      %6844 = vrot.lane.b32.xlu0 %v6722, 125
      %v6845 = vpop.permute.xlu0 %6844
      %6846 = vrot.lane.b32.xlu0 %v6723, 125
      %v6847 = vpop.permute.xlu0 %6846
      %6848 = vrot.lane.b32.xlu0 %v6724, 125
      %v6849 = vpop.permute.xlu0 %6848
      %6850 = vrot.lane.b32.xlu0 %v6725, 125
      %v6851 = vpop.permute.xlu0 %6850
      %6852 = vrot.lane.b32.xlu0 %v6726, 125
      %v6853 = vpop.permute.xlu0 %6852
      %6854 = vrot.lane.b32.xlu0 %v6727, 125
      %v6855 = vpop.permute.xlu0 %6854
      %6856 = vrot.lane.b32.xlu0 %v6728, 125
      %v6857 = vpop.permute.xlu0 %6856
      %6858 = vrot.lane.b32.xlu0 %v6729, 125
      %v6859 = vpop.permute.xlu0 %6858
      %6860 = vrot.lane.b32.xlu0 %v6730, 125
      %v6861 = vpop.permute.xlu0 %6860
      %6862 = vrot.lane.b32.xlu0 %v6731, 125
      %v6863 = vpop.permute.xlu0 %6862
      %6864 = vrot.lane.b32.xlu0 %v6732, 125
      %v6865 = vpop.permute.xlu0 %6864
      %6866 = vrot.lane.b32.xlu0 %v6733, 125
      %v6867 = vpop.permute.xlu0 %6866
      %6868 = vrot.lane.b32.xlu0 %v6734, 125
      %v6869 = vpop.permute.xlu0 %6868
      %6870 = vrot.lane.b32.xlu0 %v6735, 125
      %v6871 = vpop.permute.xlu0 %6870
      %v6872 = vsel %vm759, %v6841, %v6843
      %v6873 = vsel %vm759, %v6843, %v6845
      %v6874 = vsel %vm759, %v6845, %v6847
      %v6875 = vsel %vm759, %v6849, %v6851
      %v6876 = vsel %vm759, %v6851, %v6853
      %v6877 = vsel %vm759, %v6853, %v6855
      %v6878 = vsel %vm759, %v6857, %v6859
      %v6879 = vsel %vm759, %v6859, %v6861
      %v6880 = vsel %vm759, %v6861, %v6863
      %v6881 = vsel %vm759, %v6865, %v6867
      %v6882 = vsel %vm759, %v6867, %v6869
      %v6883 = vsel %vm759, %v6869, %v6871
      %6884 = vrot.lane.b32.xlu0 %v6720, 124
      %v6885 = vpop.permute.xlu0 %6884
      %6886 = vrot.lane.b32.xlu0 %v6721, 124
      %v6887 = vpop.permute.xlu0 %6886
      %6888 = vrot.lane.b32.xlu0 %v6722, 124
      %v6889 = vpop.permute.xlu0 %6888
      %6890 = vrot.lane.b32.xlu0 %v6723, 124
      %v6891 = vpop.permute.xlu0 %6890
      %6892 = vrot.lane.b32.xlu0 %v6724, 124
      %v6893 = vpop.permute.xlu0 %6892
      %6894 = vrot.lane.b32.xlu0 %v6725, 124
      %v6895 = vpop.permute.xlu0 %6894
      %6896 = vrot.lane.b32.xlu0 %v6726, 124
      %v6897 = vpop.permute.xlu0 %6896
      %6898 = vrot.lane.b32.xlu0 %v6727, 124
      %v6899 = vpop.permute.xlu0 %6898
      %6900 = vrot.lane.b32.xlu0 %v6728, 124
      %v6901 = vpop.permute.xlu0 %6900
      %6902 = vrot.lane.b32.xlu0 %v6729, 124
      %v6903 = vpop.permute.xlu0 %6902
      %6904 = vrot.lane.b32.xlu0 %v6730, 124
      %v6905 = vpop.permute.xlu0 %6904
      %6906 = vrot.lane.b32.xlu0 %v6731, 124
      %v6907 = vpop.permute.xlu0 %6906
      %6908 = vrot.lane.b32.xlu0 %v6732, 124
      %v6909 = vpop.permute.xlu0 %6908
      %6910 = vrot.lane.b32.xlu0 %v6733, 124
      %v6911 = vpop.permute.xlu0 %6910
      %6912 = vrot.lane.b32.xlu0 %v6734, 124
      %v6913 = vpop.permute.xlu0 %6912
      %6914 = vrot.lane.b32.xlu0 %v6735, 124
      %v6915 = vpop.permute.xlu0 %6914
      %v6916 = vsel %vm771, %v6885, %v6887
      %v6917 = vsel %vm771, %v6887, %v6889
      %v6918 = vsel %vm771, %v6889, %v6891
      %v6919 = vsel %vm771, %v6893, %v6895
      %v6920 = vsel %vm771, %v6895, %v6897
      %v6921 = vsel %vm771, %v6897, %v6899
      %v6922 = vsel %vm771, %v6901, %v6903
      %v6923 = vsel %vm771, %v6903, %v6905
      %v6924 = vsel %vm771, %v6905, %v6907
      %v6925 = vsel %vm771, %v6909, %v6911
      %v6926 = vsel %vm771, %v6911, %v6913
      %v6927 = vsel %vm771, %v6913, %v6915
      %s6928 = scalar_lea.vmem %s9, 24
      %v6929 = vld [vmem:[%s6928] sm:$0x77]
      %6931 = vst [vmem:[#allocation1] ss:$2 sm:$0xff] %v6929
      %v6932 = vld.sshfl [vmem:[#allocation1] sm:$0xff pattern:$0x75316420]
      %v6933 = vld.sshfl [vmem:[#allocation1 + $0x8] sm:$0xff pattern:$0x75316420]
      %6935 = vrot.lane.b32.xlu0 %v6720, 106
      %v6936 = vpop.permute.xlu0 %6935
      %6937 = vrot.lane.b32.xlu0 %v6721, 106
      %v6938 = vpop.permute.xlu0 %6937
      %6939 = vrot.lane.b32.xlu0 %v6722, 106
      %v6940 = vpop.permute.xlu0 %6939
      %6941 = vrot.lane.b32.xlu0 %v6723, 106
      %v6942 = vpop.permute.xlu0 %6941
      %6943 = vrot.lane.b32.xlu0 %v6724, 106
      %v6944 = vpop.permute.xlu0 %6943
      %6945 = vrot.lane.b32.xlu0 %v6725, 106
      %v6946 = vpop.permute.xlu0 %6945
      %6947 = vrot.lane.b32.xlu0 %v6726, 106
      %v6948 = vpop.permute.xlu0 %6947
      %6949 = vrot.lane.b32.xlu0 %v6727, 106
      %v6950 = vpop.permute.xlu0 %6949
      %6951 = vrot.lane.b32.xlu0 %v6728, 106
      %v6952 = vpop.permute.xlu0 %6951
      %6953 = vrot.lane.b32.xlu0 %v6729, 106
      %v6954 = vpop.permute.xlu0 %6953
      %6955 = vrot.lane.b32.xlu0 %v6730, 106
      %v6956 = vpop.permute.xlu0 %6955
      %6957 = vrot.lane.b32.xlu0 %v6731, 106
      %v6958 = vpop.permute.xlu0 %6957
      %6959 = vrot.lane.b32.xlu0 %v6732, 106
      %v6960 = vpop.permute.xlu0 %6959
      %6961 = vrot.lane.b32.xlu0 %v6733, 106
      %v6962 = vpop.permute.xlu0 %6961
      %6963 = vrot.lane.b32.xlu0 %v6734, 106
      %v6964 = vpop.permute.xlu0 %6963
      %6965 = vrot.lane.b32.xlu0 %v6735, 106
      %v6966 = vpop.permute.xlu0 %6965
      %6967 = vrot.lane.b32.xlu0 %v6784, 106
      %v6968 = vpop.permute.xlu0 %6967
      %6969 = vrot.lane.b32.xlu0 %v6785, 106
      %v6970 = vpop.permute.xlu0 %6969
      %6971 = vrot.lane.b32.xlu0 %v6786, 106
      %v6972 = vpop.permute.xlu0 %6971
      %6973 = vrot.lane.b32.xlu0 %v6759, 106
      %v6974 = vpop.permute.xlu0 %6973
      %6975 = vrot.lane.b32.xlu0 %v6787, 106
      %v6976 = vpop.permute.xlu0 %6975
      %6977 = vrot.lane.b32.xlu0 %v6788, 106
      %v6978 = vpop.permute.xlu0 %6977
      %6979 = vrot.lane.b32.xlu0 %v6789, 106
      %v6980 = vpop.permute.xlu0 %6979
      %6981 = vrot.lane.b32.xlu0 %v6767, 106
      %v6982 = vpop.permute.xlu0 %6981
      %6983 = vrot.lane.b32.xlu0 %v6790, 106
      %v6984 = vpop.permute.xlu0 %6983
      %6985 = vrot.lane.b32.xlu0 %v6791, 106
      %v6986 = vpop.permute.xlu0 %6985
      %6987 = vrot.lane.b32.xlu0 %v6792, 106
      %v6988 = vpop.permute.xlu0 %6987
      %6989 = vrot.lane.b32.xlu0 %v6775, 106
      %v6990 = vpop.permute.xlu0 %6989
      %6991 = vrot.lane.b32.xlu0 %v6793, 106
      %v6992 = vpop.permute.xlu0 %6991
      %6993 = vrot.lane.b32.xlu0 %v6794, 106
      %v6994 = vpop.permute.xlu0 %6993
      %6995 = vrot.lane.b32.xlu0 %v6795, 106
      %v6996 = vpop.permute.xlu0 %6995
      %6997 = vrot.lane.b32.xlu0 %v6783, 106
      %v6998 = vpop.permute.xlu0 %6997
      %6999 = vrot.lane.b32.xlu0 %v6828, 106
      %v7000 = vpop.permute.xlu0 %6999
      %7001 = vrot.lane.b32.xlu0 %v6829, 106
      %v7002 = vpop.permute.xlu0 %7001
      %7003 = vrot.lane.b32.xlu0 %v6830, 106
      %v7004 = vpop.permute.xlu0 %7003
      %7005 = vrot.lane.b32.xlu0 %v6803, 106
      %v7006 = vpop.permute.xlu0 %7005
      %7007 = vrot.lane.b32.xlu0 %v6831, 106
      %v7008 = vpop.permute.xlu0 %7007
      %7009 = vrot.lane.b32.xlu0 %v6832, 106
      %v7010 = vpop.permute.xlu0 %7009
      %7011 = vrot.lane.b32.xlu0 %v6833, 106
      %v7012 = vpop.permute.xlu0 %7011
      %7013 = vrot.lane.b32.xlu0 %v6811, 106
      %v7014 = vpop.permute.xlu0 %7013
      %7015 = vrot.lane.b32.xlu0 %v6834, 106
      %v7016 = vpop.permute.xlu0 %7015
      %7017 = vrot.lane.b32.xlu0 %v6835, 106
      %v7018 = vpop.permute.xlu0 %7017
      %7019 = vrot.lane.b32.xlu0 %v6836, 106
      %v7020 = vpop.permute.xlu0 %7019
      %7021 = vrot.lane.b32.xlu0 %v6819, 106
      %v7022 = vpop.permute.xlu0 %7021
      %7023 = vrot.lane.b32.xlu0 %v6837, 106
      %v7024 = vpop.permute.xlu0 %7023
      %7025 = vrot.lane.b32.xlu0 %v6838, 106
      %v7026 = vpop.permute.xlu0 %7025
      %7027 = vrot.lane.b32.xlu0 %v6839, 106
      %v7028 = vpop.permute.xlu0 %7027
      %7029 = vrot.lane.b32.xlu0 %v6827, 106
      %v7030 = vpop.permute.xlu0 %7029
      %7031 = vrot.lane.b32.xlu0 %v6872, 106
      %v7032 = vpop.permute.xlu0 %7031
      %7033 = vrot.lane.b32.xlu0 %v6873, 106
      %v7034 = vpop.permute.xlu0 %7033
      %7035 = vrot.lane.b32.xlu0 %v6874, 106
      %v7036 = vpop.permute.xlu0 %7035
      %7037 = vrot.lane.b32.xlu0 %v6847, 106
      %v7038 = vpop.permute.xlu0 %7037
      %7039 = vrot.lane.b32.xlu0 %v6875, 106
      %v7040 = vpop.permute.xlu0 %7039
      %7041 = vrot.lane.b32.xlu0 %v6876, 106
      %v7042 = vpop.permute.xlu0 %7041
      %7043 = vrot.lane.b32.xlu0 %v6877, 106
      %v7044 = vpop.permute.xlu0 %7043
      %7045 = vrot.lane.b32.xlu0 %v6855, 106
      %v7046 = vpop.permute.xlu0 %7045
      %7047 = vrot.lane.b32.xlu0 %v6878, 106
      %v7048 = vpop.permute.xlu0 %7047
      %7049 = vrot.lane.b32.xlu0 %v6879, 106
      %v7050 = vpop.permute.xlu0 %7049
      %7051 = vrot.lane.b32.xlu0 %v6880, 106
      %v7052 = vpop.permute.xlu0 %7051
      %7053 = vrot.lane.b32.xlu0 %v6863, 106
      %v7054 = vpop.permute.xlu0 %7053
      %7055 = vrot.lane.b32.xlu0 %v6881, 106
      %v7056 = vpop.permute.xlu0 %7055
      %7057 = vrot.lane.b32.xlu0 %v6882, 106
      %v7058 = vpop.permute.xlu0 %7057
      %7059 = vrot.lane.b32.xlu0 %v6883, 106
      %v7060 = vpop.permute.xlu0 %7059
      %7061 = vrot.lane.b32.xlu0 %v6871, 106
      %v7062 = vpop.permute.xlu0 %7061
      %7063 = vrot.lane.b32.xlu0 %v6916, 106
      %v7064 = vpop.permute.xlu0 %7063
      %7065 = vrot.lane.b32.xlu0 %v6917, 106
      %v7066 = vpop.permute.xlu0 %7065
      %7067 = vrot.lane.b32.xlu0 %v6918, 106
      %v7068 = vpop.permute.xlu0 %7067
      %7069 = vrot.lane.b32.xlu0 %v6891, 106
      %v7070 = vpop.permute.xlu0 %7069
      %7071 = vrot.lane.b32.xlu0 %v6919, 106
      %v7072 = vpop.permute.xlu0 %7071
      %7073 = vrot.lane.b32.xlu0 %v6920, 106
      %v7074 = vpop.permute.xlu0 %7073
      %7075 = vrot.lane.b32.xlu0 %v6921, 106
      %v7076 = vpop.permute.xlu0 %7075
      %7077 = vrot.lane.b32.xlu0 %v6899, 106
      %v7078 = vpop.permute.xlu0 %7077
      %7079 = vrot.lane.b32.xlu0 %v6922, 106
      %v7080 = vpop.permute.xlu0 %7079
      %7081 = vrot.lane.b32.xlu0 %v6923, 106
      %v7082 = vpop.permute.xlu0 %7081
      %7083 = vrot.lane.b32.xlu0 %v6924, 106
      %v7084 = vpop.permute.xlu0 %7083
      %7085 = vrot.lane.b32.xlu0 %v6907, 106
      %v7086 = vpop.permute.xlu0 %7085
      %7087 = vrot.lane.b32.xlu0 %v6925, 106
      %v7088 = vpop.permute.xlu0 %7087
      %7089 = vrot.lane.b32.xlu0 %v6926, 106
      %v7090 = vpop.permute.xlu0 %7089
      %7091 = vrot.lane.b32.xlu0 %v6927, 106
      %v7092 = vpop.permute.xlu0 %7091
      %7093 = vrot.lane.b32.xlu0 %v6915, 106
      %v7094 = vpop.permute.xlu0 %7093
      %vm7095 = vcmask 867328
      %v7096 = vsel %vm7095, %v6936, %v6938
      %v7097 = vsel %vm7095, %v6938, %v6940
      %v7098 = vsel %vm7095, %v6940, %v6942
      %v7099 = vsel %vm7095, %v6944, %v6946
      %v7100 = vsel %vm7095, %v6946, %v6948
      %v7101 = vsel %vm7095, %v6948, %v6950
      %v7102 = vsel %vm7095, %v6952, %v6954
      %v7103 = vsel %vm7095, %v6954, %v6956
      %v7104 = vsel %vm7095, %v6956, %v6958
      %v7105 = vsel %vm7095, %v6960, %v6962
      %v7106 = vsel %vm7095, %v6962, %v6964
      %v7107 = vsel %vm7095, %v6964, %v6966
      %v7108 = vsel %vm7095, %v6968, %v6970
      %v7109 = vsel %vm7095, %v6970, %v6972
      %v7110 = vsel %vm7095, %v6972, %v6974
      %v7111 = vsel %vm7095, %v6976, %v6978
      %v7112 = vsel %vm7095, %v6978, %v6980
      %v7113 = vsel %vm7095, %v6980, %v6982
      %v7114 = vsel %vm7095, %v6984, %v6986
      %v7115 = vsel %vm7095, %v6986, %v6988
      %v7116 = vsel %vm7095, %v6988, %v6990
      %v7117 = vsel %vm7095, %v6992, %v6994
      %v7118 = vsel %vm7095, %v6994, %v6996
      %v7119 = vsel %vm7095, %v6996, %v6998
      %v7120 = vsel %vm7095, %v7000, %v7002
      %v7121 = vsel %vm7095, %v7002, %v7004
      %v7122 = vsel %vm7095, %v7004, %v7006
      %v7123 = vsel %vm7095, %v7008, %v7010
      %v7124 = vsel %vm7095, %v7010, %v7012
      %v7125 = vsel %vm7095, %v7012, %v7014
      %v7126 = vsel %vm7095, %v7016, %v7018
      %v7127 = vsel %vm7095, %v7018, %v7020
      %v7128 = vsel %vm7095, %v7020, %v7022
      %v7129 = vsel %vm7095, %v7024, %v7026
      %v7130 = vsel %vm7095, %v7026, %v7028
      %v7131 = vsel %vm7095, %v7028, %v7030
      %v7132 = vsel %vm7095, %v7032, %v7034
      %v7133 = vsel %vm7095, %v7034, %v7036
      %v7134 = vsel %vm7095, %v7036, %v7038
      %v7135 = vsel %vm7095, %v7040, %v7042
      %v7136 = vsel %vm7095, %v7042, %v7044
      %v7137 = vsel %vm7095, %v7044, %v7046
      %v7138 = vsel %vm7095, %v7048, %v7050
      %v7139 = vsel %vm7095, %v7050, %v7052
      %v7140 = vsel %vm7095, %v7052, %v7054
      %v7141 = vsel %vm7095, %v7056, %v7058
      %v7142 = vsel %vm7095, %v7058, %v7060
      %v7143 = vsel %vm7095, %v7060, %v7062
      %v7144 = vsel %vm7095, %v7064, %v7066
      %v7145 = vsel %vm7095, %v7066, %v7068
      %v7146 = vsel %vm7095, %v7068, %v7070
      %v7147 = vsel %vm7095, %v7072, %v7074
      %v7148 = vsel %vm7095, %v7074, %v7076
      %v7149 = vsel %vm7095, %v7076, %v7078
      %v7150 = vsel %vm7095, %v7080, %v7082
      %v7151 = vsel %vm7095, %v7082, %v7084
      %v7152 = vsel %vm7095, %v7084, %v7086
      %v7153 = vsel %vm7095, %v7088, %v7090
      %v7154 = vsel %vm7095, %v7090, %v7092
      %v7155 = vsel %vm7095, %v7092, %v7094
      %v7216 = vsel %vm5548, %v6933, 0
      %7218 = vmatpush.msra.mxu0 %v7141
      %7219 = vmatpush.msra.mxu0 %v7138
      %7220 = vmatpush.msra.mxu0 %v7135
      %7221 = vmatpush.msra.mxu0 %v7132
      %7222 = vmatpush.msra.mxu0 %v7129
      %7223 = vmatpush.msra.mxu0 %v7126
      %7224 = vmatpush.msra.mxu0 %v7123
      %7225 = vmatpush.msra.mxu0 %v7120
      %7226 = vmatpush.msra.mxu0 %v7117
      %7227 = vmatpush.msra.mxu0 %v7114
      %7228 = vmatpush.msra.mxu0 %v7111
      %7229 = vmatpush.msra.mxu0 %v7108
      %7230 = vmatpush.msra.mxu0 %v7105
      %7231 = vmatpush.msra.mxu0 %v7102
      %7232 = vmatpush.msra.mxu0 %v7099
      %7233 = vmatpush.msra.mxu0 %v7096
      %7234 = vmatmul.f32.gmra.mxu0 %v6932
      %v7235 = vpop.f32.mrf.mxu0
      %v7236 = vadd.f32 0.0, %v7235
      %7237 = vdwg.mxu0
      %7238 = vmatpush.msra.mxu0 0.0
      %7239 = vmatpush.msra.mxu0 0.0
      %7240 = vmatpush.msra.mxu0 0.0
      %7241 = vmatpush.msra.mxu0 0.0
      %7242 = vmatpush.msra.mxu0 0.0
      %7243 = vmatpush.msra.mxu0 0.0
      %7244 = vmatpush.msra.mxu0 0.0
      %7245 = vmatpush.msra.mxu0 0.0
      %7246 = vmatpush.msra.mxu0 0.0
      %7247 = vmatpush.msra.mxu0 0.0
      %7248 = vmatpush.msra.mxu0 0.0
      %7249 = vmatpush.msra.mxu0 0.0
      %7250 = vmatpush.msra.mxu0 %v7153
      %7251 = vmatpush.msra.mxu0 %v7150
      %7252 = vmatpush.msra.mxu0 %v7147
      %7253 = vmatpush.msra.mxu0 %v7144
      %7254 = vmatmul.f32.gmra.mxu0 %v7216
      %v7255 = vpop.f32.mrf.mxu0
      %v7256 = vadd.f32 %v7236, %v7255
      %7257 = vdwg.mxu0
      %7258 = vmatpush.msra.mxu0 %v7142
      %7259 = vmatpush.msra.mxu0 %v7139
      %7260 = vmatpush.msra.mxu0 %v7136
      %7261 = vmatpush.msra.mxu0 %v7133
      %7262 = vmatpush.msra.mxu0 %v7130
      %7263 = vmatpush.msra.mxu0 %v7127
      %7264 = vmatpush.msra.mxu0 %v7124
      %7265 = vmatpush.msra.mxu0 %v7121
      %7266 = vmatpush.msra.mxu0 %v7118
      %7267 = vmatpush.msra.mxu0 %v7115
      %7268 = vmatpush.msra.mxu0 %v7112
      %7269 = vmatpush.msra.mxu0 %v7109
      %7270 = vmatpush.msra.mxu0 %v7106
      %7271 = vmatpush.msra.mxu0 %v7103
      %7272 = vmatpush.msra.mxu0 %v7100
      %7273 = vmatpush.msra.mxu0 %v7097
      %7274 = vmatmul.f32.gmra.mxu0 %v6932
      %v7275 = vpop.f32.mrf.mxu0
      %v7276 = vadd.f32 0.0, %v7275
      %7277 = vdwg.mxu0
      %7278 = vmatpush.msra.mxu0 0.0
      %7279 = vmatpush.msra.mxu0 0.0
      %7280 = vmatpush.msra.mxu0 0.0
      %7281 = vmatpush.msra.mxu0 0.0
      %7282 = vmatpush.msra.mxu0 0.0
      %7283 = vmatpush.msra.mxu0 0.0
      %7284 = vmatpush.msra.mxu0 0.0
      %7285 = vmatpush.msra.mxu0 0.0
      %7286 = vmatpush.msra.mxu0 0.0
      %7287 = vmatpush.msra.mxu0 0.0
      %7288 = vmatpush.msra.mxu0 0.0
      %7289 = vmatpush.msra.mxu0 0.0
      %7290 = vmatpush.msra.mxu0 %v7154
      %7291 = vmatpush.msra.mxu0 %v7151
      %7292 = vmatpush.msra.mxu0 %v7148
      %7293 = vmatpush.msra.mxu0 %v7145
      %7294 = vmatmul.f32.gmra.mxu0 %v7216
      %v7295 = vpop.f32.mrf.mxu0
      %v7296 = vadd.f32 %v7276, %v7295
      %7297 = vdwg.mxu0
      %7298 = vmatpush.msra.mxu0 %v7143
      %7299 = vmatpush.msra.mxu0 %v7140
      %7300 = vmatpush.msra.mxu0 %v7137
      %7301 = vmatpush.msra.mxu0 %v7134
      %7302 = vmatpush.msra.mxu0 %v7131
      %7303 = vmatpush.msra.mxu0 %v7128
      %7304 = vmatpush.msra.mxu0 %v7125
      %7305 = vmatpush.msra.mxu0 %v7122
      %7306 = vmatpush.msra.mxu0 %v7119
      %7307 = vmatpush.msra.mxu0 %v7116
      %7308 = vmatpush.msra.mxu0 %v7113
      %7309 = vmatpush.msra.mxu0 %v7110
      %7310 = vmatpush.msra.mxu0 %v7107
      %7311 = vmatpush.msra.mxu0 %v7104
      %7312 = vmatpush.msra.mxu0 %v7101
      %7313 = vmatpush.msra.mxu0 %v7098
      %7314 = vmatmul.f32.gmra.mxu0 %v6932
      %v7315 = vpop.f32.mrf.mxu0
      %v7316 = vadd.f32 0.0, %v7315
      %7317 = vdwg.mxu0
      %7318 = vmatpush.msra.mxu0 0.0
      %7319 = vmatpush.msra.mxu0 0.0
      %7320 = vmatpush.msra.mxu0 0.0
      %7321 = vmatpush.msra.mxu0 0.0
      %7322 = vmatpush.msra.mxu0 0.0
      %7323 = vmatpush.msra.mxu0 0.0
      %7324 = vmatpush.msra.mxu0 0.0
      %7325 = vmatpush.msra.mxu0 0.0
      %7326 = vmatpush.msra.mxu0 0.0
      %7327 = vmatpush.msra.mxu0 0.0
      %7328 = vmatpush.msra.mxu0 0.0
      %7329 = vmatpush.msra.mxu0 0.0
      %7330 = vmatpush.msra.mxu0 %v7155
      %7331 = vmatpush.msra.mxu0 %v7152
      %7332 = vmatpush.msra.mxu0 %v7149
      %7333 = vmatpush.msra.mxu0 %v7146
      %7334 = vmatmul.f32.gmra.mxu0 %v7216
      %v7335 = vpop.f32.mrf.mxu0
      %v7336 = vadd.f32 %v7316, %v7335
      %7337 = vdwg.mxu0
      %v7338 = vadd.f32 %v6717, %v7256
      %v7339 = vadd.f32 %v6718, %v7296
      %v7340 = vadd.f32 %v6719, %v7336
      %v7341 = vld [vmem:[#allocation3 + $0x8] sm:$0xff]
      %v7342 = vld [vmem:[#allocation3 + $0x10] sm:$0xff]
      %v7343 = vld [vmem:[#allocation3 + $0x18] sm:$0xff]
      %v7344 = vld [vmem:[#allocation3 + $0x20] sm:$0xff]
      %v7345 = vld [vmem:[#allocation3 + $0x30] sm:$0xff]
      %v7346 = vld [vmem:[#allocation3 + $0x38] sm:$0xff]
      %v7347 = vld [vmem:[#allocation3 + $0x40] sm:$0xff]
      %v7348 = vld [vmem:[#allocation3 + $0x48] sm:$0xff]
      %v7349 = vld [vmem:[#allocation3 + $0x58] sm:$0xff]
      %v7350 = vld [vmem:[#allocation3 + $0x60] sm:$0xff]
      %v7351 = vld [vmem:[#allocation3 + $0x68] sm:$0xff]
      %v7352 = vld [vmem:[#allocation3 + $0x70] sm:$0xff]
      %v7353 = vld [vmem:[#allocation3 + $0x80] sm:$0xff]
      %v7354 = vld [vmem:[#allocation3 + $0x88] sm:$0xff]
      %v7355 = vld [vmem:[#allocation3 + $0x90] sm:$0xff]
      %v7356 = vld [vmem:[#allocation3 + $0x98] sm:$0xff]
      %7373 = vrot.lane.b32.xlu0 %v7341, 127
      %v7374 = vpop.permute.xlu0 %7373
      %7375 = vrot.lane.b32.xlu0 %v7342, 127
      %v7376 = vpop.permute.xlu0 %7375
      %7377 = vrot.lane.b32.xlu0 %v7343, 127
      %v7378 = vpop.permute.xlu0 %7377
      %7379 = vrot.lane.b32.xlu0 %v7344, 127
      %v7380 = vpop.permute.xlu0 %7379
      %7381 = vrot.lane.b32.xlu0 %v7345, 127
      %v7382 = vpop.permute.xlu0 %7381
      %7383 = vrot.lane.b32.xlu0 %v7346, 127
      %v7384 = vpop.permute.xlu0 %7383
      %7385 = vrot.lane.b32.xlu0 %v7347, 127
      %v7386 = vpop.permute.xlu0 %7385
      %7387 = vrot.lane.b32.xlu0 %v7348, 127
      %v7388 = vpop.permute.xlu0 %7387
      %7389 = vrot.lane.b32.xlu0 %v7349, 127
      %v7390 = vpop.permute.xlu0 %7389
      %7391 = vrot.lane.b32.xlu0 %v7350, 127
      %v7392 = vpop.permute.xlu0 %7391
      %7393 = vrot.lane.b32.xlu0 %v7351, 127
      %v7394 = vpop.permute.xlu0 %7393
      %7395 = vrot.lane.b32.xlu0 %v7352, 127
      %v7396 = vpop.permute.xlu0 %7395
      %7397 = vrot.lane.b32.xlu0 %v7353, 127
      %v7398 = vpop.permute.xlu0 %7397
      %7399 = vrot.lane.b32.xlu0 %v7354, 127
      %v7400 = vpop.permute.xlu0 %7399
      %7401 = vrot.lane.b32.xlu0 %v7355, 127
      %v7402 = vpop.permute.xlu0 %7401
      %7403 = vrot.lane.b32.xlu0 %v7356, 127
      %v7404 = vpop.permute.xlu0 %7403
      %v7405 = vsel %vm735, %v7374, %v7376
      %v7406 = vsel %vm735, %v7376, %v7378
      %v7407 = vsel %vm735, %v7378, %v7380
      %v7408 = vsel %vm735, %v7382, %v7384
      %v7409 = vsel %vm735, %v7384, %v7386
      %v7410 = vsel %vm735, %v7386, %v7388
      %v7411 = vsel %vm735, %v7390, %v7392
      %v7412 = vsel %vm735, %v7392, %v7394
      %v7413 = vsel %vm735, %v7394, %v7396
      %v7414 = vsel %vm735, %v7398, %v7400
      %v7415 = vsel %vm735, %v7400, %v7402
      %v7416 = vsel %vm735, %v7402, %v7404
      %7417 = vrot.lane.b32.xlu0 %v7341, 126
      %v7418 = vpop.permute.xlu0 %7417
      %7419 = vrot.lane.b32.xlu0 %v7342, 126
      %v7420 = vpop.permute.xlu0 %7419
      %7421 = vrot.lane.b32.xlu0 %v7343, 126
      %v7422 = vpop.permute.xlu0 %7421
      %7423 = vrot.lane.b32.xlu0 %v7344, 126
      %v7424 = vpop.permute.xlu0 %7423
      %7425 = vrot.lane.b32.xlu0 %v7345, 126
      %v7426 = vpop.permute.xlu0 %7425
      %7427 = vrot.lane.b32.xlu0 %v7346, 126
      %v7428 = vpop.permute.xlu0 %7427
      %7429 = vrot.lane.b32.xlu0 %v7347, 126
      %v7430 = vpop.permute.xlu0 %7429
      %7431 = vrot.lane.b32.xlu0 %v7348, 126
      %v7432 = vpop.permute.xlu0 %7431
      %7433 = vrot.lane.b32.xlu0 %v7349, 126
      %v7434 = vpop.permute.xlu0 %7433
      %7435 = vrot.lane.b32.xlu0 %v7350, 126
      %v7436 = vpop.permute.xlu0 %7435
      %7437 = vrot.lane.b32.xlu0 %v7351, 126
      %v7438 = vpop.permute.xlu0 %7437
      %7439 = vrot.lane.b32.xlu0 %v7352, 126
      %v7440 = vpop.permute.xlu0 %7439
      %7441 = vrot.lane.b32.xlu0 %v7353, 126
      %v7442 = vpop.permute.xlu0 %7441
      %7443 = vrot.lane.b32.xlu0 %v7354, 126
      %v7444 = vpop.permute.xlu0 %7443
      %7445 = vrot.lane.b32.xlu0 %v7355, 126
      %v7446 = vpop.permute.xlu0 %7445
      %7447 = vrot.lane.b32.xlu0 %v7356, 126
      %v7448 = vpop.permute.xlu0 %7447
      %v7449 = vsel %vm747, %v7418, %v7420
      %v7450 = vsel %vm747, %v7420, %v7422
      %v7451 = vsel %vm747, %v7422, %v7424
      %v7452 = vsel %vm747, %v7426, %v7428
      %v7453 = vsel %vm747, %v7428, %v7430
      %v7454 = vsel %vm747, %v7430, %v7432
      %v7455 = vsel %vm747, %v7434, %v7436
      %v7456 = vsel %vm747, %v7436, %v7438
      %v7457 = vsel %vm747, %v7438, %v7440
      %v7458 = vsel %vm747, %v7442, %v7444
      %v7459 = vsel %vm747, %v7444, %v7446
      %v7460 = vsel %vm747, %v7446, %v7448
      %7461 = vrot.lane.b32.xlu0 %v7341, 125
      %v7462 = vpop.permute.xlu0 %7461
      %7463 = vrot.lane.b32.xlu0 %v7342, 125
      %v7464 = vpop.permute.xlu0 %7463
      %7465 = vrot.lane.b32.xlu0 %v7343, 125
      %v7466 = vpop.permute.xlu0 %7465
      %7467 = vrot.lane.b32.xlu0 %v7344, 125
      %v7468 = vpop.permute.xlu0 %7467
      %7469 = vrot.lane.b32.xlu0 %v7345, 125
      %v7470 = vpop.permute.xlu0 %7469
      %7471 = vrot.lane.b32.xlu0 %v7346, 125
      %v7472 = vpop.permute.xlu0 %7471
      %7473 = vrot.lane.b32.xlu0 %v7347, 125
      %v7474 = vpop.permute.xlu0 %7473
      %7475 = vrot.lane.b32.xlu0 %v7348, 125
      %v7476 = vpop.permute.xlu0 %7475
      %7477 = vrot.lane.b32.xlu0 %v7349, 125
      %v7478 = vpop.permute.xlu0 %7477
      %7479 = vrot.lane.b32.xlu0 %v7350, 125
      %v7480 = vpop.permute.xlu0 %7479
      %7481 = vrot.lane.b32.xlu0 %v7351, 125
      %v7482 = vpop.permute.xlu0 %7481
      %7483 = vrot.lane.b32.xlu0 %v7352, 125
      %v7484 = vpop.permute.xlu0 %7483
      %7485 = vrot.lane.b32.xlu0 %v7353, 125
      %v7486 = vpop.permute.xlu0 %7485
      %7487 = vrot.lane.b32.xlu0 %v7354, 125
      %v7488 = vpop.permute.xlu0 %7487
      %7489 = vrot.lane.b32.xlu0 %v7355, 125
      %v7490 = vpop.permute.xlu0 %7489
      %7491 = vrot.lane.b32.xlu0 %v7356, 125
      %v7492 = vpop.permute.xlu0 %7491
      %v7493 = vsel %vm759, %v7462, %v7464
      %v7494 = vsel %vm759, %v7464, %v7466
      %v7495 = vsel %vm759, %v7466, %v7468
      %v7496 = vsel %vm759, %v7470, %v7472
      %v7497 = vsel %vm759, %v7472, %v7474
      %v7498 = vsel %vm759, %v7474, %v7476
      %v7499 = vsel %vm759, %v7478, %v7480
      %v7500 = vsel %vm759, %v7480, %v7482
      %v7501 = vsel %vm759, %v7482, %v7484
      %v7502 = vsel %vm759, %v7486, %v7488
      %v7503 = vsel %vm759, %v7488, %v7490
      %v7504 = vsel %vm759, %v7490, %v7492
      %7505 = vrot.lane.b32.xlu0 %v7341, 124
      %v7506 = vpop.permute.xlu0 %7505
      %7507 = vrot.lane.b32.xlu0 %v7342, 124
      %v7508 = vpop.permute.xlu0 %7507
      %7509 = vrot.lane.b32.xlu0 %v7343, 124
      %v7510 = vpop.permute.xlu0 %7509
      %7511 = vrot.lane.b32.xlu0 %v7344, 124
      %v7512 = vpop.permute.xlu0 %7511
      %7513 = vrot.lane.b32.xlu0 %v7345, 124
      %v7514 = vpop.permute.xlu0 %7513
      %7515 = vrot.lane.b32.xlu0 %v7346, 124
      %v7516 = vpop.permute.xlu0 %7515
      %7517 = vrot.lane.b32.xlu0 %v7347, 124
      %v7518 = vpop.permute.xlu0 %7517
      %7519 = vrot.lane.b32.xlu0 %v7348, 124
      %v7520 = vpop.permute.xlu0 %7519
      %7521 = vrot.lane.b32.xlu0 %v7349, 124
      %v7522 = vpop.permute.xlu0 %7521
      %7523 = vrot.lane.b32.xlu0 %v7350, 124
      %v7524 = vpop.permute.xlu0 %7523
      %7525 = vrot.lane.b32.xlu0 %v7351, 124
      %v7526 = vpop.permute.xlu0 %7525
      %7527 = vrot.lane.b32.xlu0 %v7352, 124
      %v7528 = vpop.permute.xlu0 %7527
      %7529 = vrot.lane.b32.xlu0 %v7353, 124
      %v7530 = vpop.permute.xlu0 %7529
      %7531 = vrot.lane.b32.xlu0 %v7354, 124
      %v7532 = vpop.permute.xlu0 %7531
      %7533 = vrot.lane.b32.xlu0 %v7355, 124
      %v7534 = vpop.permute.xlu0 %7533
      %7535 = vrot.lane.b32.xlu0 %v7356, 124
      %v7536 = vpop.permute.xlu0 %7535
      %v7537 = vsel %vm771, %v7506, %v7508
      %v7538 = vsel %vm771, %v7508, %v7510
      %v7539 = vsel %vm771, %v7510, %v7512
      %v7540 = vsel %vm771, %v7514, %v7516
      %v7541 = vsel %vm771, %v7516, %v7518
      %v7542 = vsel %vm771, %v7518, %v7520
      %v7543 = vsel %vm771, %v7522, %v7524
      %v7544 = vsel %vm771, %v7524, %v7526
      %v7545 = vsel %vm771, %v7526, %v7528
      %v7546 = vsel %vm771, %v7530, %v7532
      %v7547 = vsel %vm771, %v7532, %v7534
      %v7548 = vsel %vm771, %v7534, %v7536
      %s7549 = scalar_lea.vmem %s9, 32
      %v7550 = vld [vmem:[%s7549] sm:$0x77]
      %7552 = vst [vmem:[#allocation1] ss:$2 sm:$0xff] %v7550
      %v7553 = vld.sshfl [vmem:[#allocation1] sm:$0xff pattern:$0x75316420]
      %v7554 = vld.sshfl [vmem:[#allocation1 + $0x8] sm:$0xff pattern:$0x75316420]
      %7556 = vrot.lane.b32.xlu0 %v7341, 82
      %v7557 = vpop.permute.xlu0 %7556
      %7558 = vrot.lane.b32.xlu0 %v7342, 82
      %v7559 = vpop.permute.xlu0 %7558
      %7560 = vrot.lane.b32.xlu0 %v7343, 82
      %v7561 = vpop.permute.xlu0 %7560
      %7562 = vrot.lane.b32.xlu0 %v7344, 82
      %v7563 = vpop.permute.xlu0 %7562
      %7564 = vrot.lane.b32.xlu0 %v7345, 82
      %v7565 = vpop.permute.xlu0 %7564
      %7566 = vrot.lane.b32.xlu0 %v7346, 82
      %v7567 = vpop.permute.xlu0 %7566
      %7568 = vrot.lane.b32.xlu0 %v7347, 82
      %v7569 = vpop.permute.xlu0 %7568
      %7570 = vrot.lane.b32.xlu0 %v7348, 82
      %v7571 = vpop.permute.xlu0 %7570
      %7572 = vrot.lane.b32.xlu0 %v7349, 82
      %v7573 = vpop.permute.xlu0 %7572
      %7574 = vrot.lane.b32.xlu0 %v7350, 82
      %v7575 = vpop.permute.xlu0 %7574
      %7576 = vrot.lane.b32.xlu0 %v7351, 82
      %v7577 = vpop.permute.xlu0 %7576
      %7578 = vrot.lane.b32.xlu0 %v7352, 82
      %v7579 = vpop.permute.xlu0 %7578
      %7580 = vrot.lane.b32.xlu0 %v7353, 82
      %v7581 = vpop.permute.xlu0 %7580
      %7582 = vrot.lane.b32.xlu0 %v7354, 82
      %v7583 = vpop.permute.xlu0 %7582
      %7584 = vrot.lane.b32.xlu0 %v7355, 82
      %v7585 = vpop.permute.xlu0 %7584
      %7586 = vrot.lane.b32.xlu0 %v7356, 82
      %v7587 = vpop.permute.xlu0 %7586
      %7588 = vrot.lane.b32.xlu0 %v7405, 82
      %v7589 = vpop.permute.xlu0 %7588
      %7590 = vrot.lane.b32.xlu0 %v7406, 82
      %v7591 = vpop.permute.xlu0 %7590
      %7592 = vrot.lane.b32.xlu0 %v7407, 82
      %v7593 = vpop.permute.xlu0 %7592
      %7594 = vrot.lane.b32.xlu0 %v7380, 82
      %v7595 = vpop.permute.xlu0 %7594
      %7596 = vrot.lane.b32.xlu0 %v7408, 82
      %v7597 = vpop.permute.xlu0 %7596
      %7598 = vrot.lane.b32.xlu0 %v7409, 82
      %v7599 = vpop.permute.xlu0 %7598
      %7600 = vrot.lane.b32.xlu0 %v7410, 82
      %v7601 = vpop.permute.xlu0 %7600
      %7602 = vrot.lane.b32.xlu0 %v7388, 82
      %v7603 = vpop.permute.xlu0 %7602
      %7604 = vrot.lane.b32.xlu0 %v7411, 82
      %v7605 = vpop.permute.xlu0 %7604
      %7606 = vrot.lane.b32.xlu0 %v7412, 82
      %v7607 = vpop.permute.xlu0 %7606
      %7608 = vrot.lane.b32.xlu0 %v7413, 82
      %v7609 = vpop.permute.xlu0 %7608
      %7610 = vrot.lane.b32.xlu0 %v7396, 82
      %v7611 = vpop.permute.xlu0 %7610
      %7612 = vrot.lane.b32.xlu0 %v7414, 82
      %v7613 = vpop.permute.xlu0 %7612
      %7614 = vrot.lane.b32.xlu0 %v7415, 82
      %v7615 = vpop.permute.xlu0 %7614
      %7616 = vrot.lane.b32.xlu0 %v7416, 82
      %v7617 = vpop.permute.xlu0 %7616
      %7618 = vrot.lane.b32.xlu0 %v7404, 82
      %v7619 = vpop.permute.xlu0 %7618
      %7620 = vrot.lane.b32.xlu0 %v7449, 82
      %v7621 = vpop.permute.xlu0 %7620
      %7622 = vrot.lane.b32.xlu0 %v7450, 82
      %v7623 = vpop.permute.xlu0 %7622
      %7624 = vrot.lane.b32.xlu0 %v7451, 82
      %v7625 = vpop.permute.xlu0 %7624
      %7626 = vrot.lane.b32.xlu0 %v7424, 82
      %v7627 = vpop.permute.xlu0 %7626
      %7628 = vrot.lane.b32.xlu0 %v7452, 82
      %v7629 = vpop.permute.xlu0 %7628
      %7630 = vrot.lane.b32.xlu0 %v7453, 82
      %v7631 = vpop.permute.xlu0 %7630
      %7632 = vrot.lane.b32.xlu0 %v7454, 82
      %v7633 = vpop.permute.xlu0 %7632
      %7634 = vrot.lane.b32.xlu0 %v7432, 82
      %v7635 = vpop.permute.xlu0 %7634
      %7636 = vrot.lane.b32.xlu0 %v7455, 82
      %v7637 = vpop.permute.xlu0 %7636
      %7638 = vrot.lane.b32.xlu0 %v7456, 82
      %v7639 = vpop.permute.xlu0 %7638
      %7640 = vrot.lane.b32.xlu0 %v7457, 82
      %v7641 = vpop.permute.xlu0 %7640
      %7642 = vrot.lane.b32.xlu0 %v7440, 82
      %v7643 = vpop.permute.xlu0 %7642
      %7644 = vrot.lane.b32.xlu0 %v7458, 82
      %v7645 = vpop.permute.xlu0 %7644
      %7646 = vrot.lane.b32.xlu0 %v7459, 82
      %v7647 = vpop.permute.xlu0 %7646
      %7648 = vrot.lane.b32.xlu0 %v7460, 82
      %v7649 = vpop.permute.xlu0 %7648
      %7650 = vrot.lane.b32.xlu0 %v7448, 82
      %v7651 = vpop.permute.xlu0 %7650
      %7652 = vrot.lane.b32.xlu0 %v7493, 82
      %v7653 = vpop.permute.xlu0 %7652
      %7654 = vrot.lane.b32.xlu0 %v7494, 82
      %v7655 = vpop.permute.xlu0 %7654
      %7656 = vrot.lane.b32.xlu0 %v7495, 82
      %v7657 = vpop.permute.xlu0 %7656
      %7658 = vrot.lane.b32.xlu0 %v7468, 82
      %v7659 = vpop.permute.xlu0 %7658
      %7660 = vrot.lane.b32.xlu0 %v7496, 82
      %v7661 = vpop.permute.xlu0 %7660
      %7662 = vrot.lane.b32.xlu0 %v7497, 82
      %v7663 = vpop.permute.xlu0 %7662
      %7664 = vrot.lane.b32.xlu0 %v7498, 82
      %v7665 = vpop.permute.xlu0 %7664
      %7666 = vrot.lane.b32.xlu0 %v7476, 82
      %v7667 = vpop.permute.xlu0 %7666
      %7668 = vrot.lane.b32.xlu0 %v7499, 82
      %v7669 = vpop.permute.xlu0 %7668
      %7670 = vrot.lane.b32.xlu0 %v7500, 82
      %v7671 = vpop.permute.xlu0 %7670
      %7672 = vrot.lane.b32.xlu0 %v7501, 82
      %v7673 = vpop.permute.xlu0 %7672
      %7674 = vrot.lane.b32.xlu0 %v7484, 82
      %v7675 = vpop.permute.xlu0 %7674
      %7676 = vrot.lane.b32.xlu0 %v7502, 82
      %v7677 = vpop.permute.xlu0 %7676
      %7678 = vrot.lane.b32.xlu0 %v7503, 82
      %v7679 = vpop.permute.xlu0 %7678
      %7680 = vrot.lane.b32.xlu0 %v7504, 82
      %v7681 = vpop.permute.xlu0 %7680
      %7682 = vrot.lane.b32.xlu0 %v7492, 82
      %v7683 = vpop.permute.xlu0 %7682
      %7684 = vrot.lane.b32.xlu0 %v7537, 82
      %v7685 = vpop.permute.xlu0 %7684
      %7686 = vrot.lane.b32.xlu0 %v7538, 82
      %v7687 = vpop.permute.xlu0 %7686
      %7688 = vrot.lane.b32.xlu0 %v7539, 82
      %v7689 = vpop.permute.xlu0 %7688
      %7690 = vrot.lane.b32.xlu0 %v7512, 82
      %v7691 = vpop.permute.xlu0 %7690
      %7692 = vrot.lane.b32.xlu0 %v7540, 82
      %v7693 = vpop.permute.xlu0 %7692
      %7694 = vrot.lane.b32.xlu0 %v7541, 82
      %v7695 = vpop.permute.xlu0 %7694
      %7696 = vrot.lane.b32.xlu0 %v7542, 82
      %v7697 = vpop.permute.xlu0 %7696
      %7698 = vrot.lane.b32.xlu0 %v7520, 82
      %v7699 = vpop.permute.xlu0 %7698
      %7700 = vrot.lane.b32.xlu0 %v7543, 82
      %v7701 = vpop.permute.xlu0 %7700
      %7702 = vrot.lane.b32.xlu0 %v7544, 82
      %v7703 = vpop.permute.xlu0 %7702
      %7704 = vrot.lane.b32.xlu0 %v7545, 82
      %v7705 = vpop.permute.xlu0 %7704
      %7706 = vrot.lane.b32.xlu0 %v7528, 82
      %v7707 = vpop.permute.xlu0 %7706
      %7708 = vrot.lane.b32.xlu0 %v7546, 82
      %v7709 = vpop.permute.xlu0 %7708
      %7710 = vrot.lane.b32.xlu0 %v7547, 82
      %v7711 = vpop.permute.xlu0 %7710
      %7712 = vrot.lane.b32.xlu0 %v7548, 82
      %v7713 = vpop.permute.xlu0 %7712
      %7714 = vrot.lane.b32.xlu0 %v7536, 82
      %v7715 = vpop.permute.xlu0 %7714
      %vm7716 = vcmask 670720
      %v7717 = vsel %vm7716, %v7557, %v7559
      %v7718 = vsel %vm7716, %v7559, %v7561
      %v7719 = vsel %vm7716, %v7561, %v7563
      %v7720 = vsel %vm7716, %v7565, %v7567
      %v7721 = vsel %vm7716, %v7567, %v7569
      %v7722 = vsel %vm7716, %v7569, %v7571
      %v7723 = vsel %vm7716, %v7573, %v7575
      %v7724 = vsel %vm7716, %v7575, %v7577
      %v7725 = vsel %vm7716, %v7577, %v7579
      %v7726 = vsel %vm7716, %v7581, %v7583
      %v7727 = vsel %vm7716, %v7583, %v7585
      %v7728 = vsel %vm7716, %v7585, %v7587
      %v7729 = vsel %vm7716, %v7589, %v7591
      %v7730 = vsel %vm7716, %v7591, %v7593
      %v7731 = vsel %vm7716, %v7593, %v7595
      %v7732 = vsel %vm7716, %v7597, %v7599
      %v7733 = vsel %vm7716, %v7599, %v7601
      %v7734 = vsel %vm7716, %v7601, %v7603
      %v7735 = vsel %vm7716, %v7605, %v7607
      %v7736 = vsel %vm7716, %v7607, %v7609
      %v7737 = vsel %vm7716, %v7609, %v7611
      %v7738 = vsel %vm7716, %v7613, %v7615
      %v7739 = vsel %vm7716, %v7615, %v7617
      %v7740 = vsel %vm7716, %v7617, %v7619
      %v7741 = vsel %vm7716, %v7621, %v7623
      %v7742 = vsel %vm7716, %v7623, %v7625
      %v7743 = vsel %vm7716, %v7625, %v7627
      %v7744 = vsel %vm7716, %v7629, %v7631
      %v7745 = vsel %vm7716, %v7631, %v7633
      %v7746 = vsel %vm7716, %v7633, %v7635
      %v7747 = vsel %vm7716, %v7637, %v7639
      %v7748 = vsel %vm7716, %v7639, %v7641
      %v7749 = vsel %vm7716, %v7641, %v7643
      %v7750 = vsel %vm7716, %v7645, %v7647
      %v7751 = vsel %vm7716, %v7647, %v7649
      %v7752 = vsel %vm7716, %v7649, %v7651
      %v7753 = vsel %vm7716, %v7653, %v7655
      %v7754 = vsel %vm7716, %v7655, %v7657
      %v7755 = vsel %vm7716, %v7657, %v7659
      %v7756 = vsel %vm7716, %v7661, %v7663
      %v7757 = vsel %vm7716, %v7663, %v7665
      %v7758 = vsel %vm7716, %v7665, %v7667
      %v7759 = vsel %vm7716, %v7669, %v7671
      %v7760 = vsel %vm7716, %v7671, %v7673
      %v7761 = vsel %vm7716, %v7673, %v7675
      %v7762 = vsel %vm7716, %v7677, %v7679
      %v7763 = vsel %vm7716, %v7679, %v7681
      %v7764 = vsel %vm7716, %v7681, %v7683
      %v7765 = vsel %vm7716, %v7685, %v7687
      %v7766 = vsel %vm7716, %v7687, %v7689
      %v7767 = vsel %vm7716, %v7689, %v7691
      %v7768 = vsel %vm7716, %v7693, %v7695
      %v7769 = vsel %vm7716, %v7695, %v7697
      %v7770 = vsel %vm7716, %v7697, %v7699
      %v7771 = vsel %vm7716, %v7701, %v7703
      %v7772 = vsel %vm7716, %v7703, %v7705
      %v7773 = vsel %vm7716, %v7705, %v7707
      %v7774 = vsel %vm7716, %v7709, %v7711
      %v7775 = vsel %vm7716, %v7711, %v7713
      %v7776 = vsel %vm7716, %v7713, %v7715
      %v7837 = vsel %vm5548, %v7554, 0
      %7839 = vmatpush.msra.mxu0 %v7762
      %7840 = vmatpush.msra.mxu0 %v7759
      %7841 = vmatpush.msra.mxu0 %v7756
      %7842 = vmatpush.msra.mxu0 %v7753
      %7843 = vmatpush.msra.mxu0 %v7750
      %7844 = vmatpush.msra.mxu0 %v7747
      %7845 = vmatpush.msra.mxu0 %v7744
      %7846 = vmatpush.msra.mxu0 %v7741
      %7847 = vmatpush.msra.mxu0 %v7738
      %7848 = vmatpush.msra.mxu0 %v7735
      %7849 = vmatpush.msra.mxu0 %v7732
      %7850 = vmatpush.msra.mxu0 %v7729
      %7851 = vmatpush.msra.mxu0 %v7726
      %7852 = vmatpush.msra.mxu0 %v7723
      %7853 = vmatpush.msra.mxu0 %v7720
      %7854 = vmatpush.msra.mxu0 %v7717
      %7855 = vmatmul.f32.gmra.mxu0 %v7553
      %v7856 = vpop.f32.mrf.mxu0
      %v7857 = vadd.f32 0.0, %v7856
      %7858 = vdwg.mxu0
      %7859 = vmatpush.msra.mxu0 0.0
      %7860 = vmatpush.msra.mxu0 0.0
      %7861 = vmatpush.msra.mxu0 0.0
      %7862 = vmatpush.msra.mxu0 0.0
      %7863 = vmatpush.msra.mxu0 0.0
      %7864 = vmatpush.msra.mxu0 0.0
      %7865 = vmatpush.msra.mxu0 0.0
      %7866 = vmatpush.msra.mxu0 0.0
      %7867 = vmatpush.msra.mxu0 0.0
      %7868 = vmatpush.msra.mxu0 0.0
      %7869 = vmatpush.msra.mxu0 0.0
      %7870 = vmatpush.msra.mxu0 0.0
      %7871 = vmatpush.msra.mxu0 %v7774
      %7872 = vmatpush.msra.mxu0 %v7771
      %7873 = vmatpush.msra.mxu0 %v7768
      %7874 = vmatpush.msra.mxu0 %v7765
      %7875 = vmatmul.f32.gmra.mxu0 %v7837
      %v7876 = vpop.f32.mrf.mxu0
      %v7877 = vadd.f32 %v7857, %v7876
      %7878 = vdwg.mxu0
      %7879 = vmatpush.msra.mxu0 %v7763
      %7880 = vmatpush.msra.mxu0 %v7760
      %7881 = vmatpush.msra.mxu0 %v7757
      %7882 = vmatpush.msra.mxu0 %v7754
      %7883 = vmatpush.msra.mxu0 %v7751
      %7884 = vmatpush.msra.mxu0 %v7748
      %7885 = vmatpush.msra.mxu0 %v7745
      %7886 = vmatpush.msra.mxu0 %v7742
      %7887 = vmatpush.msra.mxu0 %v7739
      %7888 = vmatpush.msra.mxu0 %v7736
      %7889 = vmatpush.msra.mxu0 %v7733
      %7890 = vmatpush.msra.mxu0 %v7730
      %7891 = vmatpush.msra.mxu0 %v7727
      %7892 = vmatpush.msra.mxu0 %v7724
      %7893 = vmatpush.msra.mxu0 %v7721
      %7894 = vmatpush.msra.mxu0 %v7718
      %7895 = vmatmul.f32.gmra.mxu0 %v7553
      %v7896 = vpop.f32.mrf.mxu0
      %v7897 = vadd.f32 0.0, %v7896
      %7898 = vdwg.mxu0
      %7899 = vmatpush.msra.mxu0 0.0
      %7900 = vmatpush.msra.mxu0 0.0
      %7901 = vmatpush.msra.mxu0 0.0
      %7902 = vmatpush.msra.mxu0 0.0
      %7903 = vmatpush.msra.mxu0 0.0
      %7904 = vmatpush.msra.mxu0 0.0
      %7905 = vmatpush.msra.mxu0 0.0
      %7906 = vmatpush.msra.mxu0 0.0
      %7907 = vmatpush.msra.mxu0 0.0
      %7908 = vmatpush.msra.mxu0 0.0
      %7909 = vmatpush.msra.mxu0 0.0
      %7910 = vmatpush.msra.mxu0 0.0
      %7911 = vmatpush.msra.mxu0 %v7775
      %7912 = vmatpush.msra.mxu0 %v7772
      %7913 = vmatpush.msra.mxu0 %v7769
      %7914 = vmatpush.msra.mxu0 %v7766
      %7915 = vmatmul.f32.gmra.mxu0 %v7837
      %v7916 = vpop.f32.mrf.mxu0
      %v7917 = vadd.f32 %v7897, %v7916
      %7918 = vdwg.mxu0
      %7919 = vmatpush.msra.mxu0 %v7764
      %7920 = vmatpush.msra.mxu0 %v7761
      %7921 = vmatpush.msra.mxu0 %v7758
      %7922 = vmatpush.msra.mxu0 %v7755
      %7923 = vmatpush.msra.mxu0 %v7752
      %7924 = vmatpush.msra.mxu0 %v7749
      %7925 = vmatpush.msra.mxu0 %v7746
      %7926 = vmatpush.msra.mxu0 %v7743
      %7927 = vmatpush.msra.mxu0 %v7740
      %7928 = vmatpush.msra.mxu0 %v7737
      %7929 = vmatpush.msra.mxu0 %v7734
      %7930 = vmatpush.msra.mxu0 %v7731
      %7931 = vmatpush.msra.mxu0 %v7728
      %7932 = vmatpush.msra.mxu0 %v7725
      %7933 = vmatpush.msra.mxu0 %v7722
      %7934 = vmatpush.msra.mxu0 %v7719
      %7935 = vmatmul.f32.gmra.mxu0 %v7553
      %v7936 = vpop.f32.mrf.mxu0
      %v7937 = vadd.f32 0.0, %v7936
      %7938 = vdwg.mxu0
      %7939 = vmatpush.msra.mxu0 0.0
      %7940 = vmatpush.msra.mxu0 0.0
      %7941 = vmatpush.msra.mxu0 0.0
      %7942 = vmatpush.msra.mxu0 0.0
      %7943 = vmatpush.msra.mxu0 0.0
      %7944 = vmatpush.msra.mxu0 0.0
      %7945 = vmatpush.msra.mxu0 0.0
      %7946 = vmatpush.msra.mxu0 0.0
      %7947 = vmatpush.msra.mxu0 0.0
      %7948 = vmatpush.msra.mxu0 0.0
      %7949 = vmatpush.msra.mxu0 0.0
      %7950 = vmatpush.msra.mxu0 0.0
      %7951 = vmatpush.msra.mxu0 %v7776
      %7952 = vmatpush.msra.mxu0 %v7773
      %7953 = vmatpush.msra.mxu0 %v7770
      %7954 = vmatpush.msra.mxu0 %v7767
      %7955 = vmatmul.f32.gmra.mxu0 %v7837
      %v7956 = vpop.f32.mrf.mxu0
      %v7957 = vadd.f32 %v7937, %v7956
      %7958 = vdwg.mxu0
      %v7959 = vadd.f32 %v7338, %v7877
      %v7960 = vadd.f32 %v7339, %v7917
      %v7961 = vadd.f32 %v7340, %v7957
      %v7962 = vld [vmem:[%s10] sm:$0x7]
      %7964 = vset.pattern.permute.xlu0 0
      %7965 = vperm.xlu0 %7964, %v7962
      %v7966 = vpop.permute.xlu0 %7965
      %v7968 = vadd.f32 %v7959, %v7966
      %v7969 = vadd.f32 %v7960, %v7966
      %v7970 = vadd.f32 %v7961, %v7966
      %v7971 = vld [vmem:[%s2] sm:$0xff]
      %v7972 = vld [vmem:[%s2 + $0x8] sm:$0xff]
      %v7973 = vld [vmem:[%s2 + $0x10] sm:$0xff]
      %v7974 = vld [vmem:[%s2 + $0x18] sm:$0xff]
      %v7975 = vld [vmem:[%s2 + $0x20] sm:$0xff]
      %v7976 = vld [vmem:[%s2 + $0x28] sm:$0xff]
      %v7977 = vld [vmem:[%s2 + $0x30] sm:$0xff]
      %v7978 = vld [vmem:[%s2 + $0x38] sm:$0xff]
      %v7979 = vld [vmem:[%s2 + $0x40] sm:$0xff]
      %v7980 = vld [vmem:[%s2 + $0x48] sm:$0xff]
      %v7981 = vld [vmem:[%s2 + $0x50] sm:$0xff]
      %v7982 = vld [vmem:[%s2 + $0x58] sm:$0xff]
      %v7983 = vld [vmem:[%s2 + $0x60] sm:$0xff]
      %v7984 = vld [vmem:[%s2 + $0x68] sm:$0xff]
      %v7985 = vld [vmem:[%s2 + $0x70] sm:$0xff]
      %v7986 = vld [vmem:[%s2 + $0x78] sm:$0xff]
      %v7987 = vld [vmem:[%s2 + $0x80] sm:$0xff]
      %v7988 = vld [vmem:[%s2 + $0x88] sm:$0xff]
      %v7989 = vld [vmem:[%s2 + $0x90] sm:$0xff]
      %v7990 = vld [vmem:[%s2 + $0x98] sm:$0xff]
      %v7991 = vld [vmem:[%s2 + $0xa0] sm:$0xff]
      %v7992 = vld [vmem:[%s2 + $0xa8] sm:$0xff]
      %v7993 = vld [vmem:[%s2 + $0xb0] sm:$0xff]
      %v7994 = vld [vmem:[%s2 + $0xb8] sm:$0xff]
      %v7995 = vld [vmem:[%s2 + $0xc0] sm:$0xff]
      %v7996 = vld [vmem:[%s2 + $0xc8] sm:$0xff]
      %v7997 = vld [vmem:[%s2 + $0xd0] sm:$0xff]
      %v7998 = vld [vmem:[%s2 + $0xd8] sm:$0xff]
      %v7999 = vld [vmem:[%s2 + $0xe0] sm:$0xff]
      %v8000 = vld [vmem:[%s2 + $0xe8] sm:$0xff]
      %v8001 = vld [vmem:[%s2 + $0xf0] sm:$0xff]
      %v8002 = vld [vmem:[%s2 + $0xf8] sm:$0xff]
      %v8003 = vld [vmem:[%s2 + $0x100] sm:$0xff]
      %v8004 = vld [vmem:[%s2 + $0x108] sm:$0xff]
      %v8005 = vld [vmem:[%s2 + $0x110] sm:$0xff]
      %v8006 = vld [vmem:[%s2 + $0x118] sm:$0xff]
      %v8007 = vld [vmem:[%s2 + $0x120] sm:$0xff]
      %v8008 = vld [vmem:[%s2 + $0x128] sm:$0xff]
      %v8009 = vld [vmem:[%s2 + $0x130] sm:$0xff]
      %v8010 = vld [vmem:[%s2 + $0x138] sm:$0xff]
      %v8011 = vld [vmem:[%s2 + $0x140] sm:$0xff]
      %v8012 = vld [vmem:[%s2 + $0x148] sm:$0xff]
      %v8013 = vld [vmem:[%s2 + $0x150] sm:$0xff]
      %v8014 = vld [vmem:[%s2 + $0x158] sm:$0xff]
      %v8015 = vld [vmem:[%s2 + $0x160] sm:$0xff]
      %v8016 = vld [vmem:[%s2 + $0x168] sm:$0xff]
      %v8017 = vld [vmem:[%s2 + $0x170] sm:$0xff]
      %v8018 = vld [vmem:[%s2 + $0x178] sm:$0xff]
      %v8019 = vld [vmem:[%s2 + $0x180] sm:$0xff]
      %v8020 = vld [vmem:[%s2 + $0x188] sm:$0xff]
      %v8021 = vld [vmem:[%s2 + $0x190] sm:$0xff]
      %v8022 = vld [vmem:[%s2 + $0x198] sm:$0xff]
      %v8023 = vld [vmem:[%s2 + $0x1a0] sm:$0xff]
      %v8024 = vld [vmem:[%s2 + $0x1a8] sm:$0xff]
      %v8025 = vld [vmem:[%s2 + $0x1b0] sm:$0xff]
      %v8026 = vld [vmem:[%s2 + $0x1b8] sm:$0xff]
      %v8027 = vld [vmem:[%s2 + $0x1c0] sm:$0xff]
      %v8028 = vld [vmem:[%s2 + $0x1c8] sm:$0xff]
      %v8029 = vld [vmem:[%s2 + $0x1d0] sm:$0xff]
      %v8030 = vld [vmem:[%s2 + $0x1d8] sm:$0xff]
      %v8031 = vld [vmem:[%s2 + $0x1e0] sm:$0xff]
      %v8032 = vld [vmem:[%s2 + $0x1e8] sm:$0xff]
      %v8033 = vld [vmem:[%s2 + $0x1f0] sm:$0xff]
      %v8034 = vld [vmem:[%s2 + $0x1f8] sm:$0xff]
      %v8035 = vld [vmem:[%s2 + $0x200] sm:$0xff]
      %v8036 = vld [vmem:[%s2 + $0x208] sm:$0xff]
      %v8037 = vld [vmem:[%s2 + $0x210] sm:$0xff]
      %v8038 = vld [vmem:[%s2 + $0x218] sm:$0xff]
      %v8039 = vld [vmem:[%s2 + $0x220] sm:$0xff]
      %v8040 = vld [vmem:[%s2 + $0x228] sm:$0xff]
      %v8041 = vld [vmem:[%s2 + $0x230] sm:$0xff]
      %v8042 = vld [vmem:[%s2 + $0x238] sm:$0xff]
      %v8043 = vld [vmem:[%s2 + $0x240] sm:$0xff]
      %v8044 = vld [vmem:[%s2 + $0x248] sm:$0xff]
      %v8045 = vld [vmem:[%s2 + $0x250] sm:$0xff]
      %v8046 = vld [vmem:[%s2 + $0x258] sm:$0xff]
      %v8047 = vld [vmem:[%s2 + $0x260] sm:$0xff]
      %v8048 = vld [vmem:[%s2 + $0x268] sm:$0xff]
      %v8049 = vld [vmem:[%s2 + $0x270] sm:$0xff]
      %v8050 = vld [vmem:[%s2 + $0x278] sm:$0xff]
      %v8051 = vld [vmem:[%s2 + $0x280] sm:$0xff]
      %v8052 = vld [vmem:[%s2 + $0x288] sm:$0xff]
      %v8053 = vld [vmem:[%s2 + $0x290] sm:$0xff]
      %v8054 = vld [vmem:[%s2 + $0x298] sm:$0xff]
      %v8055 = vld [vmem:[%s2 + $0x2a0] sm:$0xff]
      %v8056 = vld [vmem:[%s2 + $0x2a8] sm:$0xff]
      %v8057 = vld [vmem:[%s2 + $0x2b0] sm:$0xff]
      %v8058 = vld [vmem:[%s2 + $0x2b8] sm:$0xff]
      %v8059 = vld [vmem:[%s2 + $0x2c0] sm:$0xff]
      %v8060 = vld [vmem:[%s2 + $0x2c8] sm:$0xff]
      %v8061 = vld [vmem:[%s2 + $0x2d0] sm:$0xff]
      %v8062 = vld [vmem:[%s2 + $0x2d8] sm:$0xff]
      %v8063 = vld [vmem:[%s2 + $0x2e0] sm:$0xff]
      %v8064 = vld [vmem:[%s2 + $0x2e8] sm:$0xff]
      %v8065 = vld [vmem:[%s2 + $0x2f0] sm:$0xff]
      %v8066 = vld [vmem:[%s2 + $0x2f8] sm:$0xff]
      %8067 = vmatpush.msra.mxu0 %v8001
      %8068 = vmatpush.msra.mxu0 %v7999
      %8069 = vmatpush.msra.mxu0 %v7997
      %8070 = vmatpush.msra.mxu0 %v7995
      %8071 = vmatpush.msra.mxu0 %v7993
      %8072 = vmatpush.msra.mxu0 %v7991
      %8073 = vmatpush.msra.mxu0 %v7989
      %8074 = vmatpush.msra.mxu0 %v7987
      %8075 = vmatpush.msra.mxu0 %v7985
      %8076 = vmatpush.msra.mxu0 %v7983
      %8077 = vmatpush.msra.mxu0 %v7981
      %8078 = vmatpush.msra.mxu0 %v7979
      %8079 = vmatpush.msra.mxu0 %v7977
      %8080 = vmatpush.msra.mxu0 %v7975
      %8081 = vmatpush.msra.mxu0 %v7973
      %8082 = vmatpush.msra.mxu0 %v7971
      %8083 = vmatmul.f32.gmra.mxu0 %v7968
      %v8084 = vpop.f32.mrf.mxu0
      %v8085 = vadd.f32 0.0, %v8084
      %8086 = vdwg.mxu0
      %8087 = vmatpush.msra.mxu0 %v8033
      %8088 = vmatpush.msra.mxu0 %v8031
      %8089 = vmatpush.msra.mxu0 %v8029
      %8090 = vmatpush.msra.mxu0 %v8027
      %8091 = vmatpush.msra.mxu0 %v8025
      %8092 = vmatpush.msra.mxu0 %v8023
      %8093 = vmatpush.msra.mxu0 %v8021
      %8094 = vmatpush.msra.mxu0 %v8019
      %8095 = vmatpush.msra.mxu0 %v8017
      %8096 = vmatpush.msra.mxu0 %v8015
      %8097 = vmatpush.msra.mxu0 %v8013
      %8098 = vmatpush.msra.mxu0 %v8011
      %8099 = vmatpush.msra.mxu0 %v8009
      %8100 = vmatpush.msra.mxu0 %v8007
      %8101 = vmatpush.msra.mxu0 %v8005
      %8102 = vmatpush.msra.mxu0 %v8003
      %8103 = vmatmul.f32.gmra.mxu0 %v7969
      %v8104 = vpop.f32.mrf.mxu0
      %v8105 = vadd.f32 %v8085, %v8104
      %8106 = vdwg.mxu0
      %8107 = vmatpush.msra.mxu0 %v8065
      %8108 = vmatpush.msra.mxu0 %v8063
      %8109 = vmatpush.msra.mxu0 %v8061
      %8110 = vmatpush.msra.mxu0 %v8059
      %8111 = vmatpush.msra.mxu0 %v8057
      %8112 = vmatpush.msra.mxu0 %v8055
      %8113 = vmatpush.msra.mxu0 %v8053
      %8114 = vmatpush.msra.mxu0 %v8051
      %8115 = vmatpush.msra.mxu0 %v8049
      %8116 = vmatpush.msra.mxu0 %v8047
      %8117 = vmatpush.msra.mxu0 %v8045
      %8118 = vmatpush.msra.mxu0 %v8043
      %8119 = vmatpush.msra.mxu0 %v8041
      %8120 = vmatpush.msra.mxu0 %v8039
      %8121 = vmatpush.msra.mxu0 %v8037
      %8122 = vmatpush.msra.mxu0 %v8035
      %8123 = vmatmul.f32.gmra.mxu0 %v7970
      %v8124 = vpop.f32.mrf.mxu0
      %v8125 = vadd.f32 %v8105, %v8124
      %8126 = vdwg.mxu0
      %8127 = vmatpush.msra.mxu0 %v8002
      %8128 = vmatpush.msra.mxu0 %v8000
      %8129 = vmatpush.msra.mxu0 %v7998
      %8130 = vmatpush.msra.mxu0 %v7996
      %8131 = vmatpush.msra.mxu0 %v7994
      %8132 = vmatpush.msra.mxu0 %v7992
      %8133 = vmatpush.msra.mxu0 %v7990
      %8134 = vmatpush.msra.mxu0 %v7988
      %8135 = vmatpush.msra.mxu0 %v7986
      %8136 = vmatpush.msra.mxu0 %v7984
      %8137 = vmatpush.msra.mxu0 %v7982
      %8138 = vmatpush.msra.mxu0 %v7980
      %8139 = vmatpush.msra.mxu0 %v7978
      %8140 = vmatpush.msra.mxu0 %v7976
      %8141 = vmatpush.msra.mxu0 %v7974
      %8142 = vmatpush.msra.mxu0 %v7972
      %8143 = vmatmul.f32.gmra.mxu0 %v7968
      %v8144 = vpop.f32.mrf.mxu0
      %v8145 = vadd.f32 0.0, %v8144
      %8146 = vdwg.mxu0
      %8147 = vmatpush.msra.mxu0 %v8034
      %8148 = vmatpush.msra.mxu0 %v8032
      %8149 = vmatpush.msra.mxu0 %v8030
      %8150 = vmatpush.msra.mxu0 %v8028
      %8151 = vmatpush.msra.mxu0 %v8026
      %8152 = vmatpush.msra.mxu0 %v8024
      %8153 = vmatpush.msra.mxu0 %v8022
      %8154 = vmatpush.msra.mxu0 %v8020
      %8155 = vmatpush.msra.mxu0 %v8018
      %8156 = vmatpush.msra.mxu0 %v8016
      %8157 = vmatpush.msra.mxu0 %v8014
      %8158 = vmatpush.msra.mxu0 %v8012
      %8159 = vmatpush.msra.mxu0 %v8010
      %8160 = vmatpush.msra.mxu0 %v8008
      %8161 = vmatpush.msra.mxu0 %v8006
      %8162 = vmatpush.msra.mxu0 %v8004
      %8163 = vmatmul.f32.gmra.mxu0 %v7969
      %v8164 = vpop.f32.mrf.mxu0
      %v8165 = vadd.f32 %v8145, %v8164
      %8166 = vdwg.mxu0
      %8167 = vmatpush.msra.mxu0 %v8066
      %8168 = vmatpush.msra.mxu0 %v8064
      %8169 = vmatpush.msra.mxu0 %v8062
      %8170 = vmatpush.msra.mxu0 %v8060
      %8171 = vmatpush.msra.mxu0 %v8058
      %8172 = vmatpush.msra.mxu0 %v8056
      %8173 = vmatpush.msra.mxu0 %v8054
      %8174 = vmatpush.msra.mxu0 %v8052
      %8175 = vmatpush.msra.mxu0 %v8050
      %8176 = vmatpush.msra.mxu0 %v8048
      %8177 = vmatpush.msra.mxu0 %v8046
      %8178 = vmatpush.msra.mxu0 %v8044
      %8179 = vmatpush.msra.mxu0 %v8042
      %8180 = vmatpush.msra.mxu0 %v8040
      %8181 = vmatpush.msra.mxu0 %v8038
      %8182 = vmatpush.msra.mxu0 %v8036
      %8183 = vmatmul.f32.gmra.mxu0 %v7970
      %v8184 = vpop.f32.mrf.mxu0
      %v8185 = vadd.f32 %v8165, %v8184
      %8186 = vdwg.mxu0
      %v8189 = vrot.slane %v8185, 4
      %vm8190 = vcmask 1043456
      %v8191 = vsel %vm8190, %v8125, %v8189
      %8193 = vst [vmem:[%s386] sm:$0x77] %v8191
      %p8194 = scmp.lt.s32.totalorder %s22, 1
      %s8195 = scalar_select %p8194, %s22, 1
      %s8196 = smul.addr %s8195, 2
      %s8197 = smul.addr %s8196, 4
      %s8198 = scalar_lea.vmem %s11, %s8197
      // Predicated region
      $region65: #{model_b_forward.1} parent=63 // pred_check
        %p8199 = pneg %p276
      $region66: #{model_b_forward.1} parent=63 // pred_check_branch
        %8201 = sbr.rel (%p8199) target = $region68
      $region67: #{model_b_forward.1} parent=63 // pred_region
        _
      $region68: #{model_b_forward.1} parent=63 // pred_fallthru
        _
    $region64: #{model_b_forward.1} parent=5 // pred_fallthru
      _
    %p8202 = scmp.le.s32.totalorder 2, %s17
    // Predicated region
    $region69: #{model_b_forward.1} parent=5 // pred_check
      %p8203 = pneg %p8202
    $region70: #{model_b_forward.1} parent=5 // pred_check_branch
      %8205 = sbr.rel (%p8203) target = $region72
    $region71: #{model_b_forward.1} parent=5 // pred_region
      %s8206 = ssub.s32 %s17, 2
      // Predicated region
      $region73: #{model_b_forward.1} parent=71 // pred_check
        %p8207 = pneg %p282
      $region74: #{model_b_forward.1} parent=71 // pred_check_branch
        %8209 = sbr.rel (%p8207) target = $region76
      $region75: #{model_b_forward.1} parent=71 // pred_region
        %p8210 = scmp.lt.s32.totalorder %s23, 1
        %s8211 = scalar_select %p8210, %s23, 1
        %s8212 = smul.addr %s8211, 2
        %s8213 = smul.addr %s8212, 4
        %s8214 = scalar_lea.vmem %s11, %s8213
      $region76: #{model_b_forward.1} parent=71 // pred_fallthru
        _
    $region72: #{model_b_forward.1} parent=5 // pred_fallthru
      _
  $region6: #{model_b_forward.1} parent=0 // loop_footer
    %s21 = sadd.s32 1, %s17
  $region7: #{model_b_forward.1} parent=0 // loop_footer_branch
    %16 = sbr.rel target = $region3
  $region8: #{model_b_forward.1} parent=0 // loop_exit
    _

</llo_original>
